<compile_context>
chip_gen: v7x
topology: tpu7x:2x2x1
jax: 0.10.0
libtpu: 0.0.40
codegen_flags: <defaults>
</compile_context>

<pallas_src>
import functools

import jax
import jax.numpy as jnp
from jax import lax
from jax.experimental import pallas as pl
from jax.experimental.pallas import tpu as pltpu

KSIZE = 5              # conv kernel size (config.KERNEL_SIZE)
PAD = 2                # reflection padding (config.PADDING)
CPAD = 64              # all layers channel-padded to 64 (lane-dense)
KDIM = KSIZE * CPAD    # K of each per-kernel-row matmul (kw-major, cin-minor)


# ---------------------------------------------------------------------------
# In-kernel helpers
# ---------------------------------------------------------------------------
def _kw_windows(core, W):
    """(TH, W, C) -> (TH, W, KSIZE*C).

    Concatenation along channels of the 5 kw-shifted windows of the
    column-reflection-padded (pad=2) rows of `core`.  Window kw covers padded
    columns [kw, kw+W); padded col p maps to source col 2-p (p<2), p-2, or
    2W-p-2... i.e. PyTorch ReflectionPad2d(2) semantics.
    """
    c = core
    wins = [
        jnp.concatenate([c[:, 2:3], c[:, 1:2], c[:, 0:W - 2]], axis=1),   # kw=0
        jnp.concatenate([c[:, 1:2], c[:, 0:W - 1]], axis=1),              # kw=1
        c,                                                                # kw=2
        jnp.concatenate([c[:, 1:W], c[:, W - 2:W - 1]], axis=1),          # kw=3
        jnp.concatenate([c[:, 2:W], c[:, W - 2:W - 1], c[:, W - 3:W - 2]],
                        axis=1),                                          # kw=4
    ]
    return jnp.concatenate(wins, axis=-1)


def _write_row_borders(pads_ref, buf, H):
    """Row reflection (pad=2): only the 4 thin border rows are copied."""
    pads_ref[buf, 0] = pads_ref[buf, 4]           # padded row 0  <- src row 2
    pads_ref[buf, 1] = pads_ref[buf, 3]           # padded row 1  <- src row 1
    pads_ref[buf, H + 2] = pads_ref[buf, H]       # padded H+2    <- src H-2
    pads_ref[buf, H + 3] = pads_ref[buf, H - 1]   # padded H+3    <- src H-3


def _sr_fused_kernel(x_ref, w_ref, o_ref, pads_ref, *, H, W, TH):
    # x_ref   : (1, H, W, CPAD)        bf16  channel-padded upsampled input
    # w_ref   : (8, 5, KDIM, CPAD)     bf16  all-layer weights (kw-major K)
    # o_ref   : (1, H, W, CPAD)        f32   layer-8 output (first 3 ch real)
    # pads_ref: (2, H+4, W, KDIM)      bf16  ping-pong kw-preconcat padded acts
    C = CPAD
    n_chunks = H // TH
    n_layers = w_ref.shape[0]

    # ---- stage 0: buffer 0 <- kw-preconcat reflection-pad of the input -----
    def init_chunk(c, carry):
        r0 = c * TH
        core = x_ref[0, pl.ds(r0, TH)]                       # (TH, W, C) bf16
        pads_ref[0, pl.ds(PAD + r0, TH)] = _kw_windows(core, W)
        return carry

    lax.fori_loop(0, n_chunks, init_chunk, 0)
    _write_row_borders(pads_ref, 0, H)

    # ---- layers 1..7: conv5x5 + ReLU, ping-pong between the two buffers ----
    def layer_body(l, carry):
        src = l % 2
        dst = 1 - src

        def chunk_body(c, inner):
            r0 = c * TH
            # kh=0 initializes the live f32 accumulator, kh=1..4 add into it.
            acc = jnp.dot(
                pads_ref[src, pl.ds(r0, TH)].reshape(TH * W, KDIM),
                w_ref[l, 0], preferred_element_type=jnp.float32)
            for kh in range(1, KSIZE):
                lhs = pads_ref[src, pl.ds(r0 + kh, TH)].reshape(TH * W, KDIM)
                acc = acc + jnp.dot(lhs, w_ref[l, kh],
                                    preferred_element_type=jnp.float32)
            core = jnp.maximum(acc, 0.0).astype(jnp.bfloat16).reshape(TH, W, C)
            # Write the next layer's padded activation directly (interior).
            pads_ref[dst, pl.ds(PAD + r0, TH)] = _kw_windows(core, W)
            return inner

        lax.fori_loop(0, n_chunks, chunk_body, 0)
        _write_row_borders(pads_ref, dst, H)
        return carry

    lax.fori_loop(0, n_layers - 1, layer_body, 0)

    # ---- layer 8: conv5x5, no ReLU, lane-dense f32 output -------------------
    src8 = (n_layers - 1) % 2                                # static (=1)

    def last_chunk(c, carry):
        r0 = c * TH
        acc = jnp.dot(
            pads_ref[src8, pl.ds(r0, TH)].reshape(TH * W, KDIM),
            w_ref[n_layers - 1, 0], preferred_element_type=jnp.float32)
        for kh in range(1, KSIZE):
            lhs = pads_ref[src8, pl.ds(r0 + kh, TH)].reshape(TH * W, KDIM)
            acc = acc + jnp.dot(lhs, w_ref[n_layers - 1, kh],
                                preferred_element_type=jnp.float32)
        o_ref[0, pl.ds(r0, TH)] = acc.reshape(TH, W, C)
        return carry

    lax.fori_loop(0, n_chunks, last_chunk, 0)


# ---------------------------------------------------------------------------
# Weight preparation: zero-pad channels to CPAD, flatten (kw, cin), cast bf16
# ---------------------------------------------------------------------------
def prepare_weights(params):
    ws = []
    for w in params:                                     # (5, 5, cin, cout) f32
        cin, cout = w.shape[2], w.shape[3]
        wp = jnp.pad(w, ((0, 0), (0, 0), (0, CPAD - cin), (0, CPAD - cout)))
        # (kh, kw, cin, cout) -> (kh, kw*cin, cout); matches _kw_windows order.
        ws.append(wp.reshape(KSIZE, KDIM, CPAD))
    return jnp.stack(ws, axis=0).astype(jnp.bfloat16)    # (8, 5, 320, 64)


# ---------------------------------------------------------------------------
# Glue: bilinear upsample with align_corners=True (nn.UpsamplingBilinear2d)
# ---------------------------------------------------------------------------
def upsample_bilinear_align_corners(x_nhwc, scale):
    N, H, W, C = x_nhwc.shape
    Ho, Wo = H * scale, W * scale

    def coords(out_size, in_size):
        if out_size == 1 or in_size == 1:
            z = jnp.zeros((out_size,), jnp.float32)
            zi = jnp.zeros((out_size,), jnp.int32)
            return z, zi, zi
        src = jnp.arange(out_size, dtype=jnp.float32) * (in_size - 1) / (out_size - 1)
        lo = jnp.floor(src).astype(jnp.int32)
        hi = jnp.minimum(lo + 1, in_size - 1)
        return src - lo.astype(jnp.float32), lo, hi

    fh, hlo, hhi = coords(Ho, H)
    fw, wlo, whi = coords(Wo, W)

    top = x_nhwc[:, hlo, :, :]
    bot = x_nhwc[:, hhi, :, :]
    v = top * (1.0 - fh)[None, :, None, None] + bot * fh[None, :, None, None]
    left = v[:, :, wlo, :]
    right = v[:, :, whi, :]
    return (left * (1.0 - fw)[None, None, :, None]
            + right * fw[None, None, :, None])


# ---------------------------------------------------------------------------
# Model: parameters + forward
# ---------------------------------------------------------------------------
def init_params(key):
    layer_chans = [(3, 64)] + [(64, 64)] * 6 + [(64, 3)]
    keys = jax.random.split(key, len(layer_chans))
    params = []
    for k, (cin, cout) in zip(keys, layer_chans):
        fan_in = cin * KSIZE * KSIZE
        w = jax.random.normal(k, (KSIZE, KSIZE, cin, cout), jnp.float32)
        params.append(w * (2.0 / fan_in) ** 0.5)
    return params


def _pick_row_chunk(H, W):
    # Keep the per-chunk f32 accumulator around <= 64 KB (~16 vregs).
    for th in (8, 4, 2):
        if H % th == 0 and th * W <= 256:
            return th
    return 1


def sr_model_forward(x_nchw, params, scale_factor=2):
    x = jnp.transpose(x_nchw, (0, 2, 3, 1))                  # NCHW -> NHWC
    up = upsample_bilinear_align_corners(x, scale_factor)    # (N,H,W,3) f32
    N, H, W, Cin = up.shape
    assert H >= 3 and W >= 3, "reflection pad (2) needs spatial dims >= 3"
    # NOTE: W should be a multiple of 8 for free (TH,W,K)<->(TH*W,K) reshapes.

    # Lane-dense kernel input: channel-pad 3->64, cast bf16 in XLA (fuses with
    # the upsample gather; removes 3-lane masked loads / tiny strided DMAs).
    x_in = jnp.pad(up.astype(jnp.bfloat16),
                   ((0, 0), (0, 0), (0, 0), (0, CPAD - Cin)))
    w = prepare_weights(params)                              # (8,5,320,64) bf16

    TH = _pick_row_chunk(H, W)

    # Explicit VMEM budget: ping-pong pads + double-buffered weights/in/out.
    pads_bytes = 2 * (H + 2 * PAD) * W * KDIM * 2
    w_bytes = 2 * 8 * KSIZE * KDIM * CPAD * 2
    io_bytes = 2 * H * W * CPAD * (2 + 4)
    vmem_limit = int(min(pads_bytes + w_bytes + io_bytes + (16 << 20), 96 << 20))

    conv_out = pl.pallas_call(
        functools.partial(_sr_fused_kernel, H=H, W=W, TH=TH),
        out_shape=jax.ShapeDtypeStruct((N, H, W, CPAD), jnp.float32),
        grid=(N,),
        in_specs=[
            pl.BlockSpec((1, H, W, CPAD), lambda b: (b, 0, 0, 0)),
            pl.BlockSpec((8, KSIZE, KDIM, CPAD), lambda b: (0, 0, 0, 0)),
        ],
        out_specs=pl.BlockSpec((1, H, W, CPAD), lambda b: (b, 0, 0, 0)),
        scratch_shapes=[
            pltpu.VMEM((2, H + 2 * PAD, W, KDIM), jnp.bfloat16),
        ],
        compiler_params=pltpu.CompilerParams(
            dimension_semantics=("parallel",),
            vmem_limit_bytes=vmem_limit),
    )(x_in, w)

    # Slice the 3 real channels, residual add and layout change stay in XLA.
    out = conv_out[..., :Cin] + up
    return jnp.transpose(out, (0, 3, 1, 2))                  # NHWC -> NCHW


# ---------------------------------------------------------------------------
# Pure-JAX reference (bf16 MXU operands, f32 accumulation — mirrors kernel
# quantization points but uses XLA's conv, i.e. an independent reduction order)
# ---------------------------------------------------------------------------
def reference_forward(x_nchw, params, scale_factor=2):
    x = jnp.transpose(x_nchw, (0, 2, 3, 1))
    up = upsample_bilinear_align_corners(x, scale_factor)
    out = up
    for i, w in enumerate(params):
        xp = jnp.pad(out, ((0, 0), (PAD, PAD), (PAD, PAD), (0, 0)),
                     mode="reflect").astype(jnp.bfloat16)
        out = lax.conv_general_dilated(
            xp, w.astype(jnp.bfloat16), window_strides=(1, 1), padding="VALID",
            dimension_numbers=("NHWC", "HWIO", "NHWC"),
            preferred_element_type=jnp.float32)
        if i < 7:
            out = jnp.maximum(out, 0.0)
    out = out + up
    return jnp.transpose(out, (0, 3, 1, 2))


if __name__ == "__main__":
    key = jax.random.PRNGKey(0)
    k_params, k_x = jax.random.split(key)

    params = init_params(k_params)
    x = jax.random.normal(k_x, (2, 3, 16, 16), jnp.float32)  # NCHW like PyTorch
    scale = 2

    fwd = jax.jit(functools.partial(sr_model_forward, scale_factor=scale))
    out = jax.block_until_ready(fwd(x, params))

    ref = jax.block_until_ready(reference_forward(x, params, scale_factor=scale))

    assert out.shape == (2, 3, 16 * scale, 16 * scale), out.shape
    max_err = float(jnp.max(jnp.abs(out - ref)))
    mean_err = float(jnp.mean(jnp.abs(out - ref)))
    max_ref = float(jnp.max(jnp.abs(ref)))
    mean_ref = float(jnp.mean(jnp.abs(ref)))
    # bf16 activations through an 8-conv chain, compared against an
    # independent XLA conv reference with a different f32 reduction order:
    # worst-case per-element drift is a few percent of the output scale, while
    # real indexing/layout bugs produce O(|ref|) errors everywhere.
    assert max_err <= 3e-2 + 3e-2 * max_ref, (max_err, max_ref)
    assert mean_err <= 1e-2 * (1.0 + mean_ref), (mean_err, mean_ref)
    print("KERNEL_OK")
</pallas_src>

<mosaic_0001>
module attributes {stable_mosaic.version = 11 : i64} {
  func.func @_sr_fused_kernel(%arg0: i32, %arg1: memref<1x32x32x64xbf16, #tpu.memory_space<vmem>>, %arg2: memref<8x5x320x64xbf16, #tpu.memory_space<vmem>>, %arg3: memref<1x32x32x64xf32, #tpu.memory_space<vmem>>, %arg4: memref<2x36x32x320xbf16, #tpu.memory_space<vmem>>) attributes {dimension_semantics = [#tpu.dimension_semantics<parallel>], iteration_bounds = array<i64: 2>, scalar_prefetch = 0 : i64, scratch_operands = 1 : i64, tpu.core_type = #tpu.core_type<tc>, window_params = [{transform_indices = @transform_0, window_bounds = array<i64: 1, 32, 32, 64>}, {pipeline_mode = #tpu.pipeline_mode<synchronous>, transform_indices = @transform_1, window_bounds = array<i64: 8, 5, 320, 64>}, {transform_indices = @transform_2, window_bounds = array<i64: 1, 32, 32, 64>}]} {
    %c0_i32 = arith.constant 0 : i32
    %c4_i32 = arith.constant 4 : i32
    %0 = arith.addi %c0_i32, %c4_i32 : i32
    %c1_i32 = arith.constant 1 : i32
    scf.for %arg5 = %c0_i32 to %0 step %c1_i32  : i32 {
      %c8_i32 = arith.constant 8 : i32
      %23 = arith.muli %arg5, %c8_i32 : i32
      %c0_32 = arith.constant 0 : index
      %24 = arith.index_cast %23 : i32 to index
      %c0_33 = arith.constant 0 : index
      %c0_34 = arith.constant 0 : index
      %25 = vector.load %arg1[%c0_32, %24, %c0_33, %c0_34] : memref<1x32x32x64xbf16, #tpu.memory_space<vmem>>, vector<1x8x32x64xbf16>
      %26 = vector.shape_cast %25 : vector<1x8x32x64xbf16> to vector<8x32x64xbf16>
      %27 = vector.extract_strided_slice %26 {offsets = [0, 2, 0], sizes = [8, 1, 64], strides = [1, 1, 1]} : vector<8x32x64xbf16> to vector<8x1x64xbf16>
      %28 = vector.extract_strided_slice %26 {offsets = [0, 1, 0], sizes = [8, 1, 64], strides = [1, 1, 1]} : vector<8x32x64xbf16> to vector<8x1x64xbf16>
      %29 = vector.extract_strided_slice %26 {offsets = [0, 0, 0], sizes = [8, 30, 64], strides = [1, 1, 1]} : vector<8x32x64xbf16> to vector<8x30x64xbf16>
      %30 = tpu.concatenate %27, %28, %29 in 1 : vector<8x1x64xbf16>, vector<8x1x64xbf16>, vector<8x30x64xbf16> -> vector<8x32x64xbf16>
      %31 = vector.extract_strided_slice %26 {offsets = [0, 1, 0], sizes = [8, 1, 64], strides = [1, 1, 1]} : vector<8x32x64xbf16> to vector<8x1x64xbf16>
      %32 = vector.extract_strided_slice %26 {offsets = [0, 0, 0], sizes = [8, 31, 64], strides = [1, 1, 1]} : vector<8x32x64xbf16> to vector<8x31x64xbf16>
      %33 = tpu.concatenate %31, %32 in 1 : vector<8x1x64xbf16>, vector<8x31x64xbf16> -> vector<8x32x64xbf16>
      %34 = vector.extract_strided_slice %26 {offsets = [0, 1, 0], sizes = [8, 31, 64], strides = [1, 1, 1]} : vector<8x32x64xbf16> to vector<8x31x64xbf16>
      %35 = vector.extract_strided_slice %26 {offsets = [0, 30, 0], sizes = [8, 1, 64], strides = [1, 1, 1]} : vector<8x32x64xbf16> to vector<8x1x64xbf16>
      %36 = tpu.concatenate %34, %35 in 1 : vector<8x31x64xbf16>, vector<8x1x64xbf16> -> vector<8x32x64xbf16>
      %37 = vector.extract_strided_slice %26 {offsets = [0, 2, 0], sizes = [8, 30, 64], strides = [1, 1, 1]} : vector<8x32x64xbf16> to vector<8x30x64xbf16>
      %38 = vector.extract_strided_slice %26 {offsets = [0, 30, 0], sizes = [8, 1, 64], strides = [1, 1, 1]} : vector<8x32x64xbf16> to vector<8x1x64xbf16>
      %39 = vector.extract_strided_slice %26 {offsets = [0, 29, 0], sizes = [8, 1, 64], strides = [1, 1, 1]} : vector<8x32x64xbf16> to vector<8x1x64xbf16>
      %40 = tpu.concatenate %37, %38, %39 in 1 : vector<8x30x64xbf16>, vector<8x1x64xbf16>, vector<8x1x64xbf16> -> vector<8x32x64xbf16>
      %41 = tpu.concatenate %30, %33, %26, %36, %40 in 2 : vector<8x32x64xbf16>, vector<8x32x64xbf16>, vector<8x32x64xbf16>, vector<8x32x64xbf16>, vector<8x32x64xbf16> -> vector<8x32x320xbf16>
      %c2_i32 = arith.constant 2 : i32
      %42 = arith.addi %c2_i32, %23 : i32
      %c0_35 = arith.constant 0 : index
      %43 = arith.index_cast %42 : i32 to index
      %c0_36 = arith.constant 0 : index
      %c0_37 = arith.constant 0 : index
      %44 = vector.load %arg4[%c0_35, %43, %c0_36, %c0_37] : memref<2x36x32x320xbf16, #tpu.memory_space<vmem>>, vector<1x8x32x320xbf16>
      %45 = vector.shape_cast %44 : vector<1x8x32x320xbf16> to vector<8x32x320xbf16>
      %46 = vector.shape_cast %41 : vector<8x32x320xbf16> to vector<1x8x32x320xbf16>
      tpu.vector_store %arg4[%c0_35, %43, %c0_36, %c0_37], %46 {strides = array<i32>} : memref<2x36x32x320xbf16, #tpu.memory_space<vmem>>, vector<1x8x32x320xbf16>,
    }
    %c4_i32_0 = arith.constant 4 : i32
    %c0 = arith.constant 0 : index
    %c4 = arith.constant 4 : index
    %c0_1 = arith.constant 0 : index
    %c0_2 = arith.constant 0 : index
    %1 = vector.load %arg4[%c0, %c4, %c0_1, %c0_2] : memref<2x36x32x320xbf16, #tpu.memory_space<vmem>>, vector<1x1x32x320xbf16>
    %2 = vector.shape_cast %1 : vector<1x1x32x320xbf16> to vector<32x320xbf16>
    %c0_3 = arith.constant 0 : index
    %c0_4 = arith.constant 0 : index
    %c0_5 = arith.constant 0 : index
    %c0_6 = arith.constant 0 : index
    %3 = vector.load %arg4[%c0_3, %c0_4, %c0_5, %c0_6] : memref<2x36x32x320xbf16, #tpu.memory_space<vmem>>, vector<1x1x32x320xbf16>
    %4 = vector.shape_cast %3 : vector<1x1x32x320xbf16> to vector<32x320xbf16>
    %5 = vector.shape_cast %2 : vector<32x320xbf16> to vector<1x1x32x320xbf16>
    tpu.vector_store %arg4[%c0_3, %c0_4, %c0_5, %c0_6], %5 {strides = array<i32>} : memref<2x36x32x320xbf16, #tpu.memory_space<vmem>>, vector<1x1x32x320xbf16>,
    %c0_7 = arith.constant 0 : index
    %c3 = arith.constant 3 : index
    %c0_8 = arith.constant 0 : index
    %c0_9 = arith.constant 0 : index
    %6 = vector.load %arg4[%c0_7, %c3, %c0_8, %c0_9] : memref<2x36x32x320xbf16, #tpu.memory_space<vmem>>, vector<1x1x32x320xbf16>
    %7 = vector.shape_cast %6 : vector<1x1x32x320xbf16> to vector<32x320xbf16>
    %c0_10 = arith.constant 0 : index
    %c1 = arith.constant 1 : index
    %c0_11 = arith.constant 0 : index
    %c0_12 = arith.constant 0 : index
    %8 = vector.load %arg4[%c0_10, %c1, %c0_11, %c0_12] : memref<2x36x32x320xbf16, #tpu.memory_space<vmem>>, vector<1x1x32x320xbf16>
    %9 = vector.shape_cast %8 : vector<1x1x32x320xbf16> to vector<32x320xbf16>
    %10 = vector.shape_cast %7 : vector<32x320xbf16> to vector<1x1x32x320xbf16>
    tpu.vector_store %arg4[%c0_10, %c1, %c0_11, %c0_12], %10 {strides = array<i32>} : memref<2x36x32x320xbf16, #tpu.memory_space<vmem>>, vector<1x1x32x320xbf16>,
    %c0_13 = arith.constant 0 : index
    %c32 = arith.constant 32 : index
    %c0_14 = arith.constant 0 : index
    %c0_15 = arith.constant 0 : index
    %11 = vector.load %arg4[%c0_13, %c32, %c0_14, %c0_15] : memref<2x36x32x320xbf16, #tpu.memory_space<vmem>>, vector<1x1x32x320xbf16>
    %12 = vector.shape_cast %11 : vector<1x1x32x320xbf16> to vector<32x320xbf16>
    %c0_16 = arith.constant 0 : index
    %c34 = arith.constant 34 : index
    %c0_17 = arith.constant 0 : index
    %c0_18 = arith.constant 0 : index
    %13 = vector.load %arg4[%c0_16, %c34, %c0_17, %c0_18] : memref<2x36x32x320xbf16, #tpu.memory_space<vmem>>, vector<1x1x32x320xbf16>
    %14 = vector.shape_cast %13 : vector<1x1x32x320xbf16> to vector<32x320xbf16>
    %15 = vector.shape_cast %12 : vector<32x320xbf16> to vector<1x1x32x320xbf16>
    tpu.vector_store %arg4[%c0_16, %c34, %c0_17, %c0_18], %15 {strides = array<i32>} : memref<2x36x32x320xbf16, #tpu.memory_space<vmem>>, vector<1x1x32x320xbf16>,
    %c0_19 = arith.constant 0 : index
    %c31 = arith.constant 31 : index
    %c0_20 = arith.constant 0 : index
    %c0_21 = arith.constant 0 : index
    %16 = vector.load %arg4[%c0_19, %c31, %c0_20, %c0_21] : memref<2x36x32x320xbf16, #tpu.memory_space<vmem>>, vector<1x1x32x320xbf16>
    %17 = vector.shape_cast %16 : vector<1x1x32x320xbf16> to vector<32x320xbf16>
    %c0_22 = arith.constant 0 : index
    %c35 = arith.constant 35 : index
    %c0_23 = arith.constant 0 : index
    %c0_24 = arith.constant 0 : index
    %18 = vector.load %arg4[%c0_22, %c35, %c0_23, %c0_24] : memref<2x36x32x320xbf16, #tpu.memory_space<vmem>>, vector<1x1x32x320xbf16>
    %19 = vector.shape_cast %18 : vector<1x1x32x320xbf16> to vector<32x320xbf16>
    %20 = vector.shape_cast %17 : vector<32x320xbf16> to vector<1x1x32x320xbf16>
    tpu.vector_store %arg4[%c0_22, %c35, %c0_23, %c0_24], %20 {strides = array<i32>} : memref<2x36x32x320xbf16, #tpu.memory_space<vmem>>, vector<1x1x32x320xbf16>,
    %c0_i32_25 = arith.constant 0 : i32
    %c7_i32 = arith.constant 7 : i32
    %21 = arith.addi %c0_i32_25, %c7_i32 : i32
    %c1_i32_26 = arith.constant 1 : i32
    scf.for %arg5 = %c0_i32_25 to %21 step %c1_i32_26  : i32 {
      %c2_i32 = arith.constant 2 : i32
      %c0_i32_32 = arith.constant 0 : i32
      %23 = arith.cmpi eq, %c2_i32, %c0_i32_32 : i32
      %c1_i32_33 = arith.constant 1 : i32
      %24 = arith.select %23, %c1_i32_33, %c2_i32 : i32
      %25 = arith.remsi %arg5, %24 : i32
      %c0_i32_34 = arith.constant 0 : i32
      %26 = arith.cmpi ne, %25, %c0_i32_34 : i32
      %c0_i32_35 = arith.constant 0 : i32
      %27 = arith.cmpi slt, %25, %c0_i32_35 : i32
      %c0_i32_36 = arith.constant 0 : i32
      %28 = arith.cmpi slt, %24, %c0_i32_36 : i32
      %29 = arith.xori %27, %28 : i1
      %30 = arith.andi %29, %26 : i1
      %31 = arith.addi %25, %24 : i32
      %32 = arith.select %30, %31, %25 : i32
      %c1_i32_37 = arith.constant 1 : i32
      %33 = arith.subi %c1_i32_37, %32 : i32
      %c0_i32_38 = arith.constant 0 : i32
      %c4_i32_39 = arith.constant 4 : i32
      %34 = arith.addi %c0_i32_38, %c4_i32_39 : i32
      %c1_i32_40 = arith.constant 1 : i32
      scf.for %arg6 = %c0_i32_38 to %34 step %c1_i32_40  : i32 {
        %c8_i32 = arith.constant 8 : i32
        %63 = arith.muli %arg6, %c8_i32 : i32
        %64 = arith.index_cast %32 : i32 to index
        %65 = arith.index_cast %63 : i32 to index
        %c0_66 = arith.constant 0 : index
        %c0_67 = arith.constant 0 : index
        %66 = vector.load %arg4[%64, %65, %c0_66, %c0_67] : memref<2x36x32x320xbf16, #tpu.memory_space<vmem>>, vector<1x8x32x320xbf16>
        %67 = vector.shape_cast %66 : vector<1x8x32x320xbf16> to vector<8x32x320xbf16>
        %68 = vector.shape_cast %67 : vector<8x32x320xbf16> to vector<256x320xbf16>
        %69 = arith.index_cast %arg5 : i32 to index
        %c0_68 = arith.constant 0 : index
        %c0_69 = arith.constant 0 : index
        %c0_70 = arith.constant 0 : index
        %70 = vector.load %arg2[%69, %c0_68, %c0_69, %c0_70] : memref<8x5x320x64xbf16, #tpu.memory_space<vmem>>, vector<1x1x320x64xbf16>
        %71 = vector.shape_cast %70 : vector<1x1x320x64xbf16> to vector<320x64xbf16>
        %cst = arith.constant dense<0.000000e+00> : vector<256x64xf32>
        %72 = tpu.matmul %68, %71, %cst {dimension_numbers = #tpu.dot_dimension_numbers<[1], [0], [0], [1], [0, 0, 1, 1], [], []>} : vector<256x320xbf16>, vector<320x64xbf16>, vector<256x64xf32> -> vector<256x64xf32>
        %c1_i32_71 = arith.constant 1 : i32
        %73 = arith.addi %63, %c1_i32_71 : i32
        %74 = arith.index_cast %32 : i32 to index
        %75 = arith.index_cast %73 : i32 to index
        %c0_72 = arith.constant 0 : index
        %c0_73 = arith.constant 0 : index
        %76 = vector.load %arg4[%74, %75, %c0_72, %c0_73] : memref<2x36x32x320xbf16, #tpu.memory_space<vmem>>, vector<1x8x32x320xbf16>
        %77 = vector.shape_cast %76 : vector<1x8x32x320xbf16> to vector<8x32x320xbf16>
        %78 = vector.shape_cast %77 : vector<8x32x320xbf16> to vector<256x320xbf16>
        %79 = arith.index_cast %arg5 : i32 to index
        %c1_74 = arith.constant 1 : index
        %c0_75 = arith.constant 0 : index
        %c0_76 = arith.constant 0 : index
        %80 = vector.load %arg2[%79, %c1_74, %c0_75, %c0_76] : memref<8x5x320x64xbf16, #tpu.memory_space<vmem>>, vector<1x1x320x64xbf16>
        %81 = vector.shape_cast %80 : vector<1x1x320x64xbf16> to vector<320x64xbf16>
        %cst_77 = arith.constant dense<0.000000e+00> : vector<256x64xf32>
        %82 = tpu.matmul %78, %81, %cst_77 {dimension_numbers = #tpu.dot_dimension_numbers<[1], [0], [0], [1], [0, 0, 1, 1], [], []>} : vector<256x320xbf16>, vector<320x64xbf16>, vector<256x64xf32> -> vector<256x64xf32>
        %83 = arith.addf %72, %82 : vector<256x64xf32>
        %c2_i32_78 = arith.constant 2 : i32
        %84 = arith.addi %63, %c2_i32_78 : i32
        %85 = arith.index_cast %32 : i32 to index
        %86 = arith.index_cast %84 : i32 to index
        %c0_79 = arith.constant 0 : index
        %c0_80 = arith.constant 0 : index
        %87 = vector.load %arg4[%85, %86, %c0_79, %c0_80] : memref<2x36x32x320xbf16, #tpu.memory_space<vmem>>, vector<1x8x32x320xbf16>
        %88 = vector.shape_cast %87 : vector<1x8x32x320xbf16> to vector<8x32x320xbf16>
        %89 = vector.shape_cast %88 : vector<8x32x320xbf16> to vector<256x320xbf16>
        %90 = arith.index_cast %arg5 : i32 to index
        %c2 = arith.constant 2 : index
        %c0_81 = arith.constant 0 : index
        %c0_82 = arith.constant 0 : index
        %91 = vector.load %arg2[%90, %c2, %c0_81, %c0_82] : memref<8x5x320x64xbf16, #tpu.memory_space<vmem>>, vector<1x1x320x64xbf16>
        %92 = vector.shape_cast %91 : vector<1x1x320x64xbf16> to vector<320x64xbf16>
        %cst_83 = arith.constant dense<0.000000e+00> : vector<256x64xf32>
        %93 = tpu.matmul %89, %92, %cst_83 {dimension_numbers = #tpu.dot_dimension_numbers<[1], [0], [0], [1], [0, 0, 1, 1], [], []>} : vector<256x320xbf16>, vector<320x64xbf16>, vector<256x64xf32> -> vector<256x64xf32>
        %94 = arith.addf %83, %93 : vector<256x64xf32>
        %c3_i32 = arith.constant 3 : i32
        %95 = arith.addi %63, %c3_i32 : i32
        %96 = arith.index_cast %32 : i32 to index
        %97 = arith.index_cast %95 : i32 to index
        %c0_84 = arith.constant 0 : index
        %c0_85 = arith.constant 0 : index
        %98 = vector.load %arg4[%96, %97, %c0_84, %c0_85] : memref<2x36x32x320xbf16, #tpu.memory_space<vmem>>, vector<1x8x32x320xbf16>
        %99 = vector.shape_cast %98 : vector<1x8x32x320xbf16> to vector<8x32x320xbf16>
        %100 = vector.shape_cast %99 : vector<8x32x320xbf16> to vector<256x320xbf16>
        %101 = arith.index_cast %arg5 : i32 to index
        %c3_86 = arith.constant 3 : index
        %c0_87 = arith.constant 0 : index
        %c0_88 = arith.constant 0 : index
        %102 = vector.load %arg2[%101, %c3_86, %c0_87, %c0_88] : memref<8x5x320x64xbf16, #tpu.memory_space<vmem>>, vector<1x1x320x64xbf16>
        %103 = vector.shape_cast %102 : vector<1x1x320x64xbf16> to vector<320x64xbf16>
        %cst_89 = arith.constant dense<0.000000e+00> : vector<256x64xf32>
        %104 = tpu.matmul %100, %103, %cst_89 {dimension_numbers = #tpu.dot_dimension_numbers<[1], [0], [0], [1], [0, 0, 1, 1], [], []>} : vector<256x320xbf16>, vector<320x64xbf16>, vector<256x64xf32> -> vector<256x64xf32>
        %105 = arith.addf %94, %104 : vector<256x64xf32>
        %c4_i32_90 = arith.constant 4 : i32
        %106 = arith.addi %63, %c4_i32_90 : i32
        %107 = arith.index_cast %32 : i32 to index
        %108 = arith.index_cast %106 : i32 to index
        %c0_91 = arith.constant 0 : index
        %c0_92 = arith.constant 0 : index
        %109 = vector.load %arg4[%107, %108, %c0_91, %c0_92] : memref<2x36x32x320xbf16, #tpu.memory_space<vmem>>, vector<1x8x32x320xbf16>
        %110 = vector.shape_cast %109 : vector<1x8x32x320xbf16> to vector<8x32x320xbf16>
        %111 = vector.shape_cast %110 : vector<8x32x320xbf16> to vector<256x320xbf16>
        %112 = arith.index_cast %arg5 : i32 to index
        %c4_93 = arith.constant 4 : index
        %c0_94 = arith.constant 0 : index
        %c0_95 = arith.constant 0 : index
        %113 = vector.load %arg2[%112, %c4_93, %c0_94, %c0_95] : memref<8x5x320x64xbf16, #tpu.memory_space<vmem>>, vector<1x1x320x64xbf16>
        %114 = vector.shape_cast %113 : vector<1x1x320x64xbf16> to vector<320x64xbf16>
        %cst_96 = arith.constant dense<0.000000e+00> : vector<256x64xf32>
        %115 = tpu.matmul %111, %114, %cst_96 {dimension_numbers = #tpu.dot_dimension_numbers<[1], [0], [0], [1], [0, 0, 1, 1], [], []>} : vector<256x320xbf16>, vector<320x64xbf16>, vector<256x64xf32> -> vector<256x64xf32>
        %116 = arith.addf %105, %115 : vector<256x64xf32>
        %cst_97 = arith.constant 0.000000e+00 : f32
        %117 = vector.broadcast %cst_97 : f32 to vector<256x64xf32>
        %118 = arith.maximumf %116, %117 : vector<256x64xf32>
        %119 = arith.truncf %118 : vector<256x64xf32> to vector<256x64xbf16>
        %120 = vector.shape_cast %119 : vector<256x64xbf16> to vector<8x32x64xbf16>
        %121 = vector.extract_strided_slice %120 {offsets = [0, 2, 0], sizes = [8, 1, 64], strides = [1, 1, 1]} : vector<8x32x64xbf16> to vector<8x1x64xbf16>
        %122 = vector.extract_strided_slice %120 {offsets = [0, 1, 0], sizes = [8, 1, 64], strides = [1, 1, 1]} : vector<8x32x64xbf16> to vector<8x1x64xbf16>
        %123 = vector.extract_strided_slice %120 {offsets = [0, 0, 0], sizes = [8, 30, 64], strides = [1, 1, 1]} : vector<8x32x64xbf16> to vector<8x30x64xbf16>
        %124 = tpu.concatenate %121, %122, %123 in 1 : vector<8x1x64xbf16>, vector<8x1x64xbf16>, vector<8x30x64xbf16> -> vector<8x32x64xbf16>
        %125 = vector.extract_strided_slice %120 {offsets = [0, 1, 0], sizes = [8, 1, 64], strides = [1, 1, 1]} : vector<8x32x64xbf16> to vector<8x1x64xbf16>
        %126 = vector.extract_strided_slice %120 {offsets = [0, 0, 0], sizes = [8, 31, 64], strides = [1, 1, 1]} : vector<8x32x64xbf16> to vector<8x31x64xbf16>
        %127 = tpu.concatenate %125, %126 in 1 : vector<8x1x64xbf16>, vector<8x31x64xbf16> -> vector<8x32x64xbf16>
        %128 = vector.extract_strided_slice %120 {offsets = [0, 1, 0], sizes = [8, 31, 64], strides = [1, 1, 1]} : vector<8x32x64xbf16> to vector<8x31x64xbf16>
        %129 = vector.extract_strided_slice %120 {offsets = [0, 30, 0], sizes = [8, 1, 64], strides = [1, 1, 1]} : vector<8x32x64xbf16> to vector<8x1x64xbf16>
        %130 = tpu.concatenate %128, %129 in 1 : vector<8x31x64xbf16>, vector<8x1x64xbf16> -> vector<8x32x64xbf16>
        %131 = vector.extract_strided_slice %120 {offsets = [0, 2, 0], sizes = [8, 30, 64], strides = [1, 1, 1]} : vector<8x32x64xbf16> to vector<8x30x64xbf16>
        %132 = vector.extract_strided_slice %120 {offsets = [0, 30, 0], sizes = [8, 1, 64], strides = [1, 1, 1]} : vector<8x32x64xbf16> to vector<8x1x64xbf16>
        %133 = vector.extract_strided_slice %120 {offsets = [0, 29, 0], sizes = [8, 1, 64], strides = [1, 1, 1]} : vector<8x32x64xbf16> to vector<8x1x64xbf16>
        %134 = tpu.concatenate %131, %132, %133 in 1 : vector<8x30x64xbf16>, vector<8x1x64xbf16>, vector<8x1x64xbf16> -> vector<8x32x64xbf16>
        %135 = tpu.concatenate %124, %127, %120, %130, %134 in 2 : vector<8x32x64xbf16>, vector<8x32x64xbf16>, vector<8x32x64xbf16>, vector<8x32x64xbf16>, vector<8x32x64xbf16> -> vector<8x32x320xbf16>
        %c2_i32_98 = arith.constant 2 : i32
        %136 = arith.addi %c2_i32_98, %63 : i32
        %137 = arith.index_cast %33 : i32 to index
        %138 = arith.index_cast %136 : i32 to index
        %c0_99 = arith.constant 0 : index
        %c0_100 = arith.constant 0 : index
        %139 = vector.load %arg4[%137, %138, %c0_99, %c0_100] : memref<2x36x32x320xbf16, #tpu.memory_space<vmem>>, vector<1x8x32x320xbf16>
        %140 = vector.shape_cast %139 : vector<1x8x32x320xbf16> to vector<8x32x320xbf16>
        %141 = vector.shape_cast %135 : vector<8x32x320xbf16> to vector<1x8x32x320xbf16>
        tpu.vector_store %arg4[%137, %138, %c0_99, %c0_100], %141 {strides = array<i32>} : memref<2x36x32x320xbf16, #tpu.memory_space<vmem>>, vector<1x8x32x320xbf16>,
      }
      %c4_i32_41 = arith.constant 4 : i32
      %35 = arith.index_cast %33 : i32 to index
      %c4_42 = arith.constant 4 : index
      %c0_43 = arith.constant 0 : index
      %c0_44 = arith.constant 0 : index
      %36 = vector.load %arg4[%35, %c4_42, %c0_43, %c0_44] : memref<2x36x32x320xbf16, #tpu.memory_space<vmem>>, vector<1x1x32x320xbf16>
      %37 = vector.shape_cast %36 : vector<1x1x32x320xbf16> to vector<32x320xbf16>
      %38 = arith.index_cast %33 : i32 to index
      %c0_45 = arith.constant 0 : index
      %c0_46 = arith.constant 0 : index
      %c0_47 = arith.constant 0 : index
      %39 = vector.load %arg4[%38, %c0_45, %c0_46, %c0_47] : memref<2x36x32x320xbf16, #tpu.memory_space<vmem>>, vector<1x1x32x320xbf16>
      %40 = vector.shape_cast %39 : vector<1x1x32x320xbf16> to vector<32x320xbf16>
      %41 = vector.shape_cast %37 : vector<32x320xbf16> to vector<1x1x32x320xbf16>
      tpu.vector_store %arg4[%38, %c0_45, %c0_46, %c0_47], %41 {strides = array<i32>} : memref<2x36x32x320xbf16, #tpu.memory_space<vmem>>, vector<1x1x32x320xbf16>,
      %42 = arith.index_cast %33 : i32 to index
      %c3_48 = arith.constant 3 : index
      %c0_49 = arith.constant 0 : index
      %c0_50 = arith.constant 0 : index
      %43 = vector.load %arg4[%42, %c3_48, %c0_49, %c0_50] : memref<2x36x32x320xbf16, #tpu.memory_space<vmem>>, vector<1x1x32x320xbf16>
      %44 = vector.shape_cast %43 : vector<1x1x32x320xbf16> to vector<32x320xbf16>
      %45 = arith.index_cast %33 : i32 to index
      %c1_51 = arith.constant 1 : index
      %c0_52 = arith.constant 0 : index
      %c0_53 = arith.constant 0 : index
      %46 = vector.load %arg4[%45, %c1_51, %c0_52, %c0_53] : memref<2x36x32x320xbf16, #tpu.memory_space<vmem>>, vector<1x1x32x320xbf16>
      %47 = vector.shape_cast %46 : vector<1x1x32x320xbf16> to vector<32x320xbf16>
      %48 = vector.shape_cast %44 : vector<32x320xbf16> to vector<1x1x32x320xbf16>
      tpu.vector_store %arg4[%45, %c1_51, %c0_52, %c0_53], %48 {strides = array<i32>} : memref<2x36x32x320xbf16, #tpu.memory_space<vmem>>, vector<1x1x32x320xbf16>,
      %49 = arith.index_cast %33 : i32 to index
      %c32_54 = arith.constant 32 : index
      %c0_55 = arith.constant 0 : index
      %c0_56 = arith.constant 0 : index
      %50 = vector.load %arg4[%49, %c32_54, %c0_55, %c0_56] : memref<2x36x32x320xbf16, #tpu.memory_space<vmem>>, vector<1x1x32x320xbf16>
      %51 = vector.shape_cast %50 : vector<1x1x32x320xbf16> to vector<32x320xbf16>
      %52 = arith.index_cast %33 : i32 to index
      %c34_57 = arith.constant 34 : index
      %c0_58 = arith.constant 0 : index
      %c0_59 = arith.constant 0 : index
      %53 = vector.load %arg4[%52, %c34_57, %c0_58, %c0_59] : memref<2x36x32x320xbf16, #tpu.memory_space<vmem>>, vector<1x1x32x320xbf16>
      %54 = vector.shape_cast %53 : vector<1x1x32x320xbf16> to vector<32x320xbf16>
      %55 = vector.shape_cast %51 : vector<32x320xbf16> to vector<1x1x32x320xbf16>
      tpu.vector_store %arg4[%52, %c34_57, %c0_58, %c0_59], %55 {strides = array<i32>} : memref<2x36x32x320xbf16, #tpu.memory_space<vmem>>, vector<1x1x32x320xbf16>,
      %56 = arith.index_cast %33 : i32 to index
      %c31_60 = arith.constant 31 : index
      %c0_61 = arith.constant 0 : index
      %c0_62 = arith.constant 0 : index
      %57 = vector.load %arg4[%56, %c31_60, %c0_61, %c0_62] : memref<2x36x32x320xbf16, #tpu.memory_space<vmem>>, vector<1x1x32x320xbf16>
      %58 = vector.shape_cast %57 : vector<1x1x32x320xbf16> to vector<32x320xbf16>
      %59 = arith.index_cast %33 : i32 to index
      %c35_63 = arith.constant 35 : index
      %c0_64 = arith.constant 0 : index
      %c0_65 = arith.constant 0 : index
      %60 = vector.load %arg4[%59, %c35_63, %c0_64, %c0_65] : memref<2x36x32x320xbf16, #tpu.memory_space<vmem>>, vector<1x1x32x320xbf16>
      %61 = vector.shape_cast %60 : vector<1x1x32x320xbf16> to vector<32x320xbf16>
      %62 = vector.shape_cast %58 : vector<32x320xbf16> to vector<1x1x32x320xbf16>
      tpu.vector_store %arg4[%59, %c35_63, %c0_64, %c0_65], %62 {strides = array<i32>} : memref<2x36x32x320xbf16, #tpu.memory_space<vmem>>, vector<1x1x32x320xbf16>,
    }
    %c7_i32_27 = arith.constant 7 : i32
    %c0_i32_28 = arith.constant 0 : i32
    %c4_i32_29 = arith.constant 4 : i32
    %22 = arith.addi %c0_i32_28, %c4_i32_29 : i32
    %c1_i32_30 = arith.constant 1 : i32
    scf.for %arg5 = %c0_i32_28 to %22 step %c1_i32_30  : i32 {
      %c8_i32 = arith.constant 8 : i32
      %23 = arith.muli %arg5, %c8_i32 : i32
      %c1_32 = arith.constant 1 : index
      %24 = arith.index_cast %23 : i32 to index
      %c0_33 = arith.constant 0 : index
      %c0_34 = arith.constant 0 : index
      %25 = vector.load %arg4[%c1_32, %24, %c0_33, %c0_34] : memref<2x36x32x320xbf16, #tpu.memory_space<vmem>>, vector<1x8x32x320xbf16>
      %26 = vector.shape_cast %25 : vector<1x8x32x320xbf16> to vector<8x32x320xbf16>
      %27 = vector.shape_cast %26 : vector<8x32x320xbf16> to vector<256x320xbf16>
      %c7 = arith.constant 7 : index
      %c0_35 = arith.constant 0 : index
      %c0_36 = arith.constant 0 : index
      %c0_37 = arith.constant 0 : index
      %28 = vector.load %arg2[%c7, %c0_35, %c0_36, %c0_37] : memref<8x5x320x64xbf16, #tpu.memory_space<vmem>>, vector<1x1x320x64xbf16>
      %29 = vector.shape_cast %28 : vector<1x1x320x64xbf16> to vector<320x64xbf16>
      %cst = arith.constant dense<0.000000e+00> : vector<256x64xf32>
      %30 = tpu.matmul %27, %29, %cst {dimension_numbers = #tpu.dot_dimension_numbers<[1], [0], [0], [1], [0, 0, 1, 1], [], []>} : vector<256x320xbf16>, vector<320x64xbf16>, vector<256x64xf32> -> vector<256x64xf32>
      %c1_i32_38 = arith.constant 1 : i32
      %31 = arith.addi %23, %c1_i32_38 : i32
      %c1_39 = arith.constant 1 : index
      %32 = arith.index_cast %31 : i32 to index
      %c0_40 = arith.constant 0 : index
      %c0_41 = arith.constant 0 : index
      %33 = vector.load %arg4[%c1_39, %32, %c0_40, %c0_41] : memref<2x36x32x320xbf16, #tpu.memory_space<vmem>>, vector<1x8x32x320xbf16>
      %34 = vector.shape_cast %33 : vector<1x8x32x320xbf16> to vector<8x32x320xbf16>
      %35 = vector.shape_cast %34 : vector<8x32x320xbf16> to vector<256x320xbf16>
      %c7_42 = arith.constant 7 : index
      %c1_43 = arith.constant 1 : index
      %c0_44 = arith.constant 0 : index
      %c0_45 = arith.constant 0 : index
      %36 = vector.load %arg2[%c7_42, %c1_43, %c0_44, %c0_45] : memref<8x5x320x64xbf16, #tpu.memory_space<vmem>>, vector<1x1x320x64xbf16>
      %37 = vector.shape_cast %36 : vector<1x1x320x64xbf16> to vector<320x64xbf16>
      %cst_46 = arith.constant dense<0.000000e+00> : vector<256x64xf32>
      %38 = tpu.matmul %35, %37, %cst_46 {dimension_numbers = #tpu.dot_dimension_numbers<[1], [0], [0], [1], [0, 0, 1, 1], [], []>} : vector<256x320xbf16>, vector<320x64xbf16>, vector<256x64xf32> -> vector<256x64xf32>
      %39 = arith.addf %30, %38 : vector<256x64xf32>
      %c2_i32 = arith.constant 2 : i32
      %40 = arith.addi %23, %c2_i32 : i32
      %c1_47 = arith.constant 1 : index
      %41 = arith.index_cast %40 : i32 to index
      %c0_48 = arith.constant 0 : index
      %c0_49 = arith.constant 0 : index
      %42 = vector.load %arg4[%c1_47, %41, %c0_48, %c0_49] : memref<2x36x32x320xbf16, #tpu.memory_space<vmem>>, vector<1x8x32x320xbf16>
      %43 = vector.shape_cast %42 : vector<1x8x32x320xbf16> to vector<8x32x320xbf16>
      %44 = vector.shape_cast %43 : vector<8x32x320xbf16> to vector<256x320xbf16>
      %c7_50 = arith.constant 7 : index
      %c2 = arith.constant 2 : index
      %c0_51 = arith.constant 0 : index
      %c0_52 = arith.constant 0 : index
      %45 = vector.load %arg2[%c7_50, %c2, %c0_51, %c0_52] : memref<8x5x320x64xbf16, #tpu.memory_space<vmem>>, vector<1x1x320x64xbf16>
      %46 = vector.shape_cast %45 : vector<1x1x320x64xbf16> to vector<320x64xbf16>
      %cst_53 = arith.constant dense<0.000000e+00> : vector<256x64xf32>
      %47 = tpu.matmul %44, %46, %cst_53 {dimension_numbers = #tpu.dot_dimension_numbers<[1], [0], [0], [1], [0, 0, 1, 1], [], []>} : vector<256x320xbf16>, vector<320x64xbf16>, vector<256x64xf32> -> vector<256x64xf32>
      %48 = arith.addf %39, %47 : vector<256x64xf32>
      %c3_i32 = arith.constant 3 : i32
      %49 = arith.addi %23, %c3_i32 : i32
      %c1_54 = arith.constant 1 : index
      %50 = arith.index_cast %49 : i32 to index
      %c0_55 = arith.constant 0 : index
      %c0_56 = arith.constant 0 : index
      %51 = vector.load %arg4[%c1_54, %50, %c0_55, %c0_56] : memref<2x36x32x320xbf16, #tpu.memory_space<vmem>>, vector<1x8x32x320xbf16>
      %52 = vector.shape_cast %51 : vector<1x8x32x320xbf16> to vector<8x32x320xbf16>
      %53 = vector.shape_cast %52 : vector<8x32x320xbf16> to vector<256x320xbf16>
      %c7_57 = arith.constant 7 : index
      %c3_58 = arith.constant 3 : index
      %c0_59 = arith.constant 0 : index
      %c0_60 = arith.constant 0 : index
      %54 = vector.load %arg2[%c7_57, %c3_58, %c0_59, %c0_60] : memref<8x5x320x64xbf16, #tpu.memory_space<vmem>>, vector<1x1x320x64xbf16>
      %55 = vector.shape_cast %54 : vector<1x1x320x64xbf16> to vector<320x64xbf16>
      %cst_61 = arith.constant dense<0.000000e+00> : vector<256x64xf32>
      %56 = tpu.matmul %53, %55, %cst_61 {dimension_numbers = #tpu.dot_dimension_numbers<[1], [0], [0], [1], [0, 0, 1, 1], [], []>} : vector<256x320xbf16>, vector<320x64xbf16>, vector<256x64xf32> -> vector<256x64xf32>
      %57 = arith.addf %48, %56 : vector<256x64xf32>
      %c4_i32_62 = arith.constant 4 : i32
      %58 = arith.addi %23, %c4_i32_62 : i32
      %c1_63 = arith.constant 1 : index
      %59 = arith.index_cast %58 : i32 to index
      %c0_64 = arith.constant 0 : index
      %c0_65 = arith.constant 0 : index
      %60 = vector.load %arg4[%c1_63, %59, %c0_64, %c0_65] : memref<2x36x32x320xbf16, #tpu.memory_space<vmem>>, vector<1x8x32x320xbf16>
      %61 = vector.shape_cast %60 : vector<1x8x32x320xbf16> to vector<8x32x320xbf16>
      %62 = vector.shape_cast %61 : vector<8x32x320xbf16> to vector<256x320xbf16>
      %c7_66 = arith.constant 7 : index
      %c4_67 = arith.constant 4 : index
      %c0_68 = arith.constant 0 : index
      %c0_69 = arith.constant 0 : index
      %63 = vector.load %arg2[%c7_66, %c4_67, %c0_68, %c0_69] : memref<8x5x320x64xbf16, #tpu.memory_space<vmem>>, vector<1x1x320x64xbf16>
      %64 = vector.shape_cast %63 : vector<1x1x320x64xbf16> to vector<320x64xbf16>
      %cst_70 = arith.constant dense<0.000000e+00> : vector<256x64xf32>
      %65 = tpu.matmul %62, %64, %cst_70 {dimension_numbers = #tpu.dot_dimension_numbers<[1], [0], [0], [1], [0, 0, 1, 1], [], []>} : vector<256x320xbf16>, vector<320x64xbf16>, vector<256x64xf32> -> vector<256x64xf32>
      %66 = arith.addf %57, %65 : vector<256x64xf32>
      %67 = vector.shape_cast %66 : vector<256x64xf32> to vector<8x32x64xf32>
      %c0_71 = arith.constant 0 : index
      %68 = arith.index_cast %23 : i32 to index
      %c0_72 = arith.constant 0 : index
      %c0_73 = arith.constant 0 : index
      %69 = vector.load %arg3[%c0_71, %68, %c0_72, %c0_73] : memref<1x32x32x64xf32, #tpu.memory_space<vmem>>, vector<1x8x32x64xf32>
      %70 = vector.shape_cast %69 : vector<1x8x32x64xf32> to vector<8x32x64xf32>
      %71 = vector.shape_cast %67 : vector<8x32x64xf32> to vector<1x8x32x64xf32>
      tpu.vector_store %arg3[%c0_71, %68, %c0_72, %c0_73], %71 {strides = array<i32>} : memref<1x32x32x64xf32, #tpu.memory_space<vmem>>, vector<1x8x32x64xf32>,
    }
    %c4_i32_31 = arith.constant 4 : i32
    return
  }
  func.func @transform_0(%arg0: i32) -> (i32, i32, i32, i32) {
    %c0_i32 = arith.constant 0 : i32
    %c0_i32_0 = arith.constant 0 : i32
    %c0_i32_1 = arith.constant 0 : i32
    %c0_i32_2 = arith.constant 0 : i32
    return %arg0, %c0_i32, %c0_i32_0, %c0_i32_1 : i32, i32, i32, i32
  }
  func.func @transform_1(%arg0: i32) -> (i32, i32, i32, i32) {
    %c0_i32 = arith.constant 0 : i32
    %c0_i32_0 = arith.constant 0 : i32
    %c0_i32_1 = arith.constant 0 : i32
    %c0_i32_2 = arith.constant 0 : i32
    %c0_i32_3 = arith.constant 0 : i32
    return %c0_i32, %c0_i32_0, %c0_i32_1, %c0_i32_2 : i32, i32, i32, i32
  }
  func.func @transform_2(%arg0: i32) -> (i32, i32, i32, i32) {
    %c0_i32 = arith.constant 0 : i32
    %c0_i32_0 = arith.constant 0 : i32
    %c0_i32_1 = arith.constant 0 : i32
    %c0_i32_2 = arith.constant 0 : i32
    return %arg0, %c0_i32, %c0_i32_0, %c0_i32_1 : i32, i32, i32, i32
  }
}

</mosaic_0001>

<llo_original>
// kernel: sr_model_forward.1
$region0: #{sr_model_forward.1}
  #allocation0 [shape = 'u32[]', space=smem, size = 0x4, offset = 0x4, fixed_abs, tag = 'smem constant byte address 0x4 - core index']
  #allocation1 [shape = 'u32[144,128]{1,0:T(1,128)}', space=vmem, size = 0x12000, scoped, tag = 'internal scratch']
  #allocation2 [shape = 'bf16[2,36,32,320]{3,2,1,0:T(16,128)(2,1)}', space=vmem, size = 0x1b0000, scoped, tag = 'scratch operand']
  %s0 = inlined_call_operand.vmem [shape: bf16[2,32,32,64], index: 0, kind: input, shape index: {}]
  %s1 = inlined_call_operand.vmem [shape: bf16[8,5,320,64], index: 1, kind: input, shape index: {}]
  %s2 = inlined_call_operand.vmem [shape: f32[2,32,32,64], index: 2, kind: output, shape index: {}]
  %s3 = sld [smem:[#allocation0]]
  $region69: #{sr_model_forward.1} parent=0
    _
  %s5 = ssub.s32 1, %s3
  %s6 = scalar_select 0, %s5, %s3
  loop: start=0, step=1, limit=4
  $region2: #{sr_model_forward.1} parent=0 // loop_pre_header
    _
  $region3: #{sr_model_forward.1} parent=0 // loop_header
    %s8 = sphi 0, %s12
    %p9 = scmp.ge.s32.totalorder %s8, 4
    %s18 = sphi 0, %s20
    %s21 = sphi 0, %s18
    %s22 = sphi 0, %s21
    %s38 = sphi 0, %s22
    %s42 = sphi 0, %s42
    %s44 = sphi 0, %s42
    %s45 = sphi 0, %s44
    %s59 = sphi 0, %s45
    %s65 = sphi 0, %s67
    %s68 = sphi 0, %s65
    %s69 = sphi 0, %s68
    %s85 = sphi 0, %s69
  $region4: #{sr_model_forward.1} parent=0 // loop_header_branch
    %11 = sbr.rel (%p9) target = $region8
  $region5: #{sr_model_forward.1} parent=0 // loop_body
    %s13 = ssub.s32 %s8, 1
    %s14 = ssub.s32 %s8, 2
    %s15 = sadd.s32 %s8, 1
    %s16 = ssub.s32 %s8, %s15
    %p17 = scmp.eq.s32.totalorder %s16, 0
    %s19 = sadd.s32 %s18, 1
    %s20 = scalar_select %p17, %s18, %s19
    %p23 = pneg %p17
    %p24 = scmp.eq.s32.totalorder %s8, 1
    %p25 = por %p23, %p24
    %p26 = scmp.ne.s32.totalorder %s18, %s21
    %p27 = scmp.eq.s32.totalorder %s8, 0
    %p28 = por %p26, %p27
    %p29 = scmp.ne.s32.totalorder %s18, %s21
    %p30 = scmp.eq.s32.totalorder %s13, 1
    %p31 = por %p29, %p30
    %p32 = scmp.ne.s32.totalorder %s21, %s22
    %p33 = scmp.eq.s32.totalorder %s13, 0
    %p34 = por %p32, %p33
    %p35 = scmp.ne.s32.totalorder %s21, %s22
    %p36 = scmp.eq.s32.totalorder %s14, 1
    %p37 = por %p35, %p36
    %p39 = scmp.ne.s32.totalorder %s22, %s38
    %p40 = scmp.eq.s32.totalorder %s14, 0
    %p41 = por %p39, %p40
    %s43 = sadd.s32 %s42, 1
    %p46 = scmp.eq.s32.totalorder %s8, 1
    %p47 = scmp.ne.s32.totalorder %s42, %s44
    %p48 = scmp.eq.s32.totalorder %s8, 0
    %p49 = por %p47, %p48
    %p50 = scmp.ne.s32.totalorder %s42, %s44
    %p51 = scmp.eq.s32.totalorder %s13, 1
    %p52 = por %p50, %p51
    %p53 = scmp.ne.s32.totalorder %s44, %s45
    %p54 = scmp.eq.s32.totalorder %s13, 0
    %p55 = por %p53, %p54
    %p56 = scmp.ne.s32.totalorder %s44, %s45
    %p57 = scmp.eq.s32.totalorder %s14, 1
    %p58 = por %p56, %p57
    %p60 = scmp.ne.s32.totalorder %s45, %s59
    %p61 = scmp.eq.s32.totalorder %s14, 0
    %p62 = por %p60, %p61
    %s63 = ssub.s32 %s8, %s15
    %p64 = scmp.eq.s32.totalorder %s63, 0
    %s66 = sadd.s32 %s65, 1
    %s67 = scalar_select %p64, %s65, %s66
    %p70 = pneg %p64
    %p71 = scmp.eq.s32.totalorder %s8, 1
    %p72 = por %p70, %p71
    %p73 = scmp.ne.s32.totalorder %s65, %s68
    %p74 = scmp.eq.s32.totalorder %s8, 0
    %p75 = por %p73, %p74
    %p76 = scmp.ne.s32.totalorder %s65, %s68
    %p77 = scmp.eq.s32.totalorder %s13, 1
    %p78 = por %p76, %p77
    %p79 = scmp.ne.s32.totalorder %s68, %s69
    %p80 = scmp.eq.s32.totalorder %s13, 0
    %p81 = por %p79, %p80
    %p82 = scmp.ne.s32.totalorder %s68, %s69
    %p83 = scmp.eq.s32.totalorder %s14, 1
    %p84 = por %p82, %p83
    %p86 = scmp.ne.s32.totalorder %s69, %s85
    %p87 = scmp.eq.s32.totalorder %s14, 0
    %p88 = por %p86, %p87
    %p89 = scmp.le.s32.totalorder 1, %s8
    %p90 = scmp.lt.s32.totalorder %s8, 3
    %p91 = pnand %p89, %p90
    %p92 = pneg %p91
    // Predicated region
    $region9: #{sr_model_forward.1} parent=5 // pred_check
      _
    $region10: #{sr_model_forward.1} parent=5 // pred_check_branch
      %94 = sbr.rel (%p91) target = $region12
    $region11: #{sr_model_forward.1} parent=5 // pred_region
      %s95 = ssub.s32 %s8, 1
      // Predicated region
      $region13: #{sr_model_forward.1} parent=11 // pred_check
        %p96 = pneg %p55
      $region14: #{sr_model_forward.1} parent=11 // pred_check_branch
        %98 = sbr.rel (%p96) target = $region16
      $region15: #{sr_model_forward.1} parent=11 // pred_region
        _
      $region16: #{sr_model_forward.1} parent=11 // pred_fallthru
        _
    $region12: #{sr_model_forward.1} parent=5 // pred_fallthru
      _
    %p99 = scmp.lt.s32.totalorder %s8, 2
    // Predicated region
    $region17: #{sr_model_forward.1} parent=5 // pred_check
      %p100 = pneg %p99
    $region18: #{sr_model_forward.1} parent=5 // pred_check_branch
      %102 = sbr.rel (%p100) target = $region20
    $region19: #{sr_model_forward.1} parent=5 // pred_region
      // Predicated region
      $region21: #{sr_model_forward.1} parent=19 // pred_check
        %p103 = pneg %p28
      $region22: #{sr_model_forward.1} parent=19 // pred_check_branch
        %105 = sbr.rel (%p103) target = $region24
      $region23: #{sr_model_forward.1} parent=19 // pred_region
        %p106 = scmp.lt.s32.totalorder %s8, 1
        %s107 = scalar_select %p106, %s8, 1
        %s108 = smul.addr %s107, 128
        %s109 = smul.addr %s108, 4
        %s110 = scalar_lea.vmem %s0, %s109
      $region24: #{sr_model_forward.1} parent=19 // pred_fallthru
        _
    $region20: #{sr_model_forward.1} parent=5 // pred_fallthru
      _
    %p111 = scmp.le.s32.totalorder 1, %s8
    %p112 = scmp.lt.s32.totalorder %s8, 3
    %p113 = pnand %p111, %p112
    %p114 = pneg %p113
    // Predicated region
    $region25: #{sr_model_forward.1} parent=5 // pred_check
      _
    $region26: #{sr_model_forward.1} parent=5 // pred_check_branch
      %116 = sbr.rel (%p113) target = $region28
    $region27: #{sr_model_forward.1} parent=5 // pred_region
      %s117 = ssub.s32 %s8, 1
      %p118 = scmp.lt.s32.totalorder %s13, 1
      %s119 = scalar_select %p118, %s13, 1
      %s120 = smul.addr %s119, 128
      %s121 = smul.addr %s120, 4
      %s122 = scalar_lea.vmem %s0, %s121
      %p123 = pneg %p34
      %p124 = pneg %p31
      %p125 = pneg %p55
      %p126 = pneg %p52
      %p127 = pneg %p81
      %p128 = pneg %p78
      %p129 = scmp.lt.s32.totalorder %s13, 1
      %s130 = scalar_select %p129, %s13, 1
      %s131 = smul.addr %s130, 128
      %s132 = smul.addr %s131, 8
      %s133 = scalar_lea.vmem %s2, %s132
      %p134 = scmp.lt.s32.totalorder %s13, 1
      %s135 = scalar_select %p134, %s13, 1
      %s136 = smul.addr %s135, 128
      %s137 = smul.addr %s136, 4
      %s138 = scalar_lea.vmem %s0, %s137
      %p139 = scmp.lt.s32.totalorder %s13, 1
      %s140 = scalar_select %p139, %s13, 1
      %s141 = smul.addr %s140, 128
      %s142 = smul.addr %s141, 8
      %s143 = scalar_lea.vmem %s2, %s142
      loop: start=0, step=1, limit=4
      $region29: #{sr_model_forward.1} parent=27 // loop_pre_header
        _
      $region30: #{sr_model_forward.1} parent=27 // loop_header
        %s146 = sphi 0, %s150
        %p147 = scmp.ge.s32.totalorder %s146, 4
      $region31: #{sr_model_forward.1} parent=27 // loop_header_branch
        %149 = sbr.rel (%p147) target = $region35
      $region32: #{sr_model_forward.1} parent=27 // loop_body
        %s151 = smul.u32 %s146, 8
        %s152 = smul.u32 %s151, 4
        %s153 = smul.addr %s152, 4
        %s154 = scalar_lea.vmem %s138, %s153
        %v155 = vld [vmem:[%s154] sm:$0xf]
        %v156 = vld [vmem:[%s154 + $0x4] sm:$0xf]
        %v157 = vld [vmem:[%s154 + $0x8] sm:$0xf]
        %v158 = vld [vmem:[%s154 + $0xc] sm:$0xf]
        %v159 = vld [vmem:[%s154 + $0x10] sm:$0xf]
        %v160 = vld [vmem:[%s154 + $0x14] sm:$0xf]
        %v161 = vld [vmem:[%s154 + $0x18] sm:$0xf]
        %v162 = vld [vmem:[%s154 + $0x1c] sm:$0xf]
        %v163 = vld [vmem:[%s154 + $0x20] sm:$0xf]
        %v164 = vld [vmem:[%s154 + $0x24] sm:$0xf]
        %v165 = vld [vmem:[%s154 + $0x28] sm:$0xf]
        %v166 = vld [vmem:[%s154 + $0x2c] sm:$0xf]
        %v167 = vld [vmem:[%s154 + $0x30] sm:$0xf]
        %v168 = vld [vmem:[%s154 + $0x34] sm:$0xf]
        %v169 = vld [vmem:[%s154 + $0x38] sm:$0xf]
        %v170 = vld [vmem:[%s154 + $0x3c] sm:$0xf]
        %v171 = vld [vmem:[%s154 + $0x40] sm:$0xf]
        %v172 = vld [vmem:[%s154 + $0x44] sm:$0xf]
        %v173 = vld [vmem:[%s154 + $0x48] sm:$0xf]
        %v174 = vld [vmem:[%s154 + $0x4c] sm:$0xf]
        %v175 = vld [vmem:[%s154 + $0x50] sm:$0xf]
        %v176 = vld [vmem:[%s154 + $0x54] sm:$0xf]
        %v177 = vld [vmem:[%s154 + $0x58] sm:$0xf]
        %v178 = vld [vmem:[%s154 + $0x5c] sm:$0xf]
        %v179 = vld [vmem:[%s154 + $0x60] sm:$0xf]
        %v180 = vld [vmem:[%s154 + $0x64] sm:$0xf]
        %v181 = vld [vmem:[%s154 + $0x68] sm:$0xf]
        %v182 = vld [vmem:[%s154 + $0x6c] sm:$0xf]
        %v183 = vld [vmem:[%s154 + $0x70] sm:$0xf]
        %v184 = vld [vmem:[%s154 + $0x74] sm:$0xf]
        %v185 = vld [vmem:[%s154 + $0x78] sm:$0xf]
        %v186 = vld [vmem:[%s154 + $0x7c] sm:$0xf]
        %v195 = vunpack.c.l.b16 %v155
        %v196 = vunpack.c.l.b16 %v159
        %v197 = vunpack.c.l.b16 %v163
        %v198 = vunpack.c.l.b16 %v167
        %v199 = vunpack.c.l.b16 %v171
        %v200 = vunpack.c.l.b16 %v175
        %v201 = vunpack.c.l.b16 %v179
        %v202 = vunpack.c.l.b16 %v183
        %v203 = vpack.c.b16 %v195, %v195
        %v204 = vpack.c.b16 %v196, %v196
        %v205 = vpack.c.b16 %v197, %v197
        %v206 = vpack.c.b16 %v198, %v198
        %v207 = vpack.c.b16 %v199, %v199
        %v208 = vpack.c.b16 %v200, %v200
        %v209 = vpack.c.b16 %v201, %v201
        %v210 = vpack.c.b16 %v202, %v202
        %v211 = vrot.slane %v203, 1
        %v212 = vrot.slane %v204, 1
        %v213 = vrot.slane %v205, 1
        %v214 = vrot.slane %v206, 1
        %v215 = vrot.slane %v207, 1
        %v216 = vrot.slane %v208, 1
        %v217 = vrot.slane %v209, 1
        %v218 = vrot.slane %v210, 1
        %v251 = vunpack.c.l.b16 %v156
        %v252 = vunpack.c.l.b16 %v157
        %v253 = vunpack.c.l.b16 %v158
        %v254 = vunpack.c.l.b16 %v160
        %v255 = vunpack.c.l.b16 %v161
        %v256 = vunpack.c.l.b16 %v162
        %v257 = vunpack.c.l.b16 %v164
        %v258 = vunpack.c.l.b16 %v165
        %v259 = vunpack.c.l.b16 %v166
        %v260 = vunpack.c.l.b16 %v168
        %v261 = vunpack.c.l.b16 %v169
        %v262 = vunpack.c.l.b16 %v170
        %v263 = vunpack.c.l.b16 %v172
        %v264 = vunpack.c.l.b16 %v173
        %v265 = vunpack.c.l.b16 %v174
        %v266 = vunpack.c.l.b16 %v176
        %v267 = vunpack.c.l.b16 %v177
        %v268 = vunpack.c.l.b16 %v178
        %v269 = vunpack.c.l.b16 %v180
        %v270 = vunpack.c.l.b16 %v181
        %v271 = vunpack.c.l.b16 %v182
        %v272 = vunpack.c.l.b16 %v184
        %v273 = vunpack.c.l.b16 %v185
        %v274 = vunpack.c.l.b16 %v186
        %v275 = vpack.c.b16 %v251, %v195
        %v276 = vpack.c.b16 %v253, %v252
        %v277 = vpack.c.b16 %v254, %v196
        %v278 = vpack.c.b16 %v256, %v255
        %v279 = vpack.c.b16 %v257, %v197
        %v280 = vpack.c.b16 %v259, %v258
        %v281 = vpack.c.b16 %v260, %v198
        %v282 = vpack.c.b16 %v262, %v261
        %v283 = vpack.c.b16 %v263, %v199
        %v284 = vpack.c.b16 %v265, %v264
        %v285 = vpack.c.b16 %v266, %v200
        %v286 = vpack.c.b16 %v268, %v267
        %v287 = vpack.c.b16 %v269, %v201
        %v288 = vpack.c.b16 %v271, %v270
        %v289 = vpack.c.b16 %v272, %v202
        %v290 = vpack.c.b16 %v274, %v273
        %vm291 = vcmask 1040384
        %v292 = vrot.slane %v275, 7
        %v293 = vrot.slane %v276, 7
        %v294 = vsel %vm291, %v292, %v293
        %v295 = vrot.slane %v277, 7
        %v296 = vrot.slane %v278, 7
        %v297 = vsel %vm291, %v295, %v296
        %v298 = vrot.slane %v279, 7
        %v299 = vrot.slane %v280, 7
        %v300 = vsel %vm291, %v298, %v299
        %v301 = vrot.slane %v281, 7
        %v302 = vrot.slane %v282, 7
        %v303 = vsel %vm291, %v301, %v302
        %v304 = vrot.slane %v283, 7
        %v305 = vrot.slane %v284, 7
        %v306 = vsel %vm291, %v304, %v305
        %v307 = vrot.slane %v285, 7
        %v308 = vrot.slane %v286, 7
        %v309 = vsel %vm291, %v307, %v308
        %v310 = vrot.slane %v287, 7
        %v311 = vrot.slane %v288, 7
        %v312 = vsel %vm291, %v310, %v311
        %v313 = vrot.slane %v289, 7
        %v314 = vrot.slane %v290, 7
        %v315 = vsel %vm291, %v313, %v314
        %vm316 = vsmask.f32 256
        %vm317 = vmand %vm291, %vm316
        %v318 = vsel %vm317, %v211, %v155
        %v319 = vsel %vm317, %v212, %v159
        %v320 = vsel %vm317, %v213, %v163
        %v321 = vsel %vm317, %v214, %v167
        %v322 = vsel %vm317, %v215, %v171
        %v323 = vsel %vm317, %v216, %v175
        %v324 = vsel %vm317, %v217, %v179
        %v325 = vsel %vm317, %v218, %v183
        %vm326 = vcmask 1040384
        %v329 = vsel %vm326, %v318, %v292
        %v332 = vsel %vm326, %v319, %v295
        %v335 = vsel %vm326, %v320, %v298
        %v338 = vsel %vm326, %v321, %v301
        %v341 = vsel %vm326, %v322, %v304
        %v344 = vsel %vm326, %v323, %v307
        %v347 = vsel %vm326, %v324, %v310
        %v350 = vsel %vm326, %v325, %v313
        %v352 = vshrl.u32 %v203, 16
        %v355 = vshrl.u32 %v204, 16
        %v358 = vshrl.u32 %v205, 16
        %v361 = vshrl.u32 %v206, 16
        %v364 = vshrl.u32 %v207, 16
        %v367 = vshrl.u32 %v208, 16
        %v370 = vshrl.u32 %v209, 16
        %v373 = vshrl.u32 %v210, 16
        %v384 = vshrl.u32 %v275, 16
        %v386 = vrot.slane %v384, 7
        %v387 = vshll.u32 %v275, 16
        %v389 = vor.u32 %v386, %v387
        %v391 = vshrl.u32 %v276, 16
        %v393 = vrot.slane %v391, 7
        %v394 = vshll.u32 %v276, 16
        %v396 = vor.u32 %v393, %v394
        %v397 = vsel %vm316, %v386, %v396
        %v399 = vshrl.u32 %v277, 16
        %v401 = vrot.slane %v399, 7
        %v402 = vshll.u32 %v277, 16
        %v404 = vor.u32 %v401, %v402
        %v406 = vshrl.u32 %v278, 16
        %v408 = vrot.slane %v406, 7
        %v409 = vshll.u32 %v278, 16
        %v411 = vor.u32 %v408, %v409
        %v412 = vsel %vm316, %v401, %v411
        %v414 = vshrl.u32 %v279, 16
        %v416 = vrot.slane %v414, 7
        %v417 = vshll.u32 %v279, 16
        %v419 = vor.u32 %v416, %v417
        %v421 = vshrl.u32 %v280, 16
        %v423 = vrot.slane %v421, 7
        %v424 = vshll.u32 %v280, 16
        %v426 = vor.u32 %v423, %v424
        %v427 = vsel %vm316, %v416, %v426
        %v429 = vshrl.u32 %v281, 16
        %v431 = vrot.slane %v429, 7
        %v432 = vshll.u32 %v281, 16
        %v434 = vor.u32 %v431, %v432
        %v436 = vshrl.u32 %v282, 16
        %v438 = vrot.slane %v436, 7
        %v439 = vshll.u32 %v282, 16
        %v441 = vor.u32 %v438, %v439
        %v442 = vsel %vm316, %v431, %v441
        %v444 = vshrl.u32 %v283, 16
        %v446 = vrot.slane %v444, 7
        %v447 = vshll.u32 %v283, 16
        %v449 = vor.u32 %v446, %v447
        %v451 = vshrl.u32 %v284, 16
        %v453 = vrot.slane %v451, 7
        %v454 = vshll.u32 %v284, 16
        %v456 = vor.u32 %v453, %v454
        %v457 = vsel %vm316, %v446, %v456
        %v459 = vshrl.u32 %v285, 16
        %v461 = vrot.slane %v459, 7
        %v462 = vshll.u32 %v285, 16
        %v464 = vor.u32 %v461, %v462
        %v466 = vshrl.u32 %v286, 16
        %v468 = vrot.slane %v466, 7
        %v469 = vshll.u32 %v286, 16
        %v471 = vor.u32 %v468, %v469
        %v472 = vsel %vm316, %v461, %v471
        %v474 = vshrl.u32 %v287, 16
        %v476 = vrot.slane %v474, 7
        %v477 = vshll.u32 %v287, 16
        %v479 = vor.u32 %v476, %v477
        %v481 = vshrl.u32 %v288, 16
        %v483 = vrot.slane %v481, 7
        %v484 = vshll.u32 %v288, 16
        %v486 = vor.u32 %v483, %v484
        %v487 = vsel %vm316, %v476, %v486
        %v489 = vshrl.u32 %v289, 16
        %v491 = vrot.slane %v489, 7
        %v492 = vshll.u32 %v289, 16
        %v494 = vor.u32 %v491, %v492
        %v496 = vshrl.u32 %v290, 16
        %v498 = vrot.slane %v496, 7
        %v499 = vshll.u32 %v290, 16
        %v501 = vor.u32 %v498, %v499
        %v502 = vsel %vm316, %v491, %v501
        %v511 = vsel %vm317, %v352, %v389
        %v512 = vsel %vm317, %v355, %v404
        %v513 = vsel %vm317, %v358, %v419
        %v514 = vsel %vm317, %v361, %v434
        %v515 = vsel %vm317, %v364, %v449
        %v516 = vsel %vm317, %v367, %v464
        %v517 = vsel %vm317, %v370, %v479
        %v518 = vsel %vm317, %v373, %v494
        %vm519 = vsmask.f32 7424
        %v520 = vrot.slane %v387, 1
        %v521 = vor.u32 %v384, %v520
        %v522 = vrot.slane %v394, 1
        %v523 = vsel %vm519, %v521, %v522
        %v524 = vor.u32 %v391, %v522
        %v525 = vrot.slane %v402, 1
        %v526 = vor.u32 %v399, %v525
        %v527 = vrot.slane %v409, 1
        %v528 = vsel %vm519, %v526, %v527
        %v529 = vor.u32 %v406, %v527
        %v530 = vrot.slane %v417, 1
        %v531 = vor.u32 %v414, %v530
        %v532 = vrot.slane %v424, 1
        %v533 = vsel %vm519, %v531, %v532
        %v534 = vor.u32 %v421, %v532
        %v535 = vrot.slane %v432, 1
        %v536 = vor.u32 %v429, %v535
        %v537 = vrot.slane %v439, 1
        %v538 = vsel %vm519, %v536, %v537
        %v539 = vor.u32 %v436, %v537
        %v540 = vrot.slane %v447, 1
        %v541 = vor.u32 %v444, %v540
        %v542 = vrot.slane %v454, 1
        %v543 = vsel %vm519, %v541, %v542
        %v544 = vor.u32 %v451, %v542
        %v545 = vrot.slane %v462, 1
        %v546 = vor.u32 %v459, %v545
        %v547 = vrot.slane %v469, 1
        %v548 = vsel %vm519, %v546, %v547
        %v549 = vor.u32 %v466, %v547
        %v550 = vrot.slane %v477, 1
        %v551 = vor.u32 %v474, %v550
        %v552 = vrot.slane %v484, 1
        %v553 = vsel %vm519, %v551, %v552
        %v554 = vor.u32 %v481, %v552
        %v555 = vrot.slane %v492, 1
        %v556 = vor.u32 %v489, %v555
        %v557 = vrot.slane %v499, 1
        %v558 = vsel %vm519, %v556, %v557
        %v559 = vor.u32 %v496, %v557
        %v568 = vpack.c.b16 %v253, %v253
        %v569 = vpack.c.b16 %v256, %v256
        %v570 = vpack.c.b16 %v259, %v259
        %v571 = vpack.c.b16 %v262, %v262
        %v572 = vpack.c.b16 %v265, %v265
        %v573 = vpack.c.b16 %v268, %v268
        %v574 = vpack.c.b16 %v271, %v271
        %v575 = vpack.c.b16 %v274, %v274
        %v577 = vshll.u32 %v568, 16
        %v579 = vrot.slane %v577, 4
        %v581 = vshll.u32 %v569, 16
        %v583 = vrot.slane %v581, 4
        %v585 = vshll.u32 %v570, 16
        %v587 = vrot.slane %v585, 4
        %v589 = vshll.u32 %v571, 16
        %v591 = vrot.slane %v589, 4
        %v593 = vshll.u32 %v572, 16
        %v595 = vrot.slane %v593, 4
        %v597 = vshll.u32 %v573, 16
        %v599 = vrot.slane %v597, 4
        %v601 = vshll.u32 %v574, 16
        %v603 = vrot.slane %v601, 4
        %v605 = vshll.u32 %v575, 16
        %v607 = vrot.slane %v605, 4
        %vm616 = vcmask 1047552
        %vm617 = vmand %vm616, %vm519
        %v618 = vsel %vm617, %v524, %v579
        %v619 = vsel %vm617, %v529, %v583
        %v620 = vsel %vm617, %v534, %v587
        %v621 = vsel %vm617, %v539, %v591
        %v622 = vsel %vm617, %v544, %v595
        %v623 = vsel %vm617, %v549, %v599
        %v624 = vsel %vm617, %v554, %v603
        %v625 = vsel %vm617, %v559, %v607
        %vm626 = vcmask 1046528
        %v627 = vrot.slane %v275, 1
        %v628 = vrot.slane %v276, 1
        %v629 = vsel %vm626, %v627, %v628
        %v630 = vrot.slane %v277, 1
        %v631 = vrot.slane %v278, 1
        %v632 = vsel %vm626, %v630, %v631
        %v633 = vrot.slane %v279, 1
        %v634 = vrot.slane %v280, 1
        %v635 = vsel %vm626, %v633, %v634
        %v636 = vrot.slane %v281, 1
        %v637 = vrot.slane %v282, 1
        %v638 = vsel %vm626, %v636, %v637
        %v639 = vrot.slane %v283, 1
        %v640 = vrot.slane %v284, 1
        %v641 = vsel %vm626, %v639, %v640
        %v642 = vrot.slane %v285, 1
        %v643 = vrot.slane %v286, 1
        %v644 = vsel %vm626, %v642, %v643
        %v645 = vrot.slane %v287, 1
        %v646 = vrot.slane %v288, 1
        %v647 = vsel %vm626, %v645, %v646
        %v648 = vrot.slane %v289, 1
        %v649 = vrot.slane %v290, 1
        %v650 = vsel %vm626, %v648, %v649
        %v659 = vrot.slane %v568, 3
        %v660 = vrot.slane %v569, 3
        %v661 = vrot.slane %v570, 3
        %v662 = vrot.slane %v571, 3
        %v663 = vrot.slane %v572, 3
        %v664 = vrot.slane %v573, 3
        %v665 = vrot.slane %v574, 3
        %v666 = vrot.slane %v575, 3
        %vm675 = vcmask 1046528
        %v677 = vsel %vm675, %v628, %v568
        %v680 = vsel %vm675, %v631, %v569
        %v683 = vsel %vm675, %v634, %v570
        %v686 = vsel %vm675, %v637, %v571
        %v689 = vsel %vm675, %v640, %v572
        %v692 = vsel %vm675, %v643, %v573
        %v695 = vsel %vm675, %v646, %v574
        %v698 = vsel %vm675, %v649, %v575
        %v700 = vsel %vm617, %v677, %v659
        %v701 = vsel %vm617, %v680, %v660
        %v702 = vsel %vm617, %v683, %v661
        %v703 = vsel %vm617, %v686, %v662
        %v704 = vsel %vm617, %v689, %v663
        %v705 = vsel %vm617, %v692, %v664
        %v706 = vsel %vm617, %v695, %v665
        %v707 = vsel %vm617, %v698, %v666
        %716 = vrot.lane.b32.xlu0 %v511, 64
        %v717 = vpop.permute.xlu0 %716
        %718 = vrot.lane.b32.xlu0 %v397, 64
        %v719 = vpop.permute.xlu0 %718
        %720 = vrot.lane.b32.xlu0 %v512, 64
        %v721 = vpop.permute.xlu0 %720
        %722 = vrot.lane.b32.xlu0 %v412, 64
        %v723 = vpop.permute.xlu0 %722
        %724 = vrot.lane.b32.xlu0 %v513, 64
        %v725 = vpop.permute.xlu0 %724
        %726 = vrot.lane.b32.xlu0 %v427, 64
        %v727 = vpop.permute.xlu0 %726
        %728 = vrot.lane.b32.xlu0 %v514, 64
        %v729 = vpop.permute.xlu0 %728
        %730 = vrot.lane.b32.xlu0 %v442, 64
        %v731 = vpop.permute.xlu0 %730
        %732 = vrot.lane.b32.xlu0 %v515, 64
        %v733 = vpop.permute.xlu0 %732
        %734 = vrot.lane.b32.xlu0 %v457, 64
        %v735 = vpop.permute.xlu0 %734
        %736 = vrot.lane.b32.xlu0 %v516, 64
        %v737 = vpop.permute.xlu0 %736
        %738 = vrot.lane.b32.xlu0 %v472, 64
        %v739 = vpop.permute.xlu0 %738
        %740 = vrot.lane.b32.xlu0 %v517, 64
        %v741 = vpop.permute.xlu0 %740
        %742 = vrot.lane.b32.xlu0 %v487, 64
        %v743 = vpop.permute.xlu0 %742
        %744 = vrot.lane.b32.xlu0 %v518, 64
        %v745 = vpop.permute.xlu0 %744
        %746 = vrot.lane.b32.xlu0 %v502, 64
        %v747 = vpop.permute.xlu0 %746
        %756 = vrot.lane.b32.xlu0 %v523, 64
        %v757 = vpop.permute.xlu0 %756
        %758 = vrot.lane.b32.xlu0 %v618, 64
        %v759 = vpop.permute.xlu0 %758
        %760 = vrot.lane.b32.xlu0 %v528, 64
        %v761 = vpop.permute.xlu0 %760
        %762 = vrot.lane.b32.xlu0 %v619, 64
        %v763 = vpop.permute.xlu0 %762
        %764 = vrot.lane.b32.xlu0 %v533, 64
        %v765 = vpop.permute.xlu0 %764
        %766 = vrot.lane.b32.xlu0 %v620, 64
        %v767 = vpop.permute.xlu0 %766
        %768 = vrot.lane.b32.xlu0 %v538, 64
        %v769 = vpop.permute.xlu0 %768
        %770 = vrot.lane.b32.xlu0 %v621, 64
        %v771 = vpop.permute.xlu0 %770
        %772 = vrot.lane.b32.xlu0 %v543, 64
        %v773 = vpop.permute.xlu0 %772
        %774 = vrot.lane.b32.xlu0 %v622, 64
        %v775 = vpop.permute.xlu0 %774
        %776 = vrot.lane.b32.xlu0 %v548, 64
        %v777 = vpop.permute.xlu0 %776
        %778 = vrot.lane.b32.xlu0 %v623, 64
        %v779 = vpop.permute.xlu0 %778
        %780 = vrot.lane.b32.xlu0 %v553, 64
        %v781 = vpop.permute.xlu0 %780
        %782 = vrot.lane.b32.xlu0 %v624, 64
        %v783 = vpop.permute.xlu0 %782
        %784 = vrot.lane.b32.xlu0 %v558, 64
        %v785 = vpop.permute.xlu0 %784
        %786 = vrot.lane.b32.xlu0 %v625, 64
        %v787 = vpop.permute.xlu0 %786
        %vm788 = vcmask 523264
        %v790 = vsel %vm788, %v329, %v717
        %v794 = vsel %vm788, %v294, %v719
        %v797 = vsel %vm788, %v332, %v721
        %v801 = vsel %vm788, %v297, %v723
        %v804 = vsel %vm788, %v335, %v725
        %v808 = vsel %vm788, %v300, %v727
        %v811 = vsel %vm788, %v338, %v729
        %v815 = vsel %vm788, %v303, %v731
        %v818 = vsel %vm788, %v341, %v733
        %v822 = vsel %vm788, %v306, %v735
        %v825 = vsel %vm788, %v344, %v737
        %v829 = vsel %vm788, %v309, %v739
        %v832 = vsel %vm788, %v347, %v741
        %v836 = vsel %vm788, %v312, %v743
        %v839 = vsel %vm788, %v350, %v745
        %v843 = vsel %vm788, %v315, %v747
        %v846 = vsel %vm788, %v275, %v757
        %v849 = vsel %vm788, %v276, %v759
        %v852 = vsel %vm788, %v277, %v761
        %v855 = vsel %vm788, %v278, %v763
        %v858 = vsel %vm788, %v279, %v765
        %v861 = vsel %vm788, %v280, %v767
        %v864 = vsel %vm788, %v281, %v769
        %v867 = vsel %vm788, %v282, %v771
        %v870 = vsel %vm788, %v283, %v773
        %v873 = vsel %vm788, %v284, %v775
        %v876 = vsel %vm788, %v285, %v777
        %v879 = vsel %vm788, %v286, %v779
        %v882 = vsel %vm788, %v287, %v781
        %v885 = vsel %vm788, %v288, %v783
        %v888 = vsel %vm788, %v289, %v785
        %v891 = vsel %vm788, %v290, %v787
        %s893 = sadd.s32 %s151, 2
        %s894 = smul.u32 %s893, 6
        %s895 = smul.addr %s894, 8
        %s896 = scalar_lea.vmem [#allocation2], %s895
        %897 = vst [vmem:[%s896] sm:$0xff] %v790
        %898 = vst [vmem:[%s896 + $0x8] sm:$0xff] %v846
        %899 = vst.msk [vmem:[%s896 + $0x10] sm:$0xff] %vm788, %v629
        %900 = vst [vmem:[%s896 + $0x18] sm:$0xff] %v794
        %901 = vst [vmem:[%s896 + $0x20] sm:$0xff] %v849
        %902 = vst.msk [vmem:[%s896 + $0x28] sm:$0xff] %vm788, %v700
        %903 = vst [vmem:[%s896 + $0x30] sm:$0xff] %v797
        %904 = vst [vmem:[%s896 + $0x38] sm:$0xff] %v852
        %905 = vst.msk [vmem:[%s896 + $0x40] sm:$0xff] %vm788, %v632
        %906 = vst [vmem:[%s896 + $0x48] sm:$0xff] %v801
        %907 = vst [vmem:[%s896 + $0x50] sm:$0xff] %v855
        %908 = vst.msk [vmem:[%s896 + $0x58] sm:$0xff] %vm788, %v701
        %909 = vst [vmem:[%s896 + $0x60] sm:$0xff] %v804
        %910 = vst [vmem:[%s896 + $0x68] sm:$0xff] %v858
        %911 = vst.msk [vmem:[%s896 + $0x70] sm:$0xff] %vm788, %v635
        %912 = vst [vmem:[%s896 + $0x78] sm:$0xff] %v808
        %913 = vst [vmem:[%s896 + $0x80] sm:$0xff] %v861
        %914 = vst.msk [vmem:[%s896 + $0x88] sm:$0xff] %vm788, %v702
        %915 = vst [vmem:[%s896 + $0x90] sm:$0xff] %v811
        %916 = vst [vmem:[%s896 + $0x98] sm:$0xff] %v864
        %917 = vst.msk [vmem:[%s896 + $0xa0] sm:$0xff] %vm788, %v638
        %918 = vst [vmem:[%s896 + $0xa8] sm:$0xff] %v815
        %919 = vst [vmem:[%s896 + $0xb0] sm:$0xff] %v867
        %920 = vst.msk [vmem:[%s896 + $0xb8] sm:$0xff] %vm788, %v703
        %921 = vst [vmem:[%s896 + $0xc0] sm:$0xff] %v818
        %922 = vst [vmem:[%s896 + $0xc8] sm:$0xff] %v870
        %923 = vst.msk [vmem:[%s896 + $0xd0] sm:$0xff] %vm788, %v641
        %924 = vst [vmem:[%s896 + $0xd8] sm:$0xff] %v822
        %925 = vst [vmem:[%s896 + $0xe0] sm:$0xff] %v873
        %926 = vst.msk [vmem:[%s896 + $0xe8] sm:$0xff] %vm788, %v704
        %927 = vst [vmem:[%s896 + $0xf0] sm:$0xff] %v825
        %928 = vst [vmem:[%s896 + $0xf8] sm:$0xff] %v876
        %929 = vst.msk [vmem:[%s896 + $0x100] sm:$0xff] %vm788, %v644
        %930 = vst [vmem:[%s896 + $0x108] sm:$0xff] %v829
        %931 = vst [vmem:[%s896 + $0x110] sm:$0xff] %v879
        %932 = vst.msk [vmem:[%s896 + $0x118] sm:$0xff] %vm788, %v705
        %933 = vst [vmem:[%s896 + $0x120] sm:$0xff] %v832
        %934 = vst [vmem:[%s896 + $0x128] sm:$0xff] %v882
        %935 = vst.msk [vmem:[%s896 + $0x130] sm:$0xff] %vm788, %v647
        %936 = vst [vmem:[%s896 + $0x138] sm:$0xff] %v836
        %937 = vst [vmem:[%s896 + $0x140] sm:$0xff] %v885
        %938 = vst.msk [vmem:[%s896 + $0x148] sm:$0xff] %vm788, %v706
        %939 = vst [vmem:[%s896 + $0x150] sm:$0xff] %v839
        %940 = vst [vmem:[%s896 + $0x158] sm:$0xff] %v888
        %941 = vst.msk [vmem:[%s896 + $0x160] sm:$0xff] %vm788, %v650
        %942 = vst [vmem:[%s896 + $0x168] sm:$0xff] %v843
        %943 = vst [vmem:[%s896 + $0x170] sm:$0xff] %v891
        %944 = vst.msk [vmem:[%s896 + $0x178] sm:$0xff] %vm788, %v707
      $region33: #{sr_model_forward.1} parent=27 // loop_footer
        %s150 = sadd.s32 1, %s146
      $region34: #{sr_model_forward.1} parent=27 // loop_footer_branch
        %145 = sbr.rel target = $region30
      $region35: #{sr_model_forward.1} parent=27 // loop_exit
        _
      %s945 = scalar_lea.vmem [#allocation2], 192
      %v946 = vld [vmem:[%s945] sm:$0xff]
      %v947 = vld [vmem:[%s945 + $0x8] sm:$0xff]
      %v948 = vld [vmem:[%s945 + $0x10] sm:$0xff]
      %v949 = vld [vmem:[%s945 + $0x18] sm:$0xff]
      %v950 = vld [vmem:[%s945 + $0x20] sm:$0xff]
      %v951 = vld [vmem:[%s945 + $0x28] sm:$0xff]
      %952 = vst [vmem:[#allocation2] sm:$0xff] %v946
      %953 = vst [vmem:[#allocation2 + $0x8] sm:$0xff] %v947
      %vm954 = vcmask 523264
      %955 = vst.msk [vmem:[#allocation2 + $0x10] sm:$0xff] %vm954, %v948
      %956 = vst [vmem:[#allocation2 + $0x18] sm:$0xff] %v949
      %957 = vst [vmem:[#allocation2 + $0x20] sm:$0xff] %v950
      %958 = vst.msk [vmem:[#allocation2 + $0x28] sm:$0xff] %vm954, %v951
      %s959 = scalar_lea.vmem [#allocation2], 144
      %v960 = vld [vmem:[%s959] sm:$0xff]
      %v961 = vld [vmem:[%s959 + $0x8] sm:$0xff]
      %v962 = vld [vmem:[%s959 + $0x10] sm:$0xff]
      %v963 = vld [vmem:[%s959 + $0x18] sm:$0xff]
      %v964 = vld [vmem:[%s959 + $0x20] sm:$0xff]
      %v965 = vld [vmem:[%s959 + $0x28] sm:$0xff]
      %s966 = scalar_lea.vmem [#allocation2], 48
      %967 = vst [vmem:[%s966] sm:$0xff] %v960
      %968 = vst [vmem:[%s966 + $0x8] sm:$0xff] %v961
      %969 = vst.msk [vmem:[%s966 + $0x10] sm:$0xff] %vm954, %v962
      %970 = vst [vmem:[%s966 + $0x18] sm:$0xff] %v963
      %971 = vst [vmem:[%s966 + $0x20] sm:$0xff] %v964
      %972 = vst.msk [vmem:[%s966 + $0x28] sm:$0xff] %vm954, %v965
      %s973 = scalar_lea.vmem [#allocation2], 1536
      %v974 = vld [vmem:[%s973] sm:$0xff]
      %v975 = vld [vmem:[%s973 + $0x8] sm:$0xff]
      %v976 = vld [vmem:[%s973 + $0x10] sm:$0xff]
      %v977 = vld [vmem:[%s973 + $0x18] sm:$0xff]
      %v978 = vld [vmem:[%s973 + $0x20] sm:$0xff]
      %v979 = vld [vmem:[%s973 + $0x28] sm:$0xff]
      %s980 = scalar_lea.vmem [#allocation2], 1632
      %981 = vst [vmem:[%s980] sm:$0xff] %v974
      %982 = vst [vmem:[%s980 + $0x8] sm:$0xff] %v975
      %983 = vst.msk [vmem:[%s980 + $0x10] sm:$0xff] %vm954, %v976
      %984 = vst [vmem:[%s980 + $0x18] sm:$0xff] %v977
      %985 = vst [vmem:[%s980 + $0x20] sm:$0xff] %v978
      %986 = vst.msk [vmem:[%s980 + $0x28] sm:$0xff] %vm954, %v979
      %s987 = scalar_lea.vmem [#allocation2], 1488
      %v988 = vld [vmem:[%s987] sm:$0xff]
      %v989 = vld [vmem:[%s987 + $0x8] sm:$0xff]
      %v990 = vld [vmem:[%s987 + $0x10] sm:$0xff]
      %v991 = vld [vmem:[%s987 + $0x18] sm:$0xff]
      %v992 = vld [vmem:[%s987 + $0x20] sm:$0xff]
      %v993 = vld [vmem:[%s987 + $0x28] sm:$0xff]
      %s994 = scalar_lea.vmem [#allocation2], 1680
      %995 = vst [vmem:[%s994] sm:$0xff] %v988
      %996 = vst [vmem:[%s994 + $0x8] sm:$0xff] %v989
      %997 = vst.msk [vmem:[%s994 + $0x10] sm:$0xff] %vm954, %v990
      %998 = vst [vmem:[%s994 + $0x18] sm:$0xff] %v991
      %999 = vst [vmem:[%s994 + $0x20] sm:$0xff] %v992
      %1000 = vst.msk [vmem:[%s994 + $0x28] sm:$0xff] %vm954, %v993
      loop: start=0, step=1, limit=7
      $region36: #{sr_model_forward.1} parent=27 // loop_pre_header
        _
      $region37: #{sr_model_forward.1} parent=27 // loop_header
        %s1002 = sphi 0, %s1006
        %p1003 = scmp.ge.s32.totalorder %s1002, 7
      $region38: #{sr_model_forward.1} parent=27 // loop_header_branch
        %1005 = sbr.rel (%p1003) target = $region42
      $region39: #{sr_model_forward.1} parent=27 // loop_body
        %p1007 = scmp.lt.s32.totalorder %s1002, 0
        %s1008 = ssub.s32 0, %s1002
        %s1009 = scalar_select %p1007, %s1008, %s1002
        %s1010 = sand.u32 %s1009, 1
        %s1011 = ssub.s32 0, %s1010
        %s1012 = scalar_select %p1007, %s1011, %s1010
        %p1013 = scmp.ne.s32.totalorder %s1012, 0
        %p1014 = scmp.lt.s32.totalorder %s1012, 0
        %p1015 = pnand %p1014, %p1013
        %p1016 = pneg %p1015
        %s1017 = sadd.s32 %s1012, 2
        %s1018 = scalar_select %p1016, %s1017, %s1012
        %s1019 = ssub.s32 1, %s1018
        loop: start=0, step=1, limit=4
        $region43: #{sr_model_forward.1} parent=39 // loop_pre_header
          _
        $region44: #{sr_model_forward.1} parent=39 // loop_header
          %s1021 = sphi 0, %s1025
          %p1022 = scmp.ge.s32.totalorder %s1021, 4
        $region45: #{sr_model_forward.1} parent=39 // loop_header_branch
          %1024 = sbr.rel (%p1022) target = $region49
        $region46: #{sr_model_forward.1} parent=39 // loop_body
          %s1026 = smul.u32 %s1021, 8
          %s1027 = smul.u32 %s1026, 6
          %s1028 = smul.u32 %s1018, 216
          %s1029 = sadd.s32 %s1027, %s1028
          %s1030 = smul.addr %s1029, 8
          %s1031 = scalar_lea.vmem [#allocation2], %s1030
          %v1032 = vld [vmem:[%s1031] sm:$0xff]
          %v1033 = vld [vmem:[%s1031 + $0x8] sm:$0xff]
          %v1034 = vld [vmem:[%s1031 + $0x10] sm:$0xff]
          %v1035 = vld [vmem:[%s1031 + $0x18] sm:$0xff]
          %v1036 = vld [vmem:[%s1031 + $0x20] sm:$0xff]
          %v1037 = vld [vmem:[%s1031 + $0x28] sm:$0xff]
          %v1038 = vld [vmem:[%s1031 + $0x30] sm:$0xff]
          %v1039 = vld [vmem:[%s1031 + $0x38] sm:$0xff]
          %v1040 = vld [vmem:[%s1031 + $0x40] sm:$0xff]
          %v1041 = vld [vmem:[%s1031 + $0x48] sm:$0xff]
          %v1042 = vld [vmem:[%s1031 + $0x50] sm:$0xff]
          %v1043 = vld [vmem:[%s1031 + $0x58] sm:$0xff]
          %v1044 = vld [vmem:[%s1031 + $0x60] sm:$0xff]
          %v1045 = vld [vmem:[%s1031 + $0x68] sm:$0xff]
          %v1046 = vld [vmem:[%s1031 + $0x70] sm:$0xff]
          %v1047 = vld [vmem:[%s1031 + $0x78] sm:$0xff]
          %v1048 = vld [vmem:[%s1031 + $0x80] sm:$0xff]
          %v1049 = vld [vmem:[%s1031 + $0x88] sm:$0xff]
          %v1050 = vld [vmem:[%s1031 + $0x90] sm:$0xff]
          %v1051 = vld [vmem:[%s1031 + $0x98] sm:$0xff]
          %v1052 = vld [vmem:[%s1031 + $0xa0] sm:$0xff]
          %v1053 = vld [vmem:[%s1031 + $0xa8] sm:$0xff]
          %v1054 = vld [vmem:[%s1031 + $0xb0] sm:$0xff]
          %v1055 = vld [vmem:[%s1031 + $0xb8] sm:$0xff]
          %v1056 = vld [vmem:[%s1031 + $0xc0] sm:$0xff]
          %v1057 = vld [vmem:[%s1031 + $0xc8] sm:$0xff]
          %v1058 = vld [vmem:[%s1031 + $0xd0] sm:$0xff]
          %v1059 = vld [vmem:[%s1031 + $0xd8] sm:$0xff]
          %v1060 = vld [vmem:[%s1031 + $0xe0] sm:$0xff]
          %v1061 = vld [vmem:[%s1031 + $0xe8] sm:$0xff]
          %v1062 = vld [vmem:[%s1031 + $0xf0] sm:$0xff]
          %v1063 = vld [vmem:[%s1031 + $0xf8] sm:$0xff]
          %v1064 = vld [vmem:[%s1031 + $0x100] sm:$0xff]
          %v1065 = vld [vmem:[%s1031 + $0x108] sm:$0xff]
          %v1066 = vld [vmem:[%s1031 + $0x110] sm:$0xff]
          %v1067 = vld [vmem:[%s1031 + $0x118] sm:$0xff]
          %v1068 = vld [vmem:[%s1031 + $0x120] sm:$0xff]
          %v1069 = vld [vmem:[%s1031 + $0x128] sm:$0xff]
          %v1070 = vld [vmem:[%s1031 + $0x130] sm:$0xff]
          %v1071 = vld [vmem:[%s1031 + $0x138] sm:$0xff]
          %v1072 = vld [vmem:[%s1031 + $0x140] sm:$0xff]
          %v1073 = vld [vmem:[%s1031 + $0x148] sm:$0xff]
          %v1074 = vld [vmem:[%s1031 + $0x150] sm:$0xff]
          %v1075 = vld [vmem:[%s1031 + $0x158] sm:$0xff]
          %v1076 = vld [vmem:[%s1031 + $0x160] sm:$0xff]
          %v1077 = vld [vmem:[%s1031 + $0x168] sm:$0xff]
          %v1078 = vld [vmem:[%s1031 + $0x170] sm:$0xff]
          %v1079 = vld [vmem:[%s1031 + $0x178] sm:$0xff]
          %s1080 = smul.u32 %s1002, 200
          %s1081 = smul.addr %s1080, 4
          %s1082 = scalar_lea.vmem %s1, %s1081
          %v1083 = vld [vmem:[%s1082] sm:$0xf]
          %v1084 = vld [vmem:[%s1082 + $0x4] sm:$0xf]
          %v1085 = vld [vmem:[%s1082 + $0x8] sm:$0xf]
          %v1086 = vld [vmem:[%s1082 + $0xc] sm:$0xf]
          %v1087 = vld [vmem:[%s1082 + $0x10] sm:$0xf]
          %v1088 = vld [vmem:[%s1082 + $0x14] sm:$0xf]
          %v1089 = vld [vmem:[%s1082 + $0x18] sm:$0xf]
          %v1090 = vld [vmem:[%s1082 + $0x1c] sm:$0xf]
          %v1091 = vld [vmem:[%s1082 + $0x20] sm:$0xf]
          %v1092 = vld [vmem:[%s1082 + $0x24] sm:$0xf]
          %v1093 = vld [vmem:[%s1082 + $0x28] sm:$0xf]
          %v1094 = vld [vmem:[%s1082 + $0x2c] sm:$0xf]
          %v1095 = vld [vmem:[%s1082 + $0x30] sm:$0xf]
          %v1096 = vld [vmem:[%s1082 + $0x34] sm:$0xf]
          %v1097 = vld [vmem:[%s1082 + $0x38] sm:$0xf]
          %v1098 = vld [vmem:[%s1082 + $0x3c] sm:$0xf]
          %v1099 = vld [vmem:[%s1082 + $0x40] sm:$0xf]
          %v1100 = vld [vmem:[%s1082 + $0x44] sm:$0xf]
          %v1101 = vld [vmem:[%s1082 + $0x48] sm:$0xf]
          %v1102 = vld [vmem:[%s1082 + $0x4c] sm:$0xf]
          %v1103 = vld [vmem:[%s1082 + $0x50] sm:$0xf]
          %v1104 = vld [vmem:[%s1082 + $0x54] sm:$0xf]
          %v1105 = vld [vmem:[%s1082 + $0x58] sm:$0xf]
          %v1106 = vld [vmem:[%s1082 + $0x5c] sm:$0xf]
          %v1107 = vld [vmem:[%s1082 + $0x60] sm:$0xf]
          %v1108 = vld [vmem:[%s1082 + $0x64] sm:$0xf]
          %v1109 = vld [vmem:[%s1082 + $0x68] sm:$0xf]
          %v1110 = vld [vmem:[%s1082 + $0x6c] sm:$0xf]
          %v1111 = vld [vmem:[%s1082 + $0x70] sm:$0xf]
          %v1112 = vld [vmem:[%s1082 + $0x74] sm:$0xf]
          %v1113 = vld [vmem:[%s1082 + $0x78] sm:$0xf]
          %v1114 = vld [vmem:[%s1082 + $0x7c] sm:$0xf]
          %v1115 = vld [vmem:[%s1082 + $0x80] sm:$0xf]
          %v1116 = vld [vmem:[%s1082 + $0x84] sm:$0xf]
          %v1117 = vld [vmem:[%s1082 + $0x88] sm:$0xf]
          %v1118 = vld [vmem:[%s1082 + $0x8c] sm:$0xf]
          %v1119 = vld [vmem:[%s1082 + $0x90] sm:$0xf]
          %v1120 = vld [vmem:[%s1082 + $0x94] sm:$0xf]
          %v1121 = vld [vmem:[%s1082 + $0x98] sm:$0xf]
          %v1122 = vld [vmem:[%s1082 + $0x9c] sm:$0xf]
          %s1123 = sadd.s32 %s1026, 1
          %s1124 = smul.u32 %s1123, 6
          %s1125 = sadd.s32 %s1124, %s1028
          %s1126 = smul.addr %s1125, 8
          %s1127 = scalar_lea.vmem [#allocation2], %s1126
          %v1128 = vld [vmem:[%s1127] sm:$0xff]
          %v1129 = vld [vmem:[%s1127 + $0x8] sm:$0xff]
          %v1130 = vld [vmem:[%s1127 + $0x10] sm:$0xff]
          %v1131 = vld [vmem:[%s1127 + $0x18] sm:$0xff]
          %v1132 = vld [vmem:[%s1127 + $0x20] sm:$0xff]
          %v1133 = vld [vmem:[%s1127 + $0x28] sm:$0xff]
          %v1134 = vld [vmem:[%s1127 + $0x30] sm:$0xff]
          %v1135 = vld [vmem:[%s1127 + $0x38] sm:$0xff]
          %v1136 = vld [vmem:[%s1127 + $0x40] sm:$0xff]
          %v1137 = vld [vmem:[%s1127 + $0x48] sm:$0xff]
          %v1138 = vld [vmem:[%s1127 + $0x50] sm:$0xff]
          %v1139 = vld [vmem:[%s1127 + $0x58] sm:$0xff]
          %v1140 = vld [vmem:[%s1127 + $0x60] sm:$0xff]
          %v1141 = vld [vmem:[%s1127 + $0x68] sm:$0xff]
          %v1142 = vld [vmem:[%s1127 + $0x70] sm:$0xff]
          %v1143 = vld [vmem:[%s1127 + $0x78] sm:$0xff]
          %v1144 = vld [vmem:[%s1127 + $0x80] sm:$0xff]
          %v1145 = vld [vmem:[%s1127 + $0x88] sm:$0xff]
          %v1146 = vld [vmem:[%s1127 + $0x90] sm:$0xff]
          %v1147 = vld [vmem:[%s1127 + $0x98] sm:$0xff]
          %v1148 = vld [vmem:[%s1127 + $0xa0] sm:$0xff]
          %v1149 = vld [vmem:[%s1127 + $0xa8] sm:$0xff]
          %v1150 = vld [vmem:[%s1127 + $0xb0] sm:$0xff]
          %v1151 = vld [vmem:[%s1127 + $0xb8] sm:$0xff]
          %v1152 = vld [vmem:[%s1127 + $0xc0] sm:$0xff]
          %v1153 = vld [vmem:[%s1127 + $0xc8] sm:$0xff]
          %v1154 = vld [vmem:[%s1127 + $0xd0] sm:$0xff]
          %v1155 = vld [vmem:[%s1127 + $0xd8] sm:$0xff]
          %v1156 = vld [vmem:[%s1127 + $0xe0] sm:$0xff]
          %v1157 = vld [vmem:[%s1127 + $0xe8] sm:$0xff]
          %v1158 = vld [vmem:[%s1127 + $0xf0] sm:$0xff]
          %v1159 = vld [vmem:[%s1127 + $0xf8] sm:$0xff]
          %v1160 = vld [vmem:[%s1127 + $0x100] sm:$0xff]
          %v1161 = vld [vmem:[%s1127 + $0x108] sm:$0xff]
          %v1162 = vld [vmem:[%s1127 + $0x110] sm:$0xff]
          %v1163 = vld [vmem:[%s1127 + $0x118] sm:$0xff]
          %v1164 = vld [vmem:[%s1127 + $0x120] sm:$0xff]
          %v1165 = vld [vmem:[%s1127 + $0x128] sm:$0xff]
          %v1166 = vld [vmem:[%s1127 + $0x130] sm:$0xff]
          %v1167 = vld [vmem:[%s1127 + $0x138] sm:$0xff]
          %v1168 = vld [vmem:[%s1127 + $0x140] sm:$0xff]
          %v1169 = vld [vmem:[%s1127 + $0x148] sm:$0xff]
          %v1170 = vld [vmem:[%s1127 + $0x150] sm:$0xff]
          %v1171 = vld [vmem:[%s1127 + $0x158] sm:$0xff]
          %v1172 = vld [vmem:[%s1127 + $0x160] sm:$0xff]
          %v1173 = vld [vmem:[%s1127 + $0x168] sm:$0xff]
          %v1174 = vld [vmem:[%s1127 + $0x170] sm:$0xff]
          %v1175 = vld [vmem:[%s1127 + $0x178] sm:$0xff]
          %s1176 = sadd.s32 40, %s1080
          %s1177 = smul.addr %s1176, 4
          %s1178 = scalar_lea.vmem %s1, %s1177
          %v1179 = vld [vmem:[%s1178] sm:$0xf]
          %v1180 = vld [vmem:[%s1178 + $0x4] sm:$0xf]
          %v1181 = vld [vmem:[%s1178 + $0x8] sm:$0xf]
          %v1182 = vld [vmem:[%s1178 + $0xc] sm:$0xf]
          %v1183 = vld [vmem:[%s1178 + $0x10] sm:$0xf]
          %v1184 = vld [vmem:[%s1178 + $0x14] sm:$0xf]
          %v1185 = vld [vmem:[%s1178 + $0x18] sm:$0xf]
          %v1186 = vld [vmem:[%s1178 + $0x1c] sm:$0xf]
          %v1187 = vld [vmem:[%s1178 + $0x20] sm:$0xf]
          %v1188 = vld [vmem:[%s1178 + $0x24] sm:$0xf]
          %v1189 = vld [vmem:[%s1178 + $0x28] sm:$0xf]
          %v1190 = vld [vmem:[%s1178 + $0x2c] sm:$0xf]
          %v1191 = vld [vmem:[%s1178 + $0x30] sm:$0xf]
          %v1192 = vld [vmem:[%s1178 + $0x34] sm:$0xf]
          %v1193 = vld [vmem:[%s1178 + $0x38] sm:$0xf]
          %v1194 = vld [vmem:[%s1178 + $0x3c] sm:$0xf]
          %v1195 = vld [vmem:[%s1178 + $0x40] sm:$0xf]
          %v1196 = vld [vmem:[%s1178 + $0x44] sm:$0xf]
          %v1197 = vld [vmem:[%s1178 + $0x48] sm:$0xf]
          %v1198 = vld [vmem:[%s1178 + $0x4c] sm:$0xf]
          %v1199 = vld [vmem:[%s1178 + $0x50] sm:$0xf]
          %v1200 = vld [vmem:[%s1178 + $0x54] sm:$0xf]
          %v1201 = vld [vmem:[%s1178 + $0x58] sm:$0xf]
          %v1202 = vld [vmem:[%s1178 + $0x5c] sm:$0xf]
          %v1203 = vld [vmem:[%s1178 + $0x60] sm:$0xf]
          %v1204 = vld [vmem:[%s1178 + $0x64] sm:$0xf]
          %v1205 = vld [vmem:[%s1178 + $0x68] sm:$0xf]
          %v1206 = vld [vmem:[%s1178 + $0x6c] sm:$0xf]
          %v1207 = vld [vmem:[%s1178 + $0x70] sm:$0xf]
          %v1208 = vld [vmem:[%s1178 + $0x74] sm:$0xf]
          %v1209 = vld [vmem:[%s1178 + $0x78] sm:$0xf]
          %v1210 = vld [vmem:[%s1178 + $0x7c] sm:$0xf]
          %v1211 = vld [vmem:[%s1178 + $0x80] sm:$0xf]
          %v1212 = vld [vmem:[%s1178 + $0x84] sm:$0xf]
          %v1213 = vld [vmem:[%s1178 + $0x88] sm:$0xf]
          %v1214 = vld [vmem:[%s1178 + $0x8c] sm:$0xf]
          %v1215 = vld [vmem:[%s1178 + $0x90] sm:$0xf]
          %v1216 = vld [vmem:[%s1178 + $0x94] sm:$0xf]
          %v1217 = vld [vmem:[%s1178 + $0x98] sm:$0xf]
          %v1218 = vld [vmem:[%s1178 + $0x9c] sm:$0xf]
          %v1259 = vunpack.c.l.b16 %v1179
          %v1260 = vunpack.c.l.b16 %v1180
          %v1261 = vunpack.c.l.b16 %v1181
          %v1262 = vunpack.c.l.b16 %v1182
          %v1263 = vunpack.c.l.b16 %v1183
          %v1264 = vunpack.c.l.b16 %v1184
          %v1265 = vunpack.c.l.b16 %v1185
          %v1266 = vunpack.c.l.b16 %v1186
          %v1267 = vunpack.c.l.b16 %v1187
          %v1268 = vunpack.c.l.b16 %v1188
          %v1269 = vunpack.c.l.b16 %v1189
          %v1270 = vunpack.c.l.b16 %v1190
          %v1271 = vunpack.c.l.b16 %v1191
          %v1272 = vunpack.c.l.b16 %v1192
          %v1273 = vunpack.c.l.b16 %v1193
          %v1274 = vunpack.c.l.b16 %v1194
          %v1275 = vunpack.c.l.b16 %v1195
          %v1276 = vunpack.c.l.b16 %v1196
          %v1277 = vunpack.c.l.b16 %v1197
          %v1278 = vunpack.c.l.b16 %v1198
          %v1279 = vunpack.c.l.b16 %v1199
          %v1280 = vunpack.c.l.b16 %v1200
          %v1281 = vunpack.c.l.b16 %v1201
          %v1282 = vunpack.c.l.b16 %v1202
          %v1283 = vunpack.c.l.b16 %v1203
          %v1284 = vunpack.c.l.b16 %v1204
          %v1285 = vunpack.c.l.b16 %v1205
          %v1286 = vunpack.c.l.b16 %v1206
          %v1287 = vunpack.c.l.b16 %v1207
          %v1288 = vunpack.c.l.b16 %v1208
          %v1289 = vunpack.c.l.b16 %v1209
          %v1290 = vunpack.c.l.b16 %v1210
          %v1291 = vunpack.c.l.b16 %v1211
          %v1292 = vunpack.c.l.b16 %v1212
          %v1293 = vunpack.c.l.b16 %v1213
          %v1294 = vunpack.c.l.b16 %v1214
          %v1295 = vunpack.c.l.b16 %v1215
          %v1296 = vunpack.c.l.b16 %v1216
          %v1297 = vunpack.c.l.b16 %v1217
          %v1298 = vunpack.c.l.b16 %v1218
          %v1299 = vpack.c.b16 %v1260, %v1259
          %v1300 = vpack.c.b16 %v1262, %v1261
          %v1301 = vpack.c.b16 %v1264, %v1263
          %v1302 = vpack.c.b16 %v1266, %v1265
          %v1303 = vpack.c.b16 %v1268, %v1267
          %v1304 = vpack.c.b16 %v1270, %v1269
          %v1305 = vpack.c.b16 %v1272, %v1271
          %v1306 = vpack.c.b16 %v1274, %v1273
          %v1307 = vpack.c.b16 %v1276, %v1275
          %v1308 = vpack.c.b16 %v1278, %v1277
          %v1309 = vpack.c.b16 %v1280, %v1279
          %v1310 = vpack.c.b16 %v1282, %v1281
          %v1311 = vpack.c.b16 %v1284, %v1283
          %v1312 = vpack.c.b16 %v1286, %v1285
          %v1313 = vpack.c.b16 %v1288, %v1287
          %v1314 = vpack.c.b16 %v1290, %v1289
          %v1315 = vpack.c.b16 %v1292, %v1291
          %v1316 = vpack.c.b16 %v1294, %v1293
          %v1317 = vpack.c.b16 %v1296, %v1295
          %v1318 = vpack.c.b16 %v1298, %v1297
          %v1340 = vsel %vm954, %v1130, 0
          %v1343 = vsel %vm954, %v1133, 0
          %v1346 = vsel %vm954, %v1136, 0
          %v1349 = vsel %vm954, %v1139, 0
          %v1352 = vsel %vm954, %v1142, 0
          %v1355 = vsel %vm954, %v1145, 0
          %v1358 = vsel %vm954, %v1148, 0
          %v1361 = vsel %vm954, %v1151, 0
          %v1364 = vsel %vm954, %v1154, 0
          %v1367 = vsel %vm954, %v1157, 0
          %v1370 = vsel %vm954, %v1160, 0
          %v1373 = vsel %vm954, %v1163, 0
          %v1376 = vsel %vm954, %v1166, 0
          %v1379 = vsel %vm954, %v1169, 0
          %v1382 = vsel %vm954, %v1172, 0
          %v1385 = vsel %vm954, %v1175, 0
          %1387 = vmatprep.subr.bf16.mxu0 0
          %1388 = vmatpush1.bf16.msra.mxu0 %v1299
          %1389 = vmatprep.subr.bf16.mxu0 0
          %1390 = vmatpush1.bf16.msra.mxu0 %v1300
          %1391 = vmatprep.subr.bf16.mxu0 0
          %1392 = vmatpush1.bf16.msra.mxu0 %v1301
          %1393 = vmatprep.subr.bf16.mxu0 0
          %1394 = vmatpush1.bf16.msra.mxu0 %v1302
          %1395 = vmatprep.subr.bf16.mxu0 0
          %1396 = vmatpush1.bf16.msra.mxu0 %v1303
          %1397 = vmatprep.subr.bf16.mxu0 0
          %1398 = vmatpush1.bf16.msra.mxu0 %v1304
          %1399 = vmatprep.subr.bf16.mxu0 0
          %1400 = vmatpush1.bf16.msra.mxu0 %v1305
          %1401 = vmatprep.subr.bf16.mxu0 0
          %1402 = vmatpush1.bf16.msra.mxu0 %v1306
          %1403 = vmatprep.subr.bf16.mxu0 0
          %1404 = vmatpush1.bf16.msra.mxu0 %v1307
          %1405 = vmatprep.subr.bf16.mxu0 0
          %1406 = vmatpush1.bf16.msra.mxu0 %v1308
          %1407 = vmatprep.subr.bf16.mxu0 0
          %1408 = vmatpush1.bf16.msra.mxu0 %v1309
          %1409 = vmatprep.subr.bf16.mxu0 0
          %1410 = vmatpush1.bf16.msra.mxu0 %v1310
          %1411 = vmatprep.subr.bf16.mxu0 0
          %1412 = vmatpush1.bf16.msra.mxu0 %v1311
          %1413 = vmatprep.subr.bf16.mxu0 0
          %1414 = vmatpush1.bf16.msra.mxu0 %v1312
          %1415 = vmatprep.subr.bf16.mxu0 0
          %1416 = vmatpush1.bf16.msra.mxu0 %v1313
          %1417 = vmatprep.subr.bf16.mxu0 0
          %1418 = vmatpush1.bf16.msra.mxu0 %v1314
          %1419 = vmatprep.mubr.bf16.mxu0 %v1129
          %1420 = vmatmul.mubr.bf16.gmra.mrb[0].mxu0 %v1128
          %v1421 = vpop.f32.mrb[0].mxu0
          %v1422 = vadd.f32 0.0, %v1421
          %v1423 = vpop.f32.mrb[0].mxu0
          %v1424 = vpop.f32.mrb[0].mxu0
          %v1425 = vadd.f32 0.0, %v1424
          %v1426 = vpop.f32.mrb[0].mxu0
          %1427 = vmatprep.mubr.bf16.mxu0 %v1132
          %1428 = vmatmul.mubr.bf16.gmra.mrb[0].mxu0 %v1131
          %v1429 = vpop.f32.mrb[0].mxu0
          %v1430 = vadd.f32 0.0, %v1429
          %v1431 = vpop.f32.mrb[0].mxu0
          %v1432 = vpop.f32.mrb[0].mxu0
          %v1433 = vadd.f32 0.0, %v1432
          %v1434 = vpop.f32.mrb[0].mxu0
          %1435 = vmatprep.mubr.bf16.mxu0 %v1135
          %1436 = vmatmul.mubr.bf16.gmra.mrb[0].mxu0 %v1134
          %v1437 = vpop.f32.mrb[0].mxu0
          %v1438 = vadd.f32 0.0, %v1437
          %v1439 = vpop.f32.mrb[0].mxu0
          %v1440 = vpop.f32.mrb[0].mxu0
          %v1441 = vadd.f32 0.0, %v1440
          %v1442 = vpop.f32.mrb[0].mxu0
          %1443 = vmatprep.mubr.bf16.mxu0 %v1138
          %1444 = vmatmul.mubr.bf16.gmra.mrb[0].mxu0 %v1137
          %v1445 = vpop.f32.mrb[0].mxu0
          %v1446 = vadd.f32 0.0, %v1445
          %v1447 = vpop.f32.mrb[0].mxu0
          %v1448 = vpop.f32.mrb[0].mxu0
          %v1449 = vadd.f32 0.0, %v1448
          %v1450 = vpop.f32.mrb[0].mxu0
          %1451 = vmatprep.mubr.bf16.mxu0 %v1141
          %1452 = vmatmul.mubr.bf16.gmra.mrb[0].mxu0 %v1140
          %v1453 = vpop.f32.mrb[0].mxu0
          %v1454 = vadd.f32 0.0, %v1453
          %v1455 = vpop.f32.mrb[0].mxu0
          %v1456 = vpop.f32.mrb[0].mxu0
          %v1457 = vadd.f32 0.0, %v1456
          %v1458 = vpop.f32.mrb[0].mxu0
          %1459 = vmatprep.mubr.bf16.mxu0 %v1144
          %1460 = vmatmul.mubr.bf16.gmra.mrb[0].mxu0 %v1143
          %v1461 = vpop.f32.mrb[0].mxu0
          %v1462 = vadd.f32 0.0, %v1461
          %v1463 = vpop.f32.mrb[0].mxu0
          %v1464 = vpop.f32.mrb[0].mxu0
          %v1465 = vadd.f32 0.0, %v1464
          %v1466 = vpop.f32.mrb[0].mxu0
          %1467 = vmatprep.mubr.bf16.mxu0 %v1147
          %1468 = vmatmul.mubr.bf16.gmra.mrb[0].mxu0 %v1146
          %v1469 = vpop.f32.mrb[0].mxu0
          %v1470 = vadd.f32 0.0, %v1469
          %v1471 = vpop.f32.mrb[0].mxu0
          %v1472 = vpop.f32.mrb[0].mxu0
          %v1473 = vadd.f32 0.0, %v1472
          %v1474 = vpop.f32.mrb[0].mxu0
          %1475 = vmatprep.mubr.bf16.mxu0 %v1150
          %1476 = vmatmul.mubr.bf16.gmra.mrb[0].mxu0 %v1149
          %v1477 = vpop.f32.mrb[0].mxu0
          %v1478 = vadd.f32 0.0, %v1477
          %v1479 = vpop.f32.mrb[0].mxu0
          %v1480 = vpop.f32.mrb[0].mxu0
          %v1481 = vadd.f32 0.0, %v1480
          %v1482 = vpop.f32.mrb[0].mxu0
          %1483 = vmatprep.mubr.bf16.mxu0 %v1153
          %1484 = vmatmul.mubr.bf16.gmra.mrb[0].mxu0 %v1152
          %v1485 = vpop.f32.mrb[0].mxu0
          %v1486 = vadd.f32 0.0, %v1485
          %v1487 = vpop.f32.mrb[0].mxu0
          %v1488 = vpop.f32.mrb[0].mxu0
          %v1489 = vadd.f32 0.0, %v1488
          %v1490 = vpop.f32.mrb[0].mxu0
          %1491 = vmatprep.mubr.bf16.mxu0 %v1156
          %1492 = vmatmul.mubr.bf16.gmra.mrb[0].mxu0 %v1155
          %v1493 = vpop.f32.mrb[0].mxu0
          %v1494 = vadd.f32 0.0, %v1493
          %v1495 = vpop.f32.mrb[0].mxu0
          %v1496 = vpop.f32.mrb[0].mxu0
          %v1497 = vadd.f32 0.0, %v1496
          %v1498 = vpop.f32.mrb[0].mxu0
          %1499 = vmatprep.mubr.bf16.mxu0 %v1159
          %1500 = vmatmul.mubr.bf16.gmra.mrb[0].mxu0 %v1158
          %v1501 = vpop.f32.mrb[0].mxu0
          %v1502 = vadd.f32 0.0, %v1501
          %v1503 = vpop.f32.mrb[0].mxu0
          %v1504 = vpop.f32.mrb[0].mxu0
          %v1505 = vadd.f32 0.0, %v1504
          %v1506 = vpop.f32.mrb[0].mxu0
          %1507 = vmatprep.mubr.bf16.mxu0 %v1162
          %1508 = vmatmul.mubr.bf16.gmra.mrb[0].mxu0 %v1161
          %v1509 = vpop.f32.mrb[0].mxu0
          %v1510 = vadd.f32 0.0, %v1509
          %v1511 = vpop.f32.mrb[0].mxu0
          %v1512 = vpop.f32.mrb[0].mxu0
          %v1513 = vadd.f32 0.0, %v1512
          %v1514 = vpop.f32.mrb[0].mxu0
          %1515 = vmatprep.mubr.bf16.mxu0 %v1165
          %1516 = vmatmul.mubr.bf16.gmra.mrb[0].mxu0 %v1164
          %v1517 = vpop.f32.mrb[0].mxu0
          %v1518 = vadd.f32 0.0, %v1517
          %v1519 = vpop.f32.mrb[0].mxu0
          %v1520 = vpop.f32.mrb[0].mxu0
          %v1521 = vadd.f32 0.0, %v1520
          %v1522 = vpop.f32.mrb[0].mxu0
          %1523 = vmatprep.mubr.bf16.mxu0 %v1168
          %1524 = vmatmul.mubr.bf16.gmra.mrb[0].mxu0 %v1167
          %v1525 = vpop.f32.mrb[0].mxu0
          %v1526 = vadd.f32 0.0, %v1525
          %v1527 = vpop.f32.mrb[0].mxu0
          %v1528 = vpop.f32.mrb[0].mxu0
          %v1529 = vadd.f32 0.0, %v1528
          %v1530 = vpop.f32.mrb[0].mxu0
          %1531 = vmatprep.mubr.bf16.mxu0 %v1171
          %1532 = vmatmul.mubr.bf16.gmra.mrb[0].mxu0 %v1170
          %v1533 = vpop.f32.mrb[0].mxu0
          %v1534 = vadd.f32 0.0, %v1533
          %v1535 = vpop.f32.mrb[0].mxu0
          %v1536 = vpop.f32.mrb[0].mxu0
          %v1537 = vadd.f32 0.0, %v1536
          %v1538 = vpop.f32.mrb[0].mxu0
          %1539 = vmatprep.mubr.bf16.mxu0 %v1174
          %1540 = vmatmul.mubr.bf16.gmra.mrb[0].mxu0 %v1173
          %v1541 = vpop.f32.mrb[0].mxu0
          %v1542 = vadd.f32 0.0, %v1541
          %v1543 = vpop.f32.mrb[0].mxu0
          %v1544 = vpop.f32.mrb[0].mxu0
          %v1545 = vadd.f32 0.0, %v1544
          %v1546 = vpop.f32.mrb[0].mxu0
          %1547 = vdwg.mxu0
          %1548 = vmatprep.subr.bf16.mxu0 0
          %1549 = vmatpush1.bf16.msra.mxu0 %v1315
          %1550 = vmatprep.subr.bf16.mxu0 0
          %1551 = vmatpush1.bf16.msra.mxu0 %v1316
          %1552 = vmatprep.subr.bf16.mxu0 0
          %1553 = vmatpush1.bf16.msra.mxu0 %v1317
          %1554 = vmatprep.subr.bf16.mxu0 0
          %1555 = vmatpush1.bf16.msra.mxu0 %v1318
          %1556 = vmatprep.subr.bf16.mxu0 0
          %1557 = vmatpush1.bf16.msra.mxu0 0
          %1558 = vmatprep.subr.bf16.mxu0 0
          %1559 = vmatpush1.bf16.msra.mxu0 0
          %1560 = vmatprep.subr.bf16.mxu0 0
          %1561 = vmatpush1.bf16.msra.mxu0 0
          %1562 = vmatprep.subr.bf16.mxu0 0
          %1563 = vmatpush1.bf16.msra.mxu0 0
          %1564 = vmatprep.subr.bf16.mxu0 0
          %1565 = vmatpush1.bf16.msra.mxu0 0
          %1566 = vmatprep.subr.bf16.mxu0 0
          %1567 = vmatpush1.bf16.msra.mxu0 0
          %1568 = vmatprep.subr.bf16.mxu0 0
          %1569 = vmatpush1.bf16.msra.mxu0 0
          %1570 = vmatprep.subr.bf16.mxu0 0
          %1571 = vmatpush1.bf16.msra.mxu0 0
          %1572 = vmatprep.subr.bf16.mxu0 0
          %1573 = vmatpush1.bf16.msra.mxu0 0
          %1574 = vmatprep.subr.bf16.mxu0 0
          %1575 = vmatpush1.bf16.msra.mxu0 0
          %1576 = vmatprep.subr.bf16.mxu0 0
          %1577 = vmatpush1.bf16.msra.mxu0 0
          %1578 = vmatprep.subr.bf16.mxu0 0
          %1579 = vmatpush1.bf16.msra.mxu0 0
          %1580 = vmatprep.mubr.bf16.mxu0 0
          %1581 = vmatmul.mubr.bf16.gmra.mrb[0].mxu0 %v1340
          %v1582 = vpop.f32.mrb[0].mxu0
          %v1583 = vadd.f32 %v1422, %v1582
          %v1584 = vpop.f32.mrb[0].mxu0
          %v1585 = vpop.f32.mrb[0].mxu0
          %v1586 = vadd.f32 %v1425, %v1585
          %v1587 = vpop.f32.mrb[0].mxu0
          %1588 = vmatprep.mubr.bf16.mxu0 0
          %1589 = vmatmul.mubr.bf16.gmra.mrb[0].mxu0 %v1343
          %v1590 = vpop.f32.mrb[0].mxu0
          %v1591 = vadd.f32 %v1430, %v1590
          %v1592 = vpop.f32.mrb[0].mxu0
          %v1593 = vpop.f32.mrb[0].mxu0
          %v1594 = vadd.f32 %v1433, %v1593
          %v1595 = vpop.f32.mrb[0].mxu0
          %1596 = vmatprep.mubr.bf16.mxu0 0
          %1597 = vmatmul.mubr.bf16.gmra.mrb[0].mxu0 %v1346
          %v1598 = vpop.f32.mrb[0].mxu0
          %v1599 = vadd.f32 %v1438, %v1598
          %v1600 = vpop.f32.mrb[0].mxu0
          %v1601 = vpop.f32.mrb[0].mxu0
          %v1602 = vadd.f32 %v1441, %v1601
          %v1603 = vpop.f32.mrb[0].mxu0
          %1604 = vmatprep.mubr.bf16.mxu0 0
          %1605 = vmatmul.mubr.bf16.gmra.mrb[0].mxu0 %v1349
          %v1606 = vpop.f32.mrb[0].mxu0
          %v1607 = vadd.f32 %v1446, %v1606
          %v1608 = vpop.f32.mrb[0].mxu0
          %v1609 = vpop.f32.mrb[0].mxu0
          %v1610 = vadd.f32 %v1449, %v1609
          %v1611 = vpop.f32.mrb[0].mxu0
          %1612 = vmatprep.mubr.bf16.mxu0 0
          %1613 = vmatmul.mubr.bf16.gmra.mrb[0].mxu0 %v1352
          %v1614 = vpop.f32.mrb[0].mxu0
          %v1615 = vadd.f32 %v1454, %v1614
          %v1616 = vpop.f32.mrb[0].mxu0
          %v1617 = vpop.f32.mrb[0].mxu0
          %v1618 = vadd.f32 %v1457, %v1617
          %v1619 = vpop.f32.mrb[0].mxu0
          %1620 = vmatprep.mubr.bf16.mxu0 0
          %1621 = vmatmul.mubr.bf16.gmra.mrb[0].mxu0 %v1355
          %v1622 = vpop.f32.mrb[0].mxu0
          %v1623 = vadd.f32 %v1462, %v1622
          %v1624 = vpop.f32.mrb[0].mxu0
          %v1625 = vpop.f32.mrb[0].mxu0
          %v1626 = vadd.f32 %v1465, %v1625
          %v1627 = vpop.f32.mrb[0].mxu0
          %1628 = vmatprep.mubr.bf16.mxu0 0
          %1629 = vmatmul.mubr.bf16.gmra.mrb[0].mxu0 %v1358
          %v1630 = vpop.f32.mrb[0].mxu0
          %v1631 = vadd.f32 %v1470, %v1630
          %v1632 = vpop.f32.mrb[0].mxu0
          %v1633 = vpop.f32.mrb[0].mxu0
          %v1634 = vadd.f32 %v1473, %v1633
          %v1635 = vpop.f32.mrb[0].mxu0
          %1636 = vmatprep.mubr.bf16.mxu0 0
          %1637 = vmatmul.mubr.bf16.gmra.mrb[0].mxu0 %v1361
          %v1638 = vpop.f32.mrb[0].mxu0
          %v1639 = vadd.f32 %v1478, %v1638
          %v1640 = vpop.f32.mrb[0].mxu0
          %v1641 = vpop.f32.mrb[0].mxu0
          %v1642 = vadd.f32 %v1481, %v1641
          %v1643 = vpop.f32.mrb[0].mxu0
          %1644 = vmatprep.mubr.bf16.mxu0 0
          %1645 = vmatmul.mubr.bf16.gmra.mrb[0].mxu0 %v1364
          %v1646 = vpop.f32.mrb[0].mxu0
          %v1647 = vadd.f32 %v1486, %v1646
          %v1648 = vpop.f32.mrb[0].mxu0
          %v1649 = vpop.f32.mrb[0].mxu0
          %v1650 = vadd.f32 %v1489, %v1649
          %v1651 = vpop.f32.mrb[0].mxu0
          %1652 = vmatprep.mubr.bf16.mxu0 0
          %1653 = vmatmul.mubr.bf16.gmra.mrb[0].mxu0 %v1367
          %v1654 = vpop.f32.mrb[0].mxu0
          %v1655 = vadd.f32 %v1494, %v1654
          %v1656 = vpop.f32.mrb[0].mxu0
          %v1657 = vpop.f32.mrb[0].mxu0
          %v1658 = vadd.f32 %v1497, %v1657
          %v1659 = vpop.f32.mrb[0].mxu0
          %1660 = vmatprep.mubr.bf16.mxu0 0
          %1661 = vmatmul.mubr.bf16.gmra.mrb[0].mxu0 %v1370
          %v1662 = vpop.f32.mrb[0].mxu0
          %v1663 = vadd.f32 %v1502, %v1662
          %v1664 = vpop.f32.mrb[0].mxu0
          %v1665 = vpop.f32.mrb[0].mxu0
          %v1666 = vadd.f32 %v1505, %v1665
          %v1667 = vpop.f32.mrb[0].mxu0
          %1668 = vmatprep.mubr.bf16.mxu0 0
          %1669 = vmatmul.mubr.bf16.gmra.mrb[0].mxu0 %v1373
          %v1670 = vpop.f32.mrb[0].mxu0
          %v1671 = vadd.f32 %v1510, %v1670
          %v1672 = vpop.f32.mrb[0].mxu0
          %v1673 = vpop.f32.mrb[0].mxu0
          %v1674 = vadd.f32 %v1513, %v1673
          %v1675 = vpop.f32.mrb[0].mxu0
          %1676 = vmatprep.mubr.bf16.mxu0 0
          %1677 = vmatmul.mubr.bf16.gmra.mrb[0].mxu0 %v1376
          %v1678 = vpop.f32.mrb[0].mxu0
          %v1679 = vadd.f32 %v1518, %v1678
          %v1680 = vpop.f32.mrb[0].mxu0
          %v1681 = vpop.f32.mrb[0].mxu0
          %v1682 = vadd.f32 %v1521, %v1681
          %v1683 = vpop.f32.mrb[0].mxu0
          %1684 = vmatprep.mubr.bf16.mxu0 0
          %1685 = vmatmul.mubr.bf16.gmra.mrb[0].mxu0 %v1379
          %v1686 = vpop.f32.mrb[0].mxu0
          %v1687 = vadd.f32 %v1526, %v1686
          %v1688 = vpop.f32.mrb[0].mxu0
          %v1689 = vpop.f32.mrb[0].mxu0
          %v1690 = vadd.f32 %v1529, %v1689
          %v1691 = vpop.f32.mrb[0].mxu0
          %1692 = vmatprep.mubr.bf16.mxu0 0
          %1693 = vmatmul.mubr.bf16.gmra.mrb[0].mxu0 %v1382
          %v1694 = vpop.f32.mrb[0].mxu0
          %v1695 = vadd.f32 %v1534, %v1694
          %v1696 = vpop.f32.mrb[0].mxu0
          %v1697 = vpop.f32.mrb[0].mxu0
          %v1698 = vadd.f32 %v1537, %v1697
          %v1699 = vpop.f32.mrb[0].mxu0
          %1700 = vmatprep.mubr.bf16.mxu0 0
          %1701 = vmatmul.mubr.bf16.gmra.mrb[0].mxu0 %v1385
          %v1702 = vpop.f32.mrb[0].mxu0
          %v1703 = vadd.f32 %v1542, %v1702
          %v1704 = vpop.f32.mrb[0].mxu0
          %v1705 = vpop.f32.mrb[0].mxu0
          %v1706 = vadd.f32 %v1545, %v1705
          %v1707 = vpop.f32.mrb[0].mxu0
          %1708 = vdwg.mxu0
          %v1749 = vunpack.c.l.b16 %v1083
          %v1750 = vunpack.c.l.b16 %v1084
          %v1751 = vunpack.c.l.b16 %v1085
          %v1752 = vunpack.c.l.b16 %v1086
          %v1753 = vunpack.c.l.b16 %v1087
          %v1754 = vunpack.c.l.b16 %v1088
          %v1755 = vunpack.c.l.b16 %v1089
          %v1756 = vunpack.c.l.b16 %v1090
          %v1757 = vunpack.c.l.b16 %v1091
          %v1758 = vunpack.c.l.b16 %v1092
          %v1759 = vunpack.c.l.b16 %v1093
          %v1760 = vunpack.c.l.b16 %v1094
          %v1761 = vunpack.c.l.b16 %v1095
          %v1762 = vunpack.c.l.b16 %v1096
          %v1763 = vunpack.c.l.b16 %v1097
          %v1764 = vunpack.c.l.b16 %v1098
          %v1765 = vunpack.c.l.b16 %v1099
          %v1766 = vunpack.c.l.b16 %v1100
          %v1767 = vunpack.c.l.b16 %v1101
          %v1768 = vunpack.c.l.b16 %v1102
          %v1769 = vunpack.c.l.b16 %v1103
          %v1770 = vunpack.c.l.b16 %v1104
          %v1771 = vunpack.c.l.b16 %v1105
          %v1772 = vunpack.c.l.b16 %v1106
          %v1773 = vunpack.c.l.b16 %v1107
          %v1774 = vunpack.c.l.b16 %v1108
          %v1775 = vunpack.c.l.b16 %v1109
          %v1776 = vunpack.c.l.b16 %v1110
          %v1777 = vunpack.c.l.b16 %v1111
          %v1778 = vunpack.c.l.b16 %v1112
          %v1779 = vunpack.c.l.b16 %v1113
          %v1780 = vunpack.c.l.b16 %v1114
          %v1781 = vunpack.c.l.b16 %v1115
          %v1782 = vunpack.c.l.b16 %v1116
          %v1783 = vunpack.c.l.b16 %v1117
          %v1784 = vunpack.c.l.b16 %v1118
          %v1785 = vunpack.c.l.b16 %v1119
          %v1786 = vunpack.c.l.b16 %v1120
          %v1787 = vunpack.c.l.b16 %v1121
          %v1788 = vunpack.c.l.b16 %v1122
          %v1789 = vpack.c.b16 %v1750, %v1749
          %v1790 = vpack.c.b16 %v1752, %v1751
          %v1791 = vpack.c.b16 %v1754, %v1753
          %v1792 = vpack.c.b16 %v1756, %v1755
          %v1793 = vpack.c.b16 %v1758, %v1757
          %v1794 = vpack.c.b16 %v1760, %v1759
          %v1795 = vpack.c.b16 %v1762, %v1761
          %v1796 = vpack.c.b16 %v1764, %v1763
          %v1797 = vpack.c.b16 %v1766, %v1765
          %v1798 = vpack.c.b16 %v1768, %v1767
          %v1799 = vpack.c.b16 %v1770, %v1769
          %v1800 = vpack.c.b16 %v1772, %v1771
          %v1801 = vpack.c.b16 %v1774, %v1773
          %v1802 = vpack.c.b16 %v1776, %v1775
          %v1803 = vpack.c.b16 %v1778, %v1777
          %v1804 = vpack.c.b16 %v1780, %v1779
          %v1805 = vpack.c.b16 %v1782, %v1781
          %v1806 = vpack.c.b16 %v1784, %v1783
          %v1807 = vpack.c.b16 %v1786, %v1785
          %v1808 = vpack.c.b16 %v1788, %v1787
          %v1830 = vsel %vm954, %v1034, 0
          %v1833 = vsel %vm954, %v1037, 0
          %v1836 = vsel %vm954, %v1040, 0
          %v1839 = vsel %vm954, %v1043, 0
          %v1842 = vsel %vm954, %v1046, 0
          %v1845 = vsel %vm954, %v1049, 0
          %v1848 = vsel %vm954, %v1052, 0
          %v1851 = vsel %vm954, %v1055, 0
          %v1854 = vsel %vm954, %v1058, 0
          %v1857 = vsel %vm954, %v1061, 0
          %v1860 = vsel %vm954, %v1064, 0
          %v1863 = vsel %vm954, %v1067, 0
          %v1866 = vsel %vm954, %v1070, 0
          %v1869 = vsel %vm954, %v1073, 0
          %v1872 = vsel %vm954, %v1076, 0
          %v1875 = vsel %vm954, %v1079, 0
          %1877 = vmatprep.subr.bf16.mxu0 0
          %1878 = vmatpush1.bf16.msra.mxu0 %v1789
          %1879 = vmatprep.subr.bf16.mxu0 0
          %1880 = vmatpush1.bf16.msra.mxu0 %v1790
          %1881 = vmatprep.subr.bf16.mxu0 0
          %1882 = vmatpush1.bf16.msra.mxu0 %v1791
          %1883 = vmatprep.subr.bf16.mxu0 0
          %1884 = vmatpush1.bf16.msra.mxu0 %v1792
          %1885 = vmatprep.subr.bf16.mxu0 0
          %1886 = vmatpush1.bf16.msra.mxu0 %v1793
          %1887 = vmatprep.subr.bf16.mxu0 0
          %1888 = vmatpush1.bf16.msra.mxu0 %v1794
          %1889 = vmatprep.subr.bf16.mxu0 0
          %1890 = vmatpush1.bf16.msra.mxu0 %v1795
          %1891 = vmatprep.subr.bf16.mxu0 0
          %1892 = vmatpush1.bf16.msra.mxu0 %v1796
          %1893 = vmatprep.subr.bf16.mxu0 0
          %1894 = vmatpush1.bf16.msra.mxu0 %v1797
          %1895 = vmatprep.subr.bf16.mxu0 0
          %1896 = vmatpush1.bf16.msra.mxu0 %v1798
          %1897 = vmatprep.subr.bf16.mxu0 0
          %1898 = vmatpush1.bf16.msra.mxu0 %v1799
          %1899 = vmatprep.subr.bf16.mxu0 0
          %1900 = vmatpush1.bf16.msra.mxu0 %v1800
          %1901 = vmatprep.subr.bf16.mxu0 0
          %1902 = vmatpush1.bf16.msra.mxu0 %v1801
          %1903 = vmatprep.subr.bf16.mxu0 0
          %1904 = vmatpush1.bf16.msra.mxu0 %v1802
          %1905 = vmatprep.subr.bf16.mxu0 0
          %1906 = vmatpush1.bf16.msra.mxu0 %v1803
          %1907 = vmatprep.subr.bf16.mxu0 0
          %1908 = vmatpush1.bf16.msra.mxu0 %v1804
          %1909 = vmatprep.mubr.bf16.mxu0 %v1033
          %1910 = vmatmul.mubr.bf16.gmra.mrb[0].mxu0 %v1032
          %v1911 = vpop.f32.mrb[0].mxu0
          %v1912 = vadd.f32 %v1583, %v1911
          %v1913 = vpop.f32.mrb[0].mxu0
          %v1914 = vpop.f32.mrb[0].mxu0
          %v1915 = vadd.f32 %v1586, %v1914
          %v1916 = vpop.f32.mrb[0].mxu0
          %1917 = vmatprep.mubr.bf16.mxu0 %v1036
          %1918 = vmatmul.mubr.bf16.gmra.mrb[0].mxu0 %v1035
          %v1919 = vpop.f32.mrb[0].mxu0
          %v1920 = vadd.f32 %v1591, %v1919
          %v1921 = vpop.f32.mrb[0].mxu0
          %v1922 = vpop.f32.mrb[0].mxu0
          %v1923 = vadd.f32 %v1594, %v1922
          %v1924 = vpop.f32.mrb[0].mxu0
          %1925 = vmatprep.mubr.bf16.mxu0 %v1039
          %1926 = vmatmul.mubr.bf16.gmra.mrb[0].mxu0 %v1038
          %v1927 = vpop.f32.mrb[0].mxu0
          %v1928 = vadd.f32 %v1599, %v1927
          %v1929 = vpop.f32.mrb[0].mxu0
          %v1930 = vpop.f32.mrb[0].mxu0
          %v1931 = vadd.f32 %v1602, %v1930
          %v1932 = vpop.f32.mrb[0].mxu0
          %1933 = vmatprep.mubr.bf16.mxu0 %v1042
          %1934 = vmatmul.mubr.bf16.gmra.mrb[0].mxu0 %v1041
          %v1935 = vpop.f32.mrb[0].mxu0
          %v1936 = vadd.f32 %v1607, %v1935
          %v1937 = vpop.f32.mrb[0].mxu0
          %v1938 = vpop.f32.mrb[0].mxu0
          %v1939 = vadd.f32 %v1610, %v1938
          %v1940 = vpop.f32.mrb[0].mxu0
          %1941 = vmatprep.mubr.bf16.mxu0 %v1045
          %1942 = vmatmul.mubr.bf16.gmra.mrb[0].mxu0 %v1044
          %v1943 = vpop.f32.mrb[0].mxu0
          %v1944 = vadd.f32 %v1615, %v1943
          %v1945 = vpop.f32.mrb[0].mxu0
          %v1946 = vpop.f32.mrb[0].mxu0
          %v1947 = vadd.f32 %v1618, %v1946
          %v1948 = vpop.f32.mrb[0].mxu0
          %1949 = vmatprep.mubr.bf16.mxu0 %v1048
          %1950 = vmatmul.mubr.bf16.gmra.mrb[0].mxu0 %v1047
          %v1951 = vpop.f32.mrb[0].mxu0
          %v1952 = vadd.f32 %v1623, %v1951
          %v1953 = vpop.f32.mrb[0].mxu0
          %v1954 = vpop.f32.mrb[0].mxu0
          %v1955 = vadd.f32 %v1626, %v1954
          %v1956 = vpop.f32.mrb[0].mxu0
          %1957 = vmatprep.mubr.bf16.mxu0 %v1051
          %1958 = vmatmul.mubr.bf16.gmra.mrb[0].mxu0 %v1050
          %v1959 = vpop.f32.mrb[0].mxu0
          %v1960 = vadd.f32 %v1631, %v1959
          %v1961 = vpop.f32.mrb[0].mxu0
          %v1962 = vpop.f32.mrb[0].mxu0
          %v1963 = vadd.f32 %v1634, %v1962
          %v1964 = vpop.f32.mrb[0].mxu0
          %1965 = vmatprep.mubr.bf16.mxu0 %v1054
          %1966 = vmatmul.mubr.bf16.gmra.mrb[0].mxu0 %v1053
          %v1967 = vpop.f32.mrb[0].mxu0
          %v1968 = vadd.f32 %v1639, %v1967
          %v1969 = vpop.f32.mrb[0].mxu0
          %v1970 = vpop.f32.mrb[0].mxu0
          %v1971 = vadd.f32 %v1642, %v1970
          %v1972 = vpop.f32.mrb[0].mxu0
          %1973 = vmatprep.mubr.bf16.mxu0 %v1057
          %1974 = vmatmul.mubr.bf16.gmra.mrb[0].mxu0 %v1056
          %v1975 = vpop.f32.mrb[0].mxu0
          %v1976 = vadd.f32 %v1647, %v1975
          %v1977 = vpop.f32.mrb[0].mxu0
          %v1978 = vpop.f32.mrb[0].mxu0
          %v1979 = vadd.f32 %v1650, %v1978
          %v1980 = vpop.f32.mrb[0].mxu0
          %1981 = vmatprep.mubr.bf16.mxu0 %v1060
          %1982 = vmatmul.mubr.bf16.gmra.mrb[0].mxu0 %v1059
          %v1983 = vpop.f32.mrb[0].mxu0
          %v1984 = vadd.f32 %v1655, %v1983
          %v1985 = vpop.f32.mrb[0].mxu0
          %v1986 = vpop.f32.mrb[0].mxu0
          %v1987 = vadd.f32 %v1658, %v1986
          %v1988 = vpop.f32.mrb[0].mxu0
          %1989 = vmatprep.mubr.bf16.mxu0 %v1063
          %1990 = vmatmul.mubr.bf16.gmra.mrb[0].mxu0 %v1062
          %v1991 = vpop.f32.mrb[0].mxu0
          %v1992 = vadd.f32 %v1663, %v1991
          %v1993 = vpop.f32.mrb[0].mxu0
          %v1994 = vpop.f32.mrb[0].mxu0
          %v1995 = vadd.f32 %v1666, %v1994
          %v1996 = vpop.f32.mrb[0].mxu0
          %1997 = vmatprep.mubr.bf16.mxu0 %v1066
          %1998 = vmatmul.mubr.bf16.gmra.mrb[0].mxu0 %v1065
          %v1999 = vpop.f32.mrb[0].mxu0
          %v2000 = vadd.f32 %v1671, %v1999
          %v2001 = vpop.f32.mrb[0].mxu0
          %v2002 = vpop.f32.mrb[0].mxu0
          %v2003 = vadd.f32 %v1674, %v2002
          %v2004 = vpop.f32.mrb[0].mxu0
          %2005 = vmatprep.mubr.bf16.mxu0 %v1069
          %2006 = vmatmul.mubr.bf16.gmra.mrb[0].mxu0 %v1068
          %v2007 = vpop.f32.mrb[0].mxu0
          %v2008 = vadd.f32 %v1679, %v2007
          %v2009 = vpop.f32.mrb[0].mxu0
          %v2010 = vpop.f32.mrb[0].mxu0
          %v2011 = vadd.f32 %v1682, %v2010
          %v2012 = vpop.f32.mrb[0].mxu0
          %2013 = vmatprep.mubr.bf16.mxu0 %v1072
          %2014 = vmatmul.mubr.bf16.gmra.mrb[0].mxu0 %v1071
          %v2015 = vpop.f32.mrb[0].mxu0
          %v2016 = vadd.f32 %v1687, %v2015
          %v2017 = vpop.f32.mrb[0].mxu0
          %v2018 = vpop.f32.mrb[0].mxu0
          %v2019 = vadd.f32 %v1690, %v2018
          %v2020 = vpop.f32.mrb[0].mxu0
          %2021 = vmatprep.mubr.bf16.mxu0 %v1075
          %2022 = vmatmul.mubr.bf16.gmra.mrb[0].mxu0 %v1074
          %v2023 = vpop.f32.mrb[0].mxu0
          %v2024 = vadd.f32 %v1695, %v2023
          %v2025 = vpop.f32.mrb[0].mxu0
          %v2026 = vpop.f32.mrb[0].mxu0
          %v2027 = vadd.f32 %v1698, %v2026
          %v2028 = vpop.f32.mrb[0].mxu0
          %2029 = vmatprep.mubr.bf16.mxu0 %v1078
          %2030 = vmatmul.mubr.bf16.gmra.mrb[0].mxu0 %v1077
          %v2031 = vpop.f32.mrb[0].mxu0
          %v2032 = vadd.f32 %v1703, %v2031
          %v2033 = vpop.f32.mrb[0].mxu0
          %v2034 = vpop.f32.mrb[0].mxu0
          %v2035 = vadd.f32 %v1706, %v2034
          %v2036 = vpop.f32.mrb[0].mxu0
          %2037 = vdwg.mxu0
          %2038 = vmatprep.subr.bf16.mxu0 0
          %2039 = vmatpush1.bf16.msra.mxu0 %v1805
          %2040 = vmatprep.subr.bf16.mxu0 0
          %2041 = vmatpush1.bf16.msra.mxu0 %v1806
          %2042 = vmatprep.subr.bf16.mxu0 0
          %2043 = vmatpush1.bf16.msra.mxu0 %v1807
          %2044 = vmatprep.subr.bf16.mxu0 0
          %2045 = vmatpush1.bf16.msra.mxu0 %v1808
          %2046 = vmatprep.subr.bf16.mxu0 0
          %2047 = vmatpush1.bf16.msra.mxu0 0
          %2048 = vmatprep.subr.bf16.mxu0 0
          %2049 = vmatpush1.bf16.msra.mxu0 0
          %2050 = vmatprep.subr.bf16.mxu0 0
          %2051 = vmatpush1.bf16.msra.mxu0 0
          %2052 = vmatprep.subr.bf16.mxu0 0
          %2053 = vmatpush1.bf16.msra.mxu0 0
          %2054 = vmatprep.subr.bf16.mxu0 0
          %2055 = vmatpush1.bf16.msra.mxu0 0
          %2056 = vmatprep.subr.bf16.mxu0 0
          %2057 = vmatpush1.bf16.msra.mxu0 0
          %2058 = vmatprep.subr.bf16.mxu0 0
          %2059 = vmatpush1.bf16.msra.mxu0 0
          %2060 = vmatprep.subr.bf16.mxu0 0
          %2061 = vmatpush1.bf16.msra.mxu0 0
          %2062 = vmatprep.subr.bf16.mxu0 0
          %2063 = vmatpush1.bf16.msra.mxu0 0
          %2064 = vmatprep.subr.bf16.mxu0 0
          %2065 = vmatpush1.bf16.msra.mxu0 0
          %2066 = vmatprep.subr.bf16.mxu0 0
          %2067 = vmatpush1.bf16.msra.mxu0 0
          %2068 = vmatprep.subr.bf16.mxu0 0
          %2069 = vmatpush1.bf16.msra.mxu0 0
          %2070 = vmatprep.mubr.bf16.mxu0 0
          %2071 = vmatmul.mubr.bf16.gmra.mrb[0].mxu0 %v1830
          %v2072 = vpop.f32.mrb[0].mxu0
          %v2073 = vadd.f32 %v1912, %v2072
          %v2074 = vpop.f32.mrb[0].mxu0
          %v2075 = vpop.f32.mrb[0].mxu0
          %v2076 = vadd.f32 %v1915, %v2075
          %v2077 = vpop.f32.mrb[0].mxu0
          %2078 = vmatprep.mubr.bf16.mxu0 0
          %2079 = vmatmul.mubr.bf16.gmra.mrb[0].mxu0 %v1833
          %v2080 = vpop.f32.mrb[0].mxu0
          %v2081 = vadd.f32 %v1920, %v2080
          %v2082 = vpop.f32.mrb[0].mxu0
          %v2083 = vpop.f32.mrb[0].mxu0
          %v2084 = vadd.f32 %v1923, %v2083
          %v2085 = vpop.f32.mrb[0].mxu0
          %2086 = vmatprep.mubr.bf16.mxu0 0
          %2087 = vmatmul.mubr.bf16.gmra.mrb[0].mxu0 %v1836
          %v2088 = vpop.f32.mrb[0].mxu0
          %v2089 = vadd.f32 %v1928, %v2088
          %v2090 = vpop.f32.mrb[0].mxu0
          %v2091 = vpop.f32.mrb[0].mxu0
          %v2092 = vadd.f32 %v1931, %v2091
          %v2093 = vpop.f32.mrb[0].mxu0
          %2094 = vmatprep.mubr.bf16.mxu0 0
          %2095 = vmatmul.mubr.bf16.gmra.mrb[0].mxu0 %v1839
          %v2096 = vpop.f32.mrb[0].mxu0
          %v2097 = vadd.f32 %v1936, %v2096
          %v2098 = vpop.f32.mrb[0].mxu0
          %v2099 = vpop.f32.mrb[0].mxu0
          %v2100 = vadd.f32 %v1939, %v2099
          %v2101 = vpop.f32.mrb[0].mxu0
          %2102 = vmatprep.mubr.bf16.mxu0 0
          %2103 = vmatmul.mubr.bf16.gmra.mrb[0].mxu0 %v1842
          %v2104 = vpop.f32.mrb[0].mxu0
          %v2105 = vadd.f32 %v1944, %v2104
          %v2106 = vpop.f32.mrb[0].mxu0
          %v2107 = vpop.f32.mrb[0].mxu0
          %v2108 = vadd.f32 %v1947, %v2107
          %v2109 = vpop.f32.mrb[0].mxu0
          %2110 = vmatprep.mubr.bf16.mxu0 0
          %2111 = vmatmul.mubr.bf16.gmra.mrb[0].mxu0 %v1845
          %v2112 = vpop.f32.mrb[0].mxu0
          %v2113 = vadd.f32 %v1952, %v2112
          %v2114 = vpop.f32.mrb[0].mxu0
          %v2115 = vpop.f32.mrb[0].mxu0
          %v2116 = vadd.f32 %v1955, %v2115
          %v2117 = vpop.f32.mrb[0].mxu0
          %2118 = vmatprep.mubr.bf16.mxu0 0
          %2119 = vmatmul.mubr.bf16.gmra.mrb[0].mxu0 %v1848
          %v2120 = vpop.f32.mrb[0].mxu0
          %v2121 = vadd.f32 %v1960, %v2120
          %v2122 = vpop.f32.mrb[0].mxu0
          %v2123 = vpop.f32.mrb[0].mxu0
          %v2124 = vadd.f32 %v1963, %v2123
          %v2125 = vpop.f32.mrb[0].mxu0
          %2126 = vmatprep.mubr.bf16.mxu0 0
          %2127 = vmatmul.mubr.bf16.gmra.mrb[0].mxu0 %v1851
          %v2128 = vpop.f32.mrb[0].mxu0
          %v2129 = vadd.f32 %v1968, %v2128
          %v2130 = vpop.f32.mrb[0].mxu0
          %v2131 = vpop.f32.mrb[0].mxu0
          %v2132 = vadd.f32 %v1971, %v2131
          %v2133 = vpop.f32.mrb[0].mxu0
          %2134 = vmatprep.mubr.bf16.mxu0 0
          %2135 = vmatmul.mubr.bf16.gmra.mrb[0].mxu0 %v1854
          %v2136 = vpop.f32.mrb[0].mxu0
          %v2137 = vadd.f32 %v1976, %v2136
          %v2138 = vpop.f32.mrb[0].mxu0
          %v2139 = vpop.f32.mrb[0].mxu0
          %v2140 = vadd.f32 %v1979, %v2139
          %v2141 = vpop.f32.mrb[0].mxu0
          %2142 = vmatprep.mubr.bf16.mxu0 0
          %2143 = vmatmul.mubr.bf16.gmra.mrb[0].mxu0 %v1857
          %v2144 = vpop.f32.mrb[0].mxu0
          %v2145 = vadd.f32 %v1984, %v2144
          %v2146 = vpop.f32.mrb[0].mxu0
          %v2147 = vpop.f32.mrb[0].mxu0
          %v2148 = vadd.f32 %v1987, %v2147
          %v2149 = vpop.f32.mrb[0].mxu0
          %2150 = vmatprep.mubr.bf16.mxu0 0
          %2151 = vmatmul.mubr.bf16.gmra.mrb[0].mxu0 %v1860
          %v2152 = vpop.f32.mrb[0].mxu0
          %v2153 = vadd.f32 %v1992, %v2152
          %v2154 = vpop.f32.mrb[0].mxu0
          %v2155 = vpop.f32.mrb[0].mxu0
          %v2156 = vadd.f32 %v1995, %v2155
          %v2157 = vpop.f32.mrb[0].mxu0
          %2158 = vmatprep.mubr.bf16.mxu0 0
          %2159 = vmatmul.mubr.bf16.gmra.mrb[0].mxu0 %v1863
          %v2160 = vpop.f32.mrb[0].mxu0
          %v2161 = vadd.f32 %v2000, %v2160
          %v2162 = vpop.f32.mrb[0].mxu0
          %v2163 = vpop.f32.mrb[0].mxu0
          %v2164 = vadd.f32 %v2003, %v2163
          %v2165 = vpop.f32.mrb[0].mxu0
          %2166 = vmatprep.mubr.bf16.mxu0 0
          %2167 = vmatmul.mubr.bf16.gmra.mrb[0].mxu0 %v1866
          %v2168 = vpop.f32.mrb[0].mxu0
          %v2169 = vadd.f32 %v2008, %v2168
          %v2170 = vpop.f32.mrb[0].mxu0
          %v2171 = vpop.f32.mrb[0].mxu0
          %v2172 = vadd.f32 %v2011, %v2171
          %v2173 = vpop.f32.mrb[0].mxu0
          %2174 = vmatprep.mubr.bf16.mxu0 0
          %2175 = vmatmul.mubr.bf16.gmra.mrb[0].mxu0 %v1869
          %v2176 = vpop.f32.mrb[0].mxu0
          %v2177 = vadd.f32 %v2016, %v2176
          %v2178 = vpop.f32.mrb[0].mxu0
          %v2179 = vpop.f32.mrb[0].mxu0
          %v2180 = vadd.f32 %v2019, %v2179
          %v2181 = vpop.f32.mrb[0].mxu0
          %2182 = vmatprep.mubr.bf16.mxu0 0
          %2183 = vmatmul.mubr.bf16.gmra.mrb[0].mxu0 %v1872
          %v2184 = vpop.f32.mrb[0].mxu0
          %v2185 = vadd.f32 %v2024, %v2184
          %v2186 = vpop.f32.mrb[0].mxu0
          %v2187 = vpop.f32.mrb[0].mxu0
          %v2188 = vadd.f32 %v2027, %v2187
          %v2189 = vpop.f32.mrb[0].mxu0
          %2190 = vmatprep.mubr.bf16.mxu0 0
          %2191 = vmatmul.mubr.bf16.gmra.mrb[0].mxu0 %v1875
          %v2192 = vpop.f32.mrb[0].mxu0
          %v2193 = vadd.f32 %v2032, %v2192
          %v2194 = vpop.f32.mrb[0].mxu0
          %v2195 = vpop.f32.mrb[0].mxu0
          %v2196 = vadd.f32 %v2035, %v2195
          %v2197 = vpop.f32.mrb[0].mxu0
          %2198 = vdwg.mxu0
          %s2199 = sadd.s32 %s1026, 2
          %s2200 = smul.u32 %s2199, 6
          %s2201 = sadd.s32 %s2200, %s1028
          %s2202 = smul.addr %s2201, 8
          %s2203 = scalar_lea.vmem [#allocation2], %s2202
          %v2204 = vld [vmem:[%s2203] sm:$0xff]
          %v2205 = vld [vmem:[%s2203 + $0x8] sm:$0xff]
          %v2206 = vld [vmem:[%s2203 + $0x10] sm:$0xff]
          %v2207 = vld [vmem:[%s2203 + $0x18] sm:$0xff]
          %v2208 = vld [vmem:[%s2203 + $0x20] sm:$0xff]
          %v2209 = vld [vmem:[%s2203 + $0x28] sm:$0xff]
          %v2210 = vld [vmem:[%s2203 + $0x30] sm:$0xff]
          %v2211 = vld [vmem:[%s2203 + $0x38] sm:$0xff]
          %v2212 = vld [vmem:[%s2203 + $0x40] sm:$0xff]
          %v2213 = vld [vmem:[%s2203 + $0x48] sm:$0xff]
          %v2214 = vld [vmem:[%s2203 + $0x50] sm:$0xff]
          %v2215 = vld [vmem:[%s2203 + $0x58] sm:$0xff]
          %v2216 = vld [vmem:[%s2203 + $0x60] sm:$0xff]
          %v2217 = vld [vmem:[%s2203 + $0x68] sm:$0xff]
          %v2218 = vld [vmem:[%s2203 + $0x70] sm:$0xff]
          %v2219 = vld [vmem:[%s2203 + $0x78] sm:$0xff]
          %v2220 = vld [vmem:[%s2203 + $0x80] sm:$0xff]
          %v2221 = vld [vmem:[%s2203 + $0x88] sm:$0xff]
          %v2222 = vld [vmem:[%s2203 + $0x90] sm:$0xff]
          %v2223 = vld [vmem:[%s2203 + $0x98] sm:$0xff]
          %v2224 = vld [vmem:[%s2203 + $0xa0] sm:$0xff]
          %v2225 = vld [vmem:[%s2203 + $0xa8] sm:$0xff]
          %v2226 = vld [vmem:[%s2203 + $0xb0] sm:$0xff]
          %v2227 = vld [vmem:[%s2203 + $0xb8] sm:$0xff]
          %v2228 = vld [vmem:[%s2203 + $0xc0] sm:$0xff]
          %v2229 = vld [vmem:[%s2203 + $0xc8] sm:$0xff]
          %v2230 = vld [vmem:[%s2203 + $0xd0] sm:$0xff]
          %v2231 = vld [vmem:[%s2203 + $0xd8] sm:$0xff]
          %v2232 = vld [vmem:[%s2203 + $0xe0] sm:$0xff]
          %v2233 = vld [vmem:[%s2203 + $0xe8] sm:$0xff]
          %v2234 = vld [vmem:[%s2203 + $0xf0] sm:$0xff]
          %v2235 = vld [vmem:[%s2203 + $0xf8] sm:$0xff]
          %v2236 = vld [vmem:[%s2203 + $0x100] sm:$0xff]
          %v2237 = vld [vmem:[%s2203 + $0x108] sm:$0xff]
          %v2238 = vld [vmem:[%s2203 + $0x110] sm:$0xff]
          %v2239 = vld [vmem:[%s2203 + $0x118] sm:$0xff]
          %v2240 = vld [vmem:[%s2203 + $0x120] sm:$0xff]
          %v2241 = vld [vmem:[%s2203 + $0x128] sm:$0xff]
          %v2242 = vld [vmem:[%s2203 + $0x130] sm:$0xff]
          %v2243 = vld [vmem:[%s2203 + $0x138] sm:$0xff]
          %v2244 = vld [vmem:[%s2203 + $0x140] sm:$0xff]
          %v2245 = vld [vmem:[%s2203 + $0x148] sm:$0xff]
          %v2246 = vld [vmem:[%s2203 + $0x150] sm:$0xff]
          %v2247 = vld [vmem:[%s2203 + $0x158] sm:$0xff]
          %v2248 = vld [vmem:[%s2203 + $0x160] sm:$0xff]
          %v2249 = vld [vmem:[%s2203 + $0x168] sm:$0xff]
          %v2250 = vld [vmem:[%s2203 + $0x170] sm:$0xff]
          %v2251 = vld [vmem:[%s2203 + $0x178] sm:$0xff]
          %s2252 = sadd.s32 80, %s1080
          %s2253 = smul.addr %s2252, 4
          %s2254 = scalar_lea.vmem %s1, %s2253
          %v2255 = vld [vmem:[%s2254] sm:$0xf]
          %v2256 = vld [vmem:[%s2254 + $0x4] sm:$0xf]
          %v2257 = vld [vmem:[%s2254 + $0x8] sm:$0xf]
          %v2258 = vld [vmem:[%s2254 + $0xc] sm:$0xf]
          %v2259 = vld [vmem:[%s2254 + $0x10] sm:$0xf]
          %v2260 = vld [vmem:[%s2254 + $0x14] sm:$0xf]
          %v2261 = vld [vmem:[%s2254 + $0x18] sm:$0xf]
          %v2262 = vld [vmem:[%s2254 + $0x1c] sm:$0xf]
          %v2263 = vld [vmem:[%s2254 + $0x20] sm:$0xf]
          %v2264 = vld [vmem:[%s2254 + $0x24] sm:$0xf]
          %v2265 = vld [vmem:[%s2254 + $0x28] sm:$0xf]
          %v2266 = vld [vmem:[%s2254 + $0x2c] sm:$0xf]
          %v2267 = vld [vmem:[%s2254 + $0x30] sm:$0xf]
          %v2268 = vld [vmem:[%s2254 + $0x34] sm:$0xf]
          %v2269 = vld [vmem:[%s2254 + $0x38] sm:$0xf]
          %v2270 = vld [vmem:[%s2254 + $0x3c] sm:$0xf]
          %v2271 = vld [vmem:[%s2254 + $0x40] sm:$0xf]
          %v2272 = vld [vmem:[%s2254 + $0x44] sm:$0xf]
          %v2273 = vld [vmem:[%s2254 + $0x48] sm:$0xf]
          %v2274 = vld [vmem:[%s2254 + $0x4c] sm:$0xf]
          %v2275 = vld [vmem:[%s2254 + $0x50] sm:$0xf]
          %v2276 = vld [vmem:[%s2254 + $0x54] sm:$0xf]
          %v2277 = vld [vmem:[%s2254 + $0x58] sm:$0xf]
          %v2278 = vld [vmem:[%s2254 + $0x5c] sm:$0xf]
          %v2279 = vld [vmem:[%s2254 + $0x60] sm:$0xf]
          %v2280 = vld [vmem:[%s2254 + $0x64] sm:$0xf]
          %v2281 = vld [vmem:[%s2254 + $0x68] sm:$0xf]
          %v2282 = vld [vmem:[%s2254 + $0x6c] sm:$0xf]
          %v2283 = vld [vmem:[%s2254 + $0x70] sm:$0xf]
          %v2284 = vld [vmem:[%s2254 + $0x74] sm:$0xf]
          %v2285 = vld [vmem:[%s2254 + $0x78] sm:$0xf]
          %v2286 = vld [vmem:[%s2254 + $0x7c] sm:$0xf]
          %v2287 = vld [vmem:[%s2254 + $0x80] sm:$0xf]
          %v2288 = vld [vmem:[%s2254 + $0x84] sm:$0xf]
          %v2289 = vld [vmem:[%s2254 + $0x88] sm:$0xf]
          %v2290 = vld [vmem:[%s2254 + $0x8c] sm:$0xf]
          %v2291 = vld [vmem:[%s2254 + $0x90] sm:$0xf]
          %v2292 = vld [vmem:[%s2254 + $0x94] sm:$0xf]
          %v2293 = vld [vmem:[%s2254 + $0x98] sm:$0xf]
          %v2294 = vld [vmem:[%s2254 + $0x9c] sm:$0xf]
          %v2335 = vunpack.c.l.b16 %v2255
          %v2336 = vunpack.c.l.b16 %v2256
          %v2337 = vunpack.c.l.b16 %v2257
          %v2338 = vunpack.c.l.b16 %v2258
          %v2339 = vunpack.c.l.b16 %v2259
          %v2340 = vunpack.c.l.b16 %v2260
          %v2341 = vunpack.c.l.b16 %v2261
          %v2342 = vunpack.c.l.b16 %v2262
          %v2343 = vunpack.c.l.b16 %v2263
          %v2344 = vunpack.c.l.b16 %v2264
          %v2345 = vunpack.c.l.b16 %v2265
          %v2346 = vunpack.c.l.b16 %v2266
          %v2347 = vunpack.c.l.b16 %v2267
          %v2348 = vunpack.c.l.b16 %v2268
          %v2349 = vunpack.c.l.b16 %v2269
          %v2350 = vunpack.c.l.b16 %v2270
          %v2351 = vunpack.c.l.b16 %v2271
          %v2352 = vunpack.c.l.b16 %v2272
          %v2353 = vunpack.c.l.b16 %v2273
          %v2354 = vunpack.c.l.b16 %v2274
          %v2355 = vunpack.c.l.b16 %v2275
          %v2356 = vunpack.c.l.b16 %v2276
          %v2357 = vunpack.c.l.b16 %v2277
          %v2358 = vunpack.c.l.b16 %v2278
          %v2359 = vunpack.c.l.b16 %v2279
          %v2360 = vunpack.c.l.b16 %v2280
          %v2361 = vunpack.c.l.b16 %v2281
          %v2362 = vunpack.c.l.b16 %v2282
          %v2363 = vunpack.c.l.b16 %v2283
          %v2364 = vunpack.c.l.b16 %v2284
          %v2365 = vunpack.c.l.b16 %v2285
          %v2366 = vunpack.c.l.b16 %v2286
          %v2367 = vunpack.c.l.b16 %v2287
          %v2368 = vunpack.c.l.b16 %v2288
          %v2369 = vunpack.c.l.b16 %v2289
          %v2370 = vunpack.c.l.b16 %v2290
          %v2371 = vunpack.c.l.b16 %v2291
          %v2372 = vunpack.c.l.b16 %v2292
          %v2373 = vunpack.c.l.b16 %v2293
          %v2374 = vunpack.c.l.b16 %v2294
          %v2375 = vpack.c.b16 %v2336, %v2335
          %v2376 = vpack.c.b16 %v2338, %v2337
          %v2377 = vpack.c.b16 %v2340, %v2339
          %v2378 = vpack.c.b16 %v2342, %v2341
          %v2379 = vpack.c.b16 %v2344, %v2343
          %v2380 = vpack.c.b16 %v2346, %v2345
          %v2381 = vpack.c.b16 %v2348, %v2347
          %v2382 = vpack.c.b16 %v2350, %v2349
          %v2383 = vpack.c.b16 %v2352, %v2351
          %v2384 = vpack.c.b16 %v2354, %v2353
          %v2385 = vpack.c.b16 %v2356, %v2355
          %v2386 = vpack.c.b16 %v2358, %v2357
          %v2387 = vpack.c.b16 %v2360, %v2359
          %v2388 = vpack.c.b16 %v2362, %v2361
          %v2389 = vpack.c.b16 %v2364, %v2363
          %v2390 = vpack.c.b16 %v2366, %v2365
          %v2391 = vpack.c.b16 %v2368, %v2367
          %v2392 = vpack.c.b16 %v2370, %v2369
          %v2393 = vpack.c.b16 %v2372, %v2371
          %v2394 = vpack.c.b16 %v2374, %v2373
          %v2416 = vsel %vm954, %v2206, 0
          %v2419 = vsel %vm954, %v2209, 0
          %v2422 = vsel %vm954, %v2212, 0
          %v2425 = vsel %vm954, %v2215, 0
          %v2428 = vsel %vm954, %v2218, 0
          %v2431 = vsel %vm954, %v2221, 0
          %v2434 = vsel %vm954, %v2224, 0
          %v2437 = vsel %vm954, %v2227, 0
          %v2440 = vsel %vm954, %v2230, 0
          %v2443 = vsel %vm954, %v2233, 0
          %v2446 = vsel %vm954, %v2236, 0
          %v2449 = vsel %vm954, %v2239, 0
          %v2452 = vsel %vm954, %v2242, 0
          %v2455 = vsel %vm954, %v2245, 0
          %v2458 = vsel %vm954, %v2248, 0
          %v2461 = vsel %vm954, %v2251, 0
          %2463 = vmatprep.subr.bf16.mxu0 0
          %2464 = vmatpush1.bf16.msra.mxu0 %v2375
          %2465 = vmatprep.subr.bf16.mxu0 0
          %2466 = vmatpush1.bf16.msra.mxu0 %v2376
          %2467 = vmatprep.subr.bf16.mxu0 0
          %2468 = vmatpush1.bf16.msra.mxu0 %v2377
          %2469 = vmatprep.subr.bf16.mxu0 0
          %2470 = vmatpush1.bf16.msra.mxu0 %v2378
          %2471 = vmatprep.subr.bf16.mxu0 0
          %2472 = vmatpush1.bf16.msra.mxu0 %v2379
          %2473 = vmatprep.subr.bf16.mxu0 0
          %2474 = vmatpush1.bf16.msra.mxu0 %v2380
          %2475 = vmatprep.subr.bf16.mxu0 0
          %2476 = vmatpush1.bf16.msra.mxu0 %v2381
          %2477 = vmatprep.subr.bf16.mxu0 0
          %2478 = vmatpush1.bf16.msra.mxu0 %v2382
          %2479 = vmatprep.subr.bf16.mxu0 0
          %2480 = vmatpush1.bf16.msra.mxu0 %v2383
          %2481 = vmatprep.subr.bf16.mxu0 0
          %2482 = vmatpush1.bf16.msra.mxu0 %v2384
          %2483 = vmatprep.subr.bf16.mxu0 0
          %2484 = vmatpush1.bf16.msra.mxu0 %v2385
          %2485 = vmatprep.subr.bf16.mxu0 0
          %2486 = vmatpush1.bf16.msra.mxu0 %v2386
          %2487 = vmatprep.subr.bf16.mxu0 0
          %2488 = vmatpush1.bf16.msra.mxu0 %v2387
          %2489 = vmatprep.subr.bf16.mxu0 0
          %2490 = vmatpush1.bf16.msra.mxu0 %v2388
          %2491 = vmatprep.subr.bf16.mxu0 0
          %2492 = vmatpush1.bf16.msra.mxu0 %v2389
          %2493 = vmatprep.subr.bf16.mxu0 0
          %2494 = vmatpush1.bf16.msra.mxu0 %v2390
          %2495 = vmatprep.mubr.bf16.mxu0 %v2205
          %2496 = vmatmul.mubr.bf16.gmra.mrb[0].mxu0 %v2204
          %v2497 = vpop.f32.mrb[0].mxu0
          %v2498 = vadd.f32 0.0, %v2497
          %v2499 = vpop.f32.mrb[0].mxu0
          %v2500 = vpop.f32.mrb[0].mxu0
          %v2501 = vadd.f32 0.0, %v2500
          %v2502 = vpop.f32.mrb[0].mxu0
          %2503 = vmatprep.mubr.bf16.mxu0 %v2208
          %2504 = vmatmul.mubr.bf16.gmra.mrb[0].mxu0 %v2207
          %v2505 = vpop.f32.mrb[0].mxu0
          %v2506 = vadd.f32 0.0, %v2505
          %v2507 = vpop.f32.mrb[0].mxu0
          %v2508 = vpop.f32.mrb[0].mxu0
          %v2509 = vadd.f32 0.0, %v2508
          %v2510 = vpop.f32.mrb[0].mxu0
          %2511 = vmatprep.mubr.bf16.mxu0 %v2211
          %2512 = vmatmul.mubr.bf16.gmra.mrb[0].mxu0 %v2210
          %v2513 = vpop.f32.mrb[0].mxu0
          %v2514 = vadd.f32 0.0, %v2513
          %v2515 = vpop.f32.mrb[0].mxu0
          %v2516 = vpop.f32.mrb[0].mxu0
          %v2517 = vadd.f32 0.0, %v2516
          %v2518 = vpop.f32.mrb[0].mxu0
          %2519 = vmatprep.mubr.bf16.mxu0 %v2214
          %2520 = vmatmul.mubr.bf16.gmra.mrb[0].mxu0 %v2213
          %v2521 = vpop.f32.mrb[0].mxu0
          %v2522 = vadd.f32 0.0, %v2521
          %v2523 = vpop.f32.mrb[0].mxu0
          %v2524 = vpop.f32.mrb[0].mxu0
          %v2525 = vadd.f32 0.0, %v2524
          %v2526 = vpop.f32.mrb[0].mxu0
          %2527 = vmatprep.mubr.bf16.mxu0 %v2217
          %2528 = vmatmul.mubr.bf16.gmra.mrb[0].mxu0 %v2216
          %v2529 = vpop.f32.mrb[0].mxu0
          %v2530 = vadd.f32 0.0, %v2529
          %v2531 = vpop.f32.mrb[0].mxu0
          %v2532 = vpop.f32.mrb[0].mxu0
          %v2533 = vadd.f32 0.0, %v2532
          %v2534 = vpop.f32.mrb[0].mxu0
          %2535 = vmatprep.mubr.bf16.mxu0 %v2220
          %2536 = vmatmul.mubr.bf16.gmra.mrb[0].mxu0 %v2219
          %v2537 = vpop.f32.mrb[0].mxu0
          %v2538 = vadd.f32 0.0, %v2537
          %v2539 = vpop.f32.mrb[0].mxu0
          %v2540 = vpop.f32.mrb[0].mxu0
          %v2541 = vadd.f32 0.0, %v2540
          %v2542 = vpop.f32.mrb[0].mxu0
          %2543 = vmatprep.mubr.bf16.mxu0 %v2223
          %2544 = vmatmul.mubr.bf16.gmra.mrb[0].mxu0 %v2222
          %v2545 = vpop.f32.mrb[0].mxu0
          %v2546 = vadd.f32 0.0, %v2545
          %v2547 = vpop.f32.mrb[0].mxu0
          %v2548 = vpop.f32.mrb[0].mxu0
          %v2549 = vadd.f32 0.0, %v2548
          %v2550 = vpop.f32.mrb[0].mxu0
          %2551 = vmatprep.mubr.bf16.mxu0 %v2226
          %2552 = vmatmul.mubr.bf16.gmra.mrb[0].mxu0 %v2225
          %v2553 = vpop.f32.mrb[0].mxu0
          %v2554 = vadd.f32 0.0, %v2553
          %v2555 = vpop.f32.mrb[0].mxu0
          %v2556 = vpop.f32.mrb[0].mxu0
          %v2557 = vadd.f32 0.0, %v2556
          %v2558 = vpop.f32.mrb[0].mxu0
          %2559 = vmatprep.mubr.bf16.mxu0 %v2229
          %2560 = vmatmul.mubr.bf16.gmra.mrb[0].mxu0 %v2228
          %v2561 = vpop.f32.mrb[0].mxu0
          %v2562 = vadd.f32 0.0, %v2561
          %v2563 = vpop.f32.mrb[0].mxu0
          %v2564 = vpop.f32.mrb[0].mxu0
          %v2565 = vadd.f32 0.0, %v2564
          %v2566 = vpop.f32.mrb[0].mxu0
          %2567 = vmatprep.mubr.bf16.mxu0 %v2232
          %2568 = vmatmul.mubr.bf16.gmra.mrb[0].mxu0 %v2231
          %v2569 = vpop.f32.mrb[0].mxu0
          %v2570 = vadd.f32 0.0, %v2569
          %v2571 = vpop.f32.mrb[0].mxu0
          %v2572 = vpop.f32.mrb[0].mxu0
          %v2573 = vadd.f32 0.0, %v2572
          %v2574 = vpop.f32.mrb[0].mxu0
          %2575 = vmatprep.mubr.bf16.mxu0 %v2235
          %2576 = vmatmul.mubr.bf16.gmra.mrb[0].mxu0 %v2234
          %v2577 = vpop.f32.mrb[0].mxu0
          %v2578 = vadd.f32 0.0, %v2577
          %v2579 = vpop.f32.mrb[0].mxu0
          %v2580 = vpop.f32.mrb[0].mxu0
          %v2581 = vadd.f32 0.0, %v2580
          %v2582 = vpop.f32.mrb[0].mxu0
          %2583 = vmatprep.mubr.bf16.mxu0 %v2238
          %2584 = vmatmul.mubr.bf16.gmra.mrb[0].mxu0 %v2237
          %v2585 = vpop.f32.mrb[0].mxu0
          %v2586 = vadd.f32 0.0, %v2585
          %v2587 = vpop.f32.mrb[0].mxu0
          %v2588 = vpop.f32.mrb[0].mxu0
          %v2589 = vadd.f32 0.0, %v2588
          %v2590 = vpop.f32.mrb[0].mxu0
          %2591 = vmatprep.mubr.bf16.mxu0 %v2241
          %2592 = vmatmul.mubr.bf16.gmra.mrb[0].mxu0 %v2240
          %v2593 = vpop.f32.mrb[0].mxu0
          %v2594 = vadd.f32 0.0, %v2593
          %v2595 = vpop.f32.mrb[0].mxu0
          %v2596 = vpop.f32.mrb[0].mxu0
          %v2597 = vadd.f32 0.0, %v2596
          %v2598 = vpop.f32.mrb[0].mxu0
          %2599 = vmatprep.mubr.bf16.mxu0 %v2244
          %2600 = vmatmul.mubr.bf16.gmra.mrb[0].mxu0 %v2243
          %v2601 = vpop.f32.mrb[0].mxu0
          %v2602 = vadd.f32 0.0, %v2601
          %v2603 = vpop.f32.mrb[0].mxu0
          %v2604 = vpop.f32.mrb[0].mxu0
          %v2605 = vadd.f32 0.0, %v2604
          %v2606 = vpop.f32.mrb[0].mxu0
          %2607 = vmatprep.mubr.bf16.mxu0 %v2247
          %2608 = vmatmul.mubr.bf16.gmra.mrb[0].mxu0 %v2246
          %v2609 = vpop.f32.mrb[0].mxu0
          %v2610 = vadd.f32 0.0, %v2609
          %v2611 = vpop.f32.mrb[0].mxu0
          %v2612 = vpop.f32.mrb[0].mxu0
          %v2613 = vadd.f32 0.0, %v2612
          %v2614 = vpop.f32.mrb[0].mxu0
          %2615 = vmatprep.mubr.bf16.mxu0 %v2250
          %2616 = vmatmul.mubr.bf16.gmra.mrb[0].mxu0 %v2249
          %v2617 = vpop.f32.mrb[0].mxu0
          %v2618 = vadd.f32 0.0, %v2617
          %v2619 = vpop.f32.mrb[0].mxu0
          %v2620 = vpop.f32.mrb[0].mxu0
          %v2621 = vadd.f32 0.0, %v2620
          %v2622 = vpop.f32.mrb[0].mxu0
          %2623 = vdwg.mxu0
          %2624 = vmatprep.subr.bf16.mxu0 0
          %2625 = vmatpush1.bf16.msra.mxu0 %v2391
          %2626 = vmatprep.subr.bf16.mxu0 0
          %2627 = vmatpush1.bf16.msra.mxu0 %v2392
          %2628 = vmatprep.subr.bf16.mxu0 0
          %2629 = vmatpush1.bf16.msra.mxu0 %v2393
          %2630 = vmatprep.subr.bf16.mxu0 0
          %2631 = vmatpush1.bf16.msra.mxu0 %v2394
          %2632 = vmatprep.subr.bf16.mxu0 0
          %2633 = vmatpush1.bf16.msra.mxu0 0
          %2634 = vmatprep.subr.bf16.mxu0 0
          %2635 = vmatpush1.bf16.msra.mxu0 0
          %2636 = vmatprep.subr.bf16.mxu0 0
          %2637 = vmatpush1.bf16.msra.mxu0 0
          %2638 = vmatprep.subr.bf16.mxu0 0
          %2639 = vmatpush1.bf16.msra.mxu0 0
          %2640 = vmatprep.subr.bf16.mxu0 0
          %2641 = vmatpush1.bf16.msra.mxu0 0
          %2642 = vmatprep.subr.bf16.mxu0 0
          %2643 = vmatpush1.bf16.msra.mxu0 0
          %2644 = vmatprep.subr.bf16.mxu0 0
          %2645 = vmatpush1.bf16.msra.mxu0 0
          %2646 = vmatprep.subr.bf16.mxu0 0
          %2647 = vmatpush1.bf16.msra.mxu0 0
          %2648 = vmatprep.subr.bf16.mxu0 0
          %2649 = vmatpush1.bf16.msra.mxu0 0
          %2650 = vmatprep.subr.bf16.mxu0 0
          %2651 = vmatpush1.bf16.msra.mxu0 0
          %2652 = vmatprep.subr.bf16.mxu0 0
          %2653 = vmatpush1.bf16.msra.mxu0 0
          %2654 = vmatprep.subr.bf16.mxu0 0
          %2655 = vmatpush1.bf16.msra.mxu0 0
          %2656 = vmatprep.mubr.bf16.mxu0 0
          %2657 = vmatmul.mubr.bf16.gmra.mrb[0].mxu0 %v2416
          %v2658 = vpop.f32.mrb[0].mxu0
          %v2659 = vadd.f32 %v2498, %v2658
          %v2660 = vpop.f32.mrb[0].mxu0
          %v2661 = vpop.f32.mrb[0].mxu0
          %v2662 = vadd.f32 %v2501, %v2661
          %v2663 = vpop.f32.mrb[0].mxu0
          %2664 = vmatprep.mubr.bf16.mxu0 0
          %2665 = vmatmul.mubr.bf16.gmra.mrb[0].mxu0 %v2419
          %v2666 = vpop.f32.mrb[0].mxu0
          %v2667 = vadd.f32 %v2506, %v2666
          %v2668 = vpop.f32.mrb[0].mxu0
          %v2669 = vpop.f32.mrb[0].mxu0
          %v2670 = vadd.f32 %v2509, %v2669
          %v2671 = vpop.f32.mrb[0].mxu0
          %2672 = vmatprep.mubr.bf16.mxu0 0
          %2673 = vmatmul.mubr.bf16.gmra.mrb[0].mxu0 %v2422
          %v2674 = vpop.f32.mrb[0].mxu0
          %v2675 = vadd.f32 %v2514, %v2674
          %v2676 = vpop.f32.mrb[0].mxu0
          %v2677 = vpop.f32.mrb[0].mxu0
          %v2678 = vadd.f32 %v2517, %v2677
          %v2679 = vpop.f32.mrb[0].mxu0
          %2680 = vmatprep.mubr.bf16.mxu0 0
          %2681 = vmatmul.mubr.bf16.gmra.mrb[0].mxu0 %v2425
          %v2682 = vpop.f32.mrb[0].mxu0
          %v2683 = vadd.f32 %v2522, %v2682
          %v2684 = vpop.f32.mrb[0].mxu0
          %v2685 = vpop.f32.mrb[0].mxu0
          %v2686 = vadd.f32 %v2525, %v2685
          %v2687 = vpop.f32.mrb[0].mxu0
          %2688 = vmatprep.mubr.bf16.mxu0 0
          %2689 = vmatmul.mubr.bf16.gmra.mrb[0].mxu0 %v2428
          %v2690 = vpop.f32.mrb[0].mxu0
          %v2691 = vadd.f32 %v2530, %v2690
          %v2692 = vpop.f32.mrb[0].mxu0
          %v2693 = vpop.f32.mrb[0].mxu0
          %v2694 = vadd.f32 %v2533, %v2693
          %v2695 = vpop.f32.mrb[0].mxu0
          %2696 = vmatprep.mubr.bf16.mxu0 0
          %2697 = vmatmul.mubr.bf16.gmra.mrb[0].mxu0 %v2431
          %v2698 = vpop.f32.mrb[0].mxu0
          %v2699 = vadd.f32 %v2538, %v2698
          %v2700 = vpop.f32.mrb[0].mxu0
          %v2701 = vpop.f32.mrb[0].mxu0
          %v2702 = vadd.f32 %v2541, %v2701
          %v2703 = vpop.f32.mrb[0].mxu0
          %2704 = vmatprep.mubr.bf16.mxu0 0
          %2705 = vmatmul.mubr.bf16.gmra.mrb[0].mxu0 %v2434
          %v2706 = vpop.f32.mrb[0].mxu0
          %v2707 = vadd.f32 %v2546, %v2706
          %v2708 = vpop.f32.mrb[0].mxu0
          %v2709 = vpop.f32.mrb[0].mxu0
          %v2710 = vadd.f32 %v2549, %v2709
          %v2711 = vpop.f32.mrb[0].mxu0
          %2712 = vmatprep.mubr.bf16.mxu0 0
          %2713 = vmatmul.mubr.bf16.gmra.mrb[0].mxu0 %v2437
          %v2714 = vpop.f32.mrb[0].mxu0
          %v2715 = vadd.f32 %v2554, %v2714
          %v2716 = vpop.f32.mrb[0].mxu0
          %v2717 = vpop.f32.mrb[0].mxu0
          %v2718 = vadd.f32 %v2557, %v2717
          %v2719 = vpop.f32.mrb[0].mxu0
          %2720 = vmatprep.mubr.bf16.mxu0 0
          %2721 = vmatmul.mubr.bf16.gmra.mrb[0].mxu0 %v2440
          %v2722 = vpop.f32.mrb[0].mxu0
          %v2723 = vadd.f32 %v2562, %v2722
          %v2724 = vpop.f32.mrb[0].mxu0
          %v2725 = vpop.f32.mrb[0].mxu0
          %v2726 = vadd.f32 %v2565, %v2725
          %v2727 = vpop.f32.mrb[0].mxu0
          %2728 = vmatprep.mubr.bf16.mxu0 0
          %2729 = vmatmul.mubr.bf16.gmra.mrb[0].mxu0 %v2443
          %v2730 = vpop.f32.mrb[0].mxu0
          %v2731 = vadd.f32 %v2570, %v2730
          %v2732 = vpop.f32.mrb[0].mxu0
          %v2733 = vpop.f32.mrb[0].mxu0
          %v2734 = vadd.f32 %v2573, %v2733
          %v2735 = vpop.f32.mrb[0].mxu0
          %2736 = vmatprep.mubr.bf16.mxu0 0
          %2737 = vmatmul.mubr.bf16.gmra.mrb[0].mxu0 %v2446
          %v2738 = vpop.f32.mrb[0].mxu0
          %v2739 = vadd.f32 %v2578, %v2738
          %v2740 = vpop.f32.mrb[0].mxu0
          %v2741 = vpop.f32.mrb[0].mxu0
          %v2742 = vadd.f32 %v2581, %v2741
          %v2743 = vpop.f32.mrb[0].mxu0
          %2744 = vmatprep.mubr.bf16.mxu0 0
          %2745 = vmatmul.mubr.bf16.gmra.mrb[0].mxu0 %v2449
          %v2746 = vpop.f32.mrb[0].mxu0
          %v2747 = vadd.f32 %v2586, %v2746
          %v2748 = vpop.f32.mrb[0].mxu0
          %v2749 = vpop.f32.mrb[0].mxu0
          %v2750 = vadd.f32 %v2589, %v2749
          %v2751 = vpop.f32.mrb[0].mxu0
          %2752 = vmatprep.mubr.bf16.mxu0 0
          %2753 = vmatmul.mubr.bf16.gmra.mrb[0].mxu0 %v2452
          %v2754 = vpop.f32.mrb[0].mxu0
          %v2755 = vadd.f32 %v2594, %v2754
          %v2756 = vpop.f32.mrb[0].mxu0
          %v2757 = vpop.f32.mrb[0].mxu0
          %v2758 = vadd.f32 %v2597, %v2757
          %v2759 = vpop.f32.mrb[0].mxu0
          %2760 = vmatprep.mubr.bf16.mxu0 0
          %2761 = vmatmul.mubr.bf16.gmra.mrb[0].mxu0 %v2455
          %v2762 = vpop.f32.mrb[0].mxu0
          %v2763 = vadd.f32 %v2602, %v2762
          %v2764 = vpop.f32.mrb[0].mxu0
          %v2765 = vpop.f32.mrb[0].mxu0
          %v2766 = vadd.f32 %v2605, %v2765
          %v2767 = vpop.f32.mrb[0].mxu0
          %2768 = vmatprep.mubr.bf16.mxu0 0
          %2769 = vmatmul.mubr.bf16.gmra.mrb[0].mxu0 %v2458
          %v2770 = vpop.f32.mrb[0].mxu0
          %v2771 = vadd.f32 %v2610, %v2770
          %v2772 = vpop.f32.mrb[0].mxu0
          %v2773 = vpop.f32.mrb[0].mxu0
          %v2774 = vadd.f32 %v2613, %v2773
          %v2775 = vpop.f32.mrb[0].mxu0
          %2776 = vmatprep.mubr.bf16.mxu0 0
          %2777 = vmatmul.mubr.bf16.gmra.mrb[0].mxu0 %v2461
          %v2778 = vpop.f32.mrb[0].mxu0
          %v2779 = vadd.f32 %v2618, %v2778
          %v2780 = vpop.f32.mrb[0].mxu0
          %v2781 = vpop.f32.mrb[0].mxu0
          %v2782 = vadd.f32 %v2621, %v2781
          %v2783 = vpop.f32.mrb[0].mxu0
          %2784 = vdwg.mxu0
          %v2785 = vadd.f32 %v2073, %v2659
          %v2786 = vadd.f32 %v2076, %v2662
          %v2787 = vadd.f32 %v2081, %v2667
          %v2788 = vadd.f32 %v2084, %v2670
          %v2789 = vadd.f32 %v2089, %v2675
          %v2790 = vadd.f32 %v2092, %v2678
          %v2791 = vadd.f32 %v2097, %v2683
          %v2792 = vadd.f32 %v2100, %v2686
          %v2793 = vadd.f32 %v2105, %v2691
          %v2794 = vadd.f32 %v2108, %v2694
          %v2795 = vadd.f32 %v2113, %v2699
          %v2796 = vadd.f32 %v2116, %v2702
          %v2797 = vadd.f32 %v2121, %v2707
          %v2798 = vadd.f32 %v2124, %v2710
          %v2799 = vadd.f32 %v2129, %v2715
          %v2800 = vadd.f32 %v2132, %v2718
          %v2801 = vadd.f32 %v2137, %v2723
          %v2802 = vadd.f32 %v2140, %v2726
          %v2803 = vadd.f32 %v2145, %v2731
          %v2804 = vadd.f32 %v2148, %v2734
          %v2805 = vadd.f32 %v2153, %v2739
          %v2806 = vadd.f32 %v2156, %v2742
          %v2807 = vadd.f32 %v2161, %v2747
          %v2808 = vadd.f32 %v2164, %v2750
          %v2809 = vadd.f32 %v2169, %v2755
          %v2810 = vadd.f32 %v2172, %v2758
          %v2811 = vadd.f32 %v2177, %v2763
          %v2812 = vadd.f32 %v2180, %v2766
          %v2813 = vadd.f32 %v2185, %v2771
          %v2814 = vadd.f32 %v2188, %v2774
          %v2815 = vadd.f32 %v2193, %v2779
          %v2816 = vadd.f32 %v2196, %v2782
          %s2817 = sadd.s32 %s1026, 3
          %s2818 = smul.u32 %s2817, 6
          %s2819 = sadd.s32 %s2818, %s1028
          %s2820 = smul.addr %s2819, 8
          %s2821 = scalar_lea.vmem [#allocation2], %s2820
          %v2822 = vld [vmem:[%s2821] sm:$0xff]
          %v2823 = vld [vmem:[%s2821 + $0x8] sm:$0xff]
          %v2824 = vld [vmem:[%s2821 + $0x10] sm:$0xff]
          %v2825 = vld [vmem:[%s2821 + $0x18] sm:$0xff]
          %v2826 = vld [vmem:[%s2821 + $0x20] sm:$0xff]
          %v2827 = vld [vmem:[%s2821 + $0x28] sm:$0xff]
          %v2828 = vld [vmem:[%s2821 + $0x30] sm:$0xff]
          %v2829 = vld [vmem:[%s2821 + $0x38] sm:$0xff]
          %v2830 = vld [vmem:[%s2821 + $0x40] sm:$0xff]
          %v2831 = vld [vmem:[%s2821 + $0x48] sm:$0xff]
          %v2832 = vld [vmem:[%s2821 + $0x50] sm:$0xff]
          %v2833 = vld [vmem:[%s2821 + $0x58] sm:$0xff]
          %v2834 = vld [vmem:[%s2821 + $0x60] sm:$0xff]
          %v2835 = vld [vmem:[%s2821 + $0x68] sm:$0xff]
          %v2836 = vld [vmem:[%s2821 + $0x70] sm:$0xff]
          %v2837 = vld [vmem:[%s2821 + $0x78] sm:$0xff]
          %v2838 = vld [vmem:[%s2821 + $0x80] sm:$0xff]
          %v2839 = vld [vmem:[%s2821 + $0x88] sm:$0xff]
          %v2840 = vld [vmem:[%s2821 + $0x90] sm:$0xff]
          %v2841 = vld [vmem:[%s2821 + $0x98] sm:$0xff]
          %v2842 = vld [vmem:[%s2821 + $0xa0] sm:$0xff]
          %v2843 = vld [vmem:[%s2821 + $0xa8] sm:$0xff]
          %v2844 = vld [vmem:[%s2821 + $0xb0] sm:$0xff]
          %v2845 = vld [vmem:[%s2821 + $0xb8] sm:$0xff]
          %v2846 = vld [vmem:[%s2821 + $0xc0] sm:$0xff]
          %v2847 = vld [vmem:[%s2821 + $0xc8] sm:$0xff]
          %v2848 = vld [vmem:[%s2821 + $0xd0] sm:$0xff]
          %v2849 = vld [vmem:[%s2821 + $0xd8] sm:$0xff]
          %v2850 = vld [vmem:[%s2821 + $0xe0] sm:$0xff]
          %v2851 = vld [vmem:[%s2821 + $0xe8] sm:$0xff]
          %v2852 = vld [vmem:[%s2821 + $0xf0] sm:$0xff]
          %v2853 = vld [vmem:[%s2821 + $0xf8] sm:$0xff]
          %v2854 = vld [vmem:[%s2821 + $0x100] sm:$0xff]
          %v2855 = vld [vmem:[%s2821 + $0x108] sm:$0xff]
          %v2856 = vld [vmem:[%s2821 + $0x110] sm:$0xff]
          %v2857 = vld [vmem:[%s2821 + $0x118] sm:$0xff]
          %v2858 = vld [vmem:[%s2821 + $0x120] sm:$0xff]
          %v2859 = vld [vmem:[%s2821 + $0x128] sm:$0xff]
          %v2860 = vld [vmem:[%s2821 + $0x130] sm:$0xff]
          %v2861 = vld [vmem:[%s2821 + $0x138] sm:$0xff]
          %v2862 = vld [vmem:[%s2821 + $0x140] sm:$0xff]
          %v2863 = vld [vmem:[%s2821 + $0x148] sm:$0xff]
          %v2864 = vld [vmem:[%s2821 + $0x150] sm:$0xff]
          %v2865 = vld [vmem:[%s2821 + $0x158] sm:$0xff]
          %v2866 = vld [vmem:[%s2821 + $0x160] sm:$0xff]
          %v2867 = vld [vmem:[%s2821 + $0x168] sm:$0xff]
          %v2868 = vld [vmem:[%s2821 + $0x170] sm:$0xff]
          %v2869 = vld [vmem:[%s2821 + $0x178] sm:$0xff]
          %s2870 = sadd.s32 120, %s1080
          %s2871 = smul.addr %s2870, 4
          %s2872 = scalar_lea.vmem %s1, %s2871
          %v2873 = vld [vmem:[%s2872] sm:$0xf]
          %v2874 = vld [vmem:[%s2872 + $0x4] sm:$0xf]
          %v2875 = vld [vmem:[%s2872 + $0x8] sm:$0xf]
          %v2876 = vld [vmem:[%s2872 + $0xc] sm:$0xf]
          %v2877 = vld [vmem:[%s2872 + $0x10] sm:$0xf]
          %v2878 = vld [vmem:[%s2872 + $0x14] sm:$0xf]
          %v2879 = vld [vmem:[%s2872 + $0x18] sm:$0xf]
          %v2880 = vld [vmem:[%s2872 + $0x1c] sm:$0xf]
          %v2881 = vld [vmem:[%s2872 + $0x20] sm:$0xf]
          %v2882 = vld [vmem:[%s2872 + $0x24] sm:$0xf]
          %v2883 = vld [vmem:[%s2872 + $0x28] sm:$0xf]
          %v2884 = vld [vmem:[%s2872 + $0x2c] sm:$0xf]
          %v2885 = vld [vmem:[%s2872 + $0x30] sm:$0xf]
          %v2886 = vld [vmem:[%s2872 + $0x34] sm:$0xf]
          %v2887 = vld [vmem:[%s2872 + $0x38] sm:$0xf]
          %v2888 = vld [vmem:[%s2872 + $0x3c] sm:$0xf]
          %v2889 = vld [vmem:[%s2872 + $0x40] sm:$0xf]
          %v2890 = vld [vmem:[%s2872 + $0x44] sm:$0xf]
          %v2891 = vld [vmem:[%s2872 + $0x48] sm:$0xf]
          %v2892 = vld [vmem:[%s2872 + $0x4c] sm:$0xf]
          %v2893 = vld [vmem:[%s2872 + $0x50] sm:$0xf]
          %v2894 = vld [vmem:[%s2872 + $0x54] sm:$0xf]
          %v2895 = vld [vmem:[%s2872 + $0x58] sm:$0xf]
          %v2896 = vld [vmem:[%s2872 + $0x5c] sm:$0xf]
          %v2897 = vld [vmem:[%s2872 + $0x60] sm:$0xf]
          %v2898 = vld [vmem:[%s2872 + $0x64] sm:$0xf]
          %v2899 = vld [vmem:[%s2872 + $0x68] sm:$0xf]
          %v2900 = vld [vmem:[%s2872 + $0x6c] sm:$0xf]
          %v2901 = vld [vmem:[%s2872 + $0x70] sm:$0xf]
          %v2902 = vld [vmem:[%s2872 + $0x74] sm:$0xf]
          %v2903 = vld [vmem:[%s2872 + $0x78] sm:$0xf]
          %v2904 = vld [vmem:[%s2872 + $0x7c] sm:$0xf]
          %v2905 = vld [vmem:[%s2872 + $0x80] sm:$0xf]
          %v2906 = vld [vmem:[%s2872 + $0x84] sm:$0xf]
          %v2907 = vld [vmem:[%s2872 + $0x88] sm:$0xf]
          %v2908 = vld [vmem:[%s2872 + $0x8c] sm:$0xf]
          %v2909 = vld [vmem:[%s2872 + $0x90] sm:$0xf]
          %v2910 = vld [vmem:[%s2872 + $0x94] sm:$0xf]
          %v2911 = vld [vmem:[%s2872 + $0x98] sm:$0xf]
          %v2912 = vld [vmem:[%s2872 + $0x9c] sm:$0xf]
          %v2953 = vunpack.c.l.b16 %v2873
          %v2954 = vunpack.c.l.b16 %v2874
          %v2955 = vunpack.c.l.b16 %v2875
          %v2956 = vunpack.c.l.b16 %v2876
          %v2957 = vunpack.c.l.b16 %v2877
          %v2958 = vunpack.c.l.b16 %v2878
          %v2959 = vunpack.c.l.b16 %v2879
          %v2960 = vunpack.c.l.b16 %v2880
          %v2961 = vunpack.c.l.b16 %v2881
          %v2962 = vunpack.c.l.b16 %v2882
          %v2963 = vunpack.c.l.b16 %v2883
          %v2964 = vunpack.c.l.b16 %v2884
          %v2965 = vunpack.c.l.b16 %v2885
          %v2966 = vunpack.c.l.b16 %v2886
          %v2967 = vunpack.c.l.b16 %v2887
          %v2968 = vunpack.c.l.b16 %v2888
          %v2969 = vunpack.c.l.b16 %v2889
          %v2970 = vunpack.c.l.b16 %v2890
          %v2971 = vunpack.c.l.b16 %v2891
          %v2972 = vunpack.c.l.b16 %v2892
          %v2973 = vunpack.c.l.b16 %v2893
          %v2974 = vunpack.c.l.b16 %v2894
          %v2975 = vunpack.c.l.b16 %v2895
          %v2976 = vunpack.c.l.b16 %v2896
          %v2977 = vunpack.c.l.b16 %v2897
          %v2978 = vunpack.c.l.b16 %v2898
          %v2979 = vunpack.c.l.b16 %v2899
          %v2980 = vunpack.c.l.b16 %v2900
          %v2981 = vunpack.c.l.b16 %v2901
          %v2982 = vunpack.c.l.b16 %v2902
          %v2983 = vunpack.c.l.b16 %v2903
          %v2984 = vunpack.c.l.b16 %v2904
          %v2985 = vunpack.c.l.b16 %v2905
          %v2986 = vunpack.c.l.b16 %v2906
          %v2987 = vunpack.c.l.b16 %v2907
          %v2988 = vunpack.c.l.b16 %v2908
          %v2989 = vunpack.c.l.b16 %v2909
          %v2990 = vunpack.c.l.b16 %v2910
          %v2991 = vunpack.c.l.b16 %v2911
          %v2992 = vunpack.c.l.b16 %v2912
          %v2993 = vpack.c.b16 %v2954, %v2953
          %v2994 = vpack.c.b16 %v2956, %v2955
          %v2995 = vpack.c.b16 %v2958, %v2957
          %v2996 = vpack.c.b16 %v2960, %v2959
          %v2997 = vpack.c.b16 %v2962, %v2961
          %v2998 = vpack.c.b16 %v2964, %v2963
          %v2999 = vpack.c.b16 %v2966, %v2965
          %v3000 = vpack.c.b16 %v2968, %v2967
          %v3001 = vpack.c.b16 %v2970, %v2969
          %v3002 = vpack.c.b16 %v2972, %v2971
          %v3003 = vpack.c.b16 %v2974, %v2973
          %v3004 = vpack.c.b16 %v2976, %v2975
          %v3005 = vpack.c.b16 %v2978, %v2977
          %v3006 = vpack.c.b16 %v2980, %v2979
          %v3007 = vpack.c.b16 %v2982, %v2981
          %v3008 = vpack.c.b16 %v2984, %v2983
          %v3009 = vpack.c.b16 %v2986, %v2985
          %v3010 = vpack.c.b16 %v2988, %v2987
          %v3011 = vpack.c.b16 %v2990, %v2989
          %v3012 = vpack.c.b16 %v2992, %v2991
          %v3034 = vsel %vm954, %v2824, 0
          %v3037 = vsel %vm954, %v2827, 0
          %v3040 = vsel %vm954, %v2830, 0
          %v3043 = vsel %vm954, %v2833, 0
          %v3046 = vsel %vm954, %v2836, 0
          %v3049 = vsel %vm954, %v2839, 0
          %v3052 = vsel %vm954, %v2842, 0
          %v3055 = vsel %vm954, %v2845, 0
          %v3058 = vsel %vm954, %v2848, 0
          %v3061 = vsel %vm954, %v2851, 0
          %v3064 = vsel %vm954, %v2854, 0
          %v3067 = vsel %vm954, %v2857, 0
          %v3070 = vsel %vm954, %v2860, 0
          %v3073 = vsel %vm954, %v2863, 0
          %v3076 = vsel %vm954, %v2866, 0
          %v3079 = vsel %vm954, %v2869, 0
          %3081 = vmatprep.subr.bf16.mxu0 0
          %3082 = vmatpush1.bf16.msra.mxu0 %v2993
          %3083 = vmatprep.subr.bf16.mxu0 0
          %3084 = vmatpush1.bf16.msra.mxu0 %v2994
          %3085 = vmatprep.subr.bf16.mxu0 0
          %3086 = vmatpush1.bf16.msra.mxu0 %v2995
          %3087 = vmatprep.subr.bf16.mxu0 0
          %3088 = vmatpush1.bf16.msra.mxu0 %v2996
          %3089 = vmatprep.subr.bf16.mxu0 0
          %3090 = vmatpush1.bf16.msra.mxu0 %v2997
          %3091 = vmatprep.subr.bf16.mxu0 0
          %3092 = vmatpush1.bf16.msra.mxu0 %v2998
          %3093 = vmatprep.subr.bf16.mxu0 0
          %3094 = vmatpush1.bf16.msra.mxu0 %v2999
          %3095 = vmatprep.subr.bf16.mxu0 0
          %3096 = vmatpush1.bf16.msra.mxu0 %v3000
          %3097 = vmatprep.subr.bf16.mxu0 0
          %3098 = vmatpush1.bf16.msra.mxu0 %v3001
          %3099 = vmatprep.subr.bf16.mxu0 0
          %3100 = vmatpush1.bf16.msra.mxu0 %v3002
          %3101 = vmatprep.subr.bf16.mxu0 0
          %3102 = vmatpush1.bf16.msra.mxu0 %v3003
          %3103 = vmatprep.subr.bf16.mxu0 0
          %3104 = vmatpush1.bf16.msra.mxu0 %v3004
          %3105 = vmatprep.subr.bf16.mxu0 0
          %3106 = vmatpush1.bf16.msra.mxu0 %v3005
          %3107 = vmatprep.subr.bf16.mxu0 0
          %3108 = vmatpush1.bf16.msra.mxu0 %v3006
          %3109 = vmatprep.subr.bf16.mxu0 0
          %3110 = vmatpush1.bf16.msra.mxu0 %v3007
          %3111 = vmatprep.subr.bf16.mxu0 0
          %3112 = vmatpush1.bf16.msra.mxu0 %v3008
          %3113 = vmatprep.mubr.bf16.mxu0 %v2823
          %3114 = vmatmul.mubr.bf16.gmra.mrb[0].mxu0 %v2822
          %v3115 = vpop.f32.mrb[0].mxu0
          %v3116 = vadd.f32 0.0, %v3115
          %v3117 = vpop.f32.mrb[0].mxu0
          %v3118 = vpop.f32.mrb[0].mxu0
          %v3119 = vadd.f32 0.0, %v3118
          %v3120 = vpop.f32.mrb[0].mxu0
          %3121 = vmatprep.mubr.bf16.mxu0 %v2826
          %3122 = vmatmul.mubr.bf16.gmra.mrb[0].mxu0 %v2825
          %v3123 = vpop.f32.mrb[0].mxu0
          %v3124 = vadd.f32 0.0, %v3123
          %v3125 = vpop.f32.mrb[0].mxu0
          %v3126 = vpop.f32.mrb[0].mxu0
          %v3127 = vadd.f32 0.0, %v3126
          %v3128 = vpop.f32.mrb[0].mxu0
          %3129 = vmatprep.mubr.bf16.mxu0 %v2829
          %3130 = vmatmul.mubr.bf16.gmra.mrb[0].mxu0 %v2828
          %v3131 = vpop.f32.mrb[0].mxu0
          %v3132 = vadd.f32 0.0, %v3131
          %v3133 = vpop.f32.mrb[0].mxu0
          %v3134 = vpop.f32.mrb[0].mxu0
          %v3135 = vadd.f32 0.0, %v3134
          %v3136 = vpop.f32.mrb[0].mxu0
          %3137 = vmatprep.mubr.bf16.mxu0 %v2832
          %3138 = vmatmul.mubr.bf16.gmra.mrb[0].mxu0 %v2831
          %v3139 = vpop.f32.mrb[0].mxu0
          %v3140 = vadd.f32 0.0, %v3139
          %v3141 = vpop.f32.mrb[0].mxu0
          %v3142 = vpop.f32.mrb[0].mxu0
          %v3143 = vadd.f32 0.0, %v3142
          %v3144 = vpop.f32.mrb[0].mxu0
          %3145 = vmatprep.mubr.bf16.mxu0 %v2835
          %3146 = vmatmul.mubr.bf16.gmra.mrb[0].mxu0 %v2834
          %v3147 = vpop.f32.mrb[0].mxu0
          %v3148 = vadd.f32 0.0, %v3147
          %v3149 = vpop.f32.mrb[0].mxu0
          %v3150 = vpop.f32.mrb[0].mxu0
          %v3151 = vadd.f32 0.0, %v3150
          %v3152 = vpop.f32.mrb[0].mxu0
          %3153 = vmatprep.mubr.bf16.mxu0 %v2838
          %3154 = vmatmul.mubr.bf16.gmra.mrb[0].mxu0 %v2837
          %v3155 = vpop.f32.mrb[0].mxu0
          %v3156 = vadd.f32 0.0, %v3155
          %v3157 = vpop.f32.mrb[0].mxu0
          %v3158 = vpop.f32.mrb[0].mxu0
          %v3159 = vadd.f32 0.0, %v3158
          %v3160 = vpop.f32.mrb[0].mxu0
          %3161 = vmatprep.mubr.bf16.mxu0 %v2841
          %3162 = vmatmul.mubr.bf16.gmra.mrb[0].mxu0 %v2840
          %v3163 = vpop.f32.mrb[0].mxu0
          %v3164 = vadd.f32 0.0, %v3163
          %v3165 = vpop.f32.mrb[0].mxu0
          %v3166 = vpop.f32.mrb[0].mxu0
          %v3167 = vadd.f32 0.0, %v3166
          %v3168 = vpop.f32.mrb[0].mxu0
          %3169 = vmatprep.mubr.bf16.mxu0 %v2844
          %3170 = vmatmul.mubr.bf16.gmra.mrb[0].mxu0 %v2843
          %v3171 = vpop.f32.mrb[0].mxu0
          %v3172 = vadd.f32 0.0, %v3171
          %v3173 = vpop.f32.mrb[0].mxu0
          %v3174 = vpop.f32.mrb[0].mxu0
          %v3175 = vadd.f32 0.0, %v3174
          %v3176 = vpop.f32.mrb[0].mxu0
          %3177 = vmatprep.mubr.bf16.mxu0 %v2847
          %3178 = vmatmul.mubr.bf16.gmra.mrb[0].mxu0 %v2846
          %v3179 = vpop.f32.mrb[0].mxu0
          %v3180 = vadd.f32 0.0, %v3179
          %v3181 = vpop.f32.mrb[0].mxu0
          %v3182 = vpop.f32.mrb[0].mxu0
          %v3183 = vadd.f32 0.0, %v3182
          %v3184 = vpop.f32.mrb[0].mxu0
          %3185 = vmatprep.mubr.bf16.mxu0 %v2850
          %3186 = vmatmul.mubr.bf16.gmra.mrb[0].mxu0 %v2849
          %v3187 = vpop.f32.mrb[0].mxu0
          %v3188 = vadd.f32 0.0, %v3187
          %v3189 = vpop.f32.mrb[0].mxu0
          %v3190 = vpop.f32.mrb[0].mxu0
          %v3191 = vadd.f32 0.0, %v3190
          %v3192 = vpop.f32.mrb[0].mxu0
          %3193 = vmatprep.mubr.bf16.mxu0 %v2853
          %3194 = vmatmul.mubr.bf16.gmra.mrb[0].mxu0 %v2852
          %v3195 = vpop.f32.mrb[0].mxu0
          %v3196 = vadd.f32 0.0, %v3195
          %v3197 = vpop.f32.mrb[0].mxu0
          %v3198 = vpop.f32.mrb[0].mxu0
          %v3199 = vadd.f32 0.0, %v3198
          %v3200 = vpop.f32.mrb[0].mxu0
          %3201 = vmatprep.mubr.bf16.mxu0 %v2856
          %3202 = vmatmul.mubr.bf16.gmra.mrb[0].mxu0 %v2855
          %v3203 = vpop.f32.mrb[0].mxu0
          %v3204 = vadd.f32 0.0, %v3203
          %v3205 = vpop.f32.mrb[0].mxu0
          %v3206 = vpop.f32.mrb[0].mxu0
          %v3207 = vadd.f32 0.0, %v3206
          %v3208 = vpop.f32.mrb[0].mxu0
          %3209 = vmatprep.mubr.bf16.mxu0 %v2859
          %3210 = vmatmul.mubr.bf16.gmra.mrb[0].mxu0 %v2858
          %v3211 = vpop.f32.mrb[0].mxu0
          %v3212 = vadd.f32 0.0, %v3211
          %v3213 = vpop.f32.mrb[0].mxu0
          %v3214 = vpop.f32.mrb[0].mxu0
          %v3215 = vadd.f32 0.0, %v3214
          %v3216 = vpop.f32.mrb[0].mxu0
          %3217 = vmatprep.mubr.bf16.mxu0 %v2862
          %3218 = vmatmul.mubr.bf16.gmra.mrb[0].mxu0 %v2861
          %v3219 = vpop.f32.mrb[0].mxu0
          %v3220 = vadd.f32 0.0, %v3219
          %v3221 = vpop.f32.mrb[0].mxu0
          %v3222 = vpop.f32.mrb[0].mxu0
          %v3223 = vadd.f32 0.0, %v3222
          %v3224 = vpop.f32.mrb[0].mxu0
          %3225 = vmatprep.mubr.bf16.mxu0 %v2865
          %3226 = vmatmul.mubr.bf16.gmra.mrb[0].mxu0 %v2864
          %v3227 = vpop.f32.mrb[0].mxu0
          %v3228 = vadd.f32 0.0, %v3227
          %v3229 = vpop.f32.mrb[0].mxu0
          %v3230 = vpop.f32.mrb[0].mxu0
          %v3231 = vadd.f32 0.0, %v3230
          %v3232 = vpop.f32.mrb[0].mxu0
          %3233 = vmatprep.mubr.bf16.mxu0 %v2868
          %3234 = vmatmul.mubr.bf16.gmra.mrb[0].mxu0 %v2867
          %v3235 = vpop.f32.mrb[0].mxu0
          %v3236 = vadd.f32 0.0, %v3235
          %v3237 = vpop.f32.mrb[0].mxu0
          %v3238 = vpop.f32.mrb[0].mxu0
          %v3239 = vadd.f32 0.0, %v3238
          %v3240 = vpop.f32.mrb[0].mxu0
          %3241 = vdwg.mxu0
          %3242 = vmatprep.subr.bf16.mxu0 0
          %3243 = vmatpush1.bf16.msra.mxu0 %v3009
          %3244 = vmatprep.subr.bf16.mxu0 0
          %3245 = vmatpush1.bf16.msra.mxu0 %v3010
          %3246 = vmatprep.subr.bf16.mxu0 0
          %3247 = vmatpush1.bf16.msra.mxu0 %v3011
          %3248 = vmatprep.subr.bf16.mxu0 0
          %3249 = vmatpush1.bf16.msra.mxu0 %v3012
          %3250 = vmatprep.subr.bf16.mxu0 0
          %3251 = vmatpush1.bf16.msra.mxu0 0
          %3252 = vmatprep.subr.bf16.mxu0 0
          %3253 = vmatpush1.bf16.msra.mxu0 0
          %3254 = vmatprep.subr.bf16.mxu0 0
          %3255 = vmatpush1.bf16.msra.mxu0 0
          %3256 = vmatprep.subr.bf16.mxu0 0
          %3257 = vmatpush1.bf16.msra.mxu0 0
          %3258 = vmatprep.subr.bf16.mxu0 0
          %3259 = vmatpush1.bf16.msra.mxu0 0
          %3260 = vmatprep.subr.bf16.mxu0 0
          %3261 = vmatpush1.bf16.msra.mxu0 0
          %3262 = vmatprep.subr.bf16.mxu0 0
          %3263 = vmatpush1.bf16.msra.mxu0 0
          %3264 = vmatprep.subr.bf16.mxu0 0
          %3265 = vmatpush1.bf16.msra.mxu0 0
          %3266 = vmatprep.subr.bf16.mxu0 0
          %3267 = vmatpush1.bf16.msra.mxu0 0
          %3268 = vmatprep.subr.bf16.mxu0 0
          %3269 = vmatpush1.bf16.msra.mxu0 0
          %3270 = vmatprep.subr.bf16.mxu0 0
          %3271 = vmatpush1.bf16.msra.mxu0 0
          %3272 = vmatprep.subr.bf16.mxu0 0
          %3273 = vmatpush1.bf16.msra.mxu0 0
          %3274 = vmatprep.mubr.bf16.mxu0 0
          %3275 = vmatmul.mubr.bf16.gmra.mrb[0].mxu0 %v3034
          %v3276 = vpop.f32.mrb[0].mxu0
          %v3277 = vadd.f32 %v3116, %v3276
          %v3278 = vpop.f32.mrb[0].mxu0
          %v3279 = vpop.f32.mrb[0].mxu0
          %v3280 = vadd.f32 %v3119, %v3279
          %v3281 = vpop.f32.mrb[0].mxu0
          %3282 = vmatprep.mubr.bf16.mxu0 0
          %3283 = vmatmul.mubr.bf16.gmra.mrb[0].mxu0 %v3037
          %v3284 = vpop.f32.mrb[0].mxu0
          %v3285 = vadd.f32 %v3124, %v3284
          %v3286 = vpop.f32.mrb[0].mxu0
          %v3287 = vpop.f32.mrb[0].mxu0
          %v3288 = vadd.f32 %v3127, %v3287
          %v3289 = vpop.f32.mrb[0].mxu0
          %3290 = vmatprep.mubr.bf16.mxu0 0
          %3291 = vmatmul.mubr.bf16.gmra.mrb[0].mxu0 %v3040
          %v3292 = vpop.f32.mrb[0].mxu0
          %v3293 = vadd.f32 %v3132, %v3292
          %v3294 = vpop.f32.mrb[0].mxu0
          %v3295 = vpop.f32.mrb[0].mxu0
          %v3296 = vadd.f32 %v3135, %v3295
          %v3297 = vpop.f32.mrb[0].mxu0
          %3298 = vmatprep.mubr.bf16.mxu0 0
          %3299 = vmatmul.mubr.bf16.gmra.mrb[0].mxu0 %v3043
          %v3300 = vpop.f32.mrb[0].mxu0
          %v3301 = vadd.f32 %v3140, %v3300
          %v3302 = vpop.f32.mrb[0].mxu0
          %v3303 = vpop.f32.mrb[0].mxu0
          %v3304 = vadd.f32 %v3143, %v3303
          %v3305 = vpop.f32.mrb[0].mxu0
          %3306 = vmatprep.mubr.bf16.mxu0 0
          %3307 = vmatmul.mubr.bf16.gmra.mrb[0].mxu0 %v3046
          %v3308 = vpop.f32.mrb[0].mxu0
          %v3309 = vadd.f32 %v3148, %v3308
          %v3310 = vpop.f32.mrb[0].mxu0
          %v3311 = vpop.f32.mrb[0].mxu0
          %v3312 = vadd.f32 %v3151, %v3311
          %v3313 = vpop.f32.mrb[0].mxu0
          %3314 = vmatprep.mubr.bf16.mxu0 0
          %3315 = vmatmul.mubr.bf16.gmra.mrb[0].mxu0 %v3049
          %v3316 = vpop.f32.mrb[0].mxu0
          %v3317 = vadd.f32 %v3156, %v3316
          %v3318 = vpop.f32.mrb[0].mxu0
          %v3319 = vpop.f32.mrb[0].mxu0
          %v3320 = vadd.f32 %v3159, %v3319
          %v3321 = vpop.f32.mrb[0].mxu0
          %3322 = vmatprep.mubr.bf16.mxu0 0
          %3323 = vmatmul.mubr.bf16.gmra.mrb[0].mxu0 %v3052
          %v3324 = vpop.f32.mrb[0].mxu0
          %v3325 = vadd.f32 %v3164, %v3324
          %v3326 = vpop.f32.mrb[0].mxu0
          %v3327 = vpop.f32.mrb[0].mxu0
          %v3328 = vadd.f32 %v3167, %v3327
          %v3329 = vpop.f32.mrb[0].mxu0
          %3330 = vmatprep.mubr.bf16.mxu0 0
          %3331 = vmatmul.mubr.bf16.gmra.mrb[0].mxu0 %v3055
          %v3332 = vpop.f32.mrb[0].mxu0
          %v3333 = vadd.f32 %v3172, %v3332
          %v3334 = vpop.f32.mrb[0].mxu0
          %v3335 = vpop.f32.mrb[0].mxu0
          %v3336 = vadd.f32 %v3175, %v3335
          %v3337 = vpop.f32.mrb[0].mxu0
          %3338 = vmatprep.mubr.bf16.mxu0 0
          %3339 = vmatmul.mubr.bf16.gmra.mrb[0].mxu0 %v3058
          %v3340 = vpop.f32.mrb[0].mxu0
          %v3341 = vadd.f32 %v3180, %v3340
          %v3342 = vpop.f32.mrb[0].mxu0
          %v3343 = vpop.f32.mrb[0].mxu0
          %v3344 = vadd.f32 %v3183, %v3343
          %v3345 = vpop.f32.mrb[0].mxu0
          %3346 = vmatprep.mubr.bf16.mxu0 0
          %3347 = vmatmul.mubr.bf16.gmra.mrb[0].mxu0 %v3061
          %v3348 = vpop.f32.mrb[0].mxu0
          %v3349 = vadd.f32 %v3188, %v3348
          %v3350 = vpop.f32.mrb[0].mxu0
          %v3351 = vpop.f32.mrb[0].mxu0
          %v3352 = vadd.f32 %v3191, %v3351
          %v3353 = vpop.f32.mrb[0].mxu0
          %3354 = vmatprep.mubr.bf16.mxu0 0
          %3355 = vmatmul.mubr.bf16.gmra.mrb[0].mxu0 %v3064
          %v3356 = vpop.f32.mrb[0].mxu0
          %v3357 = vadd.f32 %v3196, %v3356
          %v3358 = vpop.f32.mrb[0].mxu0
          %v3359 = vpop.f32.mrb[0].mxu0
          %v3360 = vadd.f32 %v3199, %v3359
          %v3361 = vpop.f32.mrb[0].mxu0
          %3362 = vmatprep.mubr.bf16.mxu0 0
          %3363 = vmatmul.mubr.bf16.gmra.mrb[0].mxu0 %v3067
          %v3364 = vpop.f32.mrb[0].mxu0
          %v3365 = vadd.f32 %v3204, %v3364
          %v3366 = vpop.f32.mrb[0].mxu0
          %v3367 = vpop.f32.mrb[0].mxu0
          %v3368 = vadd.f32 %v3207, %v3367
          %v3369 = vpop.f32.mrb[0].mxu0
          %3370 = vmatprep.mubr.bf16.mxu0 0
          %3371 = vmatmul.mubr.bf16.gmra.mrb[0].mxu0 %v3070
          %v3372 = vpop.f32.mrb[0].mxu0
          %v3373 = vadd.f32 %v3212, %v3372
          %v3374 = vpop.f32.mrb[0].mxu0
          %v3375 = vpop.f32.mrb[0].mxu0
          %v3376 = vadd.f32 %v3215, %v3375
          %v3377 = vpop.f32.mrb[0].mxu0
          %3378 = vmatprep.mubr.bf16.mxu0 0
          %3379 = vmatmul.mubr.bf16.gmra.mrb[0].mxu0 %v3073
          %v3380 = vpop.f32.mrb[0].mxu0
          %v3381 = vadd.f32 %v3220, %v3380
          %v3382 = vpop.f32.mrb[0].mxu0
          %v3383 = vpop.f32.mrb[0].mxu0
          %v3384 = vadd.f32 %v3223, %v3383
          %v3385 = vpop.f32.mrb[0].mxu0
          %3386 = vmatprep.mubr.bf16.mxu0 0
          %3387 = vmatmul.mubr.bf16.gmra.mrb[0].mxu0 %v3076
          %v3388 = vpop.f32.mrb[0].mxu0
          %v3389 = vadd.f32 %v3228, %v3388
          %v3390 = vpop.f32.mrb[0].mxu0
          %v3391 = vpop.f32.mrb[0].mxu0
          %v3392 = vadd.f32 %v3231, %v3391
          %v3393 = vpop.f32.mrb[0].mxu0
          %3394 = vmatprep.mubr.bf16.mxu0 0
          %3395 = vmatmul.mubr.bf16.gmra.mrb[0].mxu0 %v3079
          %v3396 = vpop.f32.mrb[0].mxu0
          %v3397 = vadd.f32 %v3236, %v3396
          %v3398 = vpop.f32.mrb[0].mxu0
          %v3399 = vpop.f32.mrb[0].mxu0
          %v3400 = vadd.f32 %v3239, %v3399
          %v3401 = vpop.f32.mrb[0].mxu0
          %3402 = vdwg.mxu0
          %v3403 = vadd.f32 %v2785, %v3277
          %v3404 = vadd.f32 %v2786, %v3280
          %v3405 = vadd.f32 %v2787, %v3285
          %v3406 = vadd.f32 %v2788, %v3288
          %v3407 = vadd.f32 %v2789, %v3293
          %v3408 = vadd.f32 %v2790, %v3296
          %v3409 = vadd.f32 %v2791, %v3301
          %v3410 = vadd.f32 %v2792, %v3304
          %v3411 = vadd.f32 %v2793, %v3309
          %v3412 = vadd.f32 %v2794, %v3312
          %v3413 = vadd.f32 %v2795, %v3317
          %v3414 = vadd.f32 %v2796, %v3320
          %v3415 = vadd.f32 %v2797, %v3325
          %v3416 = vadd.f32 %v2798, %v3328
          %v3417 = vadd.f32 %v2799, %v3333
          %v3418 = vadd.f32 %v2800, %v3336
          %v3419 = vadd.f32 %v2801, %v3341
          %v3420 = vadd.f32 %v2802, %v3344
          %v3421 = vadd.f32 %v2803, %v3349
          %v3422 = vadd.f32 %v2804, %v3352
          %v3423 = vadd.f32 %v2805, %v3357
          %v3424 = vadd.f32 %v2806, %v3360
          %v3425 = vadd.f32 %v2807, %v3365
          %v3426 = vadd.f32 %v2808, %v3368
          %v3427 = vadd.f32 %v2809, %v3373
          %v3428 = vadd.f32 %v2810, %v3376
          %v3429 = vadd.f32 %v2811, %v3381
          %v3430 = vadd.f32 %v2812, %v3384
          %v3431 = vadd.f32 %v2813, %v3389
          %v3432 = vadd.f32 %v2814, %v3392
          %v3433 = vadd.f32 %v2815, %v3397
          %v3434 = vadd.f32 %v2816, %v3400
          %s3435 = sadd.s32 %s1026, 4
          %s3436 = smul.u32 %s3435, 6
          %s3437 = sadd.s32 %s3436, %s1028
          %s3438 = smul.addr %s3437, 8
          %s3439 = scalar_lea.vmem [#allocation2], %s3438
          %v3440 = vld [vmem:[%s3439] sm:$0xff]
          %v3441 = vld [vmem:[%s3439 + $0x8] sm:$0xff]
          %v3442 = vld [vmem:[%s3439 + $0x10] sm:$0xff]
          %v3443 = vld [vmem:[%s3439 + $0x18] sm:$0xff]
          %v3444 = vld [vmem:[%s3439 + $0x20] sm:$0xff]
          %v3445 = vld [vmem:[%s3439 + $0x28] sm:$0xff]
          %v3446 = vld [vmem:[%s3439 + $0x30] sm:$0xff]
          %v3447 = vld [vmem:[%s3439 + $0x38] sm:$0xff]
          %v3448 = vld [vmem:[%s3439 + $0x40] sm:$0xff]
          %v3449 = vld [vmem:[%s3439 + $0x48] sm:$0xff]
          %v3450 = vld [vmem:[%s3439 + $0x50] sm:$0xff]
          %v3451 = vld [vmem:[%s3439 + $0x58] sm:$0xff]
          %v3452 = vld [vmem:[%s3439 + $0x60] sm:$0xff]
          %v3453 = vld [vmem:[%s3439 + $0x68] sm:$0xff]
          %v3454 = vld [vmem:[%s3439 + $0x70] sm:$0xff]
          %v3455 = vld [vmem:[%s3439 + $0x78] sm:$0xff]
          %v3456 = vld [vmem:[%s3439 + $0x80] sm:$0xff]
          %v3457 = vld [vmem:[%s3439 + $0x88] sm:$0xff]
          %v3458 = vld [vmem:[%s3439 + $0x90] sm:$0xff]
          %v3459 = vld [vmem:[%s3439 + $0x98] sm:$0xff]
          %v3460 = vld [vmem:[%s3439 + $0xa0] sm:$0xff]
          %v3461 = vld [vmem:[%s3439 + $0xa8] sm:$0xff]
          %v3462 = vld [vmem:[%s3439 + $0xb0] sm:$0xff]
          %v3463 = vld [vmem:[%s3439 + $0xb8] sm:$0xff]
          %v3464 = vld [vmem:[%s3439 + $0xc0] sm:$0xff]
          %v3465 = vld [vmem:[%s3439 + $0xc8] sm:$0xff]
          %v3466 = vld [vmem:[%s3439 + $0xd0] sm:$0xff]
          %v3467 = vld [vmem:[%s3439 + $0xd8] sm:$0xff]
          %v3468 = vld [vmem:[%s3439 + $0xe0] sm:$0xff]
          %v3469 = vld [vmem:[%s3439 + $0xe8] sm:$0xff]
          %v3470 = vld [vmem:[%s3439 + $0xf0] sm:$0xff]
          %v3471 = vld [vmem:[%s3439 + $0xf8] sm:$0xff]
          %v3472 = vld [vmem:[%s3439 + $0x100] sm:$0xff]
          %v3473 = vld [vmem:[%s3439 + $0x108] sm:$0xff]
          %v3474 = vld [vmem:[%s3439 + $0x110] sm:$0xff]
          %v3475 = vld [vmem:[%s3439 + $0x118] sm:$0xff]
          %v3476 = vld [vmem:[%s3439 + $0x120] sm:$0xff]
          %v3477 = vld [vmem:[%s3439 + $0x128] sm:$0xff]
          %v3478 = vld [vmem:[%s3439 + $0x130] sm:$0xff]
          %v3479 = vld [vmem:[%s3439 + $0x138] sm:$0xff]
          %v3480 = vld [vmem:[%s3439 + $0x140] sm:$0xff]
          %v3481 = vld [vmem:[%s3439 + $0x148] sm:$0xff]
          %v3482 = vld [vmem:[%s3439 + $0x150] sm:$0xff]
          %v3483 = vld [vmem:[%s3439 + $0x158] sm:$0xff]
          %v3484 = vld [vmem:[%s3439 + $0x160] sm:$0xff]
          %v3485 = vld [vmem:[%s3439 + $0x168] sm:$0xff]
          %v3486 = vld [vmem:[%s3439 + $0x170] sm:$0xff]
          %v3487 = vld [vmem:[%s3439 + $0x178] sm:$0xff]
          %s3488 = sadd.s32 160, %s1080
          %s3489 = smul.addr %s3488, 4
          %s3490 = scalar_lea.vmem %s1, %s3489
          %v3491 = vld [vmem:[%s3490] sm:$0xf]
          %v3492 = vld [vmem:[%s3490 + $0x4] sm:$0xf]
          %v3493 = vld [vmem:[%s3490 + $0x8] sm:$0xf]
          %v3494 = vld [vmem:[%s3490 + $0xc] sm:$0xf]
          %v3495 = vld [vmem:[%s3490 + $0x10] sm:$0xf]
          %v3496 = vld [vmem:[%s3490 + $0x14] sm:$0xf]
          %v3497 = vld [vmem:[%s3490 + $0x18] sm:$0xf]
          %v3498 = vld [vmem:[%s3490 + $0x1c] sm:$0xf]
          %v3499 = vld [vmem:[%s3490 + $0x20] sm:$0xf]
          %v3500 = vld [vmem:[%s3490 + $0x24] sm:$0xf]
          %v3501 = vld [vmem:[%s3490 + $0x28] sm:$0xf]
          %v3502 = vld [vmem:[%s3490 + $0x2c] sm:$0xf]
          %v3503 = vld [vmem:[%s3490 + $0x30] sm:$0xf]
          %v3504 = vld [vmem:[%s3490 + $0x34] sm:$0xf]
          %v3505 = vld [vmem:[%s3490 + $0x38] sm:$0xf]
          %v3506 = vld [vmem:[%s3490 + $0x3c] sm:$0xf]
          %v3507 = vld [vmem:[%s3490 + $0x40] sm:$0xf]
          %v3508 = vld [vmem:[%s3490 + $0x44] sm:$0xf]
          %v3509 = vld [vmem:[%s3490 + $0x48] sm:$0xf]
          %v3510 = vld [vmem:[%s3490 + $0x4c] sm:$0xf]
          %v3511 = vld [vmem:[%s3490 + $0x50] sm:$0xf]
          %v3512 = vld [vmem:[%s3490 + $0x54] sm:$0xf]
          %v3513 = vld [vmem:[%s3490 + $0x58] sm:$0xf]
          %v3514 = vld [vmem:[%s3490 + $0x5c] sm:$0xf]
          %v3515 = vld [vmem:[%s3490 + $0x60] sm:$0xf]
          %v3516 = vld [vmem:[%s3490 + $0x64] sm:$0xf]
          %v3517 = vld [vmem:[%s3490 + $0x68] sm:$0xf]
          %v3518 = vld [vmem:[%s3490 + $0x6c] sm:$0xf]
          %v3519 = vld [vmem:[%s3490 + $0x70] sm:$0xf]
          %v3520 = vld [vmem:[%s3490 + $0x74] sm:$0xf]
          %v3521 = vld [vmem:[%s3490 + $0x78] sm:$0xf]
          %v3522 = vld [vmem:[%s3490 + $0x7c] sm:$0xf]
          %v3523 = vld [vmem:[%s3490 + $0x80] sm:$0xf]
          %v3524 = vld [vmem:[%s3490 + $0x84] sm:$0xf]
          %v3525 = vld [vmem:[%s3490 + $0x88] sm:$0xf]
          %v3526 = vld [vmem:[%s3490 + $0x8c] sm:$0xf]
          %v3527 = vld [vmem:[%s3490 + $0x90] sm:$0xf]
          %v3528 = vld [vmem:[%s3490 + $0x94] sm:$0xf]
          %v3529 = vld [vmem:[%s3490 + $0x98] sm:$0xf]
          %v3530 = vld [vmem:[%s3490 + $0x9c] sm:$0xf]
          %v3571 = vunpack.c.l.b16 %v3491
          %v3572 = vunpack.c.l.b16 %v3492
          %v3573 = vunpack.c.l.b16 %v3493
          %v3574 = vunpack.c.l.b16 %v3494
          %v3575 = vunpack.c.l.b16 %v3495
          %v3576 = vunpack.c.l.b16 %v3496
          %v3577 = vunpack.c.l.b16 %v3497
          %v3578 = vunpack.c.l.b16 %v3498
          %v3579 = vunpack.c.l.b16 %v3499
          %v3580 = vunpack.c.l.b16 %v3500
          %v3581 = vunpack.c.l.b16 %v3501
          %v3582 = vunpack.c.l.b16 %v3502
          %v3583 = vunpack.c.l.b16 %v3503
          %v3584 = vunpack.c.l.b16 %v3504
          %v3585 = vunpack.c.l.b16 %v3505
          %v3586 = vunpack.c.l.b16 %v3506
          %v3587 = vunpack.c.l.b16 %v3507
          %v3588 = vunpack.c.l.b16 %v3508
          %v3589 = vunpack.c.l.b16 %v3509
          %v3590 = vunpack.c.l.b16 %v3510
          %v3591 = vunpack.c.l.b16 %v3511
          %v3592 = vunpack.c.l.b16 %v3512
          %v3593 = vunpack.c.l.b16 %v3513
          %v3594 = vunpack.c.l.b16 %v3514
          %v3595 = vunpack.c.l.b16 %v3515
          %v3596 = vunpack.c.l.b16 %v3516
          %v3597 = vunpack.c.l.b16 %v3517
          %v3598 = vunpack.c.l.b16 %v3518
          %v3599 = vunpack.c.l.b16 %v3519
          %v3600 = vunpack.c.l.b16 %v3520
          %v3601 = vunpack.c.l.b16 %v3521
          %v3602 = vunpack.c.l.b16 %v3522
          %v3603 = vunpack.c.l.b16 %v3523
          %v3604 = vunpack.c.l.b16 %v3524
          %v3605 = vunpack.c.l.b16 %v3525
          %v3606 = vunpack.c.l.b16 %v3526
          %v3607 = vunpack.c.l.b16 %v3527
          %v3608 = vunpack.c.l.b16 %v3528
          %v3609 = vunpack.c.l.b16 %v3529
          %v3610 = vunpack.c.l.b16 %v3530
          %v3611 = vpack.c.b16 %v3572, %v3571
          %v3612 = vpack.c.b16 %v3574, %v3573
          %v3613 = vpack.c.b16 %v3576, %v3575
          %v3614 = vpack.c.b16 %v3578, %v3577
          %v3615 = vpack.c.b16 %v3580, %v3579
          %v3616 = vpack.c.b16 %v3582, %v3581
          %v3617 = vpack.c.b16 %v3584, %v3583
          %v3618 = vpack.c.b16 %v3586, %v3585
          %v3619 = vpack.c.b16 %v3588, %v3587
          %v3620 = vpack.c.b16 %v3590, %v3589
          %v3621 = vpack.c.b16 %v3592, %v3591
          %v3622 = vpack.c.b16 %v3594, %v3593
          %v3623 = vpack.c.b16 %v3596, %v3595
          %v3624 = vpack.c.b16 %v3598, %v3597
          %v3625 = vpack.c.b16 %v3600, %v3599
          %v3626 = vpack.c.b16 %v3602, %v3601
          %v3627 = vpack.c.b16 %v3604, %v3603
          %v3628 = vpack.c.b16 %v3606, %v3605
          %v3629 = vpack.c.b16 %v3608, %v3607
          %v3630 = vpack.c.b16 %v3610, %v3609
          %v3652 = vsel %vm954, %v3442, 0
          %v3655 = vsel %vm954, %v3445, 0
          %v3658 = vsel %vm954, %v3448, 0
          %v3661 = vsel %vm954, %v3451, 0
          %v3664 = vsel %vm954, %v3454, 0
          %v3667 = vsel %vm954, %v3457, 0
          %v3670 = vsel %vm954, %v3460, 0
          %v3673 = vsel %vm954, %v3463, 0
          %v3676 = vsel %vm954, %v3466, 0
          %v3679 = vsel %vm954, %v3469, 0
          %v3682 = vsel %vm954, %v3472, 0
          %v3685 = vsel %vm954, %v3475, 0
          %v3688 = vsel %vm954, %v3478, 0
          %v3691 = vsel %vm954, %v3481, 0
          %v3694 = vsel %vm954, %v3484, 0
          %v3697 = vsel %vm954, %v3487, 0
          %3699 = vmatprep.subr.bf16.mxu0 0
          %3700 = vmatpush1.bf16.msra.mxu0 %v3611
          %3701 = vmatprep.subr.bf16.mxu0 0
          %3702 = vmatpush1.bf16.msra.mxu0 %v3612
          %3703 = vmatprep.subr.bf16.mxu0 0
          %3704 = vmatpush1.bf16.msra.mxu0 %v3613
          %3705 = vmatprep.subr.bf16.mxu0 0
          %3706 = vmatpush1.bf16.msra.mxu0 %v3614
          %3707 = vmatprep.subr.bf16.mxu0 0
          %3708 = vmatpush1.bf16.msra.mxu0 %v3615
          %3709 = vmatprep.subr.bf16.mxu0 0
          %3710 = vmatpush1.bf16.msra.mxu0 %v3616
          %3711 = vmatprep.subr.bf16.mxu0 0
          %3712 = vmatpush1.bf16.msra.mxu0 %v3617
          %3713 = vmatprep.subr.bf16.mxu0 0
          %3714 = vmatpush1.bf16.msra.mxu0 %v3618
          %3715 = vmatprep.subr.bf16.mxu0 0
          %3716 = vmatpush1.bf16.msra.mxu0 %v3619
          %3717 = vmatprep.subr.bf16.mxu0 0
          %3718 = vmatpush1.bf16.msra.mxu0 %v3620
          %3719 = vmatprep.subr.bf16.mxu0 0
          %3720 = vmatpush1.bf16.msra.mxu0 %v3621
          %3721 = vmatprep.subr.bf16.mxu0 0
          %3722 = vmatpush1.bf16.msra.mxu0 %v3622
          %3723 = vmatprep.subr.bf16.mxu0 0
          %3724 = vmatpush1.bf16.msra.mxu0 %v3623
          %3725 = vmatprep.subr.bf16.mxu0 0
          %3726 = vmatpush1.bf16.msra.mxu0 %v3624
          %3727 = vmatprep.subr.bf16.mxu0 0
          %3728 = vmatpush1.bf16.msra.mxu0 %v3625
          %3729 = vmatprep.subr.bf16.mxu0 0
          %3730 = vmatpush1.bf16.msra.mxu0 %v3626
          %3731 = vmatprep.mubr.bf16.mxu0 %v3441
          %3732 = vmatmul.mubr.bf16.gmra.mrb[0].mxu0 %v3440
          %v3733 = vpop.f32.mrb[0].mxu0
          %v3734 = vadd.f32 0.0, %v3733
          %v3735 = vpop.f32.mrb[0].mxu0
          %v3736 = vpop.f32.mrb[0].mxu0
          %v3737 = vadd.f32 0.0, %v3736
          %v3738 = vpop.f32.mrb[0].mxu0
          %3739 = vmatprep.mubr.bf16.mxu0 %v3444
          %3740 = vmatmul.mubr.bf16.gmra.mrb[0].mxu0 %v3443
          %v3741 = vpop.f32.mrb[0].mxu0
          %v3742 = vadd.f32 0.0, %v3741
          %v3743 = vpop.f32.mrb[0].mxu0
          %v3744 = vpop.f32.mrb[0].mxu0
          %v3745 = vadd.f32 0.0, %v3744
          %v3746 = vpop.f32.mrb[0].mxu0
          %3747 = vmatprep.mubr.bf16.mxu0 %v3447
          %3748 = vmatmul.mubr.bf16.gmra.mrb[0].mxu0 %v3446
          %v3749 = vpop.f32.mrb[0].mxu0
          %v3750 = vadd.f32 0.0, %v3749
          %v3751 = vpop.f32.mrb[0].mxu0
          %v3752 = vpop.f32.mrb[0].mxu0
          %v3753 = vadd.f32 0.0, %v3752
          %v3754 = vpop.f32.mrb[0].mxu0
          %3755 = vmatprep.mubr.bf16.mxu0 %v3450
          %3756 = vmatmul.mubr.bf16.gmra.mrb[0].mxu0 %v3449
          %v3757 = vpop.f32.mrb[0].mxu0
          %v3758 = vadd.f32 0.0, %v3757
          %v3759 = vpop.f32.mrb[0].mxu0
          %v3760 = vpop.f32.mrb[0].mxu0
          %v3761 = vadd.f32 0.0, %v3760
          %v3762 = vpop.f32.mrb[0].mxu0
          %3763 = vmatprep.mubr.bf16.mxu0 %v3453
          %3764 = vmatmul.mubr.bf16.gmra.mrb[0].mxu0 %v3452
          %v3765 = vpop.f32.mrb[0].mxu0
          %v3766 = vadd.f32 0.0, %v3765
          %v3767 = vpop.f32.mrb[0].mxu0
          %v3768 = vpop.f32.mrb[0].mxu0
          %v3769 = vadd.f32 0.0, %v3768
          %v3770 = vpop.f32.mrb[0].mxu0
          %3771 = vmatprep.mubr.bf16.mxu0 %v3456
          %3772 = vmatmul.mubr.bf16.gmra.mrb[0].mxu0 %v3455
          %v3773 = vpop.f32.mrb[0].mxu0
          %v3774 = vadd.f32 0.0, %v3773
          %v3775 = vpop.f32.mrb[0].mxu0
          %v3776 = vpop.f32.mrb[0].mxu0
          %v3777 = vadd.f32 0.0, %v3776
          %v3778 = vpop.f32.mrb[0].mxu0
          %3779 = vmatprep.mubr.bf16.mxu0 %v3459
          %3780 = vmatmul.mubr.bf16.gmra.mrb[0].mxu0 %v3458
          %v3781 = vpop.f32.mrb[0].mxu0
          %v3782 = vadd.f32 0.0, %v3781
          %v3783 = vpop.f32.mrb[0].mxu0
          %v3784 = vpop.f32.mrb[0].mxu0
          %v3785 = vadd.f32 0.0, %v3784
          %v3786 = vpop.f32.mrb[0].mxu0
          %3787 = vmatprep.mubr.bf16.mxu0 %v3462
          %3788 = vmatmul.mubr.bf16.gmra.mrb[0].mxu0 %v3461
          %v3789 = vpop.f32.mrb[0].mxu0
          %v3790 = vadd.f32 0.0, %v3789
          %v3791 = vpop.f32.mrb[0].mxu0
          %v3792 = vpop.f32.mrb[0].mxu0
          %v3793 = vadd.f32 0.0, %v3792
          %v3794 = vpop.f32.mrb[0].mxu0
          %3795 = vmatprep.mubr.bf16.mxu0 %v3465
          %3796 = vmatmul.mubr.bf16.gmra.mrb[0].mxu0 %v3464
          %v3797 = vpop.f32.mrb[0].mxu0
          %v3798 = vadd.f32 0.0, %v3797
          %v3799 = vpop.f32.mrb[0].mxu0
          %v3800 = vpop.f32.mrb[0].mxu0
          %v3801 = vadd.f32 0.0, %v3800
          %v3802 = vpop.f32.mrb[0].mxu0
          %3803 = vmatprep.mubr.bf16.mxu0 %v3468
          %3804 = vmatmul.mubr.bf16.gmra.mrb[0].mxu0 %v3467
          %v3805 = vpop.f32.mrb[0].mxu0
          %v3806 = vadd.f32 0.0, %v3805
          %v3807 = vpop.f32.mrb[0].mxu0
          %v3808 = vpop.f32.mrb[0].mxu0
          %v3809 = vadd.f32 0.0, %v3808
          %v3810 = vpop.f32.mrb[0].mxu0
          %3811 = vmatprep.mubr.bf16.mxu0 %v3471
          %3812 = vmatmul.mubr.bf16.gmra.mrb[0].mxu0 %v3470
          %v3813 = vpop.f32.mrb[0].mxu0
          %v3814 = vadd.f32 0.0, %v3813
          %v3815 = vpop.f32.mrb[0].mxu0
          %v3816 = vpop.f32.mrb[0].mxu0
          %v3817 = vadd.f32 0.0, %v3816
          %v3818 = vpop.f32.mrb[0].mxu0
          %3819 = vmatprep.mubr.bf16.mxu0 %v3474
          %3820 = vmatmul.mubr.bf16.gmra.mrb[0].mxu0 %v3473
          %v3821 = vpop.f32.mrb[0].mxu0
          %v3822 = vadd.f32 0.0, %v3821
          %v3823 = vpop.f32.mrb[0].mxu0
          %v3824 = vpop.f32.mrb[0].mxu0
          %v3825 = vadd.f32 0.0, %v3824
          %v3826 = vpop.f32.mrb[0].mxu0
          %3827 = vmatprep.mubr.bf16.mxu0 %v3477
          %3828 = vmatmul.mubr.bf16.gmra.mrb[0].mxu0 %v3476
          %v3829 = vpop.f32.mrb[0].mxu0
          %v3830 = vadd.f32 0.0, %v3829
          %v3831 = vpop.f32.mrb[0].mxu0
          %v3832 = vpop.f32.mrb[0].mxu0
          %v3833 = vadd.f32 0.0, %v3832
          %v3834 = vpop.f32.mrb[0].mxu0
          %3835 = vmatprep.mubr.bf16.mxu0 %v3480
          %3836 = vmatmul.mubr.bf16.gmra.mrb[0].mxu0 %v3479
          %v3837 = vpop.f32.mrb[0].mxu0
          %v3838 = vadd.f32 0.0, %v3837
          %v3839 = vpop.f32.mrb[0].mxu0
          %v3840 = vpop.f32.mrb[0].mxu0
          %v3841 = vadd.f32 0.0, %v3840
          %v3842 = vpop.f32.mrb[0].mxu0
          %3843 = vmatprep.mubr.bf16.mxu0 %v3483
          %3844 = vmatmul.mubr.bf16.gmra.mrb[0].mxu0 %v3482
          %v3845 = vpop.f32.mrb[0].mxu0
          %v3846 = vadd.f32 0.0, %v3845
          %v3847 = vpop.f32.mrb[0].mxu0
          %v3848 = vpop.f32.mrb[0].mxu0
          %v3849 = vadd.f32 0.0, %v3848
          %v3850 = vpop.f32.mrb[0].mxu0
          %3851 = vmatprep.mubr.bf16.mxu0 %v3486
          %3852 = vmatmul.mubr.bf16.gmra.mrb[0].mxu0 %v3485
          %v3853 = vpop.f32.mrb[0].mxu0
          %v3854 = vadd.f32 0.0, %v3853
          %v3855 = vpop.f32.mrb[0].mxu0
          %v3856 = vpop.f32.mrb[0].mxu0
          %v3857 = vadd.f32 0.0, %v3856
          %v3858 = vpop.f32.mrb[0].mxu0
          %3859 = vdwg.mxu0
          %3860 = vmatprep.subr.bf16.mxu0 0
          %3861 = vmatpush1.bf16.msra.mxu0 %v3627
          %3862 = vmatprep.subr.bf16.mxu0 0
          %3863 = vmatpush1.bf16.msra.mxu0 %v3628
          %3864 = vmatprep.subr.bf16.mxu0 0
          %3865 = vmatpush1.bf16.msra.mxu0 %v3629
          %3866 = vmatprep.subr.bf16.mxu0 0
          %3867 = vmatpush1.bf16.msra.mxu0 %v3630
          %3868 = vmatprep.subr.bf16.mxu0 0
          %3869 = vmatpush1.bf16.msra.mxu0 0
          %3870 = vmatprep.subr.bf16.mxu0 0
          %3871 = vmatpush1.bf16.msra.mxu0 0
          %3872 = vmatprep.subr.bf16.mxu0 0
          %3873 = vmatpush1.bf16.msra.mxu0 0
          %3874 = vmatprep.subr.bf16.mxu0 0
          %3875 = vmatpush1.bf16.msra.mxu0 0
          %3876 = vmatprep.subr.bf16.mxu0 0
          %3877 = vmatpush1.bf16.msra.mxu0 0
          %3878 = vmatprep.subr.bf16.mxu0 0
          %3879 = vmatpush1.bf16.msra.mxu0 0
          %3880 = vmatprep.subr.bf16.mxu0 0
          %3881 = vmatpush1.bf16.msra.mxu0 0
          %3882 = vmatprep.subr.bf16.mxu0 0
          %3883 = vmatpush1.bf16.msra.mxu0 0
          %3884 = vmatprep.subr.bf16.mxu0 0
          %3885 = vmatpush1.bf16.msra.mxu0 0
          %3886 = vmatprep.subr.bf16.mxu0 0
          %3887 = vmatpush1.bf16.msra.mxu0 0
          %3888 = vmatprep.subr.bf16.mxu0 0
          %3889 = vmatpush1.bf16.msra.mxu0 0
          %3890 = vmatprep.subr.bf16.mxu0 0
          %3891 = vmatpush1.bf16.msra.mxu0 0
          %3892 = vmatprep.mubr.bf16.mxu0 0
          %3893 = vmatmul.mubr.bf16.gmra.mrb[0].mxu0 %v3652
          %v3894 = vpop.f32.mrb[0].mxu0
          %v3895 = vadd.f32 %v3734, %v3894
          %v3896 = vpop.f32.mrb[0].mxu0
          %v3897 = vpop.f32.mrb[0].mxu0
          %v3898 = vadd.f32 %v3737, %v3897
          %v3899 = vpop.f32.mrb[0].mxu0
          %3900 = vmatprep.mubr.bf16.mxu0 0
          %3901 = vmatmul.mubr.bf16.gmra.mrb[0].mxu0 %v3655
          %v3902 = vpop.f32.mrb[0].mxu0
          %v3903 = vadd.f32 %v3742, %v3902
          %v3904 = vpop.f32.mrb[0].mxu0
          %v3905 = vpop.f32.mrb[0].mxu0
          %v3906 = vadd.f32 %v3745, %v3905
          %v3907 = vpop.f32.mrb[0].mxu0
          %3908 = vmatprep.mubr.bf16.mxu0 0
          %3909 = vmatmul.mubr.bf16.gmra.mrb[0].mxu0 %v3658
          %v3910 = vpop.f32.mrb[0].mxu0
          %v3911 = vadd.f32 %v3750, %v3910
          %v3912 = vpop.f32.mrb[0].mxu0
          %v3913 = vpop.f32.mrb[0].mxu0
          %v3914 = vadd.f32 %v3753, %v3913
          %v3915 = vpop.f32.mrb[0].mxu0
          %3916 = vmatprep.mubr.bf16.mxu0 0
          %3917 = vmatmul.mubr.bf16.gmra.mrb[0].mxu0 %v3661
          %v3918 = vpop.f32.mrb[0].mxu0
          %v3919 = vadd.f32 %v3758, %v3918
          %v3920 = vpop.f32.mrb[0].mxu0
          %v3921 = vpop.f32.mrb[0].mxu0
          %v3922 = vadd.f32 %v3761, %v3921
          %v3923 = vpop.f32.mrb[0].mxu0
          %3924 = vmatprep.mubr.bf16.mxu0 0
          %3925 = vmatmul.mubr.bf16.gmra.mrb[0].mxu0 %v3664
          %v3926 = vpop.f32.mrb[0].mxu0
          %v3927 = vadd.f32 %v3766, %v3926
          %v3928 = vpop.f32.mrb[0].mxu0
          %v3929 = vpop.f32.mrb[0].mxu0
          %v3930 = vadd.f32 %v3769, %v3929
          %v3931 = vpop.f32.mrb[0].mxu0
          %3932 = vmatprep.mubr.bf16.mxu0 0
          %3933 = vmatmul.mubr.bf16.gmra.mrb[0].mxu0 %v3667
          %v3934 = vpop.f32.mrb[0].mxu0
          %v3935 = vadd.f32 %v3774, %v3934
          %v3936 = vpop.f32.mrb[0].mxu0
          %v3937 = vpop.f32.mrb[0].mxu0
          %v3938 = vadd.f32 %v3777, %v3937
          %v3939 = vpop.f32.mrb[0].mxu0
          %3940 = vmatprep.mubr.bf16.mxu0 0
          %3941 = vmatmul.mubr.bf16.gmra.mrb[0].mxu0 %v3670
          %v3942 = vpop.f32.mrb[0].mxu0
          %v3943 = vadd.f32 %v3782, %v3942
          %v3944 = vpop.f32.mrb[0].mxu0
          %v3945 = vpop.f32.mrb[0].mxu0
          %v3946 = vadd.f32 %v3785, %v3945
          %v3947 = vpop.f32.mrb[0].mxu0
          %3948 = vmatprep.mubr.bf16.mxu0 0
          %3949 = vmatmul.mubr.bf16.gmra.mrb[0].mxu0 %v3673
          %v3950 = vpop.f32.mrb[0].mxu0
          %v3951 = vadd.f32 %v3790, %v3950
          %v3952 = vpop.f32.mrb[0].mxu0
          %v3953 = vpop.f32.mrb[0].mxu0
          %v3954 = vadd.f32 %v3793, %v3953
          %v3955 = vpop.f32.mrb[0].mxu0
          %3956 = vmatprep.mubr.bf16.mxu0 0
          %3957 = vmatmul.mubr.bf16.gmra.mrb[0].mxu0 %v3676
          %v3958 = vpop.f32.mrb[0].mxu0
          %v3959 = vadd.f32 %v3798, %v3958
          %v3960 = vpop.f32.mrb[0].mxu0
          %v3961 = vpop.f32.mrb[0].mxu0
          %v3962 = vadd.f32 %v3801, %v3961
          %v3963 = vpop.f32.mrb[0].mxu0
          %3964 = vmatprep.mubr.bf16.mxu0 0
          %3965 = vmatmul.mubr.bf16.gmra.mrb[0].mxu0 %v3679
          %v3966 = vpop.f32.mrb[0].mxu0
          %v3967 = vadd.f32 %v3806, %v3966
          %v3968 = vpop.f32.mrb[0].mxu0
          %v3969 = vpop.f32.mrb[0].mxu0
          %v3970 = vadd.f32 %v3809, %v3969
          %v3971 = vpop.f32.mrb[0].mxu0
          %3972 = vmatprep.mubr.bf16.mxu0 0
          %3973 = vmatmul.mubr.bf16.gmra.mrb[0].mxu0 %v3682
          %v3974 = vpop.f32.mrb[0].mxu0
          %v3975 = vadd.f32 %v3814, %v3974
          %v3976 = vpop.f32.mrb[0].mxu0
          %v3977 = vpop.f32.mrb[0].mxu0
          %v3978 = vadd.f32 %v3817, %v3977
          %v3979 = vpop.f32.mrb[0].mxu0
          %3980 = vmatprep.mubr.bf16.mxu0 0
          %3981 = vmatmul.mubr.bf16.gmra.mrb[0].mxu0 %v3685
          %v3982 = vpop.f32.mrb[0].mxu0
          %v3983 = vadd.f32 %v3822, %v3982
          %v3984 = vpop.f32.mrb[0].mxu0
          %v3985 = vpop.f32.mrb[0].mxu0
          %v3986 = vadd.f32 %v3825, %v3985
          %v3987 = vpop.f32.mrb[0].mxu0
          %3988 = vmatprep.mubr.bf16.mxu0 0
          %3989 = vmatmul.mubr.bf16.gmra.mrb[0].mxu0 %v3688
          %v3990 = vpop.f32.mrb[0].mxu0
          %v3991 = vadd.f32 %v3830, %v3990
          %v3992 = vpop.f32.mrb[0].mxu0
          %v3993 = vpop.f32.mrb[0].mxu0
          %v3994 = vadd.f32 %v3833, %v3993
          %v3995 = vpop.f32.mrb[0].mxu0
          %3996 = vmatprep.mubr.bf16.mxu0 0
          %3997 = vmatmul.mubr.bf16.gmra.mrb[0].mxu0 %v3691
          %v3998 = vpop.f32.mrb[0].mxu0
          %v3999 = vadd.f32 %v3838, %v3998
          %v4000 = vpop.f32.mrb[0].mxu0
          %v4001 = vpop.f32.mrb[0].mxu0
          %v4002 = vadd.f32 %v3841, %v4001
          %v4003 = vpop.f32.mrb[0].mxu0
          %4004 = vmatprep.mubr.bf16.mxu0 0
          %4005 = vmatmul.mubr.bf16.gmra.mrb[0].mxu0 %v3694
          %v4006 = vpop.f32.mrb[0].mxu0
          %v4007 = vadd.f32 %v3846, %v4006
          %v4008 = vpop.f32.mrb[0].mxu0
          %v4009 = vpop.f32.mrb[0].mxu0
          %v4010 = vadd.f32 %v3849, %v4009
          %v4011 = vpop.f32.mrb[0].mxu0
          %4012 = vmatprep.mubr.bf16.mxu0 0
          %4013 = vmatmul.mubr.bf16.gmra.mrb[0].mxu0 %v3697
          %v4014 = vpop.f32.mrb[0].mxu0
          %v4015 = vadd.f32 %v3854, %v4014
          %v4016 = vpop.f32.mrb[0].mxu0
          %v4017 = vpop.f32.mrb[0].mxu0
          %v4018 = vadd.f32 %v3857, %v4017
          %v4019 = vpop.f32.mrb[0].mxu0
          %4020 = vdwg.mxu0
          %v4021 = vadd.f32 %v3403, %v3895
          %v4022 = vadd.f32 %v3404, %v3898
          %v4023 = vadd.f32 %v3405, %v3903
          %v4024 = vadd.f32 %v3406, %v3906
          %v4025 = vadd.f32 %v3407, %v3911
          %v4026 = vadd.f32 %v3408, %v3914
          %v4027 = vadd.f32 %v3409, %v3919
          %v4028 = vadd.f32 %v3410, %v3922
          %v4029 = vadd.f32 %v3411, %v3927
          %v4030 = vadd.f32 %v3412, %v3930
          %v4031 = vadd.f32 %v3413, %v3935
          %v4032 = vadd.f32 %v3414, %v3938
          %v4033 = vadd.f32 %v3415, %v3943
          %v4034 = vadd.f32 %v3416, %v3946
          %v4035 = vadd.f32 %v3417, %v3951
          %v4036 = vadd.f32 %v3418, %v3954
          %v4037 = vadd.f32 %v3419, %v3959
          %v4038 = vadd.f32 %v3420, %v3962
          %v4039 = vadd.f32 %v3421, %v3967
          %v4040 = vadd.f32 %v3422, %v3970
          %v4041 = vadd.f32 %v3423, %v3975
          %v4042 = vadd.f32 %v3424, %v3978
          %v4043 = vadd.f32 %v3425, %v3983
          %v4044 = vadd.f32 %v3426, %v3986
          %v4045 = vadd.f32 %v3427, %v3991
          %v4046 = vadd.f32 %v3428, %v3994
          %v4047 = vadd.f32 %v3429, %v3999
          %v4048 = vadd.f32 %v3430, %v4002
          %v4049 = vadd.f32 %v3431, %v4007
          %v4050 = vadd.f32 %v3432, %v4010
          %v4051 = vadd.f32 %v3433, %v4015
          %v4052 = vadd.f32 %v3434, %v4018
          %v4053 = vmax.f32 %v4021, 0.0
          %v4054 = vmax.f32 %v4022, 0.0
          %v4055 = vmax.f32 %v4023, 0.0
          %v4056 = vmax.f32 %v4024, 0.0
          %v4057 = vmax.f32 %v4025, 0.0
          %v4058 = vmax.f32 %v4026, 0.0
          %v4059 = vmax.f32 %v4027, 0.0
          %v4060 = vmax.f32 %v4028, 0.0
          %v4061 = vmax.f32 %v4029, 0.0
          %v4062 = vmax.f32 %v4030, 0.0
          %v4063 = vmax.f32 %v4031, 0.0
          %v4064 = vmax.f32 %v4032, 0.0
          %v4065 = vmax.f32 %v4033, 0.0
          %v4066 = vmax.f32 %v4034, 0.0
          %v4067 = vmax.f32 %v4035, 0.0
          %v4068 = vmax.f32 %v4036, 0.0
          %v4069 = vmax.f32 %v4037, 0.0
          %v4070 = vmax.f32 %v4038, 0.0
          %v4071 = vmax.f32 %v4039, 0.0
          %v4072 = vmax.f32 %v4040, 0.0
          %v4073 = vmax.f32 %v4041, 0.0
          %v4074 = vmax.f32 %v4042, 0.0
          %v4075 = vmax.f32 %v4043, 0.0
          %v4076 = vmax.f32 %v4044, 0.0
          %v4077 = vmax.f32 %v4045, 0.0
          %v4078 = vmax.f32 %v4046, 0.0
          %v4079 = vmax.f32 %v4047, 0.0
          %v4080 = vmax.f32 %v4048, 0.0
          %v4081 = vmax.f32 %v4049, 0.0
          %v4082 = vmax.f32 %v4050, 0.0
          %v4083 = vmax.f32 %v4051, 0.0
          %v4084 = vmax.f32 %v4052, 0.0
          %v4085 = vpack.c.bf16 %v4054, %v4053
          %v4086 = vpack.c.bf16 %v4056, %v4055
          %v4087 = vpack.c.bf16 %v4058, %v4057
          %v4088 = vpack.c.bf16 %v4060, %v4059
          %v4089 = vpack.c.bf16 %v4062, %v4061
          %v4090 = vpack.c.bf16 %v4064, %v4063
          %v4091 = vpack.c.bf16 %v4066, %v4065
          %v4092 = vpack.c.bf16 %v4068, %v4067
          %v4093 = vpack.c.bf16 %v4070, %v4069
          %v4094 = vpack.c.bf16 %v4072, %v4071
          %v4095 = vpack.c.bf16 %v4074, %v4073
          %v4096 = vpack.c.bf16 %v4076, %v4075
          %v4097 = vpack.c.bf16 %v4078, %v4077
          %v4098 = vpack.c.bf16 %v4080, %v4079
          %v4099 = vpack.c.bf16 %v4082, %v4081
          %v4100 = vpack.c.bf16 %v4084, %v4083
          %v4109 = vrot.slane %v4085, 1
          %v4110 = vrot.slane %v4087, 1
          %v4111 = vrot.slane %v4089, 1
          %v4112 = vrot.slane %v4091, 1
          %v4113 = vrot.slane %v4093, 1
          %v4114 = vrot.slane %v4095, 1
          %v4115 = vrot.slane %v4097, 1
          %v4116 = vrot.slane %v4099, 1
          %vm4133 = vcmask 1040384
          %v4134 = vrot.slane %v4085, 7
          %v4135 = vrot.slane %v4086, 7
          %v4136 = vsel %vm4133, %v4134, %v4135
          %v4137 = vrot.slane %v4087, 7
          %v4138 = vrot.slane %v4088, 7
          %v4139 = vsel %vm4133, %v4137, %v4138
          %v4140 = vrot.slane %v4089, 7
          %v4141 = vrot.slane %v4090, 7
          %v4142 = vsel %vm4133, %v4140, %v4141
          %v4143 = vrot.slane %v4091, 7
          %v4144 = vrot.slane %v4092, 7
          %v4145 = vsel %vm4133, %v4143, %v4144
          %v4146 = vrot.slane %v4093, 7
          %v4147 = vrot.slane %v4094, 7
          %v4148 = vsel %vm4133, %v4146, %v4147
          %v4149 = vrot.slane %v4095, 7
          %v4150 = vrot.slane %v4096, 7
          %v4151 = vsel %vm4133, %v4149, %v4150
          %v4152 = vrot.slane %v4097, 7
          %v4153 = vrot.slane %v4098, 7
          %v4154 = vsel %vm4133, %v4152, %v4153
          %v4155 = vrot.slane %v4099, 7
          %v4156 = vrot.slane %v4100, 7
          %v4157 = vsel %vm4133, %v4155, %v4156
          %vm4158 = vsmask.f32 256
          %vm4159 = vmand %vm4133, %vm4158
          %v4160 = vsel %vm4159, %v4109, %v4085
          %v4161 = vsel %vm4159, %v4110, %v4087
          %v4162 = vsel %vm4159, %v4111, %v4089
          %v4163 = vsel %vm4159, %v4112, %v4091
          %v4164 = vsel %vm4159, %v4113, %v4093
          %v4165 = vsel %vm4159, %v4114, %v4095
          %v4166 = vsel %vm4159, %v4115, %v4097
          %v4167 = vsel %vm4159, %v4116, %v4099
          %vm4168 = vcmask 1040384
          %v4171 = vsel %vm4168, %v4160, %v4134
          %v4174 = vsel %vm4168, %v4161, %v4137
          %v4177 = vsel %vm4168, %v4162, %v4140
          %v4180 = vsel %vm4168, %v4163, %v4143
          %v4183 = vsel %vm4168, %v4164, %v4146
          %v4186 = vsel %vm4168, %v4165, %v4149
          %v4189 = vsel %vm4168, %v4166, %v4152
          %v4192 = vsel %vm4168, %v4167, %v4155
          %v4194 = vshrl.u32 %v4085, 16
          %v4197 = vshrl.u32 %v4087, 16
          %v4200 = vshrl.u32 %v4089, 16
          %v4203 = vshrl.u32 %v4091, 16
          %v4206 = vshrl.u32 %v4093, 16
          %v4209 = vshrl.u32 %v4095, 16
          %v4212 = vshrl.u32 %v4097, 16
          %v4215 = vshrl.u32 %v4099, 16
          %v4225 = vrot.slane %v4194, 7
          %v4226 = vshll.u32 %v4085, 16
          %v4228 = vor.u32 %v4225, %v4226
          %v4230 = vshrl.u32 %v4086, 16
          %v4232 = vrot.slane %v4230, 7
          %v4233 = vshll.u32 %v4086, 16
          %v4235 = vor.u32 %v4232, %v4233
          %v4236 = vsel %vm4158, %v4225, %v4235
          %v4237 = vrot.slane %v4197, 7
          %v4238 = vshll.u32 %v4087, 16
          %v4240 = vor.u32 %v4237, %v4238
          %v4242 = vshrl.u32 %v4088, 16
          %v4244 = vrot.slane %v4242, 7
          %v4245 = vshll.u32 %v4088, 16
          %v4247 = vor.u32 %v4244, %v4245
          %v4248 = vsel %vm4158, %v4237, %v4247
          %v4249 = vrot.slane %v4200, 7
          %v4250 = vshll.u32 %v4089, 16
          %v4252 = vor.u32 %v4249, %v4250
          %v4254 = vshrl.u32 %v4090, 16
          %v4256 = vrot.slane %v4254, 7
          %v4257 = vshll.u32 %v4090, 16
          %v4259 = vor.u32 %v4256, %v4257
          %v4260 = vsel %vm4158, %v4249, %v4259
          %v4261 = vrot.slane %v4203, 7
          %v4262 = vshll.u32 %v4091, 16
          %v4264 = vor.u32 %v4261, %v4262
          %v4266 = vshrl.u32 %v4092, 16
          %v4268 = vrot.slane %v4266, 7
          %v4269 = vshll.u32 %v4092, 16
          %v4271 = vor.u32 %v4268, %v4269
          %v4272 = vsel %vm4158, %v4261, %v4271
          %v4273 = vrot.slane %v4206, 7
          %v4274 = vshll.u32 %v4093, 16
          %v4276 = vor.u32 %v4273, %v4274
          %v4278 = vshrl.u32 %v4094, 16
          %v4280 = vrot.slane %v4278, 7
          %v4281 = vshll.u32 %v4094, 16
          %v4283 = vor.u32 %v4280, %v4281
          %v4284 = vsel %vm4158, %v4273, %v4283
          %v4285 = vrot.slane %v4209, 7
          %v4286 = vshll.u32 %v4095, 16
          %v4288 = vor.u32 %v4285, %v4286
          %v4290 = vshrl.u32 %v4096, 16
          %v4292 = vrot.slane %v4290, 7
          %v4293 = vshll.u32 %v4096, 16
          %v4295 = vor.u32 %v4292, %v4293
          %v4296 = vsel %vm4158, %v4285, %v4295
          %v4297 = vrot.slane %v4212, 7
          %v4298 = vshll.u32 %v4097, 16
          %v4300 = vor.u32 %v4297, %v4298
          %v4302 = vshrl.u32 %v4098, 16
          %v4304 = vrot.slane %v4302, 7
          %v4305 = vshll.u32 %v4098, 16
          %v4307 = vor.u32 %v4304, %v4305
          %v4308 = vsel %vm4158, %v4297, %v4307
          %v4309 = vrot.slane %v4215, 7
          %v4310 = vshll.u32 %v4099, 16
          %v4312 = vor.u32 %v4309, %v4310
          %v4314 = vshrl.u32 %v4100, 16
          %v4316 = vrot.slane %v4314, 7
          %v4317 = vshll.u32 %v4100, 16
          %v4319 = vor.u32 %v4316, %v4317
          %v4320 = vsel %vm4158, %v4309, %v4319
          %v4329 = vsel %vm4159, %v4194, %v4228
          %v4330 = vsel %vm4159, %v4197, %v4240
          %v4331 = vsel %vm4159, %v4200, %v4252
          %v4332 = vsel %vm4159, %v4203, %v4264
          %v4333 = vsel %vm4159, %v4206, %v4276
          %v4334 = vsel %vm4159, %v4209, %v4288
          %v4335 = vsel %vm4159, %v4212, %v4300
          %v4336 = vsel %vm4159, %v4215, %v4312
          %vm4337 = vsmask.f32 7424
          %v4338 = vrot.slane %v4226, 1
          %v4339 = vor.u32 %v4194, %v4338
          %v4340 = vrot.slane %v4233, 1
          %v4341 = vsel %vm4337, %v4339, %v4340
          %v4342 = vor.u32 %v4230, %v4340
          %v4343 = vrot.slane %v4238, 1
          %v4344 = vor.u32 %v4197, %v4343
          %v4345 = vrot.slane %v4245, 1
          %v4346 = vsel %vm4337, %v4344, %v4345
          %v4347 = vor.u32 %v4242, %v4345
          %v4348 = vrot.slane %v4250, 1
          %v4349 = vor.u32 %v4200, %v4348
          %v4350 = vrot.slane %v4257, 1
          %v4351 = vsel %vm4337, %v4349, %v4350
          %v4352 = vor.u32 %v4254, %v4350
          %v4353 = vrot.slane %v4262, 1
          %v4354 = vor.u32 %v4203, %v4353
          %v4355 = vrot.slane %v4269, 1
          %v4356 = vsel %vm4337, %v4354, %v4355
          %v4357 = vor.u32 %v4266, %v4355
          %v4358 = vrot.slane %v4274, 1
          %v4359 = vor.u32 %v4206, %v4358
          %v4360 = vrot.slane %v4281, 1
          %v4361 = vsel %vm4337, %v4359, %v4360
          %v4362 = vor.u32 %v4278, %v4360
          %v4363 = vrot.slane %v4286, 1
          %v4364 = vor.u32 %v4209, %v4363
          %v4365 = vrot.slane %v4293, 1
          %v4366 = vsel %vm4337, %v4364, %v4365
          %v4367 = vor.u32 %v4290, %v4365
          %v4368 = vrot.slane %v4298, 1
          %v4369 = vor.u32 %v4212, %v4368
          %v4370 = vrot.slane %v4305, 1
          %v4371 = vsel %vm4337, %v4369, %v4370
          %v4372 = vor.u32 %v4302, %v4370
          %v4373 = vrot.slane %v4310, 1
          %v4374 = vor.u32 %v4215, %v4373
          %v4375 = vrot.slane %v4317, 1
          %v4376 = vsel %vm4337, %v4374, %v4375
          %v4377 = vor.u32 %v4314, %v4375
          %vm4394 = vcmask 1047552
          %vm4395 = vmand %vm4394, %vm4337
          %v4396 = vsel %vm4395, %v4342, %v4233
          %v4397 = vsel %vm4395, %v4347, %v4245
          %v4398 = vsel %vm4395, %v4352, %v4257
          %v4399 = vsel %vm4395, %v4357, %v4269
          %v4400 = vsel %vm4395, %v4362, %v4281
          %v4401 = vsel %vm4395, %v4367, %v4293
          %v4402 = vsel %vm4395, %v4372, %v4305
          %v4403 = vsel %vm4395, %v4377, %v4317
          %vm4404 = vcmask 1046528
          %v4405 = vrot.slane %v4086, 1
          %v4406 = vsel %vm4404, %v4109, %v4405
          %v4407 = vrot.slane %v4088, 1
          %v4408 = vsel %vm4404, %v4110, %v4407
          %v4409 = vrot.slane %v4090, 1
          %v4410 = vsel %vm4404, %v4111, %v4409
          %v4411 = vrot.slane %v4092, 1
          %v4412 = vsel %vm4404, %v4112, %v4411
          %v4413 = vrot.slane %v4094, 1
          %v4414 = vsel %vm4404, %v4113, %v4413
          %v4415 = vrot.slane %v4096, 1
          %v4416 = vsel %vm4404, %v4114, %v4415
          %v4417 = vrot.slane %v4098, 1
          %v4418 = vsel %vm4404, %v4115, %v4417
          %v4419 = vrot.slane %v4100, 1
          %v4420 = vsel %vm4404, %v4116, %v4419
          %vm4437 = vcmask 1046528
          %v4439 = vsel %vm4437, %v4405, %v4086
          %v4442 = vsel %vm4437, %v4407, %v4088
          %v4445 = vsel %vm4437, %v4409, %v4090
          %v4448 = vsel %vm4437, %v4411, %v4092
          %v4451 = vsel %vm4437, %v4413, %v4094
          %v4454 = vsel %vm4437, %v4415, %v4096
          %v4457 = vsel %vm4437, %v4417, %v4098
          %v4460 = vsel %vm4437, %v4419, %v4100
          %v4462 = vsel %vm4395, %v4439, %v4135
          %v4463 = vsel %vm4395, %v4442, %v4138
          %v4464 = vsel %vm4395, %v4445, %v4141
          %v4465 = vsel %vm4395, %v4448, %v4144
          %v4466 = vsel %vm4395, %v4451, %v4147
          %v4467 = vsel %vm4395, %v4454, %v4150
          %v4468 = vsel %vm4395, %v4457, %v4153
          %v4469 = vsel %vm4395, %v4460, %v4156
          %4478 = vrot.lane.b32.xlu0 %v4329, 64
          %v4479 = vpop.permute.xlu0 %4478
          %4480 = vrot.lane.b32.xlu0 %v4236, 64
          %v4481 = vpop.permute.xlu0 %4480
          %4482 = vrot.lane.b32.xlu0 %v4330, 64
          %v4483 = vpop.permute.xlu0 %4482
          %4484 = vrot.lane.b32.xlu0 %v4248, 64
          %v4485 = vpop.permute.xlu0 %4484
          %4486 = vrot.lane.b32.xlu0 %v4331, 64
          %v4487 = vpop.permute.xlu0 %4486
          %4488 = vrot.lane.b32.xlu0 %v4260, 64
          %v4489 = vpop.permute.xlu0 %4488
          %4490 = vrot.lane.b32.xlu0 %v4332, 64
          %v4491 = vpop.permute.xlu0 %4490
          %4492 = vrot.lane.b32.xlu0 %v4272, 64
          %v4493 = vpop.permute.xlu0 %4492
          %4494 = vrot.lane.b32.xlu0 %v4333, 64
          %v4495 = vpop.permute.xlu0 %4494
          %4496 = vrot.lane.b32.xlu0 %v4284, 64
          %v4497 = vpop.permute.xlu0 %4496
          %4498 = vrot.lane.b32.xlu0 %v4334, 64
          %v4499 = vpop.permute.xlu0 %4498
          %4500 = vrot.lane.b32.xlu0 %v4296, 64
          %v4501 = vpop.permute.xlu0 %4500
          %4502 = vrot.lane.b32.xlu0 %v4335, 64
          %v4503 = vpop.permute.xlu0 %4502
          %4504 = vrot.lane.b32.xlu0 %v4308, 64
          %v4505 = vpop.permute.xlu0 %4504
          %4506 = vrot.lane.b32.xlu0 %v4336, 64
          %v4507 = vpop.permute.xlu0 %4506
          %4508 = vrot.lane.b32.xlu0 %v4320, 64
          %v4509 = vpop.permute.xlu0 %4508
          %4518 = vrot.lane.b32.xlu0 %v4341, 64
          %v4519 = vpop.permute.xlu0 %4518
          %4520 = vrot.lane.b32.xlu0 %v4396, 64
          %v4521 = vpop.permute.xlu0 %4520
          %4522 = vrot.lane.b32.xlu0 %v4346, 64
          %v4523 = vpop.permute.xlu0 %4522
          %4524 = vrot.lane.b32.xlu0 %v4397, 64
          %v4525 = vpop.permute.xlu0 %4524
          %4526 = vrot.lane.b32.xlu0 %v4351, 64
          %v4527 = vpop.permute.xlu0 %4526
          %4528 = vrot.lane.b32.xlu0 %v4398, 64
          %v4529 = vpop.permute.xlu0 %4528
          %4530 = vrot.lane.b32.xlu0 %v4356, 64
          %v4531 = vpop.permute.xlu0 %4530
          %4532 = vrot.lane.b32.xlu0 %v4399, 64
          %v4533 = vpop.permute.xlu0 %4532
          %4534 = vrot.lane.b32.xlu0 %v4361, 64
          %v4535 = vpop.permute.xlu0 %4534
          %4536 = vrot.lane.b32.xlu0 %v4400, 64
          %v4537 = vpop.permute.xlu0 %4536
          %4538 = vrot.lane.b32.xlu0 %v4366, 64
          %v4539 = vpop.permute.xlu0 %4538
          %4540 = vrot.lane.b32.xlu0 %v4401, 64
          %v4541 = vpop.permute.xlu0 %4540
          %4542 = vrot.lane.b32.xlu0 %v4371, 64
          %v4543 = vpop.permute.xlu0 %4542
          %4544 = vrot.lane.b32.xlu0 %v4402, 64
          %v4545 = vpop.permute.xlu0 %4544
          %4546 = vrot.lane.b32.xlu0 %v4376, 64
          %v4547 = vpop.permute.xlu0 %4546
          %4548 = vrot.lane.b32.xlu0 %v4403, 64
          %v4549 = vpop.permute.xlu0 %4548
          %v4551 = vsel %vm954, %v4171, %v4479
          %v4555 = vsel %vm954, %v4136, %v4481
          %v4558 = vsel %vm954, %v4174, %v4483
          %v4562 = vsel %vm954, %v4139, %v4485
          %v4565 = vsel %vm954, %v4177, %v4487
          %v4569 = vsel %vm954, %v4142, %v4489
          %v4572 = vsel %vm954, %v4180, %v4491
          %v4576 = vsel %vm954, %v4145, %v4493
          %v4579 = vsel %vm954, %v4183, %v4495
          %v4583 = vsel %vm954, %v4148, %v4497
          %v4586 = vsel %vm954, %v4186, %v4499
          %v4590 = vsel %vm954, %v4151, %v4501
          %v4593 = vsel %vm954, %v4189, %v4503
          %v4597 = vsel %vm954, %v4154, %v4505
          %v4600 = vsel %vm954, %v4192, %v4507
          %v4604 = vsel %vm954, %v4157, %v4509
          %v4607 = vsel %vm954, %v4085, %v4519
          %v4610 = vsel %vm954, %v4086, %v4521
          %v4613 = vsel %vm954, %v4087, %v4523
          %v4616 = vsel %vm954, %v4088, %v4525
          %v4619 = vsel %vm954, %v4089, %v4527
          %v4622 = vsel %vm954, %v4090, %v4529
          %v4625 = vsel %vm954, %v4091, %v4531
          %v4628 = vsel %vm954, %v4092, %v4533
          %v4631 = vsel %vm954, %v4093, %v4535
          %v4634 = vsel %vm954, %v4094, %v4537
          %v4637 = vsel %vm954, %v4095, %v4539
          %v4640 = vsel %vm954, %v4096, %v4541
          %v4643 = vsel %vm954, %v4097, %v4543
          %v4646 = vsel %vm954, %v4098, %v4545
          %v4649 = vsel %vm954, %v4099, %v4547
          %v4652 = vsel %vm954, %v4100, %v4549
          %s4654 = smul.u32 %s1019, 216
          %s4655 = sadd.s32 %s2200, %s4654
          %s4656 = smul.addr %s4655, 8
          %s4657 = scalar_lea.vmem [#allocation2], %s4656
          %4658 = vst [vmem:[%s4657] sm:$0xff] %v4551
          %4659 = vst [vmem:[%s4657 + $0x8] sm:$0xff] %v4607
          %4660 = vst.msk [vmem:[%s4657 + $0x10] sm:$0xff] %vm954, %v4406
          %4661 = vst [vmem:[%s4657 + $0x18] sm:$0xff] %v4555
          %4662 = vst [vmem:[%s4657 + $0x20] sm:$0xff] %v4610
          %4663 = vst.msk [vmem:[%s4657 + $0x28] sm:$0xff] %vm954, %v4462
          %4664 = vst [vmem:[%s4657 + $0x30] sm:$0xff] %v4558
          %4665 = vst [vmem:[%s4657 + $0x38] sm:$0xff] %v4613
          %4666 = vst.msk [vmem:[%s4657 + $0x40] sm:$0xff] %vm954, %v4408
          %4667 = vst [vmem:[%s4657 + $0x48] sm:$0xff] %v4562
          %4668 = vst [vmem:[%s4657 + $0x50] sm:$0xff] %v4616
          %4669 = vst.msk [vmem:[%s4657 + $0x58] sm:$0xff] %vm954, %v4463
          %4670 = vst [vmem:[%s4657 + $0x60] sm:$0xff] %v4565
          %4671 = vst [vmem:[%s4657 + $0x68] sm:$0xff] %v4619
          %4672 = vst.msk [vmem:[%s4657 + $0x70] sm:$0xff] %vm954, %v4410
          %4673 = vst [vmem:[%s4657 + $0x78] sm:$0xff] %v4569
          %4674 = vst [vmem:[%s4657 + $0x80] sm:$0xff] %v4622
          %4675 = vst.msk [vmem:[%s4657 + $0x88] sm:$0xff] %vm954, %v4464
          %4676 = vst [vmem:[%s4657 + $0x90] sm:$0xff] %v4572
          %4677 = vst [vmem:[%s4657 + $0x98] sm:$0xff] %v4625
          %4678 = vst.msk [vmem:[%s4657 + $0xa0] sm:$0xff] %vm954, %v4412
          %4679 = vst [vmem:[%s4657 + $0xa8] sm:$0xff] %v4576
          %4680 = vst [vmem:[%s4657 + $0xb0] sm:$0xff] %v4628
          %4681 = vst.msk [vmem:[%s4657 + $0xb8] sm:$0xff] %vm954, %v4465
          %4682 = vst [vmem:[%s4657 + $0xc0] sm:$0xff] %v4579
          %4683 = vst [vmem:[%s4657 + $0xc8] sm:$0xff] %v4631
          %4684 = vst.msk [vmem:[%s4657 + $0xd0] sm:$0xff] %vm954, %v4414
          %4685 = vst [vmem:[%s4657 + $0xd8] sm:$0xff] %v4583
          %4686 = vst [vmem:[%s4657 + $0xe0] sm:$0xff] %v4634
          %4687 = vst.msk [vmem:[%s4657 + $0xe8] sm:$0xff] %vm954, %v4466
          %4688 = vst [vmem:[%s4657 + $0xf0] sm:$0xff] %v4586
          %4689 = vst [vmem:[%s4657 + $0xf8] sm:$0xff] %v4637
          %4690 = vst.msk [vmem:[%s4657 + $0x100] sm:$0xff] %vm954, %v4416
          %4691 = vst [vmem:[%s4657 + $0x108] sm:$0xff] %v4590
          %4692 = vst [vmem:[%s4657 + $0x110] sm:$0xff] %v4640
          %4693 = vst.msk [vmem:[%s4657 + $0x118] sm:$0xff] %vm954, %v4467
          %4694 = vst [vmem:[%s4657 + $0x120] sm:$0xff] %v4593
          %4695 = vst [vmem:[%s4657 + $0x128] sm:$0xff] %v4643
          %4696 = vst.msk [vmem:[%s4657 + $0x130] sm:$0xff] %vm954, %v4418
          %4697 = vst [vmem:[%s4657 + $0x138] sm:$0xff] %v4597
          %4698 = vst [vmem:[%s4657 + $0x140] sm:$0xff] %v4646
          %4699 = vst.msk [vmem:[%s4657 + $0x148] sm:$0xff] %vm954, %v4468
          %4700 = vst [vmem:[%s4657 + $0x150] sm:$0xff] %v4600
          %4701 = vst [vmem:[%s4657 + $0x158] sm:$0xff] %v4649
          %4702 = vst.msk [vmem:[%s4657 + $0x160] sm:$0xff] %vm954, %v4420
          %4703 = vst [vmem:[%s4657 + $0x168] sm:$0xff] %v4604
          %4704 = vst [vmem:[%s4657 + $0x170] sm:$0xff] %v4652
          %4705 = vst.msk [vmem:[%s4657 + $0x178] sm:$0xff] %vm954, %v4469
        $region47: #{sr_model_forward.1} parent=39 // loop_footer
          %s1025 = sadd.s32 1, %s1021
        $region48: #{sr_model_forward.1} parent=39 // loop_footer_branch
          %1020 = sbr.rel target = $region44
        $region49: #{sr_model_forward.1} parent=39 // loop_exit
          _
        %s4706 = smul.u32 %s1019, 216
        %s4707 = sadd.s32 24, %s4706
        %s4708 = smul.addr %s4707, 8
        %s4709 = scalar_lea.vmem [#allocation2], %s4708
        %v4710 = vld [vmem:[%s4709] sm:$0xff]
        %v4711 = vld [vmem:[%s4709 + $0x8] sm:$0xff]
        %v4712 = vld [vmem:[%s4709 + $0x10] sm:$0xff]
        %v4713 = vld [vmem:[%s4709 + $0x18] sm:$0xff]
        %v4714 = vld [vmem:[%s4709 + $0x20] sm:$0xff]
        %v4715 = vld [vmem:[%s4709 + $0x28] sm:$0xff]
        %s4716 = smul.addr %s4706, 8
        %s4717 = scalar_lea.vmem [#allocation2], %s4716
        %4718 = vst [vmem:[%s4717] sm:$0xff] %v4710
        %4719 = vst [vmem:[%s4717 + $0x8] sm:$0xff] %v4711
        %4720 = vst.msk [vmem:[%s4717 + $0x10] sm:$0xff] %vm954, %v4712
        %4721 = vst [vmem:[%s4717 + $0x18] sm:$0xff] %v4713
        %4722 = vst [vmem:[%s4717 + $0x20] sm:$0xff] %v4714
        %4723 = vst.msk [vmem:[%s4717 + $0x28] sm:$0xff] %vm954, %v4715
        %s4724 = sadd.s32 18, %s4706
        %s4725 = smul.addr %s4724, 8
        %s4726 = scalar_lea.vmem [#allocation2], %s4725
        %v4727 = vld [vmem:[%s4726] sm:$0xff]
        %v4728 = vld [vmem:[%s4726 + $0x8] sm:$0xff]
        %v4729 = vld [vmem:[%s4726 + $0x10] sm:$0xff]
        %v4730 = vld [vmem:[%s4726 + $0x18] sm:$0xff]
        %v4731 = vld [vmem:[%s4726 + $0x20] sm:$0xff]
        %v4732 = vld [vmem:[%s4726 + $0x28] sm:$0xff]
        %s4733 = sadd.s32 6, %s4706
        %s4734 = smul.addr %s4733, 8
        %s4735 = scalar_lea.vmem [#allocation2], %s4734
        %4736 = vst [vmem:[%s4735] sm:$0xff] %v4727
        %4737 = vst [vmem:[%s4735 + $0x8] sm:$0xff] %v4728
        %4738 = vst.msk [vmem:[%s4735 + $0x10] sm:$0xff] %vm954, %v4729
        %4739 = vst [vmem:[%s4735 + $0x18] sm:$0xff] %v4730
        %4740 = vst [vmem:[%s4735 + $0x20] sm:$0xff] %v4731
        %4741 = vst.msk [vmem:[%s4735 + $0x28] sm:$0xff] %vm954, %v4732
        %s4742 = sadd.s32 192, %s4706
        %s4743 = smul.addr %s4742, 8
        %s4744 = scalar_lea.vmem [#allocation2], %s4743
        %v4745 = vld [vmem:[%s4744] sm:$0xff]
        %v4746 = vld [vmem:[%s4744 + $0x8] sm:$0xff]
        %v4747 = vld [vmem:[%s4744 + $0x10] sm:$0xff]
        %v4748 = vld [vmem:[%s4744 + $0x18] sm:$0xff]
        %v4749 = vld [vmem:[%s4744 + $0x20] sm:$0xff]
        %v4750 = vld [vmem:[%s4744 + $0x28] sm:$0xff]
        %s4751 = sadd.s32 204, %s4706
        %s4752 = smul.addr %s4751, 8
        %s4753 = scalar_lea.vmem [#allocation2], %s4752
        %4754 = vst [vmem:[%s4753] sm:$0xff] %v4745
        %4755 = vst [vmem:[%s4753 + $0x8] sm:$0xff] %v4746
        %4756 = vst.msk [vmem:[%s4753 + $0x10] sm:$0xff] %vm954, %v4747
        %4757 = vst [vmem:[%s4753 + $0x18] sm:$0xff] %v4748
        %4758 = vst [vmem:[%s4753 + $0x20] sm:$0xff] %v4749
        %4759 = vst.msk [vmem:[%s4753 + $0x28] sm:$0xff] %vm954, %v4750
        %s4760 = sadd.s32 186, %s4706
        %s4761 = smul.addr %s4760, 8
        %s4762 = scalar_lea.vmem [#allocation2], %s4761
        %v4763 = vld [vmem:[%s4762] sm:$0xff]
        %v4764 = vld [vmem:[%s4762 + $0x8] sm:$0xff]
        %v4765 = vld [vmem:[%s4762 + $0x10] sm:$0xff]
        %v4766 = vld [vmem:[%s4762 + $0x18] sm:$0xff]
        %v4767 = vld [vmem:[%s4762 + $0x20] sm:$0xff]
        %v4768 = vld [vmem:[%s4762 + $0x28] sm:$0xff]
        %s4769 = sadd.s32 210, %s4706
        %s4770 = smul.addr %s4769, 8
        %s4771 = scalar_lea.vmem [#allocation2], %s4770
        %4772 = vst [vmem:[%s4771] sm:$0xff] %v4763
        %4773 = vst [vmem:[%s4771 + $0x8] sm:$0xff] %v4764
        %4774 = vst.msk [vmem:[%s4771 + $0x10] sm:$0xff] %vm954, %v4765
        %4775 = vst [vmem:[%s4771 + $0x18] sm:$0xff] %v4766
        %4776 = vst [vmem:[%s4771 + $0x20] sm:$0xff] %v4767
        %4777 = vst.msk [vmem:[%s4771 + $0x28] sm:$0xff] %vm954, %v4768
      $region40: #{sr_model_forward.1} parent=27 // loop_footer
        %s1006 = sadd.s32 1, %s1002
      $region41: #{sr_model_forward.1} parent=27 // loop_footer_branch
        %1001 = sbr.rel target = $region37
      $region42: #{sr_model_forward.1} parent=27 // loop_exit
        _
      loop: start=0, step=1, limit=4
      $region50: #{sr_model_forward.1} parent=27 // loop_pre_header
        _
      $region51: #{sr_model_forward.1} parent=27 // loop_header
        %s4779 = sphi 0, %s4783
        %p4780 = scmp.ge.s32.totalorder %s4779, 4
      $region52: #{sr_model_forward.1} parent=27 // loop_header_branch
        %4782 = sbr.rel (%p4780) target = $region56
      $region53: #{sr_model_forward.1} parent=27 // loop_body
        %s4784 = smul.u32 %s4779, 8
        %s4785 = smul.u32 %s4784, 6
        %s4786 = sadd.s32 %s4785, 216
        %s4787 = smul.addr %s4786, 8
        %s4788 = scalar_lea.vmem [#allocation2], %s4787
        %v4789 = vld [vmem:[%s4788] sm:$0xff]
        %v4790 = vld [vmem:[%s4788 + $0x8] sm:$0xff]
        %v4791 = vld [vmem:[%s4788 + $0x10] sm:$0xff]
        %v4792 = vld [vmem:[%s4788 + $0x18] sm:$0xff]
        %v4793 = vld [vmem:[%s4788 + $0x20] sm:$0xff]
        %v4794 = vld [vmem:[%s4788 + $0x28] sm:$0xff]
        %v4795 = vld [vmem:[%s4788 + $0x30] sm:$0xff]
        %v4796 = vld [vmem:[%s4788 + $0x38] sm:$0xff]
        %v4797 = vld [vmem:[%s4788 + $0x40] sm:$0xff]
        %v4798 = vld [vmem:[%s4788 + $0x48] sm:$0xff]
        %v4799 = vld [vmem:[%s4788 + $0x50] sm:$0xff]
        %v4800 = vld [vmem:[%s4788 + $0x58] sm:$0xff]
        %v4801 = vld [vmem:[%s4788 + $0x60] sm:$0xff]
        %v4802 = vld [vmem:[%s4788 + $0x68] sm:$0xff]
        %v4803 = vld [vmem:[%s4788 + $0x70] sm:$0xff]
        %v4804 = vld [vmem:[%s4788 + $0x78] sm:$0xff]
        %v4805 = vld [vmem:[%s4788 + $0x80] sm:$0xff]
        %v4806 = vld [vmem:[%s4788 + $0x88] sm:$0xff]
        %v4807 = vld [vmem:[%s4788 + $0x90] sm:$0xff]
        %v4808 = vld [vmem:[%s4788 + $0x98] sm:$0xff]
        %v4809 = vld [vmem:[%s4788 + $0xa0] sm:$0xff]
        %v4810 = vld [vmem:[%s4788 + $0xa8] sm:$0xff]
        %v4811 = vld [vmem:[%s4788 + $0xb0] sm:$0xff]
        %v4812 = vld [vmem:[%s4788 + $0xb8] sm:$0xff]
        %v4813 = vld [vmem:[%s4788 + $0xc0] sm:$0xff]
        %v4814 = vld [vmem:[%s4788 + $0xc8] sm:$0xff]
        %v4815 = vld [vmem:[%s4788 + $0xd0] sm:$0xff]
        %v4816 = vld [vmem:[%s4788 + $0xd8] sm:$0xff]
        %v4817 = vld [vmem:[%s4788 + $0xe0] sm:$0xff]
        %v4818 = vld [vmem:[%s4788 + $0xe8] sm:$0xff]
        %v4819 = vld [vmem:[%s4788 + $0xf0] sm:$0xff]
        %v4820 = vld [vmem:[%s4788 + $0xf8] sm:$0xff]
        %v4821 = vld [vmem:[%s4788 + $0x100] sm:$0xff]
        %v4822 = vld [vmem:[%s4788 + $0x108] sm:$0xff]
        %v4823 = vld [vmem:[%s4788 + $0x110] sm:$0xff]
        %v4824 = vld [vmem:[%s4788 + $0x118] sm:$0xff]
        %v4825 = vld [vmem:[%s4788 + $0x120] sm:$0xff]
        %v4826 = vld [vmem:[%s4788 + $0x128] sm:$0xff]
        %v4827 = vld [vmem:[%s4788 + $0x130] sm:$0xff]
        %v4828 = vld [vmem:[%s4788 + $0x138] sm:$0xff]
        %v4829 = vld [vmem:[%s4788 + $0x140] sm:$0xff]
        %v4830 = vld [vmem:[%s4788 + $0x148] sm:$0xff]
        %v4831 = vld [vmem:[%s4788 + $0x150] sm:$0xff]
        %v4832 = vld [vmem:[%s4788 + $0x158] sm:$0xff]
        %v4833 = vld [vmem:[%s4788 + $0x160] sm:$0xff]
        %v4834 = vld [vmem:[%s4788 + $0x168] sm:$0xff]
        %v4835 = vld [vmem:[%s4788 + $0x170] sm:$0xff]
        %v4836 = vld [vmem:[%s4788 + $0x178] sm:$0xff]
        %s4837 = scalar_lea.vmem %s1, 5600
        %v4838 = vld [vmem:[%s4837] sm:$0xf]
        %v4839 = vld [vmem:[%s4837 + $0x4] sm:$0xf]
        %v4840 = vld [vmem:[%s4837 + $0x8] sm:$0xf]
        %v4841 = vld [vmem:[%s4837 + $0xc] sm:$0xf]
        %v4842 = vld [vmem:[%s4837 + $0x10] sm:$0xf]
        %v4843 = vld [vmem:[%s4837 + $0x14] sm:$0xf]
        %v4844 = vld [vmem:[%s4837 + $0x18] sm:$0xf]
        %v4845 = vld [vmem:[%s4837 + $0x1c] sm:$0xf]
        %v4846 = vld [vmem:[%s4837 + $0x20] sm:$0xf]
        %v4847 = vld [vmem:[%s4837 + $0x24] sm:$0xf]
        %v4848 = vld [vmem:[%s4837 + $0x28] sm:$0xf]
        %v4849 = vld [vmem:[%s4837 + $0x2c] sm:$0xf]
        %v4850 = vld [vmem:[%s4837 + $0x30] sm:$0xf]
        %v4851 = vld [vmem:[%s4837 + $0x34] sm:$0xf]
        %v4852 = vld [vmem:[%s4837 + $0x38] sm:$0xf]
        %v4853 = vld [vmem:[%s4837 + $0x3c] sm:$0xf]
        %v4854 = vld [vmem:[%s4837 + $0x40] sm:$0xf]
        %v4855 = vld [vmem:[%s4837 + $0x44] sm:$0xf]
        %v4856 = vld [vmem:[%s4837 + $0x48] sm:$0xf]
        %v4857 = vld [vmem:[%s4837 + $0x4c] sm:$0xf]
        %v4858 = vld [vmem:[%s4837 + $0x50] sm:$0xf]
        %v4859 = vld [vmem:[%s4837 + $0x54] sm:$0xf]
        %v4860 = vld [vmem:[%s4837 + $0x58] sm:$0xf]
        %v4861 = vld [vmem:[%s4837 + $0x5c] sm:$0xf]
        %v4862 = vld [vmem:[%s4837 + $0x60] sm:$0xf]
        %v4863 = vld [vmem:[%s4837 + $0x64] sm:$0xf]
        %v4864 = vld [vmem:[%s4837 + $0x68] sm:$0xf]
        %v4865 = vld [vmem:[%s4837 + $0x6c] sm:$0xf]
        %v4866 = vld [vmem:[%s4837 + $0x70] sm:$0xf]
        %v4867 = vld [vmem:[%s4837 + $0x74] sm:$0xf]
        %v4868 = vld [vmem:[%s4837 + $0x78] sm:$0xf]
        %v4869 = vld [vmem:[%s4837 + $0x7c] sm:$0xf]
        %v4870 = vld [vmem:[%s4837 + $0x80] sm:$0xf]
        %v4871 = vld [vmem:[%s4837 + $0x84] sm:$0xf]
        %v4872 = vld [vmem:[%s4837 + $0x88] sm:$0xf]
        %v4873 = vld [vmem:[%s4837 + $0x8c] sm:$0xf]
        %v4874 = vld [vmem:[%s4837 + $0x90] sm:$0xf]
        %v4875 = vld [vmem:[%s4837 + $0x94] sm:$0xf]
        %v4876 = vld [vmem:[%s4837 + $0x98] sm:$0xf]
        %v4877 = vld [vmem:[%s4837 + $0x9c] sm:$0xf]
        %s4878 = sadd.s32 %s4784, 1
        %s4879 = smul.u32 %s4878, 6
        %s4880 = sadd.s32 %s4879, 216
        %s4881 = smul.addr %s4880, 8
        %s4882 = scalar_lea.vmem [#allocation2], %s4881
        %v4883 = vld [vmem:[%s4882] sm:$0xff]
        %v4884 = vld [vmem:[%s4882 + $0x8] sm:$0xff]
        %v4885 = vld [vmem:[%s4882 + $0x10] sm:$0xff]
        %v4886 = vld [vmem:[%s4882 + $0x18] sm:$0xff]
        %v4887 = vld [vmem:[%s4882 + $0x20] sm:$0xff]
        %v4888 = vld [vmem:[%s4882 + $0x28] sm:$0xff]
        %v4889 = vld [vmem:[%s4882 + $0x30] sm:$0xff]
        %v4890 = vld [vmem:[%s4882 + $0x38] sm:$0xff]
        %v4891 = vld [vmem:[%s4882 + $0x40] sm:$0xff]
        %v4892 = vld [vmem:[%s4882 + $0x48] sm:$0xff]
        %v4893 = vld [vmem:[%s4882 + $0x50] sm:$0xff]
        %v4894 = vld [vmem:[%s4882 + $0x58] sm:$0xff]
        %v4895 = vld [vmem:[%s4882 + $0x60] sm:$0xff]
        %v4896 = vld [vmem:[%s4882 + $0x68] sm:$0xff]
        %v4897 = vld [vmem:[%s4882 + $0x70] sm:$0xff]
        %v4898 = vld [vmem:[%s4882 + $0x78] sm:$0xff]
        %v4899 = vld [vmem:[%s4882 + $0x80] sm:$0xff]
        %v4900 = vld [vmem:[%s4882 + $0x88] sm:$0xff]
        %v4901 = vld [vmem:[%s4882 + $0x90] sm:$0xff]
        %v4902 = vld [vmem:[%s4882 + $0x98] sm:$0xff]
        %v4903 = vld [vmem:[%s4882 + $0xa0] sm:$0xff]
        %v4904 = vld [vmem:[%s4882 + $0xa8] sm:$0xff]
        %v4905 = vld [vmem:[%s4882 + $0xb0] sm:$0xff]
        %v4906 = vld [vmem:[%s4882 + $0xb8] sm:$0xff]
        %v4907 = vld [vmem:[%s4882 + $0xc0] sm:$0xff]
        %v4908 = vld [vmem:[%s4882 + $0xc8] sm:$0xff]
        %v4909 = vld [vmem:[%s4882 + $0xd0] sm:$0xff]
        %v4910 = vld [vmem:[%s4882 + $0xd8] sm:$0xff]
        %v4911 = vld [vmem:[%s4882 + $0xe0] sm:$0xff]
        %v4912 = vld [vmem:[%s4882 + $0xe8] sm:$0xff]
        %v4913 = vld [vmem:[%s4882 + $0xf0] sm:$0xff]
        %v4914 = vld [vmem:[%s4882 + $0xf8] sm:$0xff]
        %v4915 = vld [vmem:[%s4882 + $0x100] sm:$0xff]
        %v4916 = vld [vmem:[%s4882 + $0x108] sm:$0xff]
        %v4917 = vld [vmem:[%s4882 + $0x110] sm:$0xff]
        %v4918 = vld [vmem:[%s4882 + $0x118] sm:$0xff]
        %v4919 = vld [vmem:[%s4882 + $0x120] sm:$0xff]
        %v4920 = vld [vmem:[%s4882 + $0x128] sm:$0xff]
        %v4921 = vld [vmem:[%s4882 + $0x130] sm:$0xff]
        %v4922 = vld [vmem:[%s4882 + $0x138] sm:$0xff]
        %v4923 = vld [vmem:[%s4882 + $0x140] sm:$0xff]
        %v4924 = vld [vmem:[%s4882 + $0x148] sm:$0xff]
        %v4925 = vld [vmem:[%s4882 + $0x150] sm:$0xff]
        %v4926 = vld [vmem:[%s4882 + $0x158] sm:$0xff]
        %v4927 = vld [vmem:[%s4882 + $0x160] sm:$0xff]
        %v4928 = vld [vmem:[%s4882 + $0x168] sm:$0xff]
        %v4929 = vld [vmem:[%s4882 + $0x170] sm:$0xff]
        %v4930 = vld [vmem:[%s4882 + $0x178] sm:$0xff]
        %s4931 = scalar_lea.vmem %s1, 5760
        %v4932 = vld [vmem:[%s4931] sm:$0xf]
        %v4933 = vld [vmem:[%s4931 + $0x4] sm:$0xf]
        %v4934 = vld [vmem:[%s4931 + $0x8] sm:$0xf]
        %v4935 = vld [vmem:[%s4931 + $0xc] sm:$0xf]
        %v4936 = vld [vmem:[%s4931 + $0x10] sm:$0xf]
        %v4937 = vld [vmem:[%s4931 + $0x14] sm:$0xf]
        %v4938 = vld [vmem:[%s4931 + $0x18] sm:$0xf]
        %v4939 = vld [vmem:[%s4931 + $0x1c] sm:$0xf]
        %v4940 = vld [vmem:[%s4931 + $0x20] sm:$0xf]
        %v4941 = vld [vmem:[%s4931 + $0x24] sm:$0xf]
        %v4942 = vld [vmem:[%s4931 + $0x28] sm:$0xf]
        %v4943 = vld [vmem:[%s4931 + $0x2c] sm:$0xf]
        %v4944 = vld [vmem:[%s4931 + $0x30] sm:$0xf]
        %v4945 = vld [vmem:[%s4931 + $0x34] sm:$0xf]
        %v4946 = vld [vmem:[%s4931 + $0x38] sm:$0xf]
        %v4947 = vld [vmem:[%s4931 + $0x3c] sm:$0xf]
        %v4948 = vld [vmem:[%s4931 + $0x40] sm:$0xf]
        %v4949 = vld [vmem:[%s4931 + $0x44] sm:$0xf]
        %v4950 = vld [vmem:[%s4931 + $0x48] sm:$0xf]
        %v4951 = vld [vmem:[%s4931 + $0x4c] sm:$0xf]
        %v4952 = vld [vmem:[%s4931 + $0x50] sm:$0xf]
        %v4953 = vld [vmem:[%s4931 + $0x54] sm:$0xf]
        %v4954 = vld [vmem:[%s4931 + $0x58] sm:$0xf]
        %v4955 = vld [vmem:[%s4931 + $0x5c] sm:$0xf]
        %v4956 = vld [vmem:[%s4931 + $0x60] sm:$0xf]
        %v4957 = vld [vmem:[%s4931 + $0x64] sm:$0xf]
        %v4958 = vld [vmem:[%s4931 + $0x68] sm:$0xf]
        %v4959 = vld [vmem:[%s4931 + $0x6c] sm:$0xf]
        %v4960 = vld [vmem:[%s4931 + $0x70] sm:$0xf]
        %v4961 = vld [vmem:[%s4931 + $0x74] sm:$0xf]
        %v4962 = vld [vmem:[%s4931 + $0x78] sm:$0xf]
        %v4963 = vld [vmem:[%s4931 + $0x7c] sm:$0xf]
        %v4964 = vld [vmem:[%s4931 + $0x80] sm:$0xf]
        %v4965 = vld [vmem:[%s4931 + $0x84] sm:$0xf]
        %v4966 = vld [vmem:[%s4931 + $0x88] sm:$0xf]
        %v4967 = vld [vmem:[%s4931 + $0x8c] sm:$0xf]
        %v4968 = vld [vmem:[%s4931 + $0x90] sm:$0xf]
        %v4969 = vld [vmem:[%s4931 + $0x94] sm:$0xf]
        %v4970 = vld [vmem:[%s4931 + $0x98] sm:$0xf]
        %v4971 = vld [vmem:[%s4931 + $0x9c] sm:$0xf]
        %v5012 = vunpack.c.l.b16 %v4932
        %v5013 = vunpack.c.l.b16 %v4933
        %v5014 = vunpack.c.l.b16 %v4934
        %v5015 = vunpack.c.l.b16 %v4935
        %v5016 = vunpack.c.l.b16 %v4936
        %v5017 = vunpack.c.l.b16 %v4937
        %v5018 = vunpack.c.l.b16 %v4938
        %v5019 = vunpack.c.l.b16 %v4939
        %v5020 = vunpack.c.l.b16 %v4940
        %v5021 = vunpack.c.l.b16 %v4941
        %v5022 = vunpack.c.l.b16 %v4942
        %v5023 = vunpack.c.l.b16 %v4943
        %v5024 = vunpack.c.l.b16 %v4944
        %v5025 = vunpack.c.l.b16 %v4945
        %v5026 = vunpack.c.l.b16 %v4946
        %v5027 = vunpack.c.l.b16 %v4947
        %v5028 = vunpack.c.l.b16 %v4948
        %v5029 = vunpack.c.l.b16 %v4949
        %v5030 = vunpack.c.l.b16 %v4950
        %v5031 = vunpack.c.l.b16 %v4951
        %v5032 = vunpack.c.l.b16 %v4952
        %v5033 = vunpack.c.l.b16 %v4953
        %v5034 = vunpack.c.l.b16 %v4954
        %v5035 = vunpack.c.l.b16 %v4955
        %v5036 = vunpack.c.l.b16 %v4956
        %v5037 = vunpack.c.l.b16 %v4957
        %v5038 = vunpack.c.l.b16 %v4958
        %v5039 = vunpack.c.l.b16 %v4959
        %v5040 = vunpack.c.l.b16 %v4960
        %v5041 = vunpack.c.l.b16 %v4961
        %v5042 = vunpack.c.l.b16 %v4962
        %v5043 = vunpack.c.l.b16 %v4963
        %v5044 = vunpack.c.l.b16 %v4964
        %v5045 = vunpack.c.l.b16 %v4965
        %v5046 = vunpack.c.l.b16 %v4966
        %v5047 = vunpack.c.l.b16 %v4967
        %v5048 = vunpack.c.l.b16 %v4968
        %v5049 = vunpack.c.l.b16 %v4969
        %v5050 = vunpack.c.l.b16 %v4970
        %v5051 = vunpack.c.l.b16 %v4971
        %v5052 = vpack.c.b16 %v5013, %v5012
        %v5053 = vpack.c.b16 %v5015, %v5014
        %v5054 = vpack.c.b16 %v5017, %v5016
        %v5055 = vpack.c.b16 %v5019, %v5018
        %v5056 = vpack.c.b16 %v5021, %v5020
        %v5057 = vpack.c.b16 %v5023, %v5022
        %v5058 = vpack.c.b16 %v5025, %v5024
        %v5059 = vpack.c.b16 %v5027, %v5026
        %v5060 = vpack.c.b16 %v5029, %v5028
        %v5061 = vpack.c.b16 %v5031, %v5030
        %v5062 = vpack.c.b16 %v5033, %v5032
        %v5063 = vpack.c.b16 %v5035, %v5034
        %v5064 = vpack.c.b16 %v5037, %v5036
        %v5065 = vpack.c.b16 %v5039, %v5038
        %v5066 = vpack.c.b16 %v5041, %v5040
        %v5067 = vpack.c.b16 %v5043, %v5042
        %v5068 = vpack.c.b16 %v5045, %v5044
        %v5069 = vpack.c.b16 %v5047, %v5046
        %v5070 = vpack.c.b16 %v5049, %v5048
        %v5071 = vpack.c.b16 %v5051, %v5050
        %v5093 = vsel %vm954, %v4885, 0
        %v5096 = vsel %vm954, %v4888, 0
        %v5099 = vsel %vm954, %v4891, 0
        %v5102 = vsel %vm954, %v4894, 0
        %v5105 = vsel %vm954, %v4897, 0
        %v5108 = vsel %vm954, %v4900, 0
        %v5111 = vsel %vm954, %v4903, 0
        %v5114 = vsel %vm954, %v4906, 0
        %v5117 = vsel %vm954, %v4909, 0
        %v5120 = vsel %vm954, %v4912, 0
        %v5123 = vsel %vm954, %v4915, 0
        %v5126 = vsel %vm954, %v4918, 0
        %v5129 = vsel %vm954, %v4921, 0
        %v5132 = vsel %vm954, %v4924, 0
        %v5135 = vsel %vm954, %v4927, 0
        %v5138 = vsel %vm954, %v4930, 0
        %5140 = vmatprep.subr.bf16.mxu0 0
        %5141 = vmatpush1.bf16.msra.mxu0 %v5052
        %5142 = vmatprep.subr.bf16.mxu0 0
        %5143 = vmatpush1.bf16.msra.mxu0 %v5053
        %5144 = vmatprep.subr.bf16.mxu0 0
        %5145 = vmatpush1.bf16.msra.mxu0 %v5054
        %5146 = vmatprep.subr.bf16.mxu0 0
        %5147 = vmatpush1.bf16.msra.mxu0 %v5055
        %5148 = vmatprep.subr.bf16.mxu0 0
        %5149 = vmatpush1.bf16.msra.mxu0 %v5056
        %5150 = vmatprep.subr.bf16.mxu0 0
        %5151 = vmatpush1.bf16.msra.mxu0 %v5057
        %5152 = vmatprep.subr.bf16.mxu0 0
        %5153 = vmatpush1.bf16.msra.mxu0 %v5058
        %5154 = vmatprep.subr.bf16.mxu0 0
        %5155 = vmatpush1.bf16.msra.mxu0 %v5059
        %5156 = vmatprep.subr.bf16.mxu0 0
        %5157 = vmatpush1.bf16.msra.mxu0 %v5060
        %5158 = vmatprep.subr.bf16.mxu0 0
        %5159 = vmatpush1.bf16.msra.mxu0 %v5061
        %5160 = vmatprep.subr.bf16.mxu0 0
        %5161 = vmatpush1.bf16.msra.mxu0 %v5062
        %5162 = vmatprep.subr.bf16.mxu0 0
        %5163 = vmatpush1.bf16.msra.mxu0 %v5063
        %5164 = vmatprep.subr.bf16.mxu0 0
        %5165 = vmatpush1.bf16.msra.mxu0 %v5064
        %5166 = vmatprep.subr.bf16.mxu0 0
        %5167 = vmatpush1.bf16.msra.mxu0 %v5065
        %5168 = vmatprep.subr.bf16.mxu0 0
        %5169 = vmatpush1.bf16.msra.mxu0 %v5066
        %5170 = vmatprep.subr.bf16.mxu0 0
        %5171 = vmatpush1.bf16.msra.mxu0 %v5067
        %5172 = vmatprep.mubr.bf16.mxu0 %v4884
        %5173 = vmatmul.mubr.bf16.gmra.mrb[0].mxu0 %v4883
        %v5174 = vpop.f32.mrb[0].mxu0
        %v5175 = vadd.f32 0.0, %v5174
        %v5176 = vpop.f32.mrb[0].mxu0
        %v5177 = vpop.f32.mrb[0].mxu0
        %v5178 = vadd.f32 0.0, %v5177
        %v5179 = vpop.f32.mrb[0].mxu0
        %5180 = vmatprep.mubr.bf16.mxu0 %v4887
        %5181 = vmatmul.mubr.bf16.gmra.mrb[0].mxu0 %v4886
        %v5182 = vpop.f32.mrb[0].mxu0
        %v5183 = vadd.f32 0.0, %v5182
        %v5184 = vpop.f32.mrb[0].mxu0
        %v5185 = vpop.f32.mrb[0].mxu0
        %v5186 = vadd.f32 0.0, %v5185
        %v5187 = vpop.f32.mrb[0].mxu0
        %5188 = vmatprep.mubr.bf16.mxu0 %v4890
        %5189 = vmatmul.mubr.bf16.gmra.mrb[0].mxu0 %v4889
        %v5190 = vpop.f32.mrb[0].mxu0
        %v5191 = vadd.f32 0.0, %v5190
        %v5192 = vpop.f32.mrb[0].mxu0
        %v5193 = vpop.f32.mrb[0].mxu0
        %v5194 = vadd.f32 0.0, %v5193
        %v5195 = vpop.f32.mrb[0].mxu0
        %5196 = vmatprep.mubr.bf16.mxu0 %v4893
        %5197 = vmatmul.mubr.bf16.gmra.mrb[0].mxu0 %v4892
        %v5198 = vpop.f32.mrb[0].mxu0
        %v5199 = vadd.f32 0.0, %v5198
        %v5200 = vpop.f32.mrb[0].mxu0
        %v5201 = vpop.f32.mrb[0].mxu0
        %v5202 = vadd.f32 0.0, %v5201
        %v5203 = vpop.f32.mrb[0].mxu0
        %5204 = vmatprep.mubr.bf16.mxu0 %v4896
        %5205 = vmatmul.mubr.bf16.gmra.mrb[0].mxu0 %v4895
        %v5206 = vpop.f32.mrb[0].mxu0
        %v5207 = vadd.f32 0.0, %v5206
        %v5208 = vpop.f32.mrb[0].mxu0
        %v5209 = vpop.f32.mrb[0].mxu0
        %v5210 = vadd.f32 0.0, %v5209
        %v5211 = vpop.f32.mrb[0].mxu0
        %5212 = vmatprep.mubr.bf16.mxu0 %v4899
        %5213 = vmatmul.mubr.bf16.gmra.mrb[0].mxu0 %v4898
        %v5214 = vpop.f32.mrb[0].mxu0
        %v5215 = vadd.f32 0.0, %v5214
        %v5216 = vpop.f32.mrb[0].mxu0
        %v5217 = vpop.f32.mrb[0].mxu0
        %v5218 = vadd.f32 0.0, %v5217
        %v5219 = vpop.f32.mrb[0].mxu0
        %5220 = vmatprep.mubr.bf16.mxu0 %v4902
        %5221 = vmatmul.mubr.bf16.gmra.mrb[0].mxu0 %v4901
        %v5222 = vpop.f32.mrb[0].mxu0
        %v5223 = vadd.f32 0.0, %v5222
        %v5224 = vpop.f32.mrb[0].mxu0
        %v5225 = vpop.f32.mrb[0].mxu0
        %v5226 = vadd.f32 0.0, %v5225
        %v5227 = vpop.f32.mrb[0].mxu0
        %5228 = vmatprep.mubr.bf16.mxu0 %v4905
        %5229 = vmatmul.mubr.bf16.gmra.mrb[0].mxu0 %v4904
        %v5230 = vpop.f32.mrb[0].mxu0
        %v5231 = vadd.f32 0.0, %v5230
        %v5232 = vpop.f32.mrb[0].mxu0
        %v5233 = vpop.f32.mrb[0].mxu0
        %v5234 = vadd.f32 0.0, %v5233
        %v5235 = vpop.f32.mrb[0].mxu0
        %5236 = vmatprep.mubr.bf16.mxu0 %v4908
        %5237 = vmatmul.mubr.bf16.gmra.mrb[0].mxu0 %v4907
        %v5238 = vpop.f32.mrb[0].mxu0
        %v5239 = vadd.f32 0.0, %v5238
        %v5240 = vpop.f32.mrb[0].mxu0
        %v5241 = vpop.f32.mrb[0].mxu0
        %v5242 = vadd.f32 0.0, %v5241
        %v5243 = vpop.f32.mrb[0].mxu0
        %5244 = vmatprep.mubr.bf16.mxu0 %v4911
        %5245 = vmatmul.mubr.bf16.gmra.mrb[0].mxu0 %v4910
        %v5246 = vpop.f32.mrb[0].mxu0
        %v5247 = vadd.f32 0.0, %v5246
        %v5248 = vpop.f32.mrb[0].mxu0
        %v5249 = vpop.f32.mrb[0].mxu0
        %v5250 = vadd.f32 0.0, %v5249
        %v5251 = vpop.f32.mrb[0].mxu0
        %5252 = vmatprep.mubr.bf16.mxu0 %v4914
        %5253 = vmatmul.mubr.bf16.gmra.mrb[0].mxu0 %v4913
        %v5254 = vpop.f32.mrb[0].mxu0
        %v5255 = vadd.f32 0.0, %v5254
        %v5256 = vpop.f32.mrb[0].mxu0
        %v5257 = vpop.f32.mrb[0].mxu0
        %v5258 = vadd.f32 0.0, %v5257
        %v5259 = vpop.f32.mrb[0].mxu0
        %5260 = vmatprep.mubr.bf16.mxu0 %v4917
        %5261 = vmatmul.mubr.bf16.gmra.mrb[0].mxu0 %v4916
        %v5262 = vpop.f32.mrb[0].mxu0
        %v5263 = vadd.f32 0.0, %v5262
        %v5264 = vpop.f32.mrb[0].mxu0
        %v5265 = vpop.f32.mrb[0].mxu0
        %v5266 = vadd.f32 0.0, %v5265
        %v5267 = vpop.f32.mrb[0].mxu0
        %5268 = vmatprep.mubr.bf16.mxu0 %v4920
        %5269 = vmatmul.mubr.bf16.gmra.mrb[0].mxu0 %v4919
        %v5270 = vpop.f32.mrb[0].mxu0
        %v5271 = vadd.f32 0.0, %v5270
        %v5272 = vpop.f32.mrb[0].mxu0
        %v5273 = vpop.f32.mrb[0].mxu0
        %v5274 = vadd.f32 0.0, %v5273
        %v5275 = vpop.f32.mrb[0].mxu0
        %5276 = vmatprep.mubr.bf16.mxu0 %v4923
        %5277 = vmatmul.mubr.bf16.gmra.mrb[0].mxu0 %v4922
        %v5278 = vpop.f32.mrb[0].mxu0
        %v5279 = vadd.f32 0.0, %v5278
        %v5280 = vpop.f32.mrb[0].mxu0
        %v5281 = vpop.f32.mrb[0].mxu0
        %v5282 = vadd.f32 0.0, %v5281
        %v5283 = vpop.f32.mrb[0].mxu0
        %5284 = vmatprep.mubr.bf16.mxu0 %v4926
        %5285 = vmatmul.mubr.bf16.gmra.mrb[0].mxu0 %v4925
        %v5286 = vpop.f32.mrb[0].mxu0
        %v5287 = vadd.f32 0.0, %v5286
        %v5288 = vpop.f32.mrb[0].mxu0
        %v5289 = vpop.f32.mrb[0].mxu0
        %v5290 = vadd.f32 0.0, %v5289
        %v5291 = vpop.f32.mrb[0].mxu0
        %5292 = vmatprep.mubr.bf16.mxu0 %v4929
        %5293 = vmatmul.mubr.bf16.gmra.mrb[0].mxu0 %v4928
        %v5294 = vpop.f32.mrb[0].mxu0
        %v5295 = vadd.f32 0.0, %v5294
        %v5296 = vpop.f32.mrb[0].mxu0
        %v5297 = vpop.f32.mrb[0].mxu0
        %v5298 = vadd.f32 0.0, %v5297
        %v5299 = vpop.f32.mrb[0].mxu0
        %5300 = vdwg.mxu0
        %5301 = vmatprep.subr.bf16.mxu0 0
        %5302 = vmatpush1.bf16.msra.mxu0 %v5068
        %5303 = vmatprep.subr.bf16.mxu0 0
        %5304 = vmatpush1.bf16.msra.mxu0 %v5069
        %5305 = vmatprep.subr.bf16.mxu0 0
        %5306 = vmatpush1.bf16.msra.mxu0 %v5070
        %5307 = vmatprep.subr.bf16.mxu0 0
        %5308 = vmatpush1.bf16.msra.mxu0 %v5071
        %5309 = vmatprep.subr.bf16.mxu0 0
        %5310 = vmatpush1.bf16.msra.mxu0 0
        %5311 = vmatprep.subr.bf16.mxu0 0
        %5312 = vmatpush1.bf16.msra.mxu0 0
        %5313 = vmatprep.subr.bf16.mxu0 0
        %5314 = vmatpush1.bf16.msra.mxu0 0
        %5315 = vmatprep.subr.bf16.mxu0 0
        %5316 = vmatpush1.bf16.msra.mxu0 0
        %5317 = vmatprep.subr.bf16.mxu0 0
        %5318 = vmatpush1.bf16.msra.mxu0 0
        %5319 = vmatprep.subr.bf16.mxu0 0
        %5320 = vmatpush1.bf16.msra.mxu0 0
        %5321 = vmatprep.subr.bf16.mxu0 0
        %5322 = vmatpush1.bf16.msra.mxu0 0
        %5323 = vmatprep.subr.bf16.mxu0 0
        %5324 = vmatpush1.bf16.msra.mxu0 0
        %5325 = vmatprep.subr.bf16.mxu0 0
        %5326 = vmatpush1.bf16.msra.mxu0 0
        %5327 = vmatprep.subr.bf16.mxu0 0
        %5328 = vmatpush1.bf16.msra.mxu0 0
        %5329 = vmatprep.subr.bf16.mxu0 0
        %5330 = vmatpush1.bf16.msra.mxu0 0
        %5331 = vmatprep.subr.bf16.mxu0 0
        %5332 = vmatpush1.bf16.msra.mxu0 0
        %5333 = vmatprep.mubr.bf16.mxu0 0
        %5334 = vmatmul.mubr.bf16.gmra.mrb[0].mxu0 %v5093
        %v5335 = vpop.f32.mrb[0].mxu0
        %v5336 = vadd.f32 %v5175, %v5335
        %v5337 = vpop.f32.mrb[0].mxu0
        %v5338 = vpop.f32.mrb[0].mxu0
        %v5339 = vadd.f32 %v5178, %v5338
        %v5340 = vpop.f32.mrb[0].mxu0
        %5341 = vmatprep.mubr.bf16.mxu0 0
        %5342 = vmatmul.mubr.bf16.gmra.mrb[0].mxu0 %v5096
        %v5343 = vpop.f32.mrb[0].mxu0
        %v5344 = vadd.f32 %v5183, %v5343
        %v5345 = vpop.f32.mrb[0].mxu0
        %v5346 = vpop.f32.mrb[0].mxu0
        %v5347 = vadd.f32 %v5186, %v5346
        %v5348 = vpop.f32.mrb[0].mxu0
        %5349 = vmatprep.mubr.bf16.mxu0 0
        %5350 = vmatmul.mubr.bf16.gmra.mrb[0].mxu0 %v5099
        %v5351 = vpop.f32.mrb[0].mxu0
        %v5352 = vadd.f32 %v5191, %v5351
        %v5353 = vpop.f32.mrb[0].mxu0
        %v5354 = vpop.f32.mrb[0].mxu0
        %v5355 = vadd.f32 %v5194, %v5354
        %v5356 = vpop.f32.mrb[0].mxu0
        %5357 = vmatprep.mubr.bf16.mxu0 0
        %5358 = vmatmul.mubr.bf16.gmra.mrb[0].mxu0 %v5102
        %v5359 = vpop.f32.mrb[0].mxu0
        %v5360 = vadd.f32 %v5199, %v5359
        %v5361 = vpop.f32.mrb[0].mxu0
        %v5362 = vpop.f32.mrb[0].mxu0
        %v5363 = vadd.f32 %v5202, %v5362
        %v5364 = vpop.f32.mrb[0].mxu0
        %5365 = vmatprep.mubr.bf16.mxu0 0
        %5366 = vmatmul.mubr.bf16.gmra.mrb[0].mxu0 %v5105
        %v5367 = vpop.f32.mrb[0].mxu0
        %v5368 = vadd.f32 %v5207, %v5367
        %v5369 = vpop.f32.mrb[0].mxu0
        %v5370 = vpop.f32.mrb[0].mxu0
        %v5371 = vadd.f32 %v5210, %v5370
        %v5372 = vpop.f32.mrb[0].mxu0
        %5373 = vmatprep.mubr.bf16.mxu0 0
        %5374 = vmatmul.mubr.bf16.gmra.mrb[0].mxu0 %v5108
        %v5375 = vpop.f32.mrb[0].mxu0
        %v5376 = vadd.f32 %v5215, %v5375
        %v5377 = vpop.f32.mrb[0].mxu0
        %v5378 = vpop.f32.mrb[0].mxu0
        %v5379 = vadd.f32 %v5218, %v5378
        %v5380 = vpop.f32.mrb[0].mxu0
        %5381 = vmatprep.mubr.bf16.mxu0 0
        %5382 = vmatmul.mubr.bf16.gmra.mrb[0].mxu0 %v5111
        %v5383 = vpop.f32.mrb[0].mxu0
        %v5384 = vadd.f32 %v5223, %v5383
        %v5385 = vpop.f32.mrb[0].mxu0
        %v5386 = vpop.f32.mrb[0].mxu0
        %v5387 = vadd.f32 %v5226, %v5386
        %v5388 = vpop.f32.mrb[0].mxu0
        %5389 = vmatprep.mubr.bf16.mxu0 0
        %5390 = vmatmul.mubr.bf16.gmra.mrb[0].mxu0 %v5114
        %v5391 = vpop.f32.mrb[0].mxu0
        %v5392 = vadd.f32 %v5231, %v5391
        %v5393 = vpop.f32.mrb[0].mxu0
        %v5394 = vpop.f32.mrb[0].mxu0
        %v5395 = vadd.f32 %v5234, %v5394
        %v5396 = vpop.f32.mrb[0].mxu0
        %5397 = vmatprep.mubr.bf16.mxu0 0
        %5398 = vmatmul.mubr.bf16.gmra.mrb[0].mxu0 %v5117
        %v5399 = vpop.f32.mrb[0].mxu0
        %v5400 = vadd.f32 %v5239, %v5399
        %v5401 = vpop.f32.mrb[0].mxu0
        %v5402 = vpop.f32.mrb[0].mxu0
        %v5403 = vadd.f32 %v5242, %v5402
        %v5404 = vpop.f32.mrb[0].mxu0
        %5405 = vmatprep.mubr.bf16.mxu0 0
        %5406 = vmatmul.mubr.bf16.gmra.mrb[0].mxu0 %v5120
        %v5407 = vpop.f32.mrb[0].mxu0
        %v5408 = vadd.f32 %v5247, %v5407
        %v5409 = vpop.f32.mrb[0].mxu0
        %v5410 = vpop.f32.mrb[0].mxu0
        %v5411 = vadd.f32 %v5250, %v5410
        %v5412 = vpop.f32.mrb[0].mxu0
        %5413 = vmatprep.mubr.bf16.mxu0 0
        %5414 = vmatmul.mubr.bf16.gmra.mrb[0].mxu0 %v5123
        %v5415 = vpop.f32.mrb[0].mxu0
        %v5416 = vadd.f32 %v5255, %v5415
        %v5417 = vpop.f32.mrb[0].mxu0
        %v5418 = vpop.f32.mrb[0].mxu0
        %v5419 = vadd.f32 %v5258, %v5418
        %v5420 = vpop.f32.mrb[0].mxu0
        %5421 = vmatprep.mubr.bf16.mxu0 0
        %5422 = vmatmul.mubr.bf16.gmra.mrb[0].mxu0 %v5126
        %v5423 = vpop.f32.mrb[0].mxu0
        %v5424 = vadd.f32 %v5263, %v5423
        %v5425 = vpop.f32.mrb[0].mxu0
        %v5426 = vpop.f32.mrb[0].mxu0
        %v5427 = vadd.f32 %v5266, %v5426
        %v5428 = vpop.f32.mrb[0].mxu0
        %5429 = vmatprep.mubr.bf16.mxu0 0
        %5430 = vmatmul.mubr.bf16.gmra.mrb[0].mxu0 %v5129
        %v5431 = vpop.f32.mrb[0].mxu0
        %v5432 = vadd.f32 %v5271, %v5431
        %v5433 = vpop.f32.mrb[0].mxu0
        %v5434 = vpop.f32.mrb[0].mxu0
        %v5435 = vadd.f32 %v5274, %v5434
        %v5436 = vpop.f32.mrb[0].mxu0
        %5437 = vmatprep.mubr.bf16.mxu0 0
        %5438 = vmatmul.mubr.bf16.gmra.mrb[0].mxu0 %v5132
        %v5439 = vpop.f32.mrb[0].mxu0
        %v5440 = vadd.f32 %v5279, %v5439
        %v5441 = vpop.f32.mrb[0].mxu0
        %v5442 = vpop.f32.mrb[0].mxu0
        %v5443 = vadd.f32 %v5282, %v5442
        %v5444 = vpop.f32.mrb[0].mxu0
        %5445 = vmatprep.mubr.bf16.mxu0 0
        %5446 = vmatmul.mubr.bf16.gmra.mrb[0].mxu0 %v5135
        %v5447 = vpop.f32.mrb[0].mxu0
        %v5448 = vadd.f32 %v5287, %v5447
        %v5449 = vpop.f32.mrb[0].mxu0
        %v5450 = vpop.f32.mrb[0].mxu0
        %v5451 = vadd.f32 %v5290, %v5450
        %v5452 = vpop.f32.mrb[0].mxu0
        %5453 = vmatprep.mubr.bf16.mxu0 0
        %5454 = vmatmul.mubr.bf16.gmra.mrb[0].mxu0 %v5138
        %v5455 = vpop.f32.mrb[0].mxu0
        %v5456 = vadd.f32 %v5295, %v5455
        %v5457 = vpop.f32.mrb[0].mxu0
        %v5458 = vpop.f32.mrb[0].mxu0
        %v5459 = vadd.f32 %v5298, %v5458
        %v5460 = vpop.f32.mrb[0].mxu0
        %5461 = vdwg.mxu0
        %v5502 = vunpack.c.l.b16 %v4838
        %v5503 = vunpack.c.l.b16 %v4839
        %v5504 = vunpack.c.l.b16 %v4840
        %v5505 = vunpack.c.l.b16 %v4841
        %v5506 = vunpack.c.l.b16 %v4842
        %v5507 = vunpack.c.l.b16 %v4843
        %v5508 = vunpack.c.l.b16 %v4844
        %v5509 = vunpack.c.l.b16 %v4845
        %v5510 = vunpack.c.l.b16 %v4846
        %v5511 = vunpack.c.l.b16 %v4847
        %v5512 = vunpack.c.l.b16 %v4848
        %v5513 = vunpack.c.l.b16 %v4849
        %v5514 = vunpack.c.l.b16 %v4850
        %v5515 = vunpack.c.l.b16 %v4851
        %v5516 = vunpack.c.l.b16 %v4852
        %v5517 = vunpack.c.l.b16 %v4853
        %v5518 = vunpack.c.l.b16 %v4854
        %v5519 = vunpack.c.l.b16 %v4855
        %v5520 = vunpack.c.l.b16 %v4856
        %v5521 = vunpack.c.l.b16 %v4857
        %v5522 = vunpack.c.l.b16 %v4858
        %v5523 = vunpack.c.l.b16 %v4859
        %v5524 = vunpack.c.l.b16 %v4860
        %v5525 = vunpack.c.l.b16 %v4861
        %v5526 = vunpack.c.l.b16 %v4862
        %v5527 = vunpack.c.l.b16 %v4863
        %v5528 = vunpack.c.l.b16 %v4864
        %v5529 = vunpack.c.l.b16 %v4865
        %v5530 = vunpack.c.l.b16 %v4866
        %v5531 = vunpack.c.l.b16 %v4867
        %v5532 = vunpack.c.l.b16 %v4868
        %v5533 = vunpack.c.l.b16 %v4869
        %v5534 = vunpack.c.l.b16 %v4870
        %v5535 = vunpack.c.l.b16 %v4871
        %v5536 = vunpack.c.l.b16 %v4872
        %v5537 = vunpack.c.l.b16 %v4873
        %v5538 = vunpack.c.l.b16 %v4874
        %v5539 = vunpack.c.l.b16 %v4875
        %v5540 = vunpack.c.l.b16 %v4876
        %v5541 = vunpack.c.l.b16 %v4877
        %v5542 = vpack.c.b16 %v5503, %v5502
        %v5543 = vpack.c.b16 %v5505, %v5504
        %v5544 = vpack.c.b16 %v5507, %v5506
        %v5545 = vpack.c.b16 %v5509, %v5508
        %v5546 = vpack.c.b16 %v5511, %v5510
        %v5547 = vpack.c.b16 %v5513, %v5512
        %v5548 = vpack.c.b16 %v5515, %v5514
        %v5549 = vpack.c.b16 %v5517, %v5516
        %v5550 = vpack.c.b16 %v5519, %v5518
        %v5551 = vpack.c.b16 %v5521, %v5520
        %v5552 = vpack.c.b16 %v5523, %v5522
        %v5553 = vpack.c.b16 %v5525, %v5524
        %v5554 = vpack.c.b16 %v5527, %v5526
        %v5555 = vpack.c.b16 %v5529, %v5528
        %v5556 = vpack.c.b16 %v5531, %v5530
        %v5557 = vpack.c.b16 %v5533, %v5532
        %v5558 = vpack.c.b16 %v5535, %v5534
        %v5559 = vpack.c.b16 %v5537, %v5536
        %v5560 = vpack.c.b16 %v5539, %v5538
        %v5561 = vpack.c.b16 %v5541, %v5540
        %v5583 = vsel %vm954, %v4791, 0
        %v5586 = vsel %vm954, %v4794, 0
        %v5589 = vsel %vm954, %v4797, 0
        %v5592 = vsel %vm954, %v4800, 0
        %v5595 = vsel %vm954, %v4803, 0
        %v5598 = vsel %vm954, %v4806, 0
        %v5601 = vsel %vm954, %v4809, 0
        %v5604 = vsel %vm954, %v4812, 0
        %v5607 = vsel %vm954, %v4815, 0
        %v5610 = vsel %vm954, %v4818, 0
        %v5613 = vsel %vm954, %v4821, 0
        %v5616 = vsel %vm954, %v4824, 0
        %v5619 = vsel %vm954, %v4827, 0
        %v5622 = vsel %vm954, %v4830, 0
        %v5625 = vsel %vm954, %v4833, 0
        %v5628 = vsel %vm954, %v4836, 0
        %5630 = vmatprep.subr.bf16.mxu0 0
        %5631 = vmatpush1.bf16.msra.mxu0 %v5542
        %5632 = vmatprep.subr.bf16.mxu0 0
        %5633 = vmatpush1.bf16.msra.mxu0 %v5543
        %5634 = vmatprep.subr.bf16.mxu0 0
        %5635 = vmatpush1.bf16.msra.mxu0 %v5544
        %5636 = vmatprep.subr.bf16.mxu0 0
        %5637 = vmatpush1.bf16.msra.mxu0 %v5545
        %5638 = vmatprep.subr.bf16.mxu0 0
        %5639 = vmatpush1.bf16.msra.mxu0 %v5546
        %5640 = vmatprep.subr.bf16.mxu0 0
        %5641 = vmatpush1.bf16.msra.mxu0 %v5547
        %5642 = vmatprep.subr.bf16.mxu0 0
        %5643 = vmatpush1.bf16.msra.mxu0 %v5548
        %5644 = vmatprep.subr.bf16.mxu0 0
        %5645 = vmatpush1.bf16.msra.mxu0 %v5549
        %5646 = vmatprep.subr.bf16.mxu0 0
        %5647 = vmatpush1.bf16.msra.mxu0 %v5550
        %5648 = vmatprep.subr.bf16.mxu0 0
        %5649 = vmatpush1.bf16.msra.mxu0 %v5551
        %5650 = vmatprep.subr.bf16.mxu0 0
        %5651 = vmatpush1.bf16.msra.mxu0 %v5552
        %5652 = vmatprep.subr.bf16.mxu0 0
        %5653 = vmatpush1.bf16.msra.mxu0 %v5553
        %5654 = vmatprep.subr.bf16.mxu0 0
        %5655 = vmatpush1.bf16.msra.mxu0 %v5554
        %5656 = vmatprep.subr.bf16.mxu0 0
        %5657 = vmatpush1.bf16.msra.mxu0 %v5555
        %5658 = vmatprep.subr.bf16.mxu0 0
        %5659 = vmatpush1.bf16.msra.mxu0 %v5556
        %5660 = vmatprep.subr.bf16.mxu0 0
        %5661 = vmatpush1.bf16.msra.mxu0 %v5557
        %5662 = vmatprep.mubr.bf16.mxu0 %v4790
        %5663 = vmatmul.mubr.bf16.gmra.mrb[0].mxu0 %v4789
        %v5664 = vpop.f32.mrb[0].mxu0
        %v5665 = vadd.f32 %v5336, %v5664
        %v5666 = vpop.f32.mrb[0].mxu0
        %v5667 = vpop.f32.mrb[0].mxu0
        %v5668 = vadd.f32 %v5339, %v5667
        %v5669 = vpop.f32.mrb[0].mxu0
        %5670 = vmatprep.mubr.bf16.mxu0 %v4793
        %5671 = vmatmul.mubr.bf16.gmra.mrb[0].mxu0 %v4792
        %v5672 = vpop.f32.mrb[0].mxu0
        %v5673 = vadd.f32 %v5344, %v5672
        %v5674 = vpop.f32.mrb[0].mxu0
        %v5675 = vpop.f32.mrb[0].mxu0
        %v5676 = vadd.f32 %v5347, %v5675
        %v5677 = vpop.f32.mrb[0].mxu0
        %5678 = vmatprep.mubr.bf16.mxu0 %v4796
        %5679 = vmatmul.mubr.bf16.gmra.mrb[0].mxu0 %v4795
        %v5680 = vpop.f32.mrb[0].mxu0
        %v5681 = vadd.f32 %v5352, %v5680
        %v5682 = vpop.f32.mrb[0].mxu0
        %v5683 = vpop.f32.mrb[0].mxu0
        %v5684 = vadd.f32 %v5355, %v5683
        %v5685 = vpop.f32.mrb[0].mxu0
        %5686 = vmatprep.mubr.bf16.mxu0 %v4799
        %5687 = vmatmul.mubr.bf16.gmra.mrb[0].mxu0 %v4798
        %v5688 = vpop.f32.mrb[0].mxu0
        %v5689 = vadd.f32 %v5360, %v5688
        %v5690 = vpop.f32.mrb[0].mxu0
        %v5691 = vpop.f32.mrb[0].mxu0
        %v5692 = vadd.f32 %v5363, %v5691
        %v5693 = vpop.f32.mrb[0].mxu0
        %5694 = vmatprep.mubr.bf16.mxu0 %v4802
        %5695 = vmatmul.mubr.bf16.gmra.mrb[0].mxu0 %v4801
        %v5696 = vpop.f32.mrb[0].mxu0
        %v5697 = vadd.f32 %v5368, %v5696
        %v5698 = vpop.f32.mrb[0].mxu0
        %v5699 = vpop.f32.mrb[0].mxu0
        %v5700 = vadd.f32 %v5371, %v5699
        %v5701 = vpop.f32.mrb[0].mxu0
        %5702 = vmatprep.mubr.bf16.mxu0 %v4805
        %5703 = vmatmul.mubr.bf16.gmra.mrb[0].mxu0 %v4804
        %v5704 = vpop.f32.mrb[0].mxu0
        %v5705 = vadd.f32 %v5376, %v5704
        %v5706 = vpop.f32.mrb[0].mxu0
        %v5707 = vpop.f32.mrb[0].mxu0
        %v5708 = vadd.f32 %v5379, %v5707
        %v5709 = vpop.f32.mrb[0].mxu0
        %5710 = vmatprep.mubr.bf16.mxu0 %v4808
        %5711 = vmatmul.mubr.bf16.gmra.mrb[0].mxu0 %v4807
        %v5712 = vpop.f32.mrb[0].mxu0
        %v5713 = vadd.f32 %v5384, %v5712
        %v5714 = vpop.f32.mrb[0].mxu0
        %v5715 = vpop.f32.mrb[0].mxu0
        %v5716 = vadd.f32 %v5387, %v5715
        %v5717 = vpop.f32.mrb[0].mxu0
        %5718 = vmatprep.mubr.bf16.mxu0 %v4811
        %5719 = vmatmul.mubr.bf16.gmra.mrb[0].mxu0 %v4810
        %v5720 = vpop.f32.mrb[0].mxu0
        %v5721 = vadd.f32 %v5392, %v5720
        %v5722 = vpop.f32.mrb[0].mxu0
        %v5723 = vpop.f32.mrb[0].mxu0
        %v5724 = vadd.f32 %v5395, %v5723
        %v5725 = vpop.f32.mrb[0].mxu0
        %5726 = vmatprep.mubr.bf16.mxu0 %v4814
        %5727 = vmatmul.mubr.bf16.gmra.mrb[0].mxu0 %v4813
        %v5728 = vpop.f32.mrb[0].mxu0
        %v5729 = vadd.f32 %v5400, %v5728
        %v5730 = vpop.f32.mrb[0].mxu0
        %v5731 = vpop.f32.mrb[0].mxu0
        %v5732 = vadd.f32 %v5403, %v5731
        %v5733 = vpop.f32.mrb[0].mxu0
        %5734 = vmatprep.mubr.bf16.mxu0 %v4817
        %5735 = vmatmul.mubr.bf16.gmra.mrb[0].mxu0 %v4816
        %v5736 = vpop.f32.mrb[0].mxu0
        %v5737 = vadd.f32 %v5408, %v5736
        %v5738 = vpop.f32.mrb[0].mxu0
        %v5739 = vpop.f32.mrb[0].mxu0
        %v5740 = vadd.f32 %v5411, %v5739
        %v5741 = vpop.f32.mrb[0].mxu0
        %5742 = vmatprep.mubr.bf16.mxu0 %v4820
        %5743 = vmatmul.mubr.bf16.gmra.mrb[0].mxu0 %v4819
        %v5744 = vpop.f32.mrb[0].mxu0
        %v5745 = vadd.f32 %v5416, %v5744
        %v5746 = vpop.f32.mrb[0].mxu0
        %v5747 = vpop.f32.mrb[0].mxu0
        %v5748 = vadd.f32 %v5419, %v5747
        %v5749 = vpop.f32.mrb[0].mxu0
        %5750 = vmatprep.mubr.bf16.mxu0 %v4823
        %5751 = vmatmul.mubr.bf16.gmra.mrb[0].mxu0 %v4822
        %v5752 = vpop.f32.mrb[0].mxu0
        %v5753 = vadd.f32 %v5424, %v5752
        %v5754 = vpop.f32.mrb[0].mxu0
        %v5755 = vpop.f32.mrb[0].mxu0
        %v5756 = vadd.f32 %v5427, %v5755
        %v5757 = vpop.f32.mrb[0].mxu0
        %5758 = vmatprep.mubr.bf16.mxu0 %v4826
        %5759 = vmatmul.mubr.bf16.gmra.mrb[0].mxu0 %v4825
        %v5760 = vpop.f32.mrb[0].mxu0
        %v5761 = vadd.f32 %v5432, %v5760
        %v5762 = vpop.f32.mrb[0].mxu0
        %v5763 = vpop.f32.mrb[0].mxu0
        %v5764 = vadd.f32 %v5435, %v5763
        %v5765 = vpop.f32.mrb[0].mxu0
        %5766 = vmatprep.mubr.bf16.mxu0 %v4829
        %5767 = vmatmul.mubr.bf16.gmra.mrb[0].mxu0 %v4828
        %v5768 = vpop.f32.mrb[0].mxu0
        %v5769 = vadd.f32 %v5440, %v5768
        %v5770 = vpop.f32.mrb[0].mxu0
        %v5771 = vpop.f32.mrb[0].mxu0
        %v5772 = vadd.f32 %v5443, %v5771
        %v5773 = vpop.f32.mrb[0].mxu0
        %5774 = vmatprep.mubr.bf16.mxu0 %v4832
        %5775 = vmatmul.mubr.bf16.gmra.mrb[0].mxu0 %v4831
        %v5776 = vpop.f32.mrb[0].mxu0
        %v5777 = vadd.f32 %v5448, %v5776
        %v5778 = vpop.f32.mrb[0].mxu0
        %v5779 = vpop.f32.mrb[0].mxu0
        %v5780 = vadd.f32 %v5451, %v5779
        %v5781 = vpop.f32.mrb[0].mxu0
        %5782 = vmatprep.mubr.bf16.mxu0 %v4835
        %5783 = vmatmul.mubr.bf16.gmra.mrb[0].mxu0 %v4834
        %v5784 = vpop.f32.mrb[0].mxu0
        %v5785 = vadd.f32 %v5456, %v5784
        %v5786 = vpop.f32.mrb[0].mxu0
        %v5787 = vpop.f32.mrb[0].mxu0
        %v5788 = vadd.f32 %v5459, %v5787
        %v5789 = vpop.f32.mrb[0].mxu0
        %5790 = vdwg.mxu0
        %5791 = vmatprep.subr.bf16.mxu0 0
        %5792 = vmatpush1.bf16.msra.mxu0 %v5558
        %5793 = vmatprep.subr.bf16.mxu0 0
        %5794 = vmatpush1.bf16.msra.mxu0 %v5559
        %5795 = vmatprep.subr.bf16.mxu0 0
        %5796 = vmatpush1.bf16.msra.mxu0 %v5560
        %5797 = vmatprep.subr.bf16.mxu0 0
        %5798 = vmatpush1.bf16.msra.mxu0 %v5561
        %5799 = vmatprep.subr.bf16.mxu0 0
        %5800 = vmatpush1.bf16.msra.mxu0 0
        %5801 = vmatprep.subr.bf16.mxu0 0
        %5802 = vmatpush1.bf16.msra.mxu0 0
        %5803 = vmatprep.subr.bf16.mxu0 0
        %5804 = vmatpush1.bf16.msra.mxu0 0
        %5805 = vmatprep.subr.bf16.mxu0 0
        %5806 = vmatpush1.bf16.msra.mxu0 0
        %5807 = vmatprep.subr.bf16.mxu0 0
        %5808 = vmatpush1.bf16.msra.mxu0 0
        %5809 = vmatprep.subr.bf16.mxu0 0
        %5810 = vmatpush1.bf16.msra.mxu0 0
        %5811 = vmatprep.subr.bf16.mxu0 0
        %5812 = vmatpush1.bf16.msra.mxu0 0
        %5813 = vmatprep.subr.bf16.mxu0 0
        %5814 = vmatpush1.bf16.msra.mxu0 0
        %5815 = vmatprep.subr.bf16.mxu0 0
        %5816 = vmatpush1.bf16.msra.mxu0 0
        %5817 = vmatprep.subr.bf16.mxu0 0
        %5818 = vmatpush1.bf16.msra.mxu0 0
        %5819 = vmatprep.subr.bf16.mxu0 0
        %5820 = vmatpush1.bf16.msra.mxu0 0
        %5821 = vmatprep.subr.bf16.mxu0 0
        %5822 = vmatpush1.bf16.msra.mxu0 0
        %5823 = vmatprep.mubr.bf16.mxu0 0
        %5824 = vmatmul.mubr.bf16.gmra.mrb[0].mxu0 %v5583
        %v5825 = vpop.f32.mrb[0].mxu0
        %v5826 = vadd.f32 %v5665, %v5825
        %v5827 = vpop.f32.mrb[0].mxu0
        %v5828 = vpop.f32.mrb[0].mxu0
        %v5829 = vadd.f32 %v5668, %v5828
        %v5830 = vpop.f32.mrb[0].mxu0
        %5831 = vmatprep.mubr.bf16.mxu0 0
        %5832 = vmatmul.mubr.bf16.gmra.mrb[0].mxu0 %v5586
        %v5833 = vpop.f32.mrb[0].mxu0
        %v5834 = vadd.f32 %v5673, %v5833
        %v5835 = vpop.f32.mrb[0].mxu0
        %v5836 = vpop.f32.mrb[0].mxu0
        %v5837 = vadd.f32 %v5676, %v5836
        %v5838 = vpop.f32.mrb[0].mxu0
        %5839 = vmatprep.mubr.bf16.mxu0 0
        %5840 = vmatmul.mubr.bf16.gmra.mrb[0].mxu0 %v5589
        %v5841 = vpop.f32.mrb[0].mxu0
        %v5842 = vadd.f32 %v5681, %v5841
        %v5843 = vpop.f32.mrb[0].mxu0
        %v5844 = vpop.f32.mrb[0].mxu0
        %v5845 = vadd.f32 %v5684, %v5844
        %v5846 = vpop.f32.mrb[0].mxu0
        %5847 = vmatprep.mubr.bf16.mxu0 0
        %5848 = vmatmul.mubr.bf16.gmra.mrb[0].mxu0 %v5592
        %v5849 = vpop.f32.mrb[0].mxu0
        %v5850 = vadd.f32 %v5689, %v5849
        %v5851 = vpop.f32.mrb[0].mxu0
        %v5852 = vpop.f32.mrb[0].mxu0
        %v5853 = vadd.f32 %v5692, %v5852
        %v5854 = vpop.f32.mrb[0].mxu0
        %5855 = vmatprep.mubr.bf16.mxu0 0
        %5856 = vmatmul.mubr.bf16.gmra.mrb[0].mxu0 %v5595
        %v5857 = vpop.f32.mrb[0].mxu0
        %v5858 = vadd.f32 %v5697, %v5857
        %v5859 = vpop.f32.mrb[0].mxu0
        %v5860 = vpop.f32.mrb[0].mxu0
        %v5861 = vadd.f32 %v5700, %v5860
        %v5862 = vpop.f32.mrb[0].mxu0
        %5863 = vmatprep.mubr.bf16.mxu0 0
        %5864 = vmatmul.mubr.bf16.gmra.mrb[0].mxu0 %v5598
        %v5865 = vpop.f32.mrb[0].mxu0
        %v5866 = vadd.f32 %v5705, %v5865
        %v5867 = vpop.f32.mrb[0].mxu0
        %v5868 = vpop.f32.mrb[0].mxu0
        %v5869 = vadd.f32 %v5708, %v5868
        %v5870 = vpop.f32.mrb[0].mxu0
        %5871 = vmatprep.mubr.bf16.mxu0 0
        %5872 = vmatmul.mubr.bf16.gmra.mrb[0].mxu0 %v5601
        %v5873 = vpop.f32.mrb[0].mxu0
        %v5874 = vadd.f32 %v5713, %v5873
        %v5875 = vpop.f32.mrb[0].mxu0
        %v5876 = vpop.f32.mrb[0].mxu0
        %v5877 = vadd.f32 %v5716, %v5876
        %v5878 = vpop.f32.mrb[0].mxu0
        %5879 = vmatprep.mubr.bf16.mxu0 0
        %5880 = vmatmul.mubr.bf16.gmra.mrb[0].mxu0 %v5604
        %v5881 = vpop.f32.mrb[0].mxu0
        %v5882 = vadd.f32 %v5721, %v5881
        %v5883 = vpop.f32.mrb[0].mxu0
        %v5884 = vpop.f32.mrb[0].mxu0
        %v5885 = vadd.f32 %v5724, %v5884
        %v5886 = vpop.f32.mrb[0].mxu0
        %5887 = vmatprep.mubr.bf16.mxu0 0
        %5888 = vmatmul.mubr.bf16.gmra.mrb[0].mxu0 %v5607
        %v5889 = vpop.f32.mrb[0].mxu0
        %v5890 = vadd.f32 %v5729, %v5889
        %v5891 = vpop.f32.mrb[0].mxu0
        %v5892 = vpop.f32.mrb[0].mxu0
        %v5893 = vadd.f32 %v5732, %v5892
        %v5894 = vpop.f32.mrb[0].mxu0
        %5895 = vmatprep.mubr.bf16.mxu0 0
        %5896 = vmatmul.mubr.bf16.gmra.mrb[0].mxu0 %v5610
        %v5897 = vpop.f32.mrb[0].mxu0
        %v5898 = vadd.f32 %v5737, %v5897
        %v5899 = vpop.f32.mrb[0].mxu0
        %v5900 = vpop.f32.mrb[0].mxu0
        %v5901 = vadd.f32 %v5740, %v5900
        %v5902 = vpop.f32.mrb[0].mxu0
        %5903 = vmatprep.mubr.bf16.mxu0 0
        %5904 = vmatmul.mubr.bf16.gmra.mrb[0].mxu0 %v5613
        %v5905 = vpop.f32.mrb[0].mxu0
        %v5906 = vadd.f32 %v5745, %v5905
        %v5907 = vpop.f32.mrb[0].mxu0
        %v5908 = vpop.f32.mrb[0].mxu0
        %v5909 = vadd.f32 %v5748, %v5908
        %v5910 = vpop.f32.mrb[0].mxu0
        %5911 = vmatprep.mubr.bf16.mxu0 0
        %5912 = vmatmul.mubr.bf16.gmra.mrb[0].mxu0 %v5616
        %v5913 = vpop.f32.mrb[0].mxu0
        %v5914 = vadd.f32 %v5753, %v5913
        %v5915 = vpop.f32.mrb[0].mxu0
        %v5916 = vpop.f32.mrb[0].mxu0
        %v5917 = vadd.f32 %v5756, %v5916
        %v5918 = vpop.f32.mrb[0].mxu0
        %5919 = vmatprep.mubr.bf16.mxu0 0
        %5920 = vmatmul.mubr.bf16.gmra.mrb[0].mxu0 %v5619
        %v5921 = vpop.f32.mrb[0].mxu0
        %v5922 = vadd.f32 %v5761, %v5921
        %v5923 = vpop.f32.mrb[0].mxu0
        %v5924 = vpop.f32.mrb[0].mxu0
        %v5925 = vadd.f32 %v5764, %v5924
        %v5926 = vpop.f32.mrb[0].mxu0
        %5927 = vmatprep.mubr.bf16.mxu0 0
        %5928 = vmatmul.mubr.bf16.gmra.mrb[0].mxu0 %v5622
        %v5929 = vpop.f32.mrb[0].mxu0
        %v5930 = vadd.f32 %v5769, %v5929
        %v5931 = vpop.f32.mrb[0].mxu0
        %v5932 = vpop.f32.mrb[0].mxu0
        %v5933 = vadd.f32 %v5772, %v5932
        %v5934 = vpop.f32.mrb[0].mxu0
        %5935 = vmatprep.mubr.bf16.mxu0 0
        %5936 = vmatmul.mubr.bf16.gmra.mrb[0].mxu0 %v5625
        %v5937 = vpop.f32.mrb[0].mxu0
        %v5938 = vadd.f32 %v5777, %v5937
        %v5939 = vpop.f32.mrb[0].mxu0
        %v5940 = vpop.f32.mrb[0].mxu0
        %v5941 = vadd.f32 %v5780, %v5940
        %v5942 = vpop.f32.mrb[0].mxu0
        %5943 = vmatprep.mubr.bf16.mxu0 0
        %5944 = vmatmul.mubr.bf16.gmra.mrb[0].mxu0 %v5628
        %v5945 = vpop.f32.mrb[0].mxu0
        %v5946 = vadd.f32 %v5785, %v5945
        %v5947 = vpop.f32.mrb[0].mxu0
        %v5948 = vpop.f32.mrb[0].mxu0
        %v5949 = vadd.f32 %v5788, %v5948
        %v5950 = vpop.f32.mrb[0].mxu0
        %5951 = vdwg.mxu0
        %s5952 = sadd.s32 %s4784, 2
        %s5953 = smul.u32 %s5952, 6
        %s5954 = sadd.s32 %s5953, 216
        %s5955 = smul.addr %s5954, 8
        %s5956 = scalar_lea.vmem [#allocation2], %s5955
        %v5957 = vld [vmem:[%s5956] sm:$0xff]
        %v5958 = vld [vmem:[%s5956 + $0x8] sm:$0xff]
        %v5959 = vld [vmem:[%s5956 + $0x10] sm:$0xff]
        %v5960 = vld [vmem:[%s5956 + $0x18] sm:$0xff]
        %v5961 = vld [vmem:[%s5956 + $0x20] sm:$0xff]
        %v5962 = vld [vmem:[%s5956 + $0x28] sm:$0xff]
        %v5963 = vld [vmem:[%s5956 + $0x30] sm:$0xff]
        %v5964 = vld [vmem:[%s5956 + $0x38] sm:$0xff]
        %v5965 = vld [vmem:[%s5956 + $0x40] sm:$0xff]
        %v5966 = vld [vmem:[%s5956 + $0x48] sm:$0xff]
        %v5967 = vld [vmem:[%s5956 + $0x50] sm:$0xff]
        %v5968 = vld [vmem:[%s5956 + $0x58] sm:$0xff]
        %v5969 = vld [vmem:[%s5956 + $0x60] sm:$0xff]
        %v5970 = vld [vmem:[%s5956 + $0x68] sm:$0xff]
        %v5971 = vld [vmem:[%s5956 + $0x70] sm:$0xff]
        %v5972 = vld [vmem:[%s5956 + $0x78] sm:$0xff]
        %v5973 = vld [vmem:[%s5956 + $0x80] sm:$0xff]
        %v5974 = vld [vmem:[%s5956 + $0x88] sm:$0xff]
        %v5975 = vld [vmem:[%s5956 + $0x90] sm:$0xff]
        %v5976 = vld [vmem:[%s5956 + $0x98] sm:$0xff]
        %v5977 = vld [vmem:[%s5956 + $0xa0] sm:$0xff]
        %v5978 = vld [vmem:[%s5956 + $0xa8] sm:$0xff]
        %v5979 = vld [vmem:[%s5956 + $0xb0] sm:$0xff]
        %v5980 = vld [vmem:[%s5956 + $0xb8] sm:$0xff]
        %v5981 = vld [vmem:[%s5956 + $0xc0] sm:$0xff]
        %v5982 = vld [vmem:[%s5956 + $0xc8] sm:$0xff]
        %v5983 = vld [vmem:[%s5956 + $0xd0] sm:$0xff]
        %v5984 = vld [vmem:[%s5956 + $0xd8] sm:$0xff]
        %v5985 = vld [vmem:[%s5956 + $0xe0] sm:$0xff]
        %v5986 = vld [vmem:[%s5956 + $0xe8] sm:$0xff]
        %v5987 = vld [vmem:[%s5956 + $0xf0] sm:$0xff]
        %v5988 = vld [vmem:[%s5956 + $0xf8] sm:$0xff]
        %v5989 = vld [vmem:[%s5956 + $0x100] sm:$0xff]
        %v5990 = vld [vmem:[%s5956 + $0x108] sm:$0xff]
        %v5991 = vld [vmem:[%s5956 + $0x110] sm:$0xff]
        %v5992 = vld [vmem:[%s5956 + $0x118] sm:$0xff]
        %v5993 = vld [vmem:[%s5956 + $0x120] sm:$0xff]
        %v5994 = vld [vmem:[%s5956 + $0x128] sm:$0xff]
        %v5995 = vld [vmem:[%s5956 + $0x130] sm:$0xff]
        %v5996 = vld [vmem:[%s5956 + $0x138] sm:$0xff]
        %v5997 = vld [vmem:[%s5956 + $0x140] sm:$0xff]
        %v5998 = vld [vmem:[%s5956 + $0x148] sm:$0xff]
        %v5999 = vld [vmem:[%s5956 + $0x150] sm:$0xff]
        %v6000 = vld [vmem:[%s5956 + $0x158] sm:$0xff]
        %v6001 = vld [vmem:[%s5956 + $0x160] sm:$0xff]
        %v6002 = vld [vmem:[%s5956 + $0x168] sm:$0xff]
        %v6003 = vld [vmem:[%s5956 + $0x170] sm:$0xff]
        %v6004 = vld [vmem:[%s5956 + $0x178] sm:$0xff]
        %s6005 = scalar_lea.vmem %s1, 5920
        %v6006 = vld [vmem:[%s6005] sm:$0xf]
        %v6007 = vld [vmem:[%s6005 + $0x4] sm:$0xf]
        %v6008 = vld [vmem:[%s6005 + $0x8] sm:$0xf]
        %v6009 = vld [vmem:[%s6005 + $0xc] sm:$0xf]
        %v6010 = vld [vmem:[%s6005 + $0x10] sm:$0xf]
        %v6011 = vld [vmem:[%s6005 + $0x14] sm:$0xf]
        %v6012 = vld [vmem:[%s6005 + $0x18] sm:$0xf]
        %v6013 = vld [vmem:[%s6005 + $0x1c] sm:$0xf]
        %v6014 = vld [vmem:[%s6005 + $0x20] sm:$0xf]
        %v6015 = vld [vmem:[%s6005 + $0x24] sm:$0xf]
        %v6016 = vld [vmem:[%s6005 + $0x28] sm:$0xf]
        %v6017 = vld [vmem:[%s6005 + $0x2c] sm:$0xf]
        %v6018 = vld [vmem:[%s6005 + $0x30] sm:$0xf]
        %v6019 = vld [vmem:[%s6005 + $0x34] sm:$0xf]
        %v6020 = vld [vmem:[%s6005 + $0x38] sm:$0xf]
        %v6021 = vld [vmem:[%s6005 + $0x3c] sm:$0xf]
        %v6022 = vld [vmem:[%s6005 + $0x40] sm:$0xf]
        %v6023 = vld [vmem:[%s6005 + $0x44] sm:$0xf]
        %v6024 = vld [vmem:[%s6005 + $0x48] sm:$0xf]
        %v6025 = vld [vmem:[%s6005 + $0x4c] sm:$0xf]
        %v6026 = vld [vmem:[%s6005 + $0x50] sm:$0xf]
        %v6027 = vld [vmem:[%s6005 + $0x54] sm:$0xf]
        %v6028 = vld [vmem:[%s6005 + $0x58] sm:$0xf]
        %v6029 = vld [vmem:[%s6005 + $0x5c] sm:$0xf]
        %v6030 = vld [vmem:[%s6005 + $0x60] sm:$0xf]
        %v6031 = vld [vmem:[%s6005 + $0x64] sm:$0xf]
        %v6032 = vld [vmem:[%s6005 + $0x68] sm:$0xf]
        %v6033 = vld [vmem:[%s6005 + $0x6c] sm:$0xf]
        %v6034 = vld [vmem:[%s6005 + $0x70] sm:$0xf]
        %v6035 = vld [vmem:[%s6005 + $0x74] sm:$0xf]
        %v6036 = vld [vmem:[%s6005 + $0x78] sm:$0xf]
        %v6037 = vld [vmem:[%s6005 + $0x7c] sm:$0xf]
        %v6038 = vld [vmem:[%s6005 + $0x80] sm:$0xf]
        %v6039 = vld [vmem:[%s6005 + $0x84] sm:$0xf]
        %v6040 = vld [vmem:[%s6005 + $0x88] sm:$0xf]
        %v6041 = vld [vmem:[%s6005 + $0x8c] sm:$0xf]
        %v6042 = vld [vmem:[%s6005 + $0x90] sm:$0xf]
        %v6043 = vld [vmem:[%s6005 + $0x94] sm:$0xf]
        %v6044 = vld [vmem:[%s6005 + $0x98] sm:$0xf]
        %v6045 = vld [vmem:[%s6005 + $0x9c] sm:$0xf]
        %v6086 = vunpack.c.l.b16 %v6006
        %v6087 = vunpack.c.l.b16 %v6007
        %v6088 = vunpack.c.l.b16 %v6008
        %v6089 = vunpack.c.l.b16 %v6009
        %v6090 = vunpack.c.l.b16 %v6010
        %v6091 = vunpack.c.l.b16 %v6011
        %v6092 = vunpack.c.l.b16 %v6012
        %v6093 = vunpack.c.l.b16 %v6013
        %v6094 = vunpack.c.l.b16 %v6014
        %v6095 = vunpack.c.l.b16 %v6015
        %v6096 = vunpack.c.l.b16 %v6016
        %v6097 = vunpack.c.l.b16 %v6017
        %v6098 = vunpack.c.l.b16 %v6018
        %v6099 = vunpack.c.l.b16 %v6019
        %v6100 = vunpack.c.l.b16 %v6020
        %v6101 = vunpack.c.l.b16 %v6021
        %v6102 = vunpack.c.l.b16 %v6022
        %v6103 = vunpack.c.l.b16 %v6023
        %v6104 = vunpack.c.l.b16 %v6024
        %v6105 = vunpack.c.l.b16 %v6025
        %v6106 = vunpack.c.l.b16 %v6026
        %v6107 = vunpack.c.l.b16 %v6027
        %v6108 = vunpack.c.l.b16 %v6028
        %v6109 = vunpack.c.l.b16 %v6029
        %v6110 = vunpack.c.l.b16 %v6030
        %v6111 = vunpack.c.l.b16 %v6031
        %v6112 = vunpack.c.l.b16 %v6032
        %v6113 = vunpack.c.l.b16 %v6033
        %v6114 = vunpack.c.l.b16 %v6034
        %v6115 = vunpack.c.l.b16 %v6035
        %v6116 = vunpack.c.l.b16 %v6036
        %v6117 = vunpack.c.l.b16 %v6037
        %v6118 = vunpack.c.l.b16 %v6038
        %v6119 = vunpack.c.l.b16 %v6039
        %v6120 = vunpack.c.l.b16 %v6040
        %v6121 = vunpack.c.l.b16 %v6041
        %v6122 = vunpack.c.l.b16 %v6042
        %v6123 = vunpack.c.l.b16 %v6043
        %v6124 = vunpack.c.l.b16 %v6044
        %v6125 = vunpack.c.l.b16 %v6045
        %v6126 = vpack.c.b16 %v6087, %v6086
        %v6127 = vpack.c.b16 %v6089, %v6088
        %v6128 = vpack.c.b16 %v6091, %v6090
        %v6129 = vpack.c.b16 %v6093, %v6092
        %v6130 = vpack.c.b16 %v6095, %v6094
        %v6131 = vpack.c.b16 %v6097, %v6096
        %v6132 = vpack.c.b16 %v6099, %v6098
        %v6133 = vpack.c.b16 %v6101, %v6100
        %v6134 = vpack.c.b16 %v6103, %v6102
        %v6135 = vpack.c.b16 %v6105, %v6104
        %v6136 = vpack.c.b16 %v6107, %v6106
        %v6137 = vpack.c.b16 %v6109, %v6108
        %v6138 = vpack.c.b16 %v6111, %v6110
        %v6139 = vpack.c.b16 %v6113, %v6112
        %v6140 = vpack.c.b16 %v6115, %v6114
        %v6141 = vpack.c.b16 %v6117, %v6116
        %v6142 = vpack.c.b16 %v6119, %v6118
        %v6143 = vpack.c.b16 %v6121, %v6120
        %v6144 = vpack.c.b16 %v6123, %v6122
        %v6145 = vpack.c.b16 %v6125, %v6124
        %v6167 = vsel %vm954, %v5959, 0
        %v6170 = vsel %vm954, %v5962, 0
        %v6173 = vsel %vm954, %v5965, 0
        %v6176 = vsel %vm954, %v5968, 0
        %v6179 = vsel %vm954, %v5971, 0
        %v6182 = vsel %vm954, %v5974, 0
        %v6185 = vsel %vm954, %v5977, 0
        %v6188 = vsel %vm954, %v5980, 0
        %v6191 = vsel %vm954, %v5983, 0
        %v6194 = vsel %vm954, %v5986, 0
        %v6197 = vsel %vm954, %v5989, 0
        %v6200 = vsel %vm954, %v5992, 0
        %v6203 = vsel %vm954, %v5995, 0
        %v6206 = vsel %vm954, %v5998, 0
        %v6209 = vsel %vm954, %v6001, 0
        %v6212 = vsel %vm954, %v6004, 0
        %6214 = vmatprep.subr.bf16.mxu0 0
        %6215 = vmatpush1.bf16.msra.mxu0 %v6126
        %6216 = vmatprep.subr.bf16.mxu0 0
        %6217 = vmatpush1.bf16.msra.mxu0 %v6127
        %6218 = vmatprep.subr.bf16.mxu0 0
        %6219 = vmatpush1.bf16.msra.mxu0 %v6128
        %6220 = vmatprep.subr.bf16.mxu0 0
        %6221 = vmatpush1.bf16.msra.mxu0 %v6129
        %6222 = vmatprep.subr.bf16.mxu0 0
        %6223 = vmatpush1.bf16.msra.mxu0 %v6130
        %6224 = vmatprep.subr.bf16.mxu0 0
        %6225 = vmatpush1.bf16.msra.mxu0 %v6131
        %6226 = vmatprep.subr.bf16.mxu0 0
        %6227 = vmatpush1.bf16.msra.mxu0 %v6132
        %6228 = vmatprep.subr.bf16.mxu0 0
        %6229 = vmatpush1.bf16.msra.mxu0 %v6133
        %6230 = vmatprep.subr.bf16.mxu0 0
        %6231 = vmatpush1.bf16.msra.mxu0 %v6134
        %6232 = vmatprep.subr.bf16.mxu0 0
        %6233 = vmatpush1.bf16.msra.mxu0 %v6135
        %6234 = vmatprep.subr.bf16.mxu0 0
        %6235 = vmatpush1.bf16.msra.mxu0 %v6136
        %6236 = vmatprep.subr.bf16.mxu0 0
        %6237 = vmatpush1.bf16.msra.mxu0 %v6137
        %6238 = vmatprep.subr.bf16.mxu0 0
        %6239 = vmatpush1.bf16.msra.mxu0 %v6138
        %6240 = vmatprep.subr.bf16.mxu0 0
        %6241 = vmatpush1.bf16.msra.mxu0 %v6139
        %6242 = vmatprep.subr.bf16.mxu0 0
        %6243 = vmatpush1.bf16.msra.mxu0 %v6140
        %6244 = vmatprep.subr.bf16.mxu0 0
        %6245 = vmatpush1.bf16.msra.mxu0 %v6141
        %6246 = vmatprep.mubr.bf16.mxu0 %v5958
        %6247 = vmatmul.mubr.bf16.gmra.mrb[0].mxu0 %v5957
        %v6248 = vpop.f32.mrb[0].mxu0
        %v6249 = vadd.f32 0.0, %v6248
        %v6250 = vpop.f32.mrb[0].mxu0
        %v6251 = vpop.f32.mrb[0].mxu0
        %v6252 = vadd.f32 0.0, %v6251
        %v6253 = vpop.f32.mrb[0].mxu0
        %6254 = vmatprep.mubr.bf16.mxu0 %v5961
        %6255 = vmatmul.mubr.bf16.gmra.mrb[0].mxu0 %v5960
        %v6256 = vpop.f32.mrb[0].mxu0
        %v6257 = vadd.f32 0.0, %v6256
        %v6258 = vpop.f32.mrb[0].mxu0
        %v6259 = vpop.f32.mrb[0].mxu0
        %v6260 = vadd.f32 0.0, %v6259
        %v6261 = vpop.f32.mrb[0].mxu0
        %6262 = vmatprep.mubr.bf16.mxu0 %v5964
        %6263 = vmatmul.mubr.bf16.gmra.mrb[0].mxu0 %v5963
        %v6264 = vpop.f32.mrb[0].mxu0
        %v6265 = vadd.f32 0.0, %v6264
        %v6266 = vpop.f32.mrb[0].mxu0
        %v6267 = vpop.f32.mrb[0].mxu0
        %v6268 = vadd.f32 0.0, %v6267
        %v6269 = vpop.f32.mrb[0].mxu0
        %6270 = vmatprep.mubr.bf16.mxu0 %v5967
        %6271 = vmatmul.mubr.bf16.gmra.mrb[0].mxu0 %v5966
        %v6272 = vpop.f32.mrb[0].mxu0
        %v6273 = vadd.f32 0.0, %v6272
        %v6274 = vpop.f32.mrb[0].mxu0
        %v6275 = vpop.f32.mrb[0].mxu0
        %v6276 = vadd.f32 0.0, %v6275
        %v6277 = vpop.f32.mrb[0].mxu0
        %6278 = vmatprep.mubr.bf16.mxu0 %v5970
        %6279 = vmatmul.mubr.bf16.gmra.mrb[0].mxu0 %v5969
        %v6280 = vpop.f32.mrb[0].mxu0
        %v6281 = vadd.f32 0.0, %v6280
        %v6282 = vpop.f32.mrb[0].mxu0
        %v6283 = vpop.f32.mrb[0].mxu0
        %v6284 = vadd.f32 0.0, %v6283
        %v6285 = vpop.f32.mrb[0].mxu0
        %6286 = vmatprep.mubr.bf16.mxu0 %v5973
        %6287 = vmatmul.mubr.bf16.gmra.mrb[0].mxu0 %v5972
        %v6288 = vpop.f32.mrb[0].mxu0
        %v6289 = vadd.f32 0.0, %v6288
        %v6290 = vpop.f32.mrb[0].mxu0
        %v6291 = vpop.f32.mrb[0].mxu0
        %v6292 = vadd.f32 0.0, %v6291
        %v6293 = vpop.f32.mrb[0].mxu0
        %6294 = vmatprep.mubr.bf16.mxu0 %v5976
        %6295 = vmatmul.mubr.bf16.gmra.mrb[0].mxu0 %v5975
        %v6296 = vpop.f32.mrb[0].mxu0
        %v6297 = vadd.f32 0.0, %v6296
        %v6298 = vpop.f32.mrb[0].mxu0
        %v6299 = vpop.f32.mrb[0].mxu0
        %v6300 = vadd.f32 0.0, %v6299
        %v6301 = vpop.f32.mrb[0].mxu0
        %6302 = vmatprep.mubr.bf16.mxu0 %v5979
        %6303 = vmatmul.mubr.bf16.gmra.mrb[0].mxu0 %v5978
        %v6304 = vpop.f32.mrb[0].mxu0
        %v6305 = vadd.f32 0.0, %v6304
        %v6306 = vpop.f32.mrb[0].mxu0
        %v6307 = vpop.f32.mrb[0].mxu0
        %v6308 = vadd.f32 0.0, %v6307
        %v6309 = vpop.f32.mrb[0].mxu0
        %6310 = vmatprep.mubr.bf16.mxu0 %v5982
        %6311 = vmatmul.mubr.bf16.gmra.mrb[0].mxu0 %v5981
        %v6312 = vpop.f32.mrb[0].mxu0
        %v6313 = vadd.f32 0.0, %v6312
        %v6314 = vpop.f32.mrb[0].mxu0
        %v6315 = vpop.f32.mrb[0].mxu0
        %v6316 = vadd.f32 0.0, %v6315
        %v6317 = vpop.f32.mrb[0].mxu0
        %6318 = vmatprep.mubr.bf16.mxu0 %v5985
        %6319 = vmatmul.mubr.bf16.gmra.mrb[0].mxu0 %v5984
        %v6320 = vpop.f32.mrb[0].mxu0
        %v6321 = vadd.f32 0.0, %v6320
        %v6322 = vpop.f32.mrb[0].mxu0
        %v6323 = vpop.f32.mrb[0].mxu0
        %v6324 = vadd.f32 0.0, %v6323
        %v6325 = vpop.f32.mrb[0].mxu0
        %6326 = vmatprep.mubr.bf16.mxu0 %v5988
        %6327 = vmatmul.mubr.bf16.gmra.mrb[0].mxu0 %v5987
        %v6328 = vpop.f32.mrb[0].mxu0
        %v6329 = vadd.f32 0.0, %v6328
        %v6330 = vpop.f32.mrb[0].mxu0
        %v6331 = vpop.f32.mrb[0].mxu0
        %v6332 = vadd.f32 0.0, %v6331
        %v6333 = vpop.f32.mrb[0].mxu0
        %6334 = vmatprep.mubr.bf16.mxu0 %v5991
        %6335 = vmatmul.mubr.bf16.gmra.mrb[0].mxu0 %v5990
        %v6336 = vpop.f32.mrb[0].mxu0
        %v6337 = vadd.f32 0.0, %v6336
        %v6338 = vpop.f32.mrb[0].mxu0
        %v6339 = vpop.f32.mrb[0].mxu0
        %v6340 = vadd.f32 0.0, %v6339
        %v6341 = vpop.f32.mrb[0].mxu0
        %6342 = vmatprep.mubr.bf16.mxu0 %v5994
        %6343 = vmatmul.mubr.bf16.gmra.mrb[0].mxu0 %v5993
        %v6344 = vpop.f32.mrb[0].mxu0
        %v6345 = vadd.f32 0.0, %v6344
        %v6346 = vpop.f32.mrb[0].mxu0
        %v6347 = vpop.f32.mrb[0].mxu0
        %v6348 = vadd.f32 0.0, %v6347
        %v6349 = vpop.f32.mrb[0].mxu0
        %6350 = vmatprep.mubr.bf16.mxu0 %v5997
        %6351 = vmatmul.mubr.bf16.gmra.mrb[0].mxu0 %v5996
        %v6352 = vpop.f32.mrb[0].mxu0
        %v6353 = vadd.f32 0.0, %v6352
        %v6354 = vpop.f32.mrb[0].mxu0
        %v6355 = vpop.f32.mrb[0].mxu0
        %v6356 = vadd.f32 0.0, %v6355
        %v6357 = vpop.f32.mrb[0].mxu0
        %6358 = vmatprep.mubr.bf16.mxu0 %v6000
        %6359 = vmatmul.mubr.bf16.gmra.mrb[0].mxu0 %v5999
        %v6360 = vpop.f32.mrb[0].mxu0
        %v6361 = vadd.f32 0.0, %v6360
        %v6362 = vpop.f32.mrb[0].mxu0
        %v6363 = vpop.f32.mrb[0].mxu0
        %v6364 = vadd.f32 0.0, %v6363
        %v6365 = vpop.f32.mrb[0].mxu0
        %6366 = vmatprep.mubr.bf16.mxu0 %v6003
        %6367 = vmatmul.mubr.bf16.gmra.mrb[0].mxu0 %v6002
        %v6368 = vpop.f32.mrb[0].mxu0
        %v6369 = vadd.f32 0.0, %v6368
        %v6370 = vpop.f32.mrb[0].mxu0
        %v6371 = vpop.f32.mrb[0].mxu0
        %v6372 = vadd.f32 0.0, %v6371
        %v6373 = vpop.f32.mrb[0].mxu0
        %6374 = vdwg.mxu0
        %6375 = vmatprep.subr.bf16.mxu0 0
        %6376 = vmatpush1.bf16.msra.mxu0 %v6142
        %6377 = vmatprep.subr.bf16.mxu0 0
        %6378 = vmatpush1.bf16.msra.mxu0 %v6143
        %6379 = vmatprep.subr.bf16.mxu0 0
        %6380 = vmatpush1.bf16.msra.mxu0 %v6144
        %6381 = vmatprep.subr.bf16.mxu0 0
        %6382 = vmatpush1.bf16.msra.mxu0 %v6145
        %6383 = vmatprep.subr.bf16.mxu0 0
        %6384 = vmatpush1.bf16.msra.mxu0 0
        %6385 = vmatprep.subr.bf16.mxu0 0
        %6386 = vmatpush1.bf16.msra.mxu0 0
        %6387 = vmatprep.subr.bf16.mxu0 0
        %6388 = vmatpush1.bf16.msra.mxu0 0
        %6389 = vmatprep.subr.bf16.mxu0 0
        %6390 = vmatpush1.bf16.msra.mxu0 0
        %6391 = vmatprep.subr.bf16.mxu0 0
        %6392 = vmatpush1.bf16.msra.mxu0 0
        %6393 = vmatprep.subr.bf16.mxu0 0
        %6394 = vmatpush1.bf16.msra.mxu0 0
        %6395 = vmatprep.subr.bf16.mxu0 0
        %6396 = vmatpush1.bf16.msra.mxu0 0
        %6397 = vmatprep.subr.bf16.mxu0 0
        %6398 = vmatpush1.bf16.msra.mxu0 0
        %6399 = vmatprep.subr.bf16.mxu0 0
        %6400 = vmatpush1.bf16.msra.mxu0 0
        %6401 = vmatprep.subr.bf16.mxu0 0
        %6402 = vmatpush1.bf16.msra.mxu0 0
        %6403 = vmatprep.subr.bf16.mxu0 0
        %6404 = vmatpush1.bf16.msra.mxu0 0
        %6405 = vmatprep.subr.bf16.mxu0 0
        %6406 = vmatpush1.bf16.msra.mxu0 0
        %6407 = vmatprep.mubr.bf16.mxu0 0
        %6408 = vmatmul.mubr.bf16.gmra.mrb[0].mxu0 %v6167
        %v6409 = vpop.f32.mrb[0].mxu0
        %v6410 = vadd.f32 %v6249, %v6409
        %v6411 = vpop.f32.mrb[0].mxu0
        %v6412 = vpop.f32.mrb[0].mxu0
        %v6413 = vadd.f32 %v6252, %v6412
        %v6414 = vpop.f32.mrb[0].mxu0
        %6415 = vmatprep.mubr.bf16.mxu0 0
        %6416 = vmatmul.mubr.bf16.gmra.mrb[0].mxu0 %v6170
        %v6417 = vpop.f32.mrb[0].mxu0
        %v6418 = vadd.f32 %v6257, %v6417
        %v6419 = vpop.f32.mrb[0].mxu0
        %v6420 = vpop.f32.mrb[0].mxu0
        %v6421 = vadd.f32 %v6260, %v6420
        %v6422 = vpop.f32.mrb[0].mxu0
        %6423 = vmatprep.mubr.bf16.mxu0 0
        %6424 = vmatmul.mubr.bf16.gmra.mrb[0].mxu0 %v6173
        %v6425 = vpop.f32.mrb[0].mxu0
        %v6426 = vadd.f32 %v6265, %v6425
        %v6427 = vpop.f32.mrb[0].mxu0
        %v6428 = vpop.f32.mrb[0].mxu0
        %v6429 = vadd.f32 %v6268, %v6428
        %v6430 = vpop.f32.mrb[0].mxu0
        %6431 = vmatprep.mubr.bf16.mxu0 0
        %6432 = vmatmul.mubr.bf16.gmra.mrb[0].mxu0 %v6176
        %v6433 = vpop.f32.mrb[0].mxu0
        %v6434 = vadd.f32 %v6273, %v6433
        %v6435 = vpop.f32.mrb[0].mxu0
        %v6436 = vpop.f32.mrb[0].mxu0
        %v6437 = vadd.f32 %v6276, %v6436
        %v6438 = vpop.f32.mrb[0].mxu0
        %6439 = vmatprep.mubr.bf16.mxu0 0
        %6440 = vmatmul.mubr.bf16.gmra.mrb[0].mxu0 %v6179
        %v6441 = vpop.f32.mrb[0].mxu0
        %v6442 = vadd.f32 %v6281, %v6441
        %v6443 = vpop.f32.mrb[0].mxu0
        %v6444 = vpop.f32.mrb[0].mxu0
        %v6445 = vadd.f32 %v6284, %v6444
        %v6446 = vpop.f32.mrb[0].mxu0
        %6447 = vmatprep.mubr.bf16.mxu0 0
        %6448 = vmatmul.mubr.bf16.gmra.mrb[0].mxu0 %v6182
        %v6449 = vpop.f32.mrb[0].mxu0
        %v6450 = vadd.f32 %v6289, %v6449
        %v6451 = vpop.f32.mrb[0].mxu0
        %v6452 = vpop.f32.mrb[0].mxu0
        %v6453 = vadd.f32 %v6292, %v6452
        %v6454 = vpop.f32.mrb[0].mxu0
        %6455 = vmatprep.mubr.bf16.mxu0 0
        %6456 = vmatmul.mubr.bf16.gmra.mrb[0].mxu0 %v6185
        %v6457 = vpop.f32.mrb[0].mxu0
        %v6458 = vadd.f32 %v6297, %v6457
        %v6459 = vpop.f32.mrb[0].mxu0
        %v6460 = vpop.f32.mrb[0].mxu0
        %v6461 = vadd.f32 %v6300, %v6460
        %v6462 = vpop.f32.mrb[0].mxu0
        %6463 = vmatprep.mubr.bf16.mxu0 0
        %6464 = vmatmul.mubr.bf16.gmra.mrb[0].mxu0 %v6188
        %v6465 = vpop.f32.mrb[0].mxu0
        %v6466 = vadd.f32 %v6305, %v6465
        %v6467 = vpop.f32.mrb[0].mxu0
        %v6468 = vpop.f32.mrb[0].mxu0
        %v6469 = vadd.f32 %v6308, %v6468
        %v6470 = vpop.f32.mrb[0].mxu0
        %6471 = vmatprep.mubr.bf16.mxu0 0
        %6472 = vmatmul.mubr.bf16.gmra.mrb[0].mxu0 %v6191
        %v6473 = vpop.f32.mrb[0].mxu0
        %v6474 = vadd.f32 %v6313, %v6473
        %v6475 = vpop.f32.mrb[0].mxu0
        %v6476 = vpop.f32.mrb[0].mxu0
        %v6477 = vadd.f32 %v6316, %v6476
        %v6478 = vpop.f32.mrb[0].mxu0
        %6479 = vmatprep.mubr.bf16.mxu0 0
        %6480 = vmatmul.mubr.bf16.gmra.mrb[0].mxu0 %v6194
        %v6481 = vpop.f32.mrb[0].mxu0
        %v6482 = vadd.f32 %v6321, %v6481
        %v6483 = vpop.f32.mrb[0].mxu0
        %v6484 = vpop.f32.mrb[0].mxu0
        %v6485 = vadd.f32 %v6324, %v6484
        %v6486 = vpop.f32.mrb[0].mxu0
        %6487 = vmatprep.mubr.bf16.mxu0 0
        %6488 = vmatmul.mubr.bf16.gmra.mrb[0].mxu0 %v6197
        %v6489 = vpop.f32.mrb[0].mxu0
        %v6490 = vadd.f32 %v6329, %v6489
        %v6491 = vpop.f32.mrb[0].mxu0
        %v6492 = vpop.f32.mrb[0].mxu0
        %v6493 = vadd.f32 %v6332, %v6492
        %v6494 = vpop.f32.mrb[0].mxu0
        %6495 = vmatprep.mubr.bf16.mxu0 0
        %6496 = vmatmul.mubr.bf16.gmra.mrb[0].mxu0 %v6200
        %v6497 = vpop.f32.mrb[0].mxu0
        %v6498 = vadd.f32 %v6337, %v6497
        %v6499 = vpop.f32.mrb[0].mxu0
        %v6500 = vpop.f32.mrb[0].mxu0
        %v6501 = vadd.f32 %v6340, %v6500
        %v6502 = vpop.f32.mrb[0].mxu0
        %6503 = vmatprep.mubr.bf16.mxu0 0
        %6504 = vmatmul.mubr.bf16.gmra.mrb[0].mxu0 %v6203
        %v6505 = vpop.f32.mrb[0].mxu0
        %v6506 = vadd.f32 %v6345, %v6505
        %v6507 = vpop.f32.mrb[0].mxu0
        %v6508 = vpop.f32.mrb[0].mxu0
        %v6509 = vadd.f32 %v6348, %v6508
        %v6510 = vpop.f32.mrb[0].mxu0
        %6511 = vmatprep.mubr.bf16.mxu0 0
        %6512 = vmatmul.mubr.bf16.gmra.mrb[0].mxu0 %v6206
        %v6513 = vpop.f32.mrb[0].mxu0
        %v6514 = vadd.f32 %v6353, %v6513
        %v6515 = vpop.f32.mrb[0].mxu0
        %v6516 = vpop.f32.mrb[0].mxu0
        %v6517 = vadd.f32 %v6356, %v6516
        %v6518 = vpop.f32.mrb[0].mxu0
        %6519 = vmatprep.mubr.bf16.mxu0 0
        %6520 = vmatmul.mubr.bf16.gmra.mrb[0].mxu0 %v6209
        %v6521 = vpop.f32.mrb[0].mxu0
        %v6522 = vadd.f32 %v6361, %v6521
        %v6523 = vpop.f32.mrb[0].mxu0
        %v6524 = vpop.f32.mrb[0].mxu0
        %v6525 = vadd.f32 %v6364, %v6524
        %v6526 = vpop.f32.mrb[0].mxu0
        %6527 = vmatprep.mubr.bf16.mxu0 0
        %6528 = vmatmul.mubr.bf16.gmra.mrb[0].mxu0 %v6212
        %v6529 = vpop.f32.mrb[0].mxu0
        %v6530 = vadd.f32 %v6369, %v6529
        %v6531 = vpop.f32.mrb[0].mxu0
        %v6532 = vpop.f32.mrb[0].mxu0
        %v6533 = vadd.f32 %v6372, %v6532
        %v6534 = vpop.f32.mrb[0].mxu0
        %6535 = vdwg.mxu0
        %v6536 = vadd.f32 %v5826, %v6410
        %v6537 = vadd.f32 %v5829, %v6413
        %v6538 = vadd.f32 %v5834, %v6418
        %v6539 = vadd.f32 %v5837, %v6421
        %v6540 = vadd.f32 %v5842, %v6426
        %v6541 = vadd.f32 %v5845, %v6429
        %v6542 = vadd.f32 %v5850, %v6434
        %v6543 = vadd.f32 %v5853, %v6437
        %v6544 = vadd.f32 %v5858, %v6442
        %v6545 = vadd.f32 %v5861, %v6445
        %v6546 = vadd.f32 %v5866, %v6450
        %v6547 = vadd.f32 %v5869, %v6453
        %v6548 = vadd.f32 %v5874, %v6458
        %v6549 = vadd.f32 %v5877, %v6461
        %v6550 = vadd.f32 %v5882, %v6466
        %v6551 = vadd.f32 %v5885, %v6469
        %v6552 = vadd.f32 %v5890, %v6474
        %v6553 = vadd.f32 %v5893, %v6477
        %v6554 = vadd.f32 %v5898, %v6482
        %v6555 = vadd.f32 %v5901, %v6485
        %v6556 = vadd.f32 %v5906, %v6490
        %v6557 = vadd.f32 %v5909, %v6493
        %v6558 = vadd.f32 %v5914, %v6498
        %v6559 = vadd.f32 %v5917, %v6501
        %v6560 = vadd.f32 %v5922, %v6506
        %v6561 = vadd.f32 %v5925, %v6509
        %v6562 = vadd.f32 %v5930, %v6514
        %v6563 = vadd.f32 %v5933, %v6517
        %v6564 = vadd.f32 %v5938, %v6522
        %v6565 = vadd.f32 %v5941, %v6525
        %v6566 = vadd.f32 %v5946, %v6530
        %v6567 = vadd.f32 %v5949, %v6533
        %s6568 = sadd.s32 %s4784, 3
        %s6569 = smul.u32 %s6568, 6
        %s6570 = sadd.s32 %s6569, 216
        %s6571 = smul.addr %s6570, 8
        %s6572 = scalar_lea.vmem [#allocation2], %s6571
        %v6573 = vld [vmem:[%s6572] sm:$0xff]
        %v6574 = vld [vmem:[%s6572 + $0x8] sm:$0xff]
        %v6575 = vld [vmem:[%s6572 + $0x10] sm:$0xff]
        %v6576 = vld [vmem:[%s6572 + $0x18] sm:$0xff]
        %v6577 = vld [vmem:[%s6572 + $0x20] sm:$0xff]
        %v6578 = vld [vmem:[%s6572 + $0x28] sm:$0xff]
        %v6579 = vld [vmem:[%s6572 + $0x30] sm:$0xff]
        %v6580 = vld [vmem:[%s6572 + $0x38] sm:$0xff]
        %v6581 = vld [vmem:[%s6572 + $0x40] sm:$0xff]
        %v6582 = vld [vmem:[%s6572 + $0x48] sm:$0xff]
        %v6583 = vld [vmem:[%s6572 + $0x50] sm:$0xff]
        %v6584 = vld [vmem:[%s6572 + $0x58] sm:$0xff]
        %v6585 = vld [vmem:[%s6572 + $0x60] sm:$0xff]
        %v6586 = vld [vmem:[%s6572 + $0x68] sm:$0xff]
        %v6587 = vld [vmem:[%s6572 + $0x70] sm:$0xff]
        %v6588 = vld [vmem:[%s6572 + $0x78] sm:$0xff]
        %v6589 = vld [vmem:[%s6572 + $0x80] sm:$0xff]
        %v6590 = vld [vmem:[%s6572 + $0x88] sm:$0xff]
        %v6591 = vld [vmem:[%s6572 + $0x90] sm:$0xff]
        %v6592 = vld [vmem:[%s6572 + $0x98] sm:$0xff]
        %v6593 = vld [vmem:[%s6572 + $0xa0] sm:$0xff]
        %v6594 = vld [vmem:[%s6572 + $0xa8] sm:$0xff]
        %v6595 = vld [vmem:[%s6572 + $0xb0] sm:$0xff]
        %v6596 = vld [vmem:[%s6572 + $0xb8] sm:$0xff]
        %v6597 = vld [vmem:[%s6572 + $0xc0] sm:$0xff]
        %v6598 = vld [vmem:[%s6572 + $0xc8] sm:$0xff]
        %v6599 = vld [vmem:[%s6572 + $0xd0] sm:$0xff]
        %v6600 = vld [vmem:[%s6572 + $0xd8] sm:$0xff]
        %v6601 = vld [vmem:[%s6572 + $0xe0] sm:$0xff]
        %v6602 = vld [vmem:[%s6572 + $0xe8] sm:$0xff]
        %v6603 = vld [vmem:[%s6572 + $0xf0] sm:$0xff]
        %v6604 = vld [vmem:[%s6572 + $0xf8] sm:$0xff]
        %v6605 = vld [vmem:[%s6572 + $0x100] sm:$0xff]
        %v6606 = vld [vmem:[%s6572 + $0x108] sm:$0xff]
        %v6607 = vld [vmem:[%s6572 + $0x110] sm:$0xff]
        %v6608 = vld [vmem:[%s6572 + $0x118] sm:$0xff]
        %v6609 = vld [vmem:[%s6572 + $0x120] sm:$0xff]
        %v6610 = vld [vmem:[%s6572 + $0x128] sm:$0xff]
        %v6611 = vld [vmem:[%s6572 + $0x130] sm:$0xff]
        %v6612 = vld [vmem:[%s6572 + $0x138] sm:$0xff]
        %v6613 = vld [vmem:[%s6572 + $0x140] sm:$0xff]
        %v6614 = vld [vmem:[%s6572 + $0x148] sm:$0xff]
        %v6615 = vld [vmem:[%s6572 + $0x150] sm:$0xff]
        %v6616 = vld [vmem:[%s6572 + $0x158] sm:$0xff]
        %v6617 = vld [vmem:[%s6572 + $0x160] sm:$0xff]
        %v6618 = vld [vmem:[%s6572 + $0x168] sm:$0xff]
        %v6619 = vld [vmem:[%s6572 + $0x170] sm:$0xff]
        %v6620 = vld [vmem:[%s6572 + $0x178] sm:$0xff]
        %s6621 = scalar_lea.vmem %s1, 6080
        %v6622 = vld [vmem:[%s6621] sm:$0xf]
        %v6623 = vld [vmem:[%s6621 + $0x4] sm:$0xf]
        %v6624 = vld [vmem:[%s6621 + $0x8] sm:$0xf]
        %v6625 = vld [vmem:[%s6621 + $0xc] sm:$0xf]
        %v6626 = vld [vmem:[%s6621 + $0x10] sm:$0xf]
        %v6627 = vld [vmem:[%s6621 + $0x14] sm:$0xf]
        %v6628 = vld [vmem:[%s6621 + $0x18] sm:$0xf]
        %v6629 = vld [vmem:[%s6621 + $0x1c] sm:$0xf]
        %v6630 = vld [vmem:[%s6621 + $0x20] sm:$0xf]
        %v6631 = vld [vmem:[%s6621 + $0x24] sm:$0xf]
        %v6632 = vld [vmem:[%s6621 + $0x28] sm:$0xf]
        %v6633 = vld [vmem:[%s6621 + $0x2c] sm:$0xf]
        %v6634 = vld [vmem:[%s6621 + $0x30] sm:$0xf]
        %v6635 = vld [vmem:[%s6621 + $0x34] sm:$0xf]
        %v6636 = vld [vmem:[%s6621 + $0x38] sm:$0xf]
        %v6637 = vld [vmem:[%s6621 + $0x3c] sm:$0xf]
        %v6638 = vld [vmem:[%s6621 + $0x40] sm:$0xf]
        %v6639 = vld [vmem:[%s6621 + $0x44] sm:$0xf]
        %v6640 = vld [vmem:[%s6621 + $0x48] sm:$0xf]
        %v6641 = vld [vmem:[%s6621 + $0x4c] sm:$0xf]
        %v6642 = vld [vmem:[%s6621 + $0x50] sm:$0xf]
        %v6643 = vld [vmem:[%s6621 + $0x54] sm:$0xf]
        %v6644 = vld [vmem:[%s6621 + $0x58] sm:$0xf]
        %v6645 = vld [vmem:[%s6621 + $0x5c] sm:$0xf]
        %v6646 = vld [vmem:[%s6621 + $0x60] sm:$0xf]
        %v6647 = vld [vmem:[%s6621 + $0x64] sm:$0xf]
        %v6648 = vld [vmem:[%s6621 + $0x68] sm:$0xf]
        %v6649 = vld [vmem:[%s6621 + $0x6c] sm:$0xf]
        %v6650 = vld [vmem:[%s6621 + $0x70] sm:$0xf]
        %v6651 = vld [vmem:[%s6621 + $0x74] sm:$0xf]
        %v6652 = vld [vmem:[%s6621 + $0x78] sm:$0xf]
        %v6653 = vld [vmem:[%s6621 + $0x7c] sm:$0xf]
        %v6654 = vld [vmem:[%s6621 + $0x80] sm:$0xf]
        %v6655 = vld [vmem:[%s6621 + $0x84] sm:$0xf]
        %v6656 = vld [vmem:[%s6621 + $0x88] sm:$0xf]
        %v6657 = vld [vmem:[%s6621 + $0x8c] sm:$0xf]
        %v6658 = vld [vmem:[%s6621 + $0x90] sm:$0xf]
        %v6659 = vld [vmem:[%s6621 + $0x94] sm:$0xf]
        %v6660 = vld [vmem:[%s6621 + $0x98] sm:$0xf]
        %v6661 = vld [vmem:[%s6621 + $0x9c] sm:$0xf]
        %v6702 = vunpack.c.l.b16 %v6622
        %v6703 = vunpack.c.l.b16 %v6623
        %v6704 = vunpack.c.l.b16 %v6624
        %v6705 = vunpack.c.l.b16 %v6625
        %v6706 = vunpack.c.l.b16 %v6626
        %v6707 = vunpack.c.l.b16 %v6627
        %v6708 = vunpack.c.l.b16 %v6628
        %v6709 = vunpack.c.l.b16 %v6629
        %v6710 = vunpack.c.l.b16 %v6630
        %v6711 = vunpack.c.l.b16 %v6631
        %v6712 = vunpack.c.l.b16 %v6632
        %v6713 = vunpack.c.l.b16 %v6633
        %v6714 = vunpack.c.l.b16 %v6634
        %v6715 = vunpack.c.l.b16 %v6635
        %v6716 = vunpack.c.l.b16 %v6636
        %v6717 = vunpack.c.l.b16 %v6637
        %v6718 = vunpack.c.l.b16 %v6638
        %v6719 = vunpack.c.l.b16 %v6639
        %v6720 = vunpack.c.l.b16 %v6640
        %v6721 = vunpack.c.l.b16 %v6641
        %v6722 = vunpack.c.l.b16 %v6642
        %v6723 = vunpack.c.l.b16 %v6643
        %v6724 = vunpack.c.l.b16 %v6644
        %v6725 = vunpack.c.l.b16 %v6645
        %v6726 = vunpack.c.l.b16 %v6646
        %v6727 = vunpack.c.l.b16 %v6647
        %v6728 = vunpack.c.l.b16 %v6648
        %v6729 = vunpack.c.l.b16 %v6649
        %v6730 = vunpack.c.l.b16 %v6650
        %v6731 = vunpack.c.l.b16 %v6651
        %v6732 = vunpack.c.l.b16 %v6652
        %v6733 = vunpack.c.l.b16 %v6653
        %v6734 = vunpack.c.l.b16 %v6654
        %v6735 = vunpack.c.l.b16 %v6655
        %v6736 = vunpack.c.l.b16 %v6656
        %v6737 = vunpack.c.l.b16 %v6657
        %v6738 = vunpack.c.l.b16 %v6658
        %v6739 = vunpack.c.l.b16 %v6659
        %v6740 = vunpack.c.l.b16 %v6660
        %v6741 = vunpack.c.l.b16 %v6661
        %v6742 = vpack.c.b16 %v6703, %v6702
        %v6743 = vpack.c.b16 %v6705, %v6704
        %v6744 = vpack.c.b16 %v6707, %v6706
        %v6745 = vpack.c.b16 %v6709, %v6708
        %v6746 = vpack.c.b16 %v6711, %v6710
        %v6747 = vpack.c.b16 %v6713, %v6712
        %v6748 = vpack.c.b16 %v6715, %v6714
        %v6749 = vpack.c.b16 %v6717, %v6716
        %v6750 = vpack.c.b16 %v6719, %v6718
        %v6751 = vpack.c.b16 %v6721, %v6720
        %v6752 = vpack.c.b16 %v6723, %v6722
        %v6753 = vpack.c.b16 %v6725, %v6724
        %v6754 = vpack.c.b16 %v6727, %v6726
        %v6755 = vpack.c.b16 %v6729, %v6728
        %v6756 = vpack.c.b16 %v6731, %v6730
        %v6757 = vpack.c.b16 %v6733, %v6732
        %v6758 = vpack.c.b16 %v6735, %v6734
        %v6759 = vpack.c.b16 %v6737, %v6736
        %v6760 = vpack.c.b16 %v6739, %v6738
        %v6761 = vpack.c.b16 %v6741, %v6740
        %v6783 = vsel %vm954, %v6575, 0
        %v6786 = vsel %vm954, %v6578, 0
        %v6789 = vsel %vm954, %v6581, 0
        %v6792 = vsel %vm954, %v6584, 0
        %v6795 = vsel %vm954, %v6587, 0
        %v6798 = vsel %vm954, %v6590, 0
        %v6801 = vsel %vm954, %v6593, 0
        %v6804 = vsel %vm954, %v6596, 0
        %v6807 = vsel %vm954, %v6599, 0
        %v6810 = vsel %vm954, %v6602, 0
        %v6813 = vsel %vm954, %v6605, 0
        %v6816 = vsel %vm954, %v6608, 0
        %v6819 = vsel %vm954, %v6611, 0
        %v6822 = vsel %vm954, %v6614, 0
        %v6825 = vsel %vm954, %v6617, 0
        %v6828 = vsel %vm954, %v6620, 0
        %6830 = vmatprep.subr.bf16.mxu0 0
        %6831 = vmatpush1.bf16.msra.mxu0 %v6742
        %6832 = vmatprep.subr.bf16.mxu0 0
        %6833 = vmatpush1.bf16.msra.mxu0 %v6743
        %6834 = vmatprep.subr.bf16.mxu0 0
        %6835 = vmatpush1.bf16.msra.mxu0 %v6744
        %6836 = vmatprep.subr.bf16.mxu0 0
        %6837 = vmatpush1.bf16.msra.mxu0 %v6745
        %6838 = vmatprep.subr.bf16.mxu0 0
        %6839 = vmatpush1.bf16.msra.mxu0 %v6746
        %6840 = vmatprep.subr.bf16.mxu0 0
        %6841 = vmatpush1.bf16.msra.mxu0 %v6747
        %6842 = vmatprep.subr.bf16.mxu0 0
        %6843 = vmatpush1.bf16.msra.mxu0 %v6748
        %6844 = vmatprep.subr.bf16.mxu0 0
        %6845 = vmatpush1.bf16.msra.mxu0 %v6749
        %6846 = vmatprep.subr.bf16.mxu0 0
        %6847 = vmatpush1.bf16.msra.mxu0 %v6750
        %6848 = vmatprep.subr.bf16.mxu0 0
        %6849 = vmatpush1.bf16.msra.mxu0 %v6751
        %6850 = vmatprep.subr.bf16.mxu0 0
        %6851 = vmatpush1.bf16.msra.mxu0 %v6752
        %6852 = vmatprep.subr.bf16.mxu0 0
        %6853 = vmatpush1.bf16.msra.mxu0 %v6753
        %6854 = vmatprep.subr.bf16.mxu0 0
        %6855 = vmatpush1.bf16.msra.mxu0 %v6754
        %6856 = vmatprep.subr.bf16.mxu0 0
        %6857 = vmatpush1.bf16.msra.mxu0 %v6755
        %6858 = vmatprep.subr.bf16.mxu0 0
        %6859 = vmatpush1.bf16.msra.mxu0 %v6756
        %6860 = vmatprep.subr.bf16.mxu0 0
        %6861 = vmatpush1.bf16.msra.mxu0 %v6757
        %6862 = vmatprep.mubr.bf16.mxu0 %v6574
        %6863 = vmatmul.mubr.bf16.gmra.mrb[0].mxu0 %v6573
        %v6864 = vpop.f32.mrb[0].mxu0
        %v6865 = vadd.f32 0.0, %v6864
        %v6866 = vpop.f32.mrb[0].mxu0
        %v6867 = vpop.f32.mrb[0].mxu0
        %v6868 = vadd.f32 0.0, %v6867
        %v6869 = vpop.f32.mrb[0].mxu0
        %6870 = vmatprep.mubr.bf16.mxu0 %v6577
        %6871 = vmatmul.mubr.bf16.gmra.mrb[0].mxu0 %v6576
        %v6872 = vpop.f32.mrb[0].mxu0
        %v6873 = vadd.f32 0.0, %v6872
        %v6874 = vpop.f32.mrb[0].mxu0
        %v6875 = vpop.f32.mrb[0].mxu0
        %v6876 = vadd.f32 0.0, %v6875
        %v6877 = vpop.f32.mrb[0].mxu0
        %6878 = vmatprep.mubr.bf16.mxu0 %v6580
        %6879 = vmatmul.mubr.bf16.gmra.mrb[0].mxu0 %v6579
        %v6880 = vpop.f32.mrb[0].mxu0
        %v6881 = vadd.f32 0.0, %v6880
        %v6882 = vpop.f32.mrb[0].mxu0
        %v6883 = vpop.f32.mrb[0].mxu0
        %v6884 = vadd.f32 0.0, %v6883
        %v6885 = vpop.f32.mrb[0].mxu0
        %6886 = vmatprep.mubr.bf16.mxu0 %v6583
        %6887 = vmatmul.mubr.bf16.gmra.mrb[0].mxu0 %v6582
        %v6888 = vpop.f32.mrb[0].mxu0
        %v6889 = vadd.f32 0.0, %v6888
        %v6890 = vpop.f32.mrb[0].mxu0
        %v6891 = vpop.f32.mrb[0].mxu0
        %v6892 = vadd.f32 0.0, %v6891
        %v6893 = vpop.f32.mrb[0].mxu0
        %6894 = vmatprep.mubr.bf16.mxu0 %v6586
        %6895 = vmatmul.mubr.bf16.gmra.mrb[0].mxu0 %v6585
        %v6896 = vpop.f32.mrb[0].mxu0
        %v6897 = vadd.f32 0.0, %v6896
        %v6898 = vpop.f32.mrb[0].mxu0
        %v6899 = vpop.f32.mrb[0].mxu0
        %v6900 = vadd.f32 0.0, %v6899
        %v6901 = vpop.f32.mrb[0].mxu0
        %6902 = vmatprep.mubr.bf16.mxu0 %v6589
        %6903 = vmatmul.mubr.bf16.gmra.mrb[0].mxu0 %v6588
        %v6904 = vpop.f32.mrb[0].mxu0
        %v6905 = vadd.f32 0.0, %v6904
        %v6906 = vpop.f32.mrb[0].mxu0
        %v6907 = vpop.f32.mrb[0].mxu0
        %v6908 = vadd.f32 0.0, %v6907
        %v6909 = vpop.f32.mrb[0].mxu0
        %6910 = vmatprep.mubr.bf16.mxu0 %v6592
        %6911 = vmatmul.mubr.bf16.gmra.mrb[0].mxu0 %v6591
        %v6912 = vpop.f32.mrb[0].mxu0
        %v6913 = vadd.f32 0.0, %v6912
        %v6914 = vpop.f32.mrb[0].mxu0
        %v6915 = vpop.f32.mrb[0].mxu0
        %v6916 = vadd.f32 0.0, %v6915
        %v6917 = vpop.f32.mrb[0].mxu0
        %6918 = vmatprep.mubr.bf16.mxu0 %v6595
        %6919 = vmatmul.mubr.bf16.gmra.mrb[0].mxu0 %v6594
        %v6920 = vpop.f32.mrb[0].mxu0
        %v6921 = vadd.f32 0.0, %v6920
        %v6922 = vpop.f32.mrb[0].mxu0
        %v6923 = vpop.f32.mrb[0].mxu0
        %v6924 = vadd.f32 0.0, %v6923
        %v6925 = vpop.f32.mrb[0].mxu0
        %6926 = vmatprep.mubr.bf16.mxu0 %v6598
        %6927 = vmatmul.mubr.bf16.gmra.mrb[0].mxu0 %v6597
        %v6928 = vpop.f32.mrb[0].mxu0
        %v6929 = vadd.f32 0.0, %v6928
        %v6930 = vpop.f32.mrb[0].mxu0
        %v6931 = vpop.f32.mrb[0].mxu0
        %v6932 = vadd.f32 0.0, %v6931
        %v6933 = vpop.f32.mrb[0].mxu0
        %6934 = vmatprep.mubr.bf16.mxu0 %v6601
        %6935 = vmatmul.mubr.bf16.gmra.mrb[0].mxu0 %v6600
        %v6936 = vpop.f32.mrb[0].mxu0
        %v6937 = vadd.f32 0.0, %v6936
        %v6938 = vpop.f32.mrb[0].mxu0
        %v6939 = vpop.f32.mrb[0].mxu0
        %v6940 = vadd.f32 0.0, %v6939
        %v6941 = vpop.f32.mrb[0].mxu0
        %6942 = vmatprep.mubr.bf16.mxu0 %v6604
        %6943 = vmatmul.mubr.bf16.gmra.mrb[0].mxu0 %v6603
        %v6944 = vpop.f32.mrb[0].mxu0
        %v6945 = vadd.f32 0.0, %v6944
        %v6946 = vpop.f32.mrb[0].mxu0
        %v6947 = vpop.f32.mrb[0].mxu0
        %v6948 = vadd.f32 0.0, %v6947
        %v6949 = vpop.f32.mrb[0].mxu0
        %6950 = vmatprep.mubr.bf16.mxu0 %v6607
        %6951 = vmatmul.mubr.bf16.gmra.mrb[0].mxu0 %v6606
        %v6952 = vpop.f32.mrb[0].mxu0
        %v6953 = vadd.f32 0.0, %v6952
        %v6954 = vpop.f32.mrb[0].mxu0
        %v6955 = vpop.f32.mrb[0].mxu0
        %v6956 = vadd.f32 0.0, %v6955
        %v6957 = vpop.f32.mrb[0].mxu0
        %6958 = vmatprep.mubr.bf16.mxu0 %v6610
        %6959 = vmatmul.mubr.bf16.gmra.mrb[0].mxu0 %v6609
        %v6960 = vpop.f32.mrb[0].mxu0
        %v6961 = vadd.f32 0.0, %v6960
        %v6962 = vpop.f32.mrb[0].mxu0
        %v6963 = vpop.f32.mrb[0].mxu0
        %v6964 = vadd.f32 0.0, %v6963
        %v6965 = vpop.f32.mrb[0].mxu0
        %6966 = vmatprep.mubr.bf16.mxu0 %v6613
        %6967 = vmatmul.mubr.bf16.gmra.mrb[0].mxu0 %v6612
        %v6968 = vpop.f32.mrb[0].mxu0
        %v6969 = vadd.f32 0.0, %v6968
        %v6970 = vpop.f32.mrb[0].mxu0
        %v6971 = vpop.f32.mrb[0].mxu0
        %v6972 = vadd.f32 0.0, %v6971
        %v6973 = vpop.f32.mrb[0].mxu0
        %6974 = vmatprep.mubr.bf16.mxu0 %v6616
        %6975 = vmatmul.mubr.bf16.gmra.mrb[0].mxu0 %v6615
        %v6976 = vpop.f32.mrb[0].mxu0
        %v6977 = vadd.f32 0.0, %v6976
        %v6978 = vpop.f32.mrb[0].mxu0
        %v6979 = vpop.f32.mrb[0].mxu0
        %v6980 = vadd.f32 0.0, %v6979
        %v6981 = vpop.f32.mrb[0].mxu0
        %6982 = vmatprep.mubr.bf16.mxu0 %v6619
        %6983 = vmatmul.mubr.bf16.gmra.mrb[0].mxu0 %v6618
        %v6984 = vpop.f32.mrb[0].mxu0
        %v6985 = vadd.f32 0.0, %v6984
        %v6986 = vpop.f32.mrb[0].mxu0
        %v6987 = vpop.f32.mrb[0].mxu0
        %v6988 = vadd.f32 0.0, %v6987
        %v6989 = vpop.f32.mrb[0].mxu0
        %6990 = vdwg.mxu0
        %6991 = vmatprep.subr.bf16.mxu0 0
        %6992 = vmatpush1.bf16.msra.mxu0 %v6758
        %6993 = vmatprep.subr.bf16.mxu0 0
        %6994 = vmatpush1.bf16.msra.mxu0 %v6759
        %6995 = vmatprep.subr.bf16.mxu0 0
        %6996 = vmatpush1.bf16.msra.mxu0 %v6760
        %6997 = vmatprep.subr.bf16.mxu0 0
        %6998 = vmatpush1.bf16.msra.mxu0 %v6761
        %6999 = vmatprep.subr.bf16.mxu0 0
        %7000 = vmatpush1.bf16.msra.mxu0 0
        %7001 = vmatprep.subr.bf16.mxu0 0
        %7002 = vmatpush1.bf16.msra.mxu0 0
        %7003 = vmatprep.subr.bf16.mxu0 0
        %7004 = vmatpush1.bf16.msra.mxu0 0
        %7005 = vmatprep.subr.bf16.mxu0 0
        %7006 = vmatpush1.bf16.msra.mxu0 0
        %7007 = vmatprep.subr.bf16.mxu0 0
        %7008 = vmatpush1.bf16.msra.mxu0 0
        %7009 = vmatprep.subr.bf16.mxu0 0
        %7010 = vmatpush1.bf16.msra.mxu0 0
        %7011 = vmatprep.subr.bf16.mxu0 0
        %7012 = vmatpush1.bf16.msra.mxu0 0
        %7013 = vmatprep.subr.bf16.mxu0 0
        %7014 = vmatpush1.bf16.msra.mxu0 0
        %7015 = vmatprep.subr.bf16.mxu0 0
        %7016 = vmatpush1.bf16.msra.mxu0 0
        %7017 = vmatprep.subr.bf16.mxu0 0
        %7018 = vmatpush1.bf16.msra.mxu0 0
        %7019 = vmatprep.subr.bf16.mxu0 0
        %7020 = vmatpush1.bf16.msra.mxu0 0
        %7021 = vmatprep.subr.bf16.mxu0 0
        %7022 = vmatpush1.bf16.msra.mxu0 0
        %7023 = vmatprep.mubr.bf16.mxu0 0
        %7024 = vmatmul.mubr.bf16.gmra.mrb[0].mxu0 %v6783
        %v7025 = vpop.f32.mrb[0].mxu0
        %v7026 = vadd.f32 %v6865, %v7025
        %v7027 = vpop.f32.mrb[0].mxu0
        %v7028 = vpop.f32.mrb[0].mxu0
        %v7029 = vadd.f32 %v6868, %v7028
        %v7030 = vpop.f32.mrb[0].mxu0
        %7031 = vmatprep.mubr.bf16.mxu0 0
        %7032 = vmatmul.mubr.bf16.gmra.mrb[0].mxu0 %v6786
        %v7033 = vpop.f32.mrb[0].mxu0
        %v7034 = vadd.f32 %v6873, %v7033
        %v7035 = vpop.f32.mrb[0].mxu0
        %v7036 = vpop.f32.mrb[0].mxu0
        %v7037 = vadd.f32 %v6876, %v7036
        %v7038 = vpop.f32.mrb[0].mxu0
        %7039 = vmatprep.mubr.bf16.mxu0 0
        %7040 = vmatmul.mubr.bf16.gmra.mrb[0].mxu0 %v6789
        %v7041 = vpop.f32.mrb[0].mxu0
        %v7042 = vadd.f32 %v6881, %v7041
        %v7043 = vpop.f32.mrb[0].mxu0
        %v7044 = vpop.f32.mrb[0].mxu0
        %v7045 = vadd.f32 %v6884, %v7044
        %v7046 = vpop.f32.mrb[0].mxu0
        %7047 = vmatprep.mubr.bf16.mxu0 0
        %7048 = vmatmul.mubr.bf16.gmra.mrb[0].mxu0 %v6792
        %v7049 = vpop.f32.mrb[0].mxu0
        %v7050 = vadd.f32 %v6889, %v7049
        %v7051 = vpop.f32.mrb[0].mxu0
        %v7052 = vpop.f32.mrb[0].mxu0
        %v7053 = vadd.f32 %v6892, %v7052
        %v7054 = vpop.f32.mrb[0].mxu0
        %7055 = vmatprep.mubr.bf16.mxu0 0
        %7056 = vmatmul.mubr.bf16.gmra.mrb[0].mxu0 %v6795
        %v7057 = vpop.f32.mrb[0].mxu0
        %v7058 = vadd.f32 %v6897, %v7057
        %v7059 = vpop.f32.mrb[0].mxu0
        %v7060 = vpop.f32.mrb[0].mxu0
        %v7061 = vadd.f32 %v6900, %v7060
        %v7062 = vpop.f32.mrb[0].mxu0
        %7063 = vmatprep.mubr.bf16.mxu0 0
        %7064 = vmatmul.mubr.bf16.gmra.mrb[0].mxu0 %v6798
        %v7065 = vpop.f32.mrb[0].mxu0
        %v7066 = vadd.f32 %v6905, %v7065
        %v7067 = vpop.f32.mrb[0].mxu0
        %v7068 = vpop.f32.mrb[0].mxu0
        %v7069 = vadd.f32 %v6908, %v7068
        %v7070 = vpop.f32.mrb[0].mxu0
        %7071 = vmatprep.mubr.bf16.mxu0 0
        %7072 = vmatmul.mubr.bf16.gmra.mrb[0].mxu0 %v6801
        %v7073 = vpop.f32.mrb[0].mxu0
        %v7074 = vadd.f32 %v6913, %v7073
        %v7075 = vpop.f32.mrb[0].mxu0
        %v7076 = vpop.f32.mrb[0].mxu0
        %v7077 = vadd.f32 %v6916, %v7076
        %v7078 = vpop.f32.mrb[0].mxu0
        %7079 = vmatprep.mubr.bf16.mxu0 0
        %7080 = vmatmul.mubr.bf16.gmra.mrb[0].mxu0 %v6804
        %v7081 = vpop.f32.mrb[0].mxu0
        %v7082 = vadd.f32 %v6921, %v7081
        %v7083 = vpop.f32.mrb[0].mxu0
        %v7084 = vpop.f32.mrb[0].mxu0
        %v7085 = vadd.f32 %v6924, %v7084
        %v7086 = vpop.f32.mrb[0].mxu0
        %7087 = vmatprep.mubr.bf16.mxu0 0
        %7088 = vmatmul.mubr.bf16.gmra.mrb[0].mxu0 %v6807
        %v7089 = vpop.f32.mrb[0].mxu0
        %v7090 = vadd.f32 %v6929, %v7089
        %v7091 = vpop.f32.mrb[0].mxu0
        %v7092 = vpop.f32.mrb[0].mxu0
        %v7093 = vadd.f32 %v6932, %v7092
        %v7094 = vpop.f32.mrb[0].mxu0
        %7095 = vmatprep.mubr.bf16.mxu0 0
        %7096 = vmatmul.mubr.bf16.gmra.mrb[0].mxu0 %v6810
        %v7097 = vpop.f32.mrb[0].mxu0
        %v7098 = vadd.f32 %v6937, %v7097
        %v7099 = vpop.f32.mrb[0].mxu0
        %v7100 = vpop.f32.mrb[0].mxu0
        %v7101 = vadd.f32 %v6940, %v7100
        %v7102 = vpop.f32.mrb[0].mxu0
        %7103 = vmatprep.mubr.bf16.mxu0 0
        %7104 = vmatmul.mubr.bf16.gmra.mrb[0].mxu0 %v6813
        %v7105 = vpop.f32.mrb[0].mxu0
        %v7106 = vadd.f32 %v6945, %v7105
        %v7107 = vpop.f32.mrb[0].mxu0
        %v7108 = vpop.f32.mrb[0].mxu0
        %v7109 = vadd.f32 %v6948, %v7108
        %v7110 = vpop.f32.mrb[0].mxu0
        %7111 = vmatprep.mubr.bf16.mxu0 0
        %7112 = vmatmul.mubr.bf16.gmra.mrb[0].mxu0 %v6816
        %v7113 = vpop.f32.mrb[0].mxu0
        %v7114 = vadd.f32 %v6953, %v7113
        %v7115 = vpop.f32.mrb[0].mxu0
        %v7116 = vpop.f32.mrb[0].mxu0
        %v7117 = vadd.f32 %v6956, %v7116
        %v7118 = vpop.f32.mrb[0].mxu0
        %7119 = vmatprep.mubr.bf16.mxu0 0
        %7120 = vmatmul.mubr.bf16.gmra.mrb[0].mxu0 %v6819
        %v7121 = vpop.f32.mrb[0].mxu0
        %v7122 = vadd.f32 %v6961, %v7121
        %v7123 = vpop.f32.mrb[0].mxu0
        %v7124 = vpop.f32.mrb[0].mxu0
        %v7125 = vadd.f32 %v6964, %v7124
        %v7126 = vpop.f32.mrb[0].mxu0
        %7127 = vmatprep.mubr.bf16.mxu0 0
        %7128 = vmatmul.mubr.bf16.gmra.mrb[0].mxu0 %v6822
        %v7129 = vpop.f32.mrb[0].mxu0
        %v7130 = vadd.f32 %v6969, %v7129
        %v7131 = vpop.f32.mrb[0].mxu0
        %v7132 = vpop.f32.mrb[0].mxu0
        %v7133 = vadd.f32 %v6972, %v7132
        %v7134 = vpop.f32.mrb[0].mxu0
        %7135 = vmatprep.mubr.bf16.mxu0 0
        %7136 = vmatmul.mubr.bf16.gmra.mrb[0].mxu0 %v6825
        %v7137 = vpop.f32.mrb[0].mxu0
        %v7138 = vadd.f32 %v6977, %v7137
        %v7139 = vpop.f32.mrb[0].mxu0
        %v7140 = vpop.f32.mrb[0].mxu0
        %v7141 = vadd.f32 %v6980, %v7140
        %v7142 = vpop.f32.mrb[0].mxu0
        %7143 = vmatprep.mubr.bf16.mxu0 0
        %7144 = vmatmul.mubr.bf16.gmra.mrb[0].mxu0 %v6828
        %v7145 = vpop.f32.mrb[0].mxu0
        %v7146 = vadd.f32 %v6985, %v7145
        %v7147 = vpop.f32.mrb[0].mxu0
        %v7148 = vpop.f32.mrb[0].mxu0
        %v7149 = vadd.f32 %v6988, %v7148
        %v7150 = vpop.f32.mrb[0].mxu0
        %7151 = vdwg.mxu0
        %v7152 = vadd.f32 %v6536, %v7026
        %v7153 = vadd.f32 %v6537, %v7029
        %v7154 = vadd.f32 %v6538, %v7034
        %v7155 = vadd.f32 %v6539, %v7037
        %v7156 = vadd.f32 %v6540, %v7042
        %v7157 = vadd.f32 %v6541, %v7045
        %v7158 = vadd.f32 %v6542, %v7050
        %v7159 = vadd.f32 %v6543, %v7053
        %v7160 = vadd.f32 %v6544, %v7058
        %v7161 = vadd.f32 %v6545, %v7061
        %v7162 = vadd.f32 %v6546, %v7066
        %v7163 = vadd.f32 %v6547, %v7069
        %v7164 = vadd.f32 %v6548, %v7074
        %v7165 = vadd.f32 %v6549, %v7077
        %v7166 = vadd.f32 %v6550, %v7082
        %v7167 = vadd.f32 %v6551, %v7085
        %v7168 = vadd.f32 %v6552, %v7090
        %v7169 = vadd.f32 %v6553, %v7093
        %v7170 = vadd.f32 %v6554, %v7098
        %v7171 = vadd.f32 %v6555, %v7101
        %v7172 = vadd.f32 %v6556, %v7106
        %v7173 = vadd.f32 %v6557, %v7109
        %v7174 = vadd.f32 %v6558, %v7114
        %v7175 = vadd.f32 %v6559, %v7117
        %v7176 = vadd.f32 %v6560, %v7122
        %v7177 = vadd.f32 %v6561, %v7125
        %v7178 = vadd.f32 %v6562, %v7130
        %v7179 = vadd.f32 %v6563, %v7133
        %v7180 = vadd.f32 %v6564, %v7138
        %v7181 = vadd.f32 %v6565, %v7141
        %v7182 = vadd.f32 %v6566, %v7146
        %v7183 = vadd.f32 %v6567, %v7149
        %s7184 = sadd.s32 %s4784, 4
        %s7185 = smul.u32 %s7184, 6
        %s7186 = sadd.s32 %s7185, 216
        %s7187 = smul.addr %s7186, 8
        %s7188 = scalar_lea.vmem [#allocation2], %s7187
        %v7189 = vld [vmem:[%s7188] sm:$0xff]
        %v7190 = vld [vmem:[%s7188 + $0x8] sm:$0xff]
        %v7191 = vld [vmem:[%s7188 + $0x10] sm:$0xff]
        %v7192 = vld [vmem:[%s7188 + $0x18] sm:$0xff]
        %v7193 = vld [vmem:[%s7188 + $0x20] sm:$0xff]
        %v7194 = vld [vmem:[%s7188 + $0x28] sm:$0xff]
        %v7195 = vld [vmem:[%s7188 + $0x30] sm:$0xff]
        %v7196 = vld [vmem:[%s7188 + $0x38] sm:$0xff]
        %v7197 = vld [vmem:[%s7188 + $0x40] sm:$0xff]
        %v7198 = vld [vmem:[%s7188 + $0x48] sm:$0xff]
        %v7199 = vld [vmem:[%s7188 + $0x50] sm:$0xff]
        %v7200 = vld [vmem:[%s7188 + $0x58] sm:$0xff]
        %v7201 = vld [vmem:[%s7188 + $0x60] sm:$0xff]
        %v7202 = vld [vmem:[%s7188 + $0x68] sm:$0xff]
        %v7203 = vld [vmem:[%s7188 + $0x70] sm:$0xff]
        %v7204 = vld [vmem:[%s7188 + $0x78] sm:$0xff]
        %v7205 = vld [vmem:[%s7188 + $0x80] sm:$0xff]
        %v7206 = vld [vmem:[%s7188 + $0x88] sm:$0xff]
        %v7207 = vld [vmem:[%s7188 + $0x90] sm:$0xff]
        %v7208 = vld [vmem:[%s7188 + $0x98] sm:$0xff]
        %v7209 = vld [vmem:[%s7188 + $0xa0] sm:$0xff]
        %v7210 = vld [vmem:[%s7188 + $0xa8] sm:$0xff]
        %v7211 = vld [vmem:[%s7188 + $0xb0] sm:$0xff]
        %v7212 = vld [vmem:[%s7188 + $0xb8] sm:$0xff]
        %v7213 = vld [vmem:[%s7188 + $0xc0] sm:$0xff]
        %v7214 = vld [vmem:[%s7188 + $0xc8] sm:$0xff]
        %v7215 = vld [vmem:[%s7188 + $0xd0] sm:$0xff]
        %v7216 = vld [vmem:[%s7188 + $0xd8] sm:$0xff]
        %v7217 = vld [vmem:[%s7188 + $0xe0] sm:$0xff]
        %v7218 = vld [vmem:[%s7188 + $0xe8] sm:$0xff]
        %v7219 = vld [vmem:[%s7188 + $0xf0] sm:$0xff]
        %v7220 = vld [vmem:[%s7188 + $0xf8] sm:$0xff]
        %v7221 = vld [vmem:[%s7188 + $0x100] sm:$0xff]
        %v7222 = vld [vmem:[%s7188 + $0x108] sm:$0xff]
        %v7223 = vld [vmem:[%s7188 + $0x110] sm:$0xff]
        %v7224 = vld [vmem:[%s7188 + $0x118] sm:$0xff]
        %v7225 = vld [vmem:[%s7188 + $0x120] sm:$0xff]
        %v7226 = vld [vmem:[%s7188 + $0x128] sm:$0xff]
        %v7227 = vld [vmem:[%s7188 + $0x130] sm:$0xff]
        %v7228 = vld [vmem:[%s7188 + $0x138] sm:$0xff]
        %v7229 = vld [vmem:[%s7188 + $0x140] sm:$0xff]
        %v7230 = vld [vmem:[%s7188 + $0x148] sm:$0xff]
        %v7231 = vld [vmem:[%s7188 + $0x150] sm:$0xff]
        %v7232 = vld [vmem:[%s7188 + $0x158] sm:$0xff]
        %v7233 = vld [vmem:[%s7188 + $0x160] sm:$0xff]
        %v7234 = vld [vmem:[%s7188 + $0x168] sm:$0xff]
        %v7235 = vld [vmem:[%s7188 + $0x170] sm:$0xff]
        %v7236 = vld [vmem:[%s7188 + $0x178] sm:$0xff]
        %s7237 = scalar_lea.vmem %s1, 6240
        %v7238 = vld [vmem:[%s7237] sm:$0xf]
        %v7239 = vld [vmem:[%s7237 + $0x4] sm:$0xf]
        %v7240 = vld [vmem:[%s7237 + $0x8] sm:$0xf]
        %v7241 = vld [vmem:[%s7237 + $0xc] sm:$0xf]
        %v7242 = vld [vmem:[%s7237 + $0x10] sm:$0xf]
        %v7243 = vld [vmem:[%s7237 + $0x14] sm:$0xf]
        %v7244 = vld [vmem:[%s7237 + $0x18] sm:$0xf]
        %v7245 = vld [vmem:[%s7237 + $0x1c] sm:$0xf]
        %v7246 = vld [vmem:[%s7237 + $0x20] sm:$0xf]
        %v7247 = vld [vmem:[%s7237 + $0x24] sm:$0xf]
        %v7248 = vld [vmem:[%s7237 + $0x28] sm:$0xf]
        %v7249 = vld [vmem:[%s7237 + $0x2c] sm:$0xf]
        %v7250 = vld [vmem:[%s7237 + $0x30] sm:$0xf]
        %v7251 = vld [vmem:[%s7237 + $0x34] sm:$0xf]
        %v7252 = vld [vmem:[%s7237 + $0x38] sm:$0xf]
        %v7253 = vld [vmem:[%s7237 + $0x3c] sm:$0xf]
        %v7254 = vld [vmem:[%s7237 + $0x40] sm:$0xf]
        %v7255 = vld [vmem:[%s7237 + $0x44] sm:$0xf]
        %v7256 = vld [vmem:[%s7237 + $0x48] sm:$0xf]
        %v7257 = vld [vmem:[%s7237 + $0x4c] sm:$0xf]
        %v7258 = vld [vmem:[%s7237 + $0x50] sm:$0xf]
        %v7259 = vld [vmem:[%s7237 + $0x54] sm:$0xf]
        %v7260 = vld [vmem:[%s7237 + $0x58] sm:$0xf]
        %v7261 = vld [vmem:[%s7237 + $0x5c] sm:$0xf]
        %v7262 = vld [vmem:[%s7237 + $0x60] sm:$0xf]
        %v7263 = vld [vmem:[%s7237 + $0x64] sm:$0xf]
        %v7264 = vld [vmem:[%s7237 + $0x68] sm:$0xf]
        %v7265 = vld [vmem:[%s7237 + $0x6c] sm:$0xf]
        %v7266 = vld [vmem:[%s7237 + $0x70] sm:$0xf]
        %v7267 = vld [vmem:[%s7237 + $0x74] sm:$0xf]
        %v7268 = vld [vmem:[%s7237 + $0x78] sm:$0xf]
        %v7269 = vld [vmem:[%s7237 + $0x7c] sm:$0xf]
        %v7270 = vld [vmem:[%s7237 + $0x80] sm:$0xf]
        %v7271 = vld [vmem:[%s7237 + $0x84] sm:$0xf]
        %v7272 = vld [vmem:[%s7237 + $0x88] sm:$0xf]
        %v7273 = vld [vmem:[%s7237 + $0x8c] sm:$0xf]
        %v7274 = vld [vmem:[%s7237 + $0x90] sm:$0xf]
        %v7275 = vld [vmem:[%s7237 + $0x94] sm:$0xf]
        %v7276 = vld [vmem:[%s7237 + $0x98] sm:$0xf]
        %v7277 = vld [vmem:[%s7237 + $0x9c] sm:$0xf]
        %v7318 = vunpack.c.l.b16 %v7238
        %v7319 = vunpack.c.l.b16 %v7239
        %v7320 = vunpack.c.l.b16 %v7240
        %v7321 = vunpack.c.l.b16 %v7241
        %v7322 = vunpack.c.l.b16 %v7242
        %v7323 = vunpack.c.l.b16 %v7243
        %v7324 = vunpack.c.l.b16 %v7244
        %v7325 = vunpack.c.l.b16 %v7245
        %v7326 = vunpack.c.l.b16 %v7246
        %v7327 = vunpack.c.l.b16 %v7247
        %v7328 = vunpack.c.l.b16 %v7248
        %v7329 = vunpack.c.l.b16 %v7249
        %v7330 = vunpack.c.l.b16 %v7250
        %v7331 = vunpack.c.l.b16 %v7251
        %v7332 = vunpack.c.l.b16 %v7252
        %v7333 = vunpack.c.l.b16 %v7253
        %v7334 = vunpack.c.l.b16 %v7254
        %v7335 = vunpack.c.l.b16 %v7255
        %v7336 = vunpack.c.l.b16 %v7256
        %v7337 = vunpack.c.l.b16 %v7257
        %v7338 = vunpack.c.l.b16 %v7258
        %v7339 = vunpack.c.l.b16 %v7259
        %v7340 = vunpack.c.l.b16 %v7260
        %v7341 = vunpack.c.l.b16 %v7261
        %v7342 = vunpack.c.l.b16 %v7262
        %v7343 = vunpack.c.l.b16 %v7263
        %v7344 = vunpack.c.l.b16 %v7264
        %v7345 = vunpack.c.l.b16 %v7265
        %v7346 = vunpack.c.l.b16 %v7266
        %v7347 = vunpack.c.l.b16 %v7267
        %v7348 = vunpack.c.l.b16 %v7268
        %v7349 = vunpack.c.l.b16 %v7269
        %v7350 = vunpack.c.l.b16 %v7270
        %v7351 = vunpack.c.l.b16 %v7271
        %v7352 = vunpack.c.l.b16 %v7272
        %v7353 = vunpack.c.l.b16 %v7273
        %v7354 = vunpack.c.l.b16 %v7274
        %v7355 = vunpack.c.l.b16 %v7275
        %v7356 = vunpack.c.l.b16 %v7276
        %v7357 = vunpack.c.l.b16 %v7277
        %v7358 = vpack.c.b16 %v7319, %v7318
        %v7359 = vpack.c.b16 %v7321, %v7320
        %v7360 = vpack.c.b16 %v7323, %v7322
        %v7361 = vpack.c.b16 %v7325, %v7324
        %v7362 = vpack.c.b16 %v7327, %v7326
        %v7363 = vpack.c.b16 %v7329, %v7328
        %v7364 = vpack.c.b16 %v7331, %v7330
        %v7365 = vpack.c.b16 %v7333, %v7332
        %v7366 = vpack.c.b16 %v7335, %v7334
        %v7367 = vpack.c.b16 %v7337, %v7336
        %v7368 = vpack.c.b16 %v7339, %v7338
        %v7369 = vpack.c.b16 %v7341, %v7340
        %v7370 = vpack.c.b16 %v7343, %v7342
        %v7371 = vpack.c.b16 %v7345, %v7344
        %v7372 = vpack.c.b16 %v7347, %v7346
        %v7373 = vpack.c.b16 %v7349, %v7348
        %v7374 = vpack.c.b16 %v7351, %v7350
        %v7375 = vpack.c.b16 %v7353, %v7352
        %v7376 = vpack.c.b16 %v7355, %v7354
        %v7377 = vpack.c.b16 %v7357, %v7356
        %v7399 = vsel %vm954, %v7191, 0
        %v7402 = vsel %vm954, %v7194, 0
        %v7405 = vsel %vm954, %v7197, 0
        %v7408 = vsel %vm954, %v7200, 0
        %v7411 = vsel %vm954, %v7203, 0
        %v7414 = vsel %vm954, %v7206, 0
        %v7417 = vsel %vm954, %v7209, 0
        %v7420 = vsel %vm954, %v7212, 0
        %v7423 = vsel %vm954, %v7215, 0
        %v7426 = vsel %vm954, %v7218, 0
        %v7429 = vsel %vm954, %v7221, 0
        %v7432 = vsel %vm954, %v7224, 0
        %v7435 = vsel %vm954, %v7227, 0
        %v7438 = vsel %vm954, %v7230, 0
        %v7441 = vsel %vm954, %v7233, 0
        %v7444 = vsel %vm954, %v7236, 0
        %7446 = vmatprep.subr.bf16.mxu0 0
        %7447 = vmatpush1.bf16.msra.mxu0 %v7358
        %7448 = vmatprep.subr.bf16.mxu0 0
        %7449 = vmatpush1.bf16.msra.mxu0 %v7359
        %7450 = vmatprep.subr.bf16.mxu0 0
        %7451 = vmatpush1.bf16.msra.mxu0 %v7360
        %7452 = vmatprep.subr.bf16.mxu0 0
        %7453 = vmatpush1.bf16.msra.mxu0 %v7361
        %7454 = vmatprep.subr.bf16.mxu0 0
        %7455 = vmatpush1.bf16.msra.mxu0 %v7362
        %7456 = vmatprep.subr.bf16.mxu0 0
        %7457 = vmatpush1.bf16.msra.mxu0 %v7363
        %7458 = vmatprep.subr.bf16.mxu0 0
        %7459 = vmatpush1.bf16.msra.mxu0 %v7364
        %7460 = vmatprep.subr.bf16.mxu0 0
        %7461 = vmatpush1.bf16.msra.mxu0 %v7365
        %7462 = vmatprep.subr.bf16.mxu0 0
        %7463 = vmatpush1.bf16.msra.mxu0 %v7366
        %7464 = vmatprep.subr.bf16.mxu0 0
        %7465 = vmatpush1.bf16.msra.mxu0 %v7367
        %7466 = vmatprep.subr.bf16.mxu0 0
        %7467 = vmatpush1.bf16.msra.mxu0 %v7368
        %7468 = vmatprep.subr.bf16.mxu0 0
        %7469 = vmatpush1.bf16.msra.mxu0 %v7369
        %7470 = vmatprep.subr.bf16.mxu0 0
        %7471 = vmatpush1.bf16.msra.mxu0 %v7370
        %7472 = vmatprep.subr.bf16.mxu0 0
        %7473 = vmatpush1.bf16.msra.mxu0 %v7371
        %7474 = vmatprep.subr.bf16.mxu0 0
        %7475 = vmatpush1.bf16.msra.mxu0 %v7372
        %7476 = vmatprep.subr.bf16.mxu0 0
        %7477 = vmatpush1.bf16.msra.mxu0 %v7373
        %7478 = vmatprep.mubr.bf16.mxu0 %v7190
        %7479 = vmatmul.mubr.bf16.gmra.mrb[0].mxu0 %v7189
        %v7480 = vpop.f32.mrb[0].mxu0
        %v7481 = vadd.f32 0.0, %v7480
        %v7482 = vpop.f32.mrb[0].mxu0
        %v7483 = vpop.f32.mrb[0].mxu0
        %v7484 = vadd.f32 0.0, %v7483
        %v7485 = vpop.f32.mrb[0].mxu0
        %7486 = vmatprep.mubr.bf16.mxu0 %v7193
        %7487 = vmatmul.mubr.bf16.gmra.mrb[0].mxu0 %v7192
        %v7488 = vpop.f32.mrb[0].mxu0
        %v7489 = vadd.f32 0.0, %v7488
        %v7490 = vpop.f32.mrb[0].mxu0
        %v7491 = vpop.f32.mrb[0].mxu0
        %v7492 = vadd.f32 0.0, %v7491
        %v7493 = vpop.f32.mrb[0].mxu0
        %7494 = vmatprep.mubr.bf16.mxu0 %v7196
        %7495 = vmatmul.mubr.bf16.gmra.mrb[0].mxu0 %v7195
        %v7496 = vpop.f32.mrb[0].mxu0
        %v7497 = vadd.f32 0.0, %v7496
        %v7498 = vpop.f32.mrb[0].mxu0
        %v7499 = vpop.f32.mrb[0].mxu0
        %v7500 = vadd.f32 0.0, %v7499
        %v7501 = vpop.f32.mrb[0].mxu0
        %7502 = vmatprep.mubr.bf16.mxu0 %v7199
        %7503 = vmatmul.mubr.bf16.gmra.mrb[0].mxu0 %v7198
        %v7504 = vpop.f32.mrb[0].mxu0
        %v7505 = vadd.f32 0.0, %v7504
        %v7506 = vpop.f32.mrb[0].mxu0
        %v7507 = vpop.f32.mrb[0].mxu0
        %v7508 = vadd.f32 0.0, %v7507
        %v7509 = vpop.f32.mrb[0].mxu0
        %7510 = vmatprep.mubr.bf16.mxu0 %v7202
        %7511 = vmatmul.mubr.bf16.gmra.mrb[0].mxu0 %v7201
        %v7512 = vpop.f32.mrb[0].mxu0
        %v7513 = vadd.f32 0.0, %v7512
        %v7514 = vpop.f32.mrb[0].mxu0
        %v7515 = vpop.f32.mrb[0].mxu0
        %v7516 = vadd.f32 0.0, %v7515
        %v7517 = vpop.f32.mrb[0].mxu0
        %7518 = vmatprep.mubr.bf16.mxu0 %v7205
        %7519 = vmatmul.mubr.bf16.gmra.mrb[0].mxu0 %v7204
        %v7520 = vpop.f32.mrb[0].mxu0
        %v7521 = vadd.f32 0.0, %v7520
        %v7522 = vpop.f32.mrb[0].mxu0
        %v7523 = vpop.f32.mrb[0].mxu0
        %v7524 = vadd.f32 0.0, %v7523
        %v7525 = vpop.f32.mrb[0].mxu0
        %7526 = vmatprep.mubr.bf16.mxu0 %v7208
        %7527 = vmatmul.mubr.bf16.gmra.mrb[0].mxu0 %v7207
        %v7528 = vpop.f32.mrb[0].mxu0
        %v7529 = vadd.f32 0.0, %v7528
        %v7530 = vpop.f32.mrb[0].mxu0
        %v7531 = vpop.f32.mrb[0].mxu0
        %v7532 = vadd.f32 0.0, %v7531
        %v7533 = vpop.f32.mrb[0].mxu0
        %7534 = vmatprep.mubr.bf16.mxu0 %v7211
        %7535 = vmatmul.mubr.bf16.gmra.mrb[0].mxu0 %v7210
        %v7536 = vpop.f32.mrb[0].mxu0
        %v7537 = vadd.f32 0.0, %v7536
        %v7538 = vpop.f32.mrb[0].mxu0
        %v7539 = vpop.f32.mrb[0].mxu0
        %v7540 = vadd.f32 0.0, %v7539
        %v7541 = vpop.f32.mrb[0].mxu0
        %7542 = vmatprep.mubr.bf16.mxu0 %v7214
        %7543 = vmatmul.mubr.bf16.gmra.mrb[0].mxu0 %v7213
        %v7544 = vpop.f32.mrb[0].mxu0
        %v7545 = vadd.f32 0.0, %v7544
        %v7546 = vpop.f32.mrb[0].mxu0
        %v7547 = vpop.f32.mrb[0].mxu0
        %v7548 = vadd.f32 0.0, %v7547
        %v7549 = vpop.f32.mrb[0].mxu0
        %7550 = vmatprep.mubr.bf16.mxu0 %v7217
        %7551 = vmatmul.mubr.bf16.gmra.mrb[0].mxu0 %v7216
        %v7552 = vpop.f32.mrb[0].mxu0
        %v7553 = vadd.f32 0.0, %v7552
        %v7554 = vpop.f32.mrb[0].mxu0
        %v7555 = vpop.f32.mrb[0].mxu0
        %v7556 = vadd.f32 0.0, %v7555
        %v7557 = vpop.f32.mrb[0].mxu0
        %7558 = vmatprep.mubr.bf16.mxu0 %v7220
        %7559 = vmatmul.mubr.bf16.gmra.mrb[0].mxu0 %v7219
        %v7560 = vpop.f32.mrb[0].mxu0
        %v7561 = vadd.f32 0.0, %v7560
        %v7562 = vpop.f32.mrb[0].mxu0
        %v7563 = vpop.f32.mrb[0].mxu0
        %v7564 = vadd.f32 0.0, %v7563
        %v7565 = vpop.f32.mrb[0].mxu0
        %7566 = vmatprep.mubr.bf16.mxu0 %v7223
        %7567 = vmatmul.mubr.bf16.gmra.mrb[0].mxu0 %v7222
        %v7568 = vpop.f32.mrb[0].mxu0
        %v7569 = vadd.f32 0.0, %v7568
        %v7570 = vpop.f32.mrb[0].mxu0
        %v7571 = vpop.f32.mrb[0].mxu0
        %v7572 = vadd.f32 0.0, %v7571
        %v7573 = vpop.f32.mrb[0].mxu0
        %7574 = vmatprep.mubr.bf16.mxu0 %v7226
        %7575 = vmatmul.mubr.bf16.gmra.mrb[0].mxu0 %v7225
        %v7576 = vpop.f32.mrb[0].mxu0
        %v7577 = vadd.f32 0.0, %v7576
        %v7578 = vpop.f32.mrb[0].mxu0
        %v7579 = vpop.f32.mrb[0].mxu0
        %v7580 = vadd.f32 0.0, %v7579
        %v7581 = vpop.f32.mrb[0].mxu0
        %7582 = vmatprep.mubr.bf16.mxu0 %v7229
        %7583 = vmatmul.mubr.bf16.gmra.mrb[0].mxu0 %v7228
        %v7584 = vpop.f32.mrb[0].mxu0
        %v7585 = vadd.f32 0.0, %v7584
        %v7586 = vpop.f32.mrb[0].mxu0
        %v7587 = vpop.f32.mrb[0].mxu0
        %v7588 = vadd.f32 0.0, %v7587
        %v7589 = vpop.f32.mrb[0].mxu0
        %7590 = vmatprep.mubr.bf16.mxu0 %v7232
        %7591 = vmatmul.mubr.bf16.gmra.mrb[0].mxu0 %v7231
        %v7592 = vpop.f32.mrb[0].mxu0
        %v7593 = vadd.f32 0.0, %v7592
        %v7594 = vpop.f32.mrb[0].mxu0
        %v7595 = vpop.f32.mrb[0].mxu0
        %v7596 = vadd.f32 0.0, %v7595
        %v7597 = vpop.f32.mrb[0].mxu0
        %7598 = vmatprep.mubr.bf16.mxu0 %v7235
        %7599 = vmatmul.mubr.bf16.gmra.mrb[0].mxu0 %v7234
        %v7600 = vpop.f32.mrb[0].mxu0
        %v7601 = vadd.f32 0.0, %v7600
        %v7602 = vpop.f32.mrb[0].mxu0
        %v7603 = vpop.f32.mrb[0].mxu0
        %v7604 = vadd.f32 0.0, %v7603
        %v7605 = vpop.f32.mrb[0].mxu0
        %7606 = vdwg.mxu0
        %7607 = vmatprep.subr.bf16.mxu0 0
        %7608 = vmatpush1.bf16.msra.mxu0 %v7374
        %7609 = vmatprep.subr.bf16.mxu0 0
        %7610 = vmatpush1.bf16.msra.mxu0 %v7375
        %7611 = vmatprep.subr.bf16.mxu0 0
        %7612 = vmatpush1.bf16.msra.mxu0 %v7376
        %7613 = vmatprep.subr.bf16.mxu0 0
        %7614 = vmatpush1.bf16.msra.mxu0 %v7377
        %7615 = vmatprep.subr.bf16.mxu0 0
        %7616 = vmatpush1.bf16.msra.mxu0 0
        %7617 = vmatprep.subr.bf16.mxu0 0
        %7618 = vmatpush1.bf16.msra.mxu0 0
        %7619 = vmatprep.subr.bf16.mxu0 0
        %7620 = vmatpush1.bf16.msra.mxu0 0
        %7621 = vmatprep.subr.bf16.mxu0 0
        %7622 = vmatpush1.bf16.msra.mxu0 0
        %7623 = vmatprep.subr.bf16.mxu0 0
        %7624 = vmatpush1.bf16.msra.mxu0 0
        %7625 = vmatprep.subr.bf16.mxu0 0
        %7626 = vmatpush1.bf16.msra.mxu0 0
        %7627 = vmatprep.subr.bf16.mxu0 0
        %7628 = vmatpush1.bf16.msra.mxu0 0
        %7629 = vmatprep.subr.bf16.mxu0 0
        %7630 = vmatpush1.bf16.msra.mxu0 0
        %7631 = vmatprep.subr.bf16.mxu0 0
        %7632 = vmatpush1.bf16.msra.mxu0 0
        %7633 = vmatprep.subr.bf16.mxu0 0
        %7634 = vmatpush1.bf16.msra.mxu0 0
        %7635 = vmatprep.subr.bf16.mxu0 0
        %7636 = vmatpush1.bf16.msra.mxu0 0
        %7637 = vmatprep.subr.bf16.mxu0 0
        %7638 = vmatpush1.bf16.msra.mxu0 0
        %7639 = vmatprep.mubr.bf16.mxu0 0
        %7640 = vmatmul.mubr.bf16.gmra.mrb[0].mxu0 %v7399
        %v7641 = vpop.f32.mrb[0].mxu0
        %v7642 = vadd.f32 %v7481, %v7641
        %v7643 = vpop.f32.mrb[0].mxu0
        %v7644 = vpop.f32.mrb[0].mxu0
        %v7645 = vadd.f32 %v7484, %v7644
        %v7646 = vpop.f32.mrb[0].mxu0
        %7647 = vmatprep.mubr.bf16.mxu0 0
        %7648 = vmatmul.mubr.bf16.gmra.mrb[0].mxu0 %v7402
        %v7649 = vpop.f32.mrb[0].mxu0
        %v7650 = vadd.f32 %v7489, %v7649
        %v7651 = vpop.f32.mrb[0].mxu0
        %v7652 = vpop.f32.mrb[0].mxu0
        %v7653 = vadd.f32 %v7492, %v7652
        %v7654 = vpop.f32.mrb[0].mxu0
        %7655 = vmatprep.mubr.bf16.mxu0 0
        %7656 = vmatmul.mubr.bf16.gmra.mrb[0].mxu0 %v7405
        %v7657 = vpop.f32.mrb[0].mxu0
        %v7658 = vadd.f32 %v7497, %v7657
        %v7659 = vpop.f32.mrb[0].mxu0
        %v7660 = vpop.f32.mrb[0].mxu0
        %v7661 = vadd.f32 %v7500, %v7660
        %v7662 = vpop.f32.mrb[0].mxu0
        %7663 = vmatprep.mubr.bf16.mxu0 0
        %7664 = vmatmul.mubr.bf16.gmra.mrb[0].mxu0 %v7408
        %v7665 = vpop.f32.mrb[0].mxu0
        %v7666 = vadd.f32 %v7505, %v7665
        %v7667 = vpop.f32.mrb[0].mxu0
        %v7668 = vpop.f32.mrb[0].mxu0
        %v7669 = vadd.f32 %v7508, %v7668
        %v7670 = vpop.f32.mrb[0].mxu0
        %7671 = vmatprep.mubr.bf16.mxu0 0
        %7672 = vmatmul.mubr.bf16.gmra.mrb[0].mxu0 %v7411
        %v7673 = vpop.f32.mrb[0].mxu0
        %v7674 = vadd.f32 %v7513, %v7673
        %v7675 = vpop.f32.mrb[0].mxu0
        %v7676 = vpop.f32.mrb[0].mxu0
        %v7677 = vadd.f32 %v7516, %v7676
        %v7678 = vpop.f32.mrb[0].mxu0
        %7679 = vmatprep.mubr.bf16.mxu0 0
        %7680 = vmatmul.mubr.bf16.gmra.mrb[0].mxu0 %v7414
        %v7681 = vpop.f32.mrb[0].mxu0
        %v7682 = vadd.f32 %v7521, %v7681
        %v7683 = vpop.f32.mrb[0].mxu0
        %v7684 = vpop.f32.mrb[0].mxu0
        %v7685 = vadd.f32 %v7524, %v7684
        %v7686 = vpop.f32.mrb[0].mxu0
        %7687 = vmatprep.mubr.bf16.mxu0 0
        %7688 = vmatmul.mubr.bf16.gmra.mrb[0].mxu0 %v7417
        %v7689 = vpop.f32.mrb[0].mxu0
        %v7690 = vadd.f32 %v7529, %v7689
        %v7691 = vpop.f32.mrb[0].mxu0
        %v7692 = vpop.f32.mrb[0].mxu0
        %v7693 = vadd.f32 %v7532, %v7692
        %v7694 = vpop.f32.mrb[0].mxu0
        %7695 = vmatprep.mubr.bf16.mxu0 0
        %7696 = vmatmul.mubr.bf16.gmra.mrb[0].mxu0 %v7420
        %v7697 = vpop.f32.mrb[0].mxu0
        %v7698 = vadd.f32 %v7537, %v7697
        %v7699 = vpop.f32.mrb[0].mxu0
        %v7700 = vpop.f32.mrb[0].mxu0
        %v7701 = vadd.f32 %v7540, %v7700
        %v7702 = vpop.f32.mrb[0].mxu0
        %7703 = vmatprep.mubr.bf16.mxu0 0
        %7704 = vmatmul.mubr.bf16.gmra.mrb[0].mxu0 %v7423
        %v7705 = vpop.f32.mrb[0].mxu0
        %v7706 = vadd.f32 %v7545, %v7705
        %v7707 = vpop.f32.mrb[0].mxu0
        %v7708 = vpop.f32.mrb[0].mxu0
        %v7709 = vadd.f32 %v7548, %v7708
        %v7710 = vpop.f32.mrb[0].mxu0
        %7711 = vmatprep.mubr.bf16.mxu0 0
        %7712 = vmatmul.mubr.bf16.gmra.mrb[0].mxu0 %v7426
        %v7713 = vpop.f32.mrb[0].mxu0
        %v7714 = vadd.f32 %v7553, %v7713
        %v7715 = vpop.f32.mrb[0].mxu0
        %v7716 = vpop.f32.mrb[0].mxu0
        %v7717 = vadd.f32 %v7556, %v7716
        %v7718 = vpop.f32.mrb[0].mxu0
        %7719 = vmatprep.mubr.bf16.mxu0 0
        %7720 = vmatmul.mubr.bf16.gmra.mrb[0].mxu0 %v7429
        %v7721 = vpop.f32.mrb[0].mxu0
        %v7722 = vadd.f32 %v7561, %v7721
        %v7723 = vpop.f32.mrb[0].mxu0
        %v7724 = vpop.f32.mrb[0].mxu0
        %v7725 = vadd.f32 %v7564, %v7724
        %v7726 = vpop.f32.mrb[0].mxu0
        %7727 = vmatprep.mubr.bf16.mxu0 0
        %7728 = vmatmul.mubr.bf16.gmra.mrb[0].mxu0 %v7432
        %v7729 = vpop.f32.mrb[0].mxu0
        %v7730 = vadd.f32 %v7569, %v7729
        %v7731 = vpop.f32.mrb[0].mxu0
        %v7732 = vpop.f32.mrb[0].mxu0
        %v7733 = vadd.f32 %v7572, %v7732
        %v7734 = vpop.f32.mrb[0].mxu0
        %7735 = vmatprep.mubr.bf16.mxu0 0
        %7736 = vmatmul.mubr.bf16.gmra.mrb[0].mxu0 %v7435
        %v7737 = vpop.f32.mrb[0].mxu0
        %v7738 = vadd.f32 %v7577, %v7737
        %v7739 = vpop.f32.mrb[0].mxu0
        %v7740 = vpop.f32.mrb[0].mxu0
        %v7741 = vadd.f32 %v7580, %v7740
        %v7742 = vpop.f32.mrb[0].mxu0
        %7743 = vmatprep.mubr.bf16.mxu0 0
        %7744 = vmatmul.mubr.bf16.gmra.mrb[0].mxu0 %v7438
        %v7745 = vpop.f32.mrb[0].mxu0
        %v7746 = vadd.f32 %v7585, %v7745
        %v7747 = vpop.f32.mrb[0].mxu0
        %v7748 = vpop.f32.mrb[0].mxu0
        %v7749 = vadd.f32 %v7588, %v7748
        %v7750 = vpop.f32.mrb[0].mxu0
        %7751 = vmatprep.mubr.bf16.mxu0 0
        %7752 = vmatmul.mubr.bf16.gmra.mrb[0].mxu0 %v7441
        %v7753 = vpop.f32.mrb[0].mxu0
        %v7754 = vadd.f32 %v7593, %v7753
        %v7755 = vpop.f32.mrb[0].mxu0
        %v7756 = vpop.f32.mrb[0].mxu0
        %v7757 = vadd.f32 %v7596, %v7756
        %v7758 = vpop.f32.mrb[0].mxu0
        %7759 = vmatprep.mubr.bf16.mxu0 0
        %7760 = vmatmul.mubr.bf16.gmra.mrb[0].mxu0 %v7444
        %v7761 = vpop.f32.mrb[0].mxu0
        %v7762 = vadd.f32 %v7601, %v7761
        %v7763 = vpop.f32.mrb[0].mxu0
        %v7764 = vpop.f32.mrb[0].mxu0
        %v7765 = vadd.f32 %v7604, %v7764
        %v7766 = vpop.f32.mrb[0].mxu0
        %7767 = vdwg.mxu0
        %v7768 = vadd.f32 %v7152, %v7642
        %v7769 = vadd.f32 %v7153, %v7645
        %v7770 = vadd.f32 %v7154, %v7650
        %v7771 = vadd.f32 %v7155, %v7653
        %v7772 = vadd.f32 %v7156, %v7658
        %v7773 = vadd.f32 %v7157, %v7661
        %v7774 = vadd.f32 %v7158, %v7666
        %v7775 = vadd.f32 %v7159, %v7669
        %v7776 = vadd.f32 %v7160, %v7674
        %v7777 = vadd.f32 %v7161, %v7677
        %v7778 = vadd.f32 %v7162, %v7682
        %v7779 = vadd.f32 %v7163, %v7685
        %v7780 = vadd.f32 %v7164, %v7690
        %v7781 = vadd.f32 %v7165, %v7693
        %v7782 = vadd.f32 %v7166, %v7698
        %v7783 = vadd.f32 %v7167, %v7701
        %v7784 = vadd.f32 %v7168, %v7706
        %v7785 = vadd.f32 %v7169, %v7709
        %v7786 = vadd.f32 %v7170, %v7714
        %v7787 = vadd.f32 %v7171, %v7717
        %v7788 = vadd.f32 %v7172, %v7722
        %v7789 = vadd.f32 %v7173, %v7725
        %v7790 = vadd.f32 %v7174, %v7730
        %v7791 = vadd.f32 %v7175, %v7733
        %v7792 = vadd.f32 %v7176, %v7738
        %v7793 = vadd.f32 %v7177, %v7741
        %v7794 = vadd.f32 %v7178, %v7746
        %v7795 = vadd.f32 %v7179, %v7749
        %v7796 = vadd.f32 %v7180, %v7754
        %v7797 = vadd.f32 %v7181, %v7757
        %v7798 = vadd.f32 %v7182, %v7762
        %v7799 = vadd.f32 %v7183, %v7765
        %s7800 = smul.u32 %s4784, 32
        %s7801 = scalar_lea.vmem %s143, %s7800
        %7802 = vst.msk [vmem:[%s7801] sm:$0xff] %vm954, %v7768
        %7803 = vst.msk [vmem:[%s7801 + $0x8] sm:$0xff] %vm954, %v7769
        %7804 = vst.msk [vmem:[%s7801 + $0x10] sm:$0xff] %vm954, %v7770
        %7805 = vst.msk [vmem:[%s7801 + $0x18] sm:$0xff] %vm954, %v7771
        %7806 = vst.msk [vmem:[%s7801 + $0x20] sm:$0xff] %vm954, %v7772
        %7807 = vst.msk [vmem:[%s7801 + $0x28] sm:$0xff] %vm954, %v7773
        %7808 = vst.msk [vmem:[%s7801 + $0x30] sm:$0xff] %vm954, %v7774
        %7809 = vst.msk [vmem:[%s7801 + $0x38] sm:$0xff] %vm954, %v7775
        %7810 = vst.msk [vmem:[%s7801 + $0x40] sm:$0xff] %vm954, %v7776
        %7811 = vst.msk [vmem:[%s7801 + $0x48] sm:$0xff] %vm954, %v7777
        %7812 = vst.msk [vmem:[%s7801 + $0x50] sm:$0xff] %vm954, %v7778
        %7813 = vst.msk [vmem:[%s7801 + $0x58] sm:$0xff] %vm954, %v7779
        %7814 = vst.msk [vmem:[%s7801 + $0x60] sm:$0xff] %vm954, %v7780
        %7815 = vst.msk [vmem:[%s7801 + $0x68] sm:$0xff] %vm954, %v7781
        %7816 = vst.msk [vmem:[%s7801 + $0x70] sm:$0xff] %vm954, %v7782
        %7817 = vst.msk [vmem:[%s7801 + $0x78] sm:$0xff] %vm954, %v7783
        %7818 = vst.msk [vmem:[%s7801 + $0x80] sm:$0xff] %vm954, %v7784
        %7819 = vst.msk [vmem:[%s7801 + $0x88] sm:$0xff] %vm954, %v7785
        %7820 = vst.msk [vmem:[%s7801 + $0x90] sm:$0xff] %vm954, %v7786
        %7821 = vst.msk [vmem:[%s7801 + $0x98] sm:$0xff] %vm954, %v7787
        %7822 = vst.msk [vmem:[%s7801 + $0xa0] sm:$0xff] %vm954, %v7788
        %7823 = vst.msk [vmem:[%s7801 + $0xa8] sm:$0xff] %vm954, %v7789
        %7824 = vst.msk [vmem:[%s7801 + $0xb0] sm:$0xff] %vm954, %v7790
        %7825 = vst.msk [vmem:[%s7801 + $0xb8] sm:$0xff] %vm954, %v7791
        %7826 = vst.msk [vmem:[%s7801 + $0xc0] sm:$0xff] %vm954, %v7792
        %7827 = vst.msk [vmem:[%s7801 + $0xc8] sm:$0xff] %vm954, %v7793
        %7828 = vst.msk [vmem:[%s7801 + $0xd0] sm:$0xff] %vm954, %v7794
        %7829 = vst.msk [vmem:[%s7801 + $0xd8] sm:$0xff] %vm954, %v7795
        %7830 = vst.msk [vmem:[%s7801 + $0xe0] sm:$0xff] %vm954, %v7796
        %7831 = vst.msk [vmem:[%s7801 + $0xe8] sm:$0xff] %vm954, %v7797
        %7832 = vst.msk [vmem:[%s7801 + $0xf0] sm:$0xff] %vm954, %v7798
        %7833 = vst.msk [vmem:[%s7801 + $0xf8] sm:$0xff] %vm954, %v7799
      $region54: #{sr_model_forward.1} parent=27 // loop_footer
        %s4783 = sadd.s32 1, %s4779
      $region55: #{sr_model_forward.1} parent=27 // loop_footer_branch
        %4778 = sbr.rel target = $region51
      $region56: #{sr_model_forward.1} parent=27 // loop_exit
        _
      %p7834 = scmp.lt.s32.totalorder %s13, 1
      %s7835 = scalar_select %p7834, %s13, 1
      %s7836 = smul.addr %s7835, 128
      %s7837 = smul.addr %s7836, 8
      %s7838 = scalar_lea.vmem %s2, %s7837
      // Predicated region
      $region57: #{sr_model_forward.1} parent=27 // pred_check
        %p7839 = pneg %p78
      $region58: #{sr_model_forward.1} parent=27 // pred_check_branch
        %7841 = sbr.rel (%p7839) target = $region60
      $region59: #{sr_model_forward.1} parent=27 // pred_region
        _
      $region60: #{sr_model_forward.1} parent=27 // pred_fallthru
        _
    $region28: #{sr_model_forward.1} parent=5 // pred_fallthru
      _
    %p7842 = scmp.le.s32.totalorder 2, %s8
    // Predicated region
    $region61: #{sr_model_forward.1} parent=5 // pred_check
      %p7843 = pneg %p7842
    $region62: #{sr_model_forward.1} parent=5 // pred_check_branch
      %7845 = sbr.rel (%p7843) target = $region64
    $region63: #{sr_model_forward.1} parent=5 // pred_region
      %s7846 = ssub.s32 %s8, 2
      // Predicated region
      $region65: #{sr_model_forward.1} parent=63 // pred_check
        %p7847 = pneg %p84
      $region66: #{sr_model_forward.1} parent=63 // pred_check_branch
        %7849 = sbr.rel (%p7847) target = $region68
      $region67: #{sr_model_forward.1} parent=63 // pred_region
        %p7850 = scmp.lt.s32.totalorder %s14, 1
        %s7851 = scalar_select %p7850, %s14, 1
        %s7852 = smul.addr %s7851, 128
        %s7853 = smul.addr %s7852, 8
        %s7854 = scalar_lea.vmem %s2, %s7853
      $region68: #{sr_model_forward.1} parent=63 // pred_fallthru
        _
    $region64: #{sr_model_forward.1} parent=5 // pred_fallthru
      _
  $region6: #{sr_model_forward.1} parent=0 // loop_footer
    %s12 = sadd.s32 1, %s8
  $region7: #{sr_model_forward.1} parent=0 // loop_footer_branch
    %7 = sbr.rel target = $region3
  $region8: #{sr_model_forward.1} parent=0 // loop_exit
    _

</llo_original>
